<compile_context>
chip_gen: v5e
topology: v5e:2x2
jax: 0.10.0
libtpu: 0.0.40
codegen_flags: <defaults>
</compile_context>

<pallas_src>
import functools

import jax
import jax.numpy as jnp
from jax.experimental import pallas as pl
from jax.experimental.pallas import tpu as pltpu

BN_EPS = 1e-5
C_PAD = 128     # conv/fc channels zero-padded 64 -> 128 for lane-dense stores


# ---------------------------------------------------------------------------
# Pallas kernels
# ---------------------------------------------------------------------------
def matmul_kernel(x_ref, w_ref, o_ref):
    """bf16 (tm, tk) @ (tk, C) matmul, accumulated into the resident f32
    output block across the (innermost) K grid axis -- no scratch needed."""
    @pl.when(pl.program_id(1) == 0)
    def _():
        o_ref[...] = jnp.zeros_like(o_ref)

    o_ref[...] += jnp.dot(x_ref[...], w_ref[...],
                          preferred_element_type=jnp.float32)


def conv1_partial(patches, w, *, tm=None, tk=None):
    """One half of the layer1 conv (query half or train half) as an
    im2col matmul.  patches: (M, K) bf16, w: (K, 128) bf16 -> (M, 128) f32."""
    M, K = patches.shape
    Kw, C = w.shape
    assert K == Kw
    tm = M if tm is None else tm          # demo shapes: single M / K step
    tk = K if tk is None else tk
    assert M % tm == 0 and K % tk == 0
    grid = (M // tm, K // tk)
    return pl.pallas_call(
        matmul_kernel,
        out_shape=jax.ShapeDtypeStruct((M, C), jnp.float32),
        grid_spec=pltpu.PrefetchScalarGridSpec(
            num_scalar_prefetch=0,
            grid=grid,
            in_specs=[
                pl.BlockSpec((tm, tk), lambda i, k: (i, k)),   # im2col rows
                pl.BlockSpec((tk, C), lambda i, k: (k, 0)),    # weight slab
            ],
            out_specs=pl.BlockSpec((tm, C), lambda i, k: (i, 0)),
        ),
        compiler_params=pltpu.CompilerParams(
            dimension_semantics=("parallel", "arbitrary")),
    )(patches, w)


def pair_bn_relu_kernel(aq_ref, at_ref, b_ref, g_ref, be_ref, o_ref):
    """Combine per-query / per-train partial conv results into all T*Q
    relation pairs, add the conv bias, apply training-mode BatchNorm2d
    (biased stats over all T*Q*49 rows) and ReLU.  bf16 output feeds the
    layer2 bf16 matmul."""
    aq = aq_ref[...]                                  # (Q, 49, 128) f32
    at = at_ref[...]                                  # (T, 49, 128) f32
    y = aq[None] + at[:, None] + b_ref[...]           # (T, Q, 49, 128)

    t, q, p, _ = y.shape
    inv_n = 1.0 / float(t * q * p)
    mean = jnp.sum(jnp.sum(jnp.sum(y, axis=0), axis=0), axis=0,
                   keepdims=True) * inv_n             # (1, 128)
    d = y - mean
    var = jnp.sum(jnp.sum(jnp.sum(d * d, axis=0), axis=0), axis=0,
                  keepdims=True) * inv_n              # (1, 128)
    yn = d * jax.lax.rsqrt(var + BN_EPS) * g_ref[...] + be_ref[...]
    o_ref[...] = jnp.maximum(yn, 0.0).astype(o_ref.dtype)


def pair_bn_relu(aq, at, b, g, be):
    t_n, q_n = at.shape[0], aq.shape[0]
    p, c = aq.shape[1], aq.shape[2]
    vmem = functools.partial(pl.BlockSpec, memory_space=pltpu.MemorySpace.VMEM)
    return pl.pallas_call(
        pair_bn_relu_kernel,
        out_shape=jax.ShapeDtypeStruct((t_n, q_n, p, c), jnp.bfloat16),
        in_specs=[vmem() for _ in range(5)],
        out_specs=vmem(),
    )(aq, at, b, g, be)


def layer2_head_kernel(p2_ref, w2_ref, b2_ref, g2_ref, be2_ref,
                       w3_ref, b3_ref, w4_ref, b4_ref, o_ref, *, n_pairs):
    """Fused layer2 conv + BN + ReLU + 2x2 maxpool + fc1 + ReLU + fc2 +
    sigmoid.  p2 rows are position-major (row = p*N + n, p = h*3 + w)."""
    y = jnp.dot(p2_ref[...], w2_ref[...],
                preferred_element_type=jnp.float32) + b2_ref[...]   # (9N, 128)

    # BatchNorm2d (training-mode batch stats over all N*3*3 rows) + ReLU.
    mean = jnp.mean(y, axis=0, keepdims=True)
    d = y - mean
    var = jnp.mean(d * d, axis=0, keepdims=True)
    yn = d * jax.lax.rsqrt(var + BN_EPS) * g2_ref[...] + be2_ref[...]
    yn = jnp.maximum(yn, 0.0)

    # MaxPool2d(2) on the 3x3 grid keeps positions (h, w) in {0,1}x{0,1},
    # i.e. p in {0, 1, 3, 4}: each is a contiguous N-row block.
    n = n_pairs
    pooled = jnp.maximum(jnp.maximum(yn[0 * n:1 * n], yn[1 * n:2 * n]),
                         jnp.maximum(yn[3 * n:4 * n], yn[4 * n:5 * n]))  # (N,128)

    # fc1 -> ReLU -> fc2 -> sigmoid (weights zero-padded to 128 lanes).
    h = jnp.dot(pooled, w3_ref[...],
                preferred_element_type=jnp.float32) + b3_ref[...]
    h = jnp.maximum(h, 0.0)
    z = jnp.dot(h, w4_ref[...],
                preferred_element_type=jnp.float32) + b4_ref[...]
    o_ref[...] = 1.0 / (1.0 + jnp.exp(-z))


def layer2_head(p2, w2, b2, g2, be2, w3, b3, w4, b4, *, n_pairs):
    vmem = functools.partial(pl.BlockSpec, memory_space=pltpu.MemorySpace.VMEM)
    return pl.pallas_call(
        functools.partial(layer2_head_kernel, n_pairs=n_pairs),
        out_shape=jax.ShapeDtypeStruct((n_pairs, C_PAD), jnp.float32),
        in_specs=[vmem() for _ in range(9)],
        out_specs=vmem(),
    )(p2, w2, b2, g2, be2, w3, b3, w4, b4)


# ---------------------------------------------------------------------------
# Plain-JAX glue (im2col, maxpool, parameter preparation)
# ---------------------------------------------------------------------------
def im2col_3x3_pad1(x):
    """(N, H, W, C) -> (N*H*W, 9*C); columns ordered (kh, kw, c_in)."""
    n, h, w, c = x.shape
    xp = jnp.pad(x, ((0, 0), (1, 1), (1, 1), (0, 0)))
    cols = [xp[:, kh:kh + h, kw:kw + w, :]
            for kh in range(3) for kw in range(3)]
    patches = jnp.concatenate(cols, axis=-1)              # (N, H, W, 9C)
    return patches.reshape(n * h * w, 9 * c)


def im2col_3x3_pad1_pos_major(x):
    """(N, H, W, C) -> (H*W*N, 9*C) with rows ordered (p, n), p = h*W + w,
    so the fused layer2 kernel can pool with contiguous row blocks."""
    n, h, w, c = x.shape
    xp = jnp.pad(x, ((0, 0), (1, 1), (1, 1), (0, 0)))
    cols = [xp[:, kh:kh + h, kw:kw + w, :]
            for kh in range(3) for kw in range(3)]
    patches = jnp.concatenate(cols, axis=-1)              # (N, H, W, 9C)
    patches = jnp.transpose(patches, (1, 2, 0, 3))        # (H, W, N, 9C)
    return patches.reshape(h * w * n, 9 * c)


def maxpool2x2(x):
    """nn.MaxPool2d(2) (kernel=2, stride=2, floor) on NHWC."""
    n, h, w, c = x.shape
    ho, wo = h // 2, w // 2
    x = x[:, :ho * 2, :wo * 2, :]
    return x.reshape(n, ho, 2, wo, 2, c).max(axis=(2, 4))


def init_params(key):
    ks = jax.random.split(key, 8)

    def nrm(k, shape, scale):
        return scale * jax.random.normal(k, shape, jnp.float32)

    p = {}
    # layer1: Conv2d(1024, 64, 3, padding=1) [HWIO] + BN(64)
    p["w1"] = nrm(ks[0], (3, 3, 1024, 64), 0.02)
    p["b1"] = nrm(ks[1], (64,), 0.02)
    p["g1"] = jnp.ones((64,), jnp.float32)
    p["be1"] = jnp.zeros((64,), jnp.float32)
    # layer2: Conv2d(64, 64, 3, padding=1) + BN(64)
    p["w2"] = nrm(ks[2], (3, 3, 64, 64), 0.05)
    p["b2"] = nrm(ks[3], (64,), 0.05)
    p["g2"] = jnp.ones((64,), jnp.float32)
    p["be2"] = jnp.zeros((64,), jnp.float32)
    # fc1: Linear(64, 32), fc2: Linear(32, 1)  (stored as (in, out): x @ W)
    p["fc1_w"] = nrm(ks[4], (64, 32), 0.1)
    p["fc1_b"] = nrm(ks[5], (32,), 0.1)
    p["fc2_w"] = nrm(ks[6], (32, 1), 0.1)
    p["fc2_b"] = nrm(ks[7], (1,), 0.1)
    return p


def _pad_lanes(v, width=C_PAD):
    """(F,) vector -> (1, width) row with zero padding."""
    return jnp.pad(v[None, :], ((0, 0), (0, width - v.shape[0])))


def prepare_params(p):
    """Split / zero-pad / flatten / cast natural-shaped parameters into the
    kernel layout: 64 -> 128 channel padding (gamma = beta = 0 on pad
    channels so they stay exactly zero), bf16 conv weights, 128x128 fc."""
    q = {}
    # layer1 weight: pad c_out to 128, split into query / train channel halves.
    w1 = jnp.pad(p["w1"], ((0, 0), (0, 0), (0, 0), (0, C_PAD - 64)))
    q["w1_q"] = w1[:, :, :512, :].reshape(9 * 512, C_PAD).astype(jnp.bfloat16)
    q["w1_t"] = w1[:, :, 512:, :].reshape(9 * 512, C_PAD).astype(jnp.bfloat16)
    q["b1"] = _pad_lanes(p["b1"])
    q["g1"] = _pad_lanes(p["g1"])
    q["be1"] = _pad_lanes(p["be1"])
    # layer2 weight: pad c_in (pad activation channels are exactly 0) and c_out.
    w2 = jnp.pad(p["w2"], ((0, 0), (0, 0), (0, C_PAD - 64), (0, C_PAD - 64)))
    q["w2"] = w2.reshape(9 * C_PAD, C_PAD).astype(jnp.bfloat16)
    q["b2"] = _pad_lanes(p["b2"])
    q["g2"] = _pad_lanes(p["g2"])
    q["be2"] = _pad_lanes(p["be2"])
    # fc weights zero-padded to 128x128 so matmuls/stores are lane-dense.
    q["fc1_w"] = jnp.zeros((C_PAD, C_PAD), jnp.float32).at[:64, :32].set(p["fc1_w"])
    q["fc1_b"] = _pad_lanes(p["fc1_b"])
    q["fc2_w"] = jnp.zeros((C_PAD, C_PAD), jnp.float32).at[:32, :1].set(p["fc2_w"])
    q["fc2_b"] = _pad_lanes(p["fc2_b"])
    return q


# ---------------------------------------------------------------------------
# Forward pass
# ---------------------------------------------------------------------------
def relation_network_forward(params, query, train):
    """query: (Q, 7, 7, 512), train: (T, 7, 7, 512) (NHWC) -> (T*Q, 1).
    Pair ordering matches torch: output row t*Q + q = pair(query[q], train[t])."""
    q_n, t_n = query.shape[0], train.shape[0]
    n = t_n * q_n

    # layer1 partial convs: O(T+Q) bf16 im2col matmuls (linearity trick).
    pq = im2col_3x3_pad1(query).astype(jnp.bfloat16)       # (Q*49, 4608)
    pt = im2col_3x3_pad1(train).astype(jnp.bfloat16)       # (T*49, 4608)
    aq = conv1_partial(pq, params["w1_q"]).reshape(q_n, 49, C_PAD)
    at = conv1_partial(pt, params["w1_t"]).reshape(t_n, 49, C_PAD)

    # pair combine + BN + ReLU (Pallas), then 7x7 -> 3x3 maxpool (glue).
    h1 = pair_bn_relu(aq, at, params["b1"], params["g1"], params["be1"])
    h1 = h1.reshape(n, 7, 7, C_PAD)
    h1 = maxpool2x2(h1)                                    # (N, 3, 3, 128) bf16

    # fused layer2 conv + BN + ReLU + pool + fc head (Pallas).
    p2 = im2col_3x3_pad1_pos_major(h1)                     # (9N, 1152) bf16
    out = layer2_head(p2, params["w2"], params["b2"], params["g2"],
                      params["be2"], params["fc1_w"], params["fc1_b"],
                      params["fc2_w"], params["fc2_b"], n_pairs=n)  # (N, 128)
    return out[:, :1]                                      # (N, 1)


if __name__ == "__main__":
    key = jax.random.PRNGKey(0)
    k_q, k_t, k_p = jax.random.split(key, 3)

    # The module hard-codes 512-channel 7x7 features per sample.
    Q, T = 2, 3
    query_samples = jax.random.normal(k_q, (Q, 7, 7, 512), jnp.float32)  # NHWC
    train_samples = jax.random.normal(k_t, (T, 7, 7, 512), jnp.float32)  # NHWC
    params = prepare_params(init_params(k_p))

    fwd = jax.jit(relation_network_forward)
    out = fwd(params, query_samples, train_samples)
    out = jax.block_until_ready(out)

    assert out.shape == (T * Q, 1), out.shape
    assert bool(jnp.all(jnp.isfinite(out)))
    assert bool(jnp.all((out >= 0.0) & (out <= 1.0)))
    print("KERNEL_OK")
</pallas_src>

<mosaic_0001>
module attributes {stable_mosaic.version = 11 : i64} {
  func.func @matmul_kernel(%arg0: i32, %arg1: i32, %arg2: memref<147x4608xbf16, #tpu.memory_space<vmem>>, %arg3: memref<4608x128xbf16, #tpu.memory_space<vmem>>, %arg4: memref<147x128xf32, #tpu.memory_space<vmem>>) attributes {dimension_semantics = [#tpu.dimension_semantics<parallel>, #tpu.dimension_semantics<arbitrary>], iteration_bounds = array<i64: 1, 1>, scalar_prefetch = 0 : i64, scratch_operands = 0 : i64, tpu.core_type = #tpu.core_type<tc>, window_params = [{transform_indices = @transform_0, window_bounds = array<i64: 147, 4608>}, {transform_indices = @transform_1, window_bounds = array<i64: 4608, 128>}, {transform_indices = @transform_2, window_bounds = array<i64: 147, 128>}]} {
    %c0_i32 = arith.constant 0 : i32
    %0 = arith.cmpi eq, %arg1, %c0_i32 : i32
    %1 = arith.extui %0 : i1 to i32
    %c0_i32_0 = arith.constant 0 : i32
    %2 = arith.cmpi ne, %1, %c0_i32_0 : i32
    scf.if %2 {
      %cst_8 = arith.constant 0.000000e+00 : f32
      %9 = vector.broadcast %cst_8 : f32 to vector<147x128xf32>
      %c0_9 = arith.constant 0 : index
      %c0_10 = arith.constant 0 : index
      %10 = vector.load %arg4[%c0_9, %c0_10] : memref<147x128xf32, #tpu.memory_space<vmem>>, vector<147x128xf32>
      tpu.vector_store %arg4[%c0_9, %c0_10], %9 {strides = array<i32>} : memref<147x128xf32, #tpu.memory_space<vmem>>, vector<147x128xf32>,
    } else {
    }
    %c0 = arith.constant 0 : index
    %c0_1 = arith.constant 0 : index
    %3 = vector.load %arg4[%c0, %c0_1] : memref<147x128xf32, #tpu.memory_space<vmem>>, vector<147x128xf32>
    %c0_2 = arith.constant 0 : index
    %c0_3 = arith.constant 0 : index
    %4 = vector.load %arg2[%c0_2, %c0_3] : memref<147x4608xbf16, #tpu.memory_space<vmem>>, vector<147x4608xbf16>
    %c0_4 = arith.constant 0 : index
    %c0_5 = arith.constant 0 : index
    %5 = vector.load %arg3[%c0_4, %c0_5] : memref<4608x128xbf16, #tpu.memory_space<vmem>>, vector<4608x128xbf16>
    %cst = arith.constant dense<0.000000e+00> : vector<147x128xf32>
    %6 = tpu.matmul %4, %5, %cst {dimension_numbers = #tpu.dot_dimension_numbers<[1], [0], [0], [1], [0, 0, 1, 1], [], []>} : vector<147x4608xbf16>, vector<4608x128xbf16>, vector<147x128xf32> -> vector<147x128xf32>
    %7 = arith.addf %3, %6 : vector<147x128xf32>
    %c0_6 = arith.constant 0 : index
    %c0_7 = arith.constant 0 : index
    %8 = vector.load %arg4[%c0_6, %c0_7] : memref<147x128xf32, #tpu.memory_space<vmem>>, vector<147x128xf32>
    tpu.vector_store %arg4[%c0_6, %c0_7], %7 {strides = array<i32>} : memref<147x128xf32, #tpu.memory_space<vmem>>, vector<147x128xf32>,
    return
  }
  func.func @transform_0(%arg0: i32, %arg1: i32) -> (i32, i32) {
    %c0_i32 = arith.constant 0 : i32
    return %arg0, %arg1 : i32, i32
  }
  func.func @transform_1(%arg0: i32, %arg1: i32) -> (i32, i32) {
    %c0_i32 = arith.constant 0 : i32
    %c0_i32_0 = arith.constant 0 : i32
    return %arg1, %c0_i32 : i32, i32
  }
  func.func @transform_2(%arg0: i32, %arg1: i32) -> (i32, i32) {
    %c0_i32 = arith.constant 0 : i32
    %c0_i32_0 = arith.constant 0 : i32
    return %arg0, %c0_i32 : i32, i32
  }
}

module attributes {stable_mosaic.version = 11 : i64} {
  func.func @matmul_kernel(%arg0: i32, %arg1: i32, %arg2: memref<98x4608xbf16, #tpu.memory_space<vmem>>, %arg3: memref<4608x128xbf16, #tpu.memory_space<vmem>>, %arg4: memref<98x128xf32, #tpu.memory_space<vmem>>) attributes {dimension_semantics = [#tpu.dimension_semantics<parallel>, #tpu.dimension_semantics<arbitrary>], iteration_bounds = array<i64: 1, 1>, scalar_prefetch = 0 : i64, scratch_operands = 0 : i64, tpu.core_type = #tpu.core_type<tc>, window_params = [{transform_indices = @transform_0, window_bounds = array<i64: 98, 4608>}, {transform_indices = @transform_1, window_bounds = array<i64: 4608, 128>}, {transform_indices = @transform_2, window_bounds = array<i64: 98, 128>}]} {
    %c0_i32 = arith.constant 0 : i32
    %0 = arith.cmpi eq, %arg1, %c0_i32 : i32
    %1 = arith.extui %0 : i1 to i32
    %c0_i32_0 = arith.constant 0 : i32
    %2 = arith.cmpi ne, %1, %c0_i32_0 : i32
    scf.if %2 {
      %cst_8 = arith.constant 0.000000e+00 : f32
      %9 = vector.broadcast %cst_8 : f32 to vector<98x128xf32>
      %c0_9 = arith.constant 0 : index
      %c0_10 = arith.constant 0 : index
      %10 = vector.load %arg4[%c0_9, %c0_10] : memref<98x128xf32, #tpu.memory_space<vmem>>, vector<98x128xf32>
      tpu.vector_store %arg4[%c0_9, %c0_10], %9 {strides = array<i32>} : memref<98x128xf32, #tpu.memory_space<vmem>>, vector<98x128xf32>,
    } else {
    }
    %c0 = arith.constant 0 : index
    %c0_1 = arith.constant 0 : index
    %3 = vector.load %arg4[%c0, %c0_1] : memref<98x128xf32, #tpu.memory_space<vmem>>, vector<98x128xf32>
    %c0_2 = arith.constant 0 : index
    %c0_3 = arith.constant 0 : index
    %4 = vector.load %arg2[%c0_2, %c0_3] : memref<98x4608xbf16, #tpu.memory_space<vmem>>, vector<98x4608xbf16>
    %c0_4 = arith.constant 0 : index
    %c0_5 = arith.constant 0 : index
    %5 = vector.load %arg3[%c0_4, %c0_5] : memref<4608x128xbf16, #tpu.memory_space<vmem>>, vector<4608x128xbf16>
    %cst = arith.constant dense<0.000000e+00> : vector<98x128xf32>
    %6 = tpu.matmul %4, %5, %cst {dimension_numbers = #tpu.dot_dimension_numbers<[1], [0], [0], [1], [0, 0, 1, 1], [], []>} : vector<98x4608xbf16>, vector<4608x128xbf16>, vector<98x128xf32> -> vector<98x128xf32>
    %7 = arith.addf %3, %6 : vector<98x128xf32>
    %c0_6 = arith.constant 0 : index
    %c0_7 = arith.constant 0 : index
    %8 = vector.load %arg4[%c0_6, %c0_7] : memref<98x128xf32, #tpu.memory_space<vmem>>, vector<98x128xf32>
    tpu.vector_store %arg4[%c0_6, %c0_7], %7 {strides = array<i32>} : memref<98x128xf32, #tpu.memory_space<vmem>>, vector<98x128xf32>,
    return
  }
  func.func @transform_0(%arg0: i32, %arg1: i32) -> (i32, i32) {
    %c0_i32 = arith.constant 0 : i32
    return %arg0, %arg1 : i32, i32
  }
  func.func @transform_1(%arg0: i32, %arg1: i32) -> (i32, i32) {
    %c0_i32 = arith.constant 0 : i32
    %c0_i32_0 = arith.constant 0 : i32
    return %arg1, %c0_i32 : i32, i32
  }
  func.func @transform_2(%arg0: i32, %arg1: i32) -> (i32, i32) {
    %c0_i32 = arith.constant 0 : i32
    %c0_i32_0 = arith.constant 0 : i32
    return %arg0, %c0_i32 : i32, i32
  }
}

module attributes {stable_mosaic.version = 11 : i64} {
  func.func @pair_bn_relu_kernel(%arg0: memref<2x49x128xf32, #tpu.memory_space<vmem>>, %arg1: memref<3x49x128xf32, #tpu.memory_space<vmem>>, %arg2: memref<1x128xf32, #tpu.memory_space<vmem>>, %arg3: memref<1x128xf32, #tpu.memory_space<vmem>>, %arg4: memref<1x128xf32, #tpu.memory_space<vmem>>, %arg5: memref<3x2x49x128xbf16, #tpu.memory_space<vmem>>) attributes {dimension_semantics = [], scalar_prefetch = 0 : i64, scratch_operands = 0 : i64, tpu.core_type = #tpu.core_type<tc>} {
    %c0 = arith.constant 0 : index
    %c0_0 = arith.constant 0 : index
    %c0_1 = arith.constant 0 : index
    %0 = vector.load %arg0[%c0, %c0_0, %c0_1] : memref<2x49x128xf32, #tpu.memory_space<vmem>>, vector<2x49x128xf32>
    %c0_2 = arith.constant 0 : index
    %c0_3 = arith.constant 0 : index
    %c0_4 = arith.constant 0 : index
    %1 = vector.load %arg1[%c0_2, %c0_3, %c0_4] : memref<3x49x128xf32, #tpu.memory_space<vmem>>, vector<3x49x128xf32>
    %2 = vector.shape_cast %0 : vector<2x49x128xf32> to vector<1x2x49x128xf32>
    %3 = vector.shape_cast %1 : vector<3x49x128xf32> to vector<3x1x49x128xf32>
    %4 = vector.broadcast %2 : vector<1x2x49x128xf32> to vector<3x2x49x128xf32>
    %5 = vector.broadcast %3 : vector<3x1x49x128xf32> to vector<3x2x49x128xf32>
    %6 = arith.addf %4, %5 : vector<3x2x49x128xf32>
    %c0_5 = arith.constant 0 : index
    %c0_6 = arith.constant 0 : index
    %7 = vector.load %arg2[%c0_5, %c0_6] : memref<1x128xf32, #tpu.memory_space<vmem>>, vector<1x128xf32>
    %8 = vector.shape_cast %7 : vector<1x128xf32> to vector<1x1x1x128xf32>
    %9 = vector.broadcast %8 : vector<1x1x1x128xf32> to vector<3x2x49x128xf32>
    %10 = arith.addf %6, %9 : vector<3x2x49x128xf32>
    %cst = arith.constant dense<0.000000e+00> : vector<2x49x128xf32>
    %11 = vector.multi_reduction <add>, %10, %cst [0] : vector<3x2x49x128xf32> to vector<2x49x128xf32>
    %cst_7 = arith.constant dense<0.000000e+00> : vector<49x128xf32>
    %12 = vector.multi_reduction <add>, %11, %cst_7 [0] : vector<2x49x128xf32> to vector<49x128xf32>
    %cst_8 = arith.constant dense<0.000000e+00> : vector<128xf32>
    %13 = vector.multi_reduction <add>, %12, %cst_8 [0] : vector<49x128xf32> to vector<128xf32>
    %14 = vector.shape_cast %13 : vector<128xf32> to vector<1x128xf32>
    %cst_9 = arith.constant 0.00340136047 : f32
    %15 = vector.broadcast %cst_9 : f32 to vector<1x128xf32>
    %16 = arith.mulf %14, %15 : vector<1x128xf32>
    %17 = vector.shape_cast %16 : vector<1x128xf32> to vector<1x1x1x128xf32>
    %18 = vector.broadcast %17 : vector<1x1x1x128xf32> to vector<3x2x49x128xf32>
    %19 = arith.subf %10, %18 : vector<3x2x49x128xf32>
    %20 = arith.mulf %19, %19 : vector<3x2x49x128xf32>
    %cst_10 = arith.constant dense<0.000000e+00> : vector<2x49x128xf32>
    %21 = vector.multi_reduction <add>, %20, %cst_10 [0] : vector<3x2x49x128xf32> to vector<2x49x128xf32>
    %cst_11 = arith.constant dense<0.000000e+00> : vector<49x128xf32>
    %22 = vector.multi_reduction <add>, %21, %cst_11 [0] : vector<2x49x128xf32> to vector<49x128xf32>
    %cst_12 = arith.constant dense<0.000000e+00> : vector<128xf32>
    %23 = vector.multi_reduction <add>, %22, %cst_12 [0] : vector<49x128xf32> to vector<128xf32>
    %24 = vector.shape_cast %23 : vector<128xf32> to vector<1x128xf32>
    %cst_13 = arith.constant 0.00340136047 : f32
    %25 = vector.broadcast %cst_13 : f32 to vector<1x128xf32>
    %26 = arith.mulf %24, %25 : vector<1x128xf32>
    %cst_14 = arith.constant 9.99999974E-6 : f32
    %27 = vector.broadcast %cst_14 : f32 to vector<1x128xf32>
    %28 = arith.addf %26, %27 : vector<1x128xf32>
    %29 = math.rsqrt %28 : vector<1x128xf32>
    %30 = vector.shape_cast %29 : vector<1x128xf32> to vector<1x1x1x128xf32>
    %31 = vector.broadcast %30 : vector<1x1x1x128xf32> to vector<3x2x49x128xf32>
    %32 = arith.mulf %19, %31 : vector<3x2x49x128xf32>
    %c0_15 = arith.constant 0 : index
    %c0_16 = arith.constant 0 : index
    %33 = vector.load %arg3[%c0_15, %c0_16] : memref<1x128xf32, #tpu.memory_space<vmem>>, vector<1x128xf32>
    %34 = vector.shape_cast %33 : vector<1x128xf32> to vector<1x1x1x128xf32>
    %35 = vector.broadcast %34 : vector<1x1x1x128xf32> to vector<3x2x49x128xf32>
    %36 = arith.mulf %32, %35 : vector<3x2x49x128xf32>
    %c0_17 = arith.constant 0 : index
    %c0_18 = arith.constant 0 : index
    %37 = vector.load %arg4[%c0_17, %c0_18] : memref<1x128xf32, #tpu.memory_space<vmem>>, vector<1x128xf32>
    %38 = vector.shape_cast %37 : vector<1x128xf32> to vector<1x1x1x128xf32>
    %39 = vector.broadcast %38 : vector<1x1x1x128xf32> to vector<3x2x49x128xf32>
    %40 = arith.addf %36, %39 : vector<3x2x49x128xf32>
    %cst_19 = arith.constant 0.000000e+00 : f32
    %41 = vector.broadcast %cst_19 : f32 to vector<3x2x49x128xf32>
    %42 = arith.maximumf %40, %41 : vector<3x2x49x128xf32>
    %43 = arith.truncf %42 : vector<3x2x49x128xf32> to vector<3x2x49x128xbf16>
    %c0_20 = arith.constant 0 : index
    %c0_21 = arith.constant 0 : index
    %c0_22 = arith.constant 0 : index
    %c0_23 = arith.constant 0 : index
    %44 = vector.load %arg5[%c0_20, %c0_21, %c0_22, %c0_23] : memref<3x2x49x128xbf16, #tpu.memory_space<vmem>>, vector<3x2x49x128xbf16>
    tpu.vector_store %arg5[%c0_20, %c0_21, %c0_22, %c0_23], %43 {strides = array<i32>} : memref<3x2x49x128xbf16, #tpu.memory_space<vmem>>, vector<3x2x49x128xbf16>,
    return
  }
}

module attributes {stable_mosaic.version = 11 : i64} {
  func.func @layer2_head_kernel(%arg0: memref<54x1152xbf16, #tpu.memory_space<vmem>>, %arg1: memref<1152x128xbf16, #tpu.memory_space<vmem>>, %arg2: memref<1x128xf32, #tpu.memory_space<vmem>>, %arg3: memref<1x128xf32, #tpu.memory_space<vmem>>, %arg4: memref<1x128xf32, #tpu.memory_space<vmem>>, %arg5: memref<128x128xf32, #tpu.memory_space<vmem>>, %arg6: memref<1x128xf32, #tpu.memory_space<vmem>>, %arg7: memref<128x128xf32, #tpu.memory_space<vmem>>, %arg8: memref<1x128xf32, #tpu.memory_space<vmem>>, %arg9: memref<6x128xf32, #tpu.memory_space<vmem>>) attributes {dimension_semantics = [], scalar_prefetch = 0 : i64, scratch_operands = 0 : i64, tpu.core_type = #tpu.core_type<tc>} {
    %c0 = arith.constant 0 : index
    %c0_0 = arith.constant 0 : index
    %0 = vector.load %arg0[%c0, %c0_0] : memref<54x1152xbf16, #tpu.memory_space<vmem>>, vector<54x1152xbf16>
    %c0_1 = arith.constant 0 : index
    %c0_2 = arith.constant 0 : index
    %1 = vector.load %arg1[%c0_1, %c0_2] : memref<1152x128xbf16, #tpu.memory_space<vmem>>, vector<1152x128xbf16>
    %cst = arith.constant dense<0.000000e+00> : vector<54x128xf32>
    %2 = tpu.matmul %0, %1, %cst {dimension_numbers = #tpu.dot_dimension_numbers<[1], [0], [0], [1], [0, 0, 1, 1], [], []>} : vector<54x1152xbf16>, vector<1152x128xbf16>, vector<54x128xf32> -> vector<54x128xf32>
    %c0_3 = arith.constant 0 : index
    %c0_4 = arith.constant 0 : index
    %3 = vector.load %arg2[%c0_3, %c0_4] : memref<1x128xf32, #tpu.memory_space<vmem>>, vector<1x128xf32>
    %4 = vector.broadcast %3 : vector<1x128xf32> to vector<54x128xf32>
    %5 = arith.addf %2, %4 : vector<54x128xf32>
    %cst_5 = arith.constant dense<0.000000e+00> : vector<128xf32>
    %6 = vector.multi_reduction <add>, %5, %cst_5 [0] : vector<54x128xf32> to vector<128xf32>
    %7 = vector.shape_cast %6 : vector<128xf32> to vector<1x128xf32>
    %cst_6 = arith.constant 5.400000e+01 : f32
    %8 = vector.broadcast %cst_6 : f32 to vector<1x128xf32>
    %9 = arith.divf %7, %8 : vector<1x128xf32>
    %10 = vector.broadcast %9 : vector<1x128xf32> to vector<54x128xf32>
    %11 = arith.subf %5, %10 : vector<54x128xf32>
    %12 = arith.mulf %11, %11 : vector<54x128xf32>
    %cst_7 = arith.constant dense<0.000000e+00> : vector<128xf32>
    %13 = vector.multi_reduction <add>, %12, %cst_7 [0] : vector<54x128xf32> to vector<128xf32>
    %14 = vector.shape_cast %13 : vector<128xf32> to vector<1x128xf32>
    %cst_8 = arith.constant 5.400000e+01 : f32
    %15 = vector.broadcast %cst_8 : f32 to vector<1x128xf32>
    %16 = arith.divf %14, %15 : vector<1x128xf32>
    %cst_9 = arith.constant 9.99999974E-6 : f32
    %17 = vector.broadcast %cst_9 : f32 to vector<1x128xf32>
    %18 = arith.addf %16, %17 : vector<1x128xf32>
    %19 = math.rsqrt %18 : vector<1x128xf32>
    %20 = vector.broadcast %19 : vector<1x128xf32> to vector<54x128xf32>
    %21 = arith.mulf %11, %20 : vector<54x128xf32>
    %c0_10 = arith.constant 0 : index
    %c0_11 = arith.constant 0 : index
    %22 = vector.load %arg3[%c0_10, %c0_11] : memref<1x128xf32, #tpu.memory_space<vmem>>, vector<1x128xf32>
    %23 = vector.broadcast %22 : vector<1x128xf32> to vector<54x128xf32>
    %24 = arith.mulf %21, %23 : vector<54x128xf32>
    %c0_12 = arith.constant 0 : index
    %c0_13 = arith.constant 0 : index
    %25 = vector.load %arg4[%c0_12, %c0_13] : memref<1x128xf32, #tpu.memory_space<vmem>>, vector<1x128xf32>
    %26 = vector.broadcast %25 : vector<1x128xf32> to vector<54x128xf32>
    %27 = arith.addf %24, %26 : vector<54x128xf32>
    %cst_14 = arith.constant 0.000000e+00 : f32
    %28 = vector.broadcast %cst_14 : f32 to vector<54x128xf32>
    %29 = arith.maximumf %27, %28 : vector<54x128xf32>
    %30 = vector.extract_strided_slice %29 {offsets = [0, 0], sizes = [6, 128], strides = [1, 1]} : vector<54x128xf32> to vector<6x128xf32>
    %31 = vector.extract_strided_slice %29 {offsets = [6, 0], sizes = [6, 128], strides = [1, 1]} : vector<54x128xf32> to vector<6x128xf32>
    %32 = arith.maximumf %30, %31 : vector<6x128xf32>
    %33 = vector.extract_strided_slice %29 {offsets = [18, 0], sizes = [6, 128], strides = [1, 1]} : vector<54x128xf32> to vector<6x128xf32>
    %34 = vector.extract_strided_slice %29 {offsets = [24, 0], sizes = [6, 128], strides = [1, 1]} : vector<54x128xf32> to vector<6x128xf32>
    %35 = arith.maximumf %33, %34 : vector<6x128xf32>
    %36 = arith.maximumf %32, %35 : vector<6x128xf32>
    %c0_15 = arith.constant 0 : index
    %c0_16 = arith.constant 0 : index
    %37 = vector.load %arg5[%c0_15, %c0_16] : memref<128x128xf32, #tpu.memory_space<vmem>>, vector<128x128xf32>
    %cst_17 = arith.constant dense<0.000000e+00> : vector<6x128xf32>
    %38 = tpu.matmul %36, %37, %cst_17 {dimension_numbers = #tpu.dot_dimension_numbers<[1], [0], [0], [1], [0, 0, 1, 1], [], []>} : vector<6x128xf32>, vector<128x128xf32>, vector<6x128xf32> -> vector<6x128xf32>
    %c0_18 = arith.constant 0 : index
    %c0_19 = arith.constant 0 : index
    %39 = vector.load %arg6[%c0_18, %c0_19] : memref<1x128xf32, #tpu.memory_space<vmem>>, vector<1x128xf32>
    %40 = vector.broadcast %39 : vector<1x128xf32> to vector<6x128xf32>
    %41 = arith.addf %38, %40 : vector<6x128xf32>
    %cst_20 = arith.constant 0.000000e+00 : f32
    %42 = vector.broadcast %cst_20 : f32 to vector<6x128xf32>
    %43 = arith.maximumf %41, %42 : vector<6x128xf32>
    %c0_21 = arith.constant 0 : index
    %c0_22 = arith.constant 0 : index
    %44 = vector.load %arg7[%c0_21, %c0_22] : memref<128x128xf32, #tpu.memory_space<vmem>>, vector<128x128xf32>
    %cst_23 = arith.constant dense<0.000000e+00> : vector<6x128xf32>
    %45 = tpu.matmul %43, %44, %cst_23 {dimension_numbers = #tpu.dot_dimension_numbers<[1], [0], [0], [1], [0, 0, 1, 1], [], []>} : vector<6x128xf32>, vector<128x128xf32>, vector<6x128xf32> -> vector<6x128xf32>
    %c0_24 = arith.constant 0 : index
    %c0_25 = arith.constant 0 : index
    %46 = vector.load %arg8[%c0_24, %c0_25] : memref<1x128xf32, #tpu.memory_space<vmem>>, vector<1x128xf32>
    %47 = vector.broadcast %46 : vector<1x128xf32> to vector<6x128xf32>
    %48 = arith.addf %45, %47 : vector<6x128xf32>
    %cst_26 = arith.constant 0.000000e+00 : f32
    %49 = vector.broadcast %cst_26 : f32 to vector<6x128xf32>
    %50 = arith.subf %49, %48 : vector<6x128xf32>
    %51 = math.exp %50 : vector<6x128xf32>
    %cst_27 = arith.constant 1.000000e+00 : f32
    %52 = vector.broadcast %cst_27 : f32 to vector<6x128xf32>
    %53 = arith.addf %52, %51 : vector<6x128xf32>
    %cst_28 = arith.constant 1.000000e+00 : f32
    %54 = vector.broadcast %cst_28 : f32 to vector<6x128xf32>
    %55 = arith.divf %54, %53 : vector<6x128xf32>
    %c0_29 = arith.constant 0 : index
    %c0_30 = arith.constant 0 : index
    %56 = vector.load %arg9[%c0_29, %c0_30] : memref<6x128xf32, #tpu.memory_space<vmem>>, vector<6x128xf32>
    tpu.vector_store %arg9[%c0_29, %c0_30], %55 {strides = array<i32>} : memref<6x128xf32, #tpu.memory_space<vmem>>, vector<6x128xf32>,
    return
  }
}

</mosaic_0001>

<llo_original>
// kernel: relation_network_forward.5
$region0: #{relation_network_forward.5}
  #allocation0 [shape = 'u32[]', space=smem, size = 0x4, offset = 0x4, fixed_abs, tag = 'smem constant byte address 0x4 - core index']
  #allocation1 [shape = 'u32[72,128]{1,0:T(1,128)}', space=vmem, size = 0x9000, scoped, tag = 'internal scratch']
  %s0 = inlined_call_operand.vmem [shape: bf16[147,4608], index: 0, kind: input, shape index: {}]
  %s1 = inlined_call_operand.vmem [shape: bf16[4608,128], index: 1, kind: input, shape index: {}]
  %s2 = inlined_call_operand.vmem [shape: f32[147,128], index: 2, kind: output, shape index: {}]
  %s3 = sld [smem:[#allocation0]]
  $region22: #{relation_network_forward.5} parent=0
    _
  %s5 = ssub.s32 1, %s3
  %s6 = scalar_select 0, %s5, %s3
  // Predicated region
  $region2: #{relation_network_forward.5} parent=0 // pred_check
    _
  $region3: #{relation_network_forward.5} parent=0 // pred_check_branch
    %8 = sbr.rel (0) target = $region5
  $region4: #{relation_network_forward.5} parent=0 // pred_region
    _
  $region5: #{relation_network_forward.5} parent=0 // pred_fallthru
    _
  // Predicated region
  $region6: #{relation_network_forward.5} parent=0 // pred_check
    _
  $region7: #{relation_network_forward.5} parent=0 // pred_check_branch
    %10 = sbr.rel (0) target = $region9
  $region8: #{relation_network_forward.5} parent=0 // pred_region
    _
  $region9: #{relation_network_forward.5} parent=0 // pred_fallthru
    _
  %p11 = scmp.eq.s32.totalorder 0, 0
  // Predicated region
  $region10: #{relation_network_forward.5} parent=0 // pred_check
    %p12 = pneg %p11
  $region11: #{relation_network_forward.5} parent=0 // pred_check_branch
    %14 = sbr.rel (%p12) target = $region13
  $region12: #{relation_network_forward.5} parent=0 // pred_region
    %15 = vst [vmem:[%s2] sm:$0xff] 0.0
    %16 = vst [vmem:[%s2 + $0x8] sm:$0xff] 0.0
    %17 = vst [vmem:[%s2 + $0x10] sm:$0xff] 0.0
    %18 = vst [vmem:[%s2 + $0x18] sm:$0xff] 0.0
    %19 = vst [vmem:[%s2 + $0x20] sm:$0xff] 0.0
    %20 = vst [vmem:[%s2 + $0x28] sm:$0xff] 0.0
    %21 = vst [vmem:[%s2 + $0x30] sm:$0xff] 0.0
    %22 = vst [vmem:[%s2 + $0x38] sm:$0xff] 0.0
    %23 = vst [vmem:[%s2 + $0x40] sm:$0xff] 0.0
    %24 = vst [vmem:[%s2 + $0x48] sm:$0xff] 0.0
    %25 = vst [vmem:[%s2 + $0x50] sm:$0xff] 0.0
    %26 = vst [vmem:[%s2 + $0x58] sm:$0xff] 0.0
    %27 = vst [vmem:[%s2 + $0x60] sm:$0xff] 0.0
    %28 = vst [vmem:[%s2 + $0x68] sm:$0xff] 0.0
    %29 = vst [vmem:[%s2 + $0x70] sm:$0xff] 0.0
    %30 = vst [vmem:[%s2 + $0x78] sm:$0xff] 0.0
    %31 = vst [vmem:[%s2 + $0x80] sm:$0xff] 0.0
    %32 = vst [vmem:[%s2 + $0x88] sm:$0xff] 0.0
    %33 = vst [vmem:[%s2 + $0x90] sm:$0x7] 0.0
  $region13: #{relation_network_forward.5} parent=0 // pred_fallthru
    _
  %v34 = vld [vmem:[%s2] sm:$0xff]
  %v35 = vld [vmem:[%s2 + $0x8] sm:$0xff]
  %v36 = vld [vmem:[%s2 + $0x10] sm:$0xff]
  %v37 = vld [vmem:[%s2 + $0x18] sm:$0xff]
  %v38 = vld [vmem:[%s2 + $0x20] sm:$0xff]
  %v39 = vld [vmem:[%s2 + $0x28] sm:$0xff]
  %v40 = vld [vmem:[%s2 + $0x30] sm:$0xff]
  %v41 = vld [vmem:[%s2 + $0x38] sm:$0xff]
  %v42 = vld [vmem:[%s2 + $0x40] sm:$0xff]
  %v43 = vld [vmem:[%s2 + $0x48] sm:$0xff]
  %v44 = vld [vmem:[%s2 + $0x50] sm:$0xff]
  %v45 = vld [vmem:[%s2 + $0x58] sm:$0xff]
  %v46 = vld [vmem:[%s2 + $0x60] sm:$0xff]
  %v47 = vld [vmem:[%s2 + $0x68] sm:$0xff]
  %v48 = vld [vmem:[%s2 + $0x70] sm:$0xff]
  %v49 = vld [vmem:[%s2 + $0x78] sm:$0xff]
  %v50 = vld [vmem:[%s2 + $0x80] sm:$0xff]
  %v51 = vld [vmem:[%s2 + $0x88] sm:$0xff]
  %v52 = vld [vmem:[%s2 + $0x90] sm:$0x7]
  %v53 = vld [vmem:[%s0] sm:$0xff]
  %v54 = vld [vmem:[%s0 + $0x8] sm:$0xff]
  %v55 = vld [vmem:[%s0 + $0x10] sm:$0xff]
  %v56 = vld [vmem:[%s0 + $0x18] sm:$0xff]
  %v57 = vld [vmem:[%s0 + $0x20] sm:$0xff]
  %v58 = vld [vmem:[%s0 + $0x28] sm:$0xff]
  %v59 = vld [vmem:[%s0 + $0x30] sm:$0xff]
  %v60 = vld [vmem:[%s0 + $0x38] sm:$0xff]
  %v61 = vld [vmem:[%s0 + $0x40] sm:$0xff]
  %v62 = vld [vmem:[%s0 + $0x48] sm:$0xff]
  %v63 = vld [vmem:[%s0 + $0x50] sm:$0xff]
  %v64 = vld [vmem:[%s0 + $0x58] sm:$0xff]
  %v65 = vld [vmem:[%s0 + $0x60] sm:$0xff]
  %v66 = vld [vmem:[%s0 + $0x68] sm:$0xff]
  %v67 = vld [vmem:[%s0 + $0x70] sm:$0xff]
  %v68 = vld [vmem:[%s0 + $0x78] sm:$0xff]
  %v69 = vld [vmem:[%s0 + $0x80] sm:$0xff]
  %v70 = vld [vmem:[%s0 + $0x88] sm:$0xff]
  %v71 = vld [vmem:[%s0 + $0x90] sm:$0xff]
  %v72 = vld [vmem:[%s0 + $0x98] sm:$0xff]
  %v73 = vld [vmem:[%s0 + $0xa0] sm:$0xff]
  %v74 = vld [vmem:[%s0 + $0xa8] sm:$0xff]
  %v75 = vld [vmem:[%s0 + $0xb0] sm:$0xff]
  %v76 = vld [vmem:[%s0 + $0xb8] sm:$0xff]
  %v77 = vld [vmem:[%s0 + $0xc0] sm:$0xff]
  %v78 = vld [vmem:[%s0 + $0xc8] sm:$0xff]
  %v79 = vld [vmem:[%s0 + $0xd0] sm:$0xff]
  %v80 = vld [vmem:[%s0 + $0xd8] sm:$0xff]
  %v81 = vld [vmem:[%s0 + $0xe0] sm:$0xff]
  %v82 = vld [vmem:[%s0 + $0xe8] sm:$0xff]
  %v83 = vld [vmem:[%s0 + $0xf0] sm:$0xff]
  %v84 = vld [vmem:[%s0 + $0xf8] sm:$0xff]
  %v85 = vld [vmem:[%s0 + $0x100] sm:$0xff]
  %v86 = vld [vmem:[%s0 + $0x108] sm:$0xff]
  %v87 = vld [vmem:[%s0 + $0x110] sm:$0xff]
  %v88 = vld [vmem:[%s0 + $0x118] sm:$0xff]
  %v89 = vld [vmem:[%s0 + $0x120] sm:$0xff]
  %v90 = vld [vmem:[%s0 + $0x128] sm:$0xff]
  %v91 = vld [vmem:[%s0 + $0x130] sm:$0xff]
  %v92 = vld [vmem:[%s0 + $0x138] sm:$0xff]
  %v93 = vld [vmem:[%s0 + $0x140] sm:$0xff]
  %v94 = vld [vmem:[%s0 + $0x148] sm:$0xff]
  %v95 = vld [vmem:[%s0 + $0x150] sm:$0xff]
  %v96 = vld [vmem:[%s0 + $0x158] sm:$0xff]
  %v97 = vld [vmem:[%s0 + $0x160] sm:$0xff]
  %v98 = vld [vmem:[%s0 + $0x168] sm:$0xff]
  %v99 = vld [vmem:[%s0 + $0x170] sm:$0xff]
  %v100 = vld [vmem:[%s0 + $0x178] sm:$0xff]
  %v101 = vld [vmem:[%s0 + $0x180] sm:$0xff]
  %v102 = vld [vmem:[%s0 + $0x188] sm:$0xff]
  %v103 = vld [vmem:[%s0 + $0x190] sm:$0xff]
  %v104 = vld [vmem:[%s0 + $0x198] sm:$0xff]
  %v105 = vld [vmem:[%s0 + $0x1a0] sm:$0xff]
  %v106 = vld [vmem:[%s0 + $0x1a8] sm:$0xff]
  %v107 = vld [vmem:[%s0 + $0x1b0] sm:$0xff]
  %v108 = vld [vmem:[%s0 + $0x1b8] sm:$0xff]
  %v109 = vld [vmem:[%s0 + $0x1c0] sm:$0xff]
  %v110 = vld [vmem:[%s0 + $0x1c8] sm:$0xff]
  %v111 = vld [vmem:[%s0 + $0x1d0] sm:$0xff]
  %v112 = vld [vmem:[%s0 + $0x1d8] sm:$0xff]
  %v113 = vld [vmem:[%s0 + $0x1e0] sm:$0xff]
  %v114 = vld [vmem:[%s0 + $0x1e8] sm:$0xff]
  %v115 = vld [vmem:[%s0 + $0x1f0] sm:$0xff]
  %v116 = vld [vmem:[%s0 + $0x1f8] sm:$0xff]
  %v117 = vld [vmem:[%s0 + $0x200] sm:$0xff]
  %v118 = vld [vmem:[%s0 + $0x208] sm:$0xff]
  %v119 = vld [vmem:[%s0 + $0x210] sm:$0xff]
  %v120 = vld [vmem:[%s0 + $0x218] sm:$0xff]
  %v121 = vld [vmem:[%s0 + $0x220] sm:$0xff]
  %v122 = vld [vmem:[%s0 + $0x228] sm:$0xff]
  %v123 = vld [vmem:[%s0 + $0x230] sm:$0xff]
  %v124 = vld [vmem:[%s0 + $0x238] sm:$0xff]
  %v125 = vld [vmem:[%s0 + $0x240] sm:$0xff]
  %v126 = vld [vmem:[%s0 + $0x248] sm:$0xff]
  %v127 = vld [vmem:[%s0 + $0x250] sm:$0xff]
  %v128 = vld [vmem:[%s0 + $0x258] sm:$0xff]
  %v129 = vld [vmem:[%s0 + $0x260] sm:$0xff]
  %v130 = vld [vmem:[%s0 + $0x268] sm:$0xff]
  %v131 = vld [vmem:[%s0 + $0x270] sm:$0xff]
  %v132 = vld [vmem:[%s0 + $0x278] sm:$0xff]
  %v133 = vld [vmem:[%s0 + $0x280] sm:$0xff]
  %v134 = vld [vmem:[%s0 + $0x288] sm:$0xff]
  %v135 = vld [vmem:[%s0 + $0x290] sm:$0xff]
  %v136 = vld [vmem:[%s0 + $0x298] sm:$0xff]
  %v137 = vld [vmem:[%s0 + $0x2a0] sm:$0xff]
  %v138 = vld [vmem:[%s0 + $0x2a8] sm:$0xff]
  %v139 = vld [vmem:[%s0 + $0x2b0] sm:$0xff]
  %v140 = vld [vmem:[%s0 + $0x2b8] sm:$0xff]
  %v141 = vld [vmem:[%s0 + $0x2c0] sm:$0xff]
  %v142 = vld [vmem:[%s0 + $0x2c8] sm:$0xff]
  %v143 = vld [vmem:[%s0 + $0x2d0] sm:$0xff]
  %v144 = vld [vmem:[%s0 + $0x2d8] sm:$0xff]
  %v145 = vld [vmem:[%s0 + $0x2e0] sm:$0xff]
  %v146 = vld [vmem:[%s0 + $0x2e8] sm:$0xff]
  %v147 = vld [vmem:[%s0 + $0x2f0] sm:$0xff]
  %v148 = vld [vmem:[%s0 + $0x2f8] sm:$0xff]
  %v149 = vld [vmem:[%s0 + $0x300] sm:$0xff]
  %v150 = vld [vmem:[%s0 + $0x308] sm:$0xff]
  %v151 = vld [vmem:[%s0 + $0x310] sm:$0xff]
  %v152 = vld [vmem:[%s0 + $0x318] sm:$0xff]
  %v153 = vld [vmem:[%s0 + $0x320] sm:$0xff]
  %v154 = vld [vmem:[%s0 + $0x328] sm:$0xff]
  %v155 = vld [vmem:[%s0 + $0x330] sm:$0xff]
  %v156 = vld [vmem:[%s0 + $0x338] sm:$0xff]
  %v157 = vld [vmem:[%s0 + $0x340] sm:$0xff]
  %v158 = vld [vmem:[%s0 + $0x348] sm:$0xff]
  %v159 = vld [vmem:[%s0 + $0x350] sm:$0xff]
  %v160 = vld [vmem:[%s0 + $0x358] sm:$0xff]
  %v161 = vld [vmem:[%s0 + $0x360] sm:$0xff]
  %v162 = vld [vmem:[%s0 + $0x368] sm:$0xff]
  %v163 = vld [vmem:[%s0 + $0x370] sm:$0xff]
  %v164 = vld [vmem:[%s0 + $0x378] sm:$0xff]
  %v165 = vld [vmem:[%s0 + $0x380] sm:$0xff]
  %v166 = vld [vmem:[%s0 + $0x388] sm:$0xff]
  %v167 = vld [vmem:[%s0 + $0x390] sm:$0xff]
  %v168 = vld [vmem:[%s0 + $0x398] sm:$0xff]
  %v169 = vld [vmem:[%s0 + $0x3a0] sm:$0xff]
  %v170 = vld [vmem:[%s0 + $0x3a8] sm:$0xff]
  %v171 = vld [vmem:[%s0 + $0x3b0] sm:$0xff]
  %v172 = vld [vmem:[%s0 + $0x3b8] sm:$0xff]
  %v173 = vld [vmem:[%s0 + $0x3c0] sm:$0xff]
  %v174 = vld [vmem:[%s0 + $0x3c8] sm:$0xff]
  %v175 = vld [vmem:[%s0 + $0x3d0] sm:$0xff]
  %v176 = vld [vmem:[%s0 + $0x3d8] sm:$0xff]
  %v177 = vld [vmem:[%s0 + $0x3e0] sm:$0xff]
  %v178 = vld [vmem:[%s0 + $0x3e8] sm:$0xff]
  %v179 = vld [vmem:[%s0 + $0x3f0] sm:$0xff]
  %v180 = vld [vmem:[%s0 + $0x3f8] sm:$0xff]
  %v181 = vld [vmem:[%s0 + $0x400] sm:$0xff]
  %v182 = vld [vmem:[%s0 + $0x408] sm:$0xff]
  %v183 = vld [vmem:[%s0 + $0x410] sm:$0xff]
  %v184 = vld [vmem:[%s0 + $0x418] sm:$0xff]
  %v185 = vld [vmem:[%s0 + $0x420] sm:$0xff]
  %v186 = vld [vmem:[%s0 + $0x428] sm:$0xff]
  %v187 = vld [vmem:[%s0 + $0x430] sm:$0xff]
  %v188 = vld [vmem:[%s0 + $0x438] sm:$0xff]
  %v189 = vld [vmem:[%s0 + $0x440] sm:$0xff]
  %v190 = vld [vmem:[%s0 + $0x448] sm:$0xff]
  %v191 = vld [vmem:[%s0 + $0x450] sm:$0xff]
  %v192 = vld [vmem:[%s0 + $0x458] sm:$0xff]
  %v193 = vld [vmem:[%s0 + $0x460] sm:$0xff]
  %v194 = vld [vmem:[%s0 + $0x468] sm:$0xff]
  %v195 = vld [vmem:[%s0 + $0x470] sm:$0xff]
  %v196 = vld [vmem:[%s0 + $0x478] sm:$0xff]
  %v197 = vld [vmem:[%s0 + $0x480] sm:$0xff]
  %v198 = vld [vmem:[%s0 + $0x488] sm:$0xff]
  %v199 = vld [vmem:[%s0 + $0x490] sm:$0xff]
  %v200 = vld [vmem:[%s0 + $0x498] sm:$0xff]
  %v201 = vld [vmem:[%s0 + $0x4a0] sm:$0xff]
  %v202 = vld [vmem:[%s0 + $0x4a8] sm:$0xff]
  %v203 = vld [vmem:[%s0 + $0x4b0] sm:$0xff]
  %v204 = vld [vmem:[%s0 + $0x4b8] sm:$0xff]
  %v205 = vld [vmem:[%s0 + $0x4c0] sm:$0xff]
  %v206 = vld [vmem:[%s0 + $0x4c8] sm:$0xff]
  %v207 = vld [vmem:[%s0 + $0x4d0] sm:$0xff]
  %v208 = vld [vmem:[%s0 + $0x4d8] sm:$0xff]
  %v209 = vld [vmem:[%s0 + $0x4e0] sm:$0xff]
  %v210 = vld [vmem:[%s0 + $0x4e8] sm:$0xff]
  %v211 = vld [vmem:[%s0 + $0x4f0] sm:$0xff]
  %v212 = vld [vmem:[%s0 + $0x4f8] sm:$0xff]
  %v213 = vld [vmem:[%s0 + $0x500] sm:$0xff]
  %v214 = vld [vmem:[%s0 + $0x508] sm:$0xff]
  %v215 = vld [vmem:[%s0 + $0x510] sm:$0xff]
  %v216 = vld [vmem:[%s0 + $0x518] sm:$0xff]
  %v217 = vld [vmem:[%s0 + $0x520] sm:$0xff]
  %v218 = vld [vmem:[%s0 + $0x528] sm:$0xff]
  %v219 = vld [vmem:[%s0 + $0x530] sm:$0xff]
  %v220 = vld [vmem:[%s0 + $0x538] sm:$0xff]
  %v221 = vld [vmem:[%s0 + $0x540] sm:$0xff]
  %v222 = vld [vmem:[%s0 + $0x548] sm:$0xff]
  %v223 = vld [vmem:[%s0 + $0x550] sm:$0xff]
  %v224 = vld [vmem:[%s0 + $0x558] sm:$0xff]
  %v225 = vld [vmem:[%s0 + $0x560] sm:$0xff]
  %v226 = vld [vmem:[%s0 + $0x568] sm:$0xff]
  %v227 = vld [vmem:[%s0 + $0x570] sm:$0xff]
  %v228 = vld [vmem:[%s0 + $0x578] sm:$0xff]
  %v229 = vld [vmem:[%s0 + $0x580] sm:$0xff]
  %v230 = vld [vmem:[%s0 + $0x588] sm:$0xff]
  %v231 = vld [vmem:[%s0 + $0x590] sm:$0xff]
  %v232 = vld [vmem:[%s0 + $0x598] sm:$0xff]
  %v233 = vld [vmem:[%s0 + $0x5a0] sm:$0xff]
  %v234 = vld [vmem:[%s0 + $0x5a8] sm:$0xff]
  %v235 = vld [vmem:[%s0 + $0x5b0] sm:$0xff]
  %v236 = vld [vmem:[%s0 + $0x5b8] sm:$0xff]
  %v237 = vld [vmem:[%s0 + $0x5c0] sm:$0xff]
  %v238 = vld [vmem:[%s0 + $0x5c8] sm:$0xff]
  %v239 = vld [vmem:[%s0 + $0x5d0] sm:$0xff]
  %v240 = vld [vmem:[%s0 + $0x5d8] sm:$0xff]
  %v241 = vld [vmem:[%s0 + $0x5e0] sm:$0xff]
  %v242 = vld [vmem:[%s0 + $0x5e8] sm:$0xff]
  %v243 = vld [vmem:[%s0 + $0x5f0] sm:$0xff]
  %v244 = vld [vmem:[%s0 + $0x5f8] sm:$0xff]
  %v245 = vld [vmem:[%s0 + $0x600] sm:$0xff]
  %v246 = vld [vmem:[%s0 + $0x608] sm:$0xff]
  %v247 = vld [vmem:[%s0 + $0x610] sm:$0xff]
  %v248 = vld [vmem:[%s0 + $0x618] sm:$0xff]
  %v249 = vld [vmem:[%s0 + $0x620] sm:$0xff]
  %v250 = vld [vmem:[%s0 + $0x628] sm:$0xff]
  %v251 = vld [vmem:[%s0 + $0x630] sm:$0xff]
  %v252 = vld [vmem:[%s0 + $0x638] sm:$0xff]
  %v253 = vld [vmem:[%s0 + $0x640] sm:$0xff]
  %v254 = vld [vmem:[%s0 + $0x648] sm:$0xff]
  %v255 = vld [vmem:[%s0 + $0x650] sm:$0xff]
  %v256 = vld [vmem:[%s0 + $0x658] sm:$0xff]
  %v257 = vld [vmem:[%s0 + $0x660] sm:$0xff]
  %v258 = vld [vmem:[%s0 + $0x668] sm:$0xff]
  %v259 = vld [vmem:[%s0 + $0x670] sm:$0xff]
  %v260 = vld [vmem:[%s0 + $0x678] sm:$0xff]
  %v261 = vld [vmem:[%s0 + $0x680] sm:$0xff]
  %v262 = vld [vmem:[%s0 + $0x688] sm:$0xff]
  %v263 = vld [vmem:[%s0 + $0x690] sm:$0xff]
  %v264 = vld [vmem:[%s0 + $0x698] sm:$0xff]
  %v265 = vld [vmem:[%s0 + $0x6a0] sm:$0xff]
  %v266 = vld [vmem:[%s0 + $0x6a8] sm:$0xff]
  %v267 = vld [vmem:[%s0 + $0x6b0] sm:$0xff]
  %v268 = vld [vmem:[%s0 + $0x6b8] sm:$0xff]
  %v269 = vld [vmem:[%s0 + $0x6c0] sm:$0xff]
  %v270 = vld [vmem:[%s0 + $0x6c8] sm:$0xff]
  %v271 = vld [vmem:[%s0 + $0x6d0] sm:$0xff]
  %v272 = vld [vmem:[%s0 + $0x6d8] sm:$0xff]
  %v273 = vld [vmem:[%s0 + $0x6e0] sm:$0xff]
  %v274 = vld [vmem:[%s0 + $0x6e8] sm:$0xff]
  %v275 = vld [vmem:[%s0 + $0x6f0] sm:$0xff]
  %v276 = vld [vmem:[%s0 + $0x6f8] sm:$0xff]
  %v277 = vld [vmem:[%s0 + $0x700] sm:$0xff]
  %v278 = vld [vmem:[%s0 + $0x708] sm:$0xff]
  %v279 = vld [vmem:[%s0 + $0x710] sm:$0xff]
  %v280 = vld [vmem:[%s0 + $0x718] sm:$0xff]
  %v281 = vld [vmem:[%s0 + $0x720] sm:$0xff]
  %v282 = vld [vmem:[%s0 + $0x728] sm:$0xff]
  %v283 = vld [vmem:[%s0 + $0x730] sm:$0xff]
  %v284 = vld [vmem:[%s0 + $0x738] sm:$0xff]
  %v285 = vld [vmem:[%s0 + $0x740] sm:$0xff]
  %v286 = vld [vmem:[%s0 + $0x748] sm:$0xff]
  %v287 = vld [vmem:[%s0 + $0x750] sm:$0xff]
  %v288 = vld [vmem:[%s0 + $0x758] sm:$0xff]
  %v289 = vld [vmem:[%s0 + $0x760] sm:$0xff]
  %v290 = vld [vmem:[%s0 + $0x768] sm:$0xff]
  %v291 = vld [vmem:[%s0 + $0x770] sm:$0xff]
  %v292 = vld [vmem:[%s0 + $0x778] sm:$0xff]
  %v293 = vld [vmem:[%s0 + $0x780] sm:$0xff]
  %v294 = vld [vmem:[%s0 + $0x788] sm:$0xff]
  %v295 = vld [vmem:[%s0 + $0x790] sm:$0xff]
  %v296 = vld [vmem:[%s0 + $0x798] sm:$0xff]
  %v297 = vld [vmem:[%s0 + $0x7a0] sm:$0xff]
  %v298 = vld [vmem:[%s0 + $0x7a8] sm:$0xff]
  %v299 = vld [vmem:[%s0 + $0x7b0] sm:$0xff]
  %v300 = vld [vmem:[%s0 + $0x7b8] sm:$0xff]
  %v301 = vld [vmem:[%s0 + $0x7c0] sm:$0xff]
  %v302 = vld [vmem:[%s0 + $0x7c8] sm:$0xff]
  %v303 = vld [vmem:[%s0 + $0x7d0] sm:$0xff]
  %v304 = vld [vmem:[%s0 + $0x7d8] sm:$0xff]
  %v305 = vld [vmem:[%s0 + $0x7e0] sm:$0xff]
  %v306 = vld [vmem:[%s0 + $0x7e8] sm:$0xff]
  %v307 = vld [vmem:[%s0 + $0x7f0] sm:$0xff]
  %v308 = vld [vmem:[%s0 + $0x7f8] sm:$0xff]
  %v309 = vld [vmem:[%s0 + $0x800] sm:$0xff]
  %v310 = vld [vmem:[%s0 + $0x808] sm:$0xff]
  %v311 = vld [vmem:[%s0 + $0x810] sm:$0xff]
  %v312 = vld [vmem:[%s0 + $0x818] sm:$0xff]
  %v313 = vld [vmem:[%s0 + $0x820] sm:$0xff]
  %v314 = vld [vmem:[%s0 + $0x828] sm:$0xff]
  %v315 = vld [vmem:[%s0 + $0x830] sm:$0xff]
  %v316 = vld [vmem:[%s0 + $0x838] sm:$0xff]
  %v317 = vld [vmem:[%s0 + $0x840] sm:$0xff]
  %v318 = vld [vmem:[%s0 + $0x848] sm:$0xff]
  %v319 = vld [vmem:[%s0 + $0x850] sm:$0xff]
  %v320 = vld [vmem:[%s0 + $0x858] sm:$0xff]
  %v321 = vld [vmem:[%s0 + $0x860] sm:$0xff]
  %v322 = vld [vmem:[%s0 + $0x868] sm:$0xff]
  %v323 = vld [vmem:[%s0 + $0x870] sm:$0xff]
  %v324 = vld [vmem:[%s0 + $0x878] sm:$0xff]
  %v325 = vld [vmem:[%s0 + $0x880] sm:$0xff]
  %v326 = vld [vmem:[%s0 + $0x888] sm:$0xff]
  %v327 = vld [vmem:[%s0 + $0x890] sm:$0xff]
  %v328 = vld [vmem:[%s0 + $0x898] sm:$0xff]
  %v329 = vld [vmem:[%s0 + $0x8a0] sm:$0xff]
  %v330 = vld [vmem:[%s0 + $0x8a8] sm:$0xff]
  %v331 = vld [vmem:[%s0 + $0x8b0] sm:$0xff]
  %v332 = vld [vmem:[%s0 + $0x8b8] sm:$0xff]
  %v333 = vld [vmem:[%s0 + $0x8c0] sm:$0xff]
  %v334 = vld [vmem:[%s0 + $0x8c8] sm:$0xff]
  %v335 = vld [vmem:[%s0 + $0x8d0] sm:$0xff]
  %v336 = vld [vmem:[%s0 + $0x8d8] sm:$0xff]
  %v337 = vld [vmem:[%s0 + $0x8e0] sm:$0xff]
  %v338 = vld [vmem:[%s0 + $0x8e8] sm:$0xff]
  %v339 = vld [vmem:[%s0 + $0x8f0] sm:$0xff]
  %v340 = vld [vmem:[%s0 + $0x8f8] sm:$0xff]
  %v341 = vld [vmem:[%s0 + $0x900] sm:$0xff]
  %v342 = vld [vmem:[%s0 + $0x908] sm:$0xff]
  %v343 = vld [vmem:[%s0 + $0x910] sm:$0xff]
  %v344 = vld [vmem:[%s0 + $0x918] sm:$0xff]
  %v345 = vld [vmem:[%s0 + $0x920] sm:$0xff]
  %v346 = vld [vmem:[%s0 + $0x928] sm:$0xff]
  %v347 = vld [vmem:[%s0 + $0x930] sm:$0xff]
  %v348 = vld [vmem:[%s0 + $0x938] sm:$0xff]
  %v349 = vld [vmem:[%s0 + $0x940] sm:$0xff]
  %v350 = vld [vmem:[%s0 + $0x948] sm:$0xff]
  %v351 = vld [vmem:[%s0 + $0x950] sm:$0xff]
  %v352 = vld [vmem:[%s0 + $0x958] sm:$0xff]
  %v353 = vld [vmem:[%s0 + $0x960] sm:$0xff]
  %v354 = vld [vmem:[%s0 + $0x968] sm:$0xff]
  %v355 = vld [vmem:[%s0 + $0x970] sm:$0xff]
  %v356 = vld [vmem:[%s0 + $0x978] sm:$0xff]
  %v357 = vld [vmem:[%s0 + $0x980] sm:$0xff]
  %v358 = vld [vmem:[%s0 + $0x988] sm:$0xff]
  %v359 = vld [vmem:[%s0 + $0x990] sm:$0xff]
  %v360 = vld [vmem:[%s0 + $0x998] sm:$0xff]
  %v361 = vld [vmem:[%s0 + $0x9a0] sm:$0xff]
  %v362 = vld [vmem:[%s0 + $0x9a8] sm:$0xff]
  %v363 = vld [vmem:[%s0 + $0x9b0] sm:$0xff]
  %v364 = vld [vmem:[%s0 + $0x9b8] sm:$0xff]
  %v365 = vld [vmem:[%s0 + $0x9c0] sm:$0xff]
  %v366 = vld [vmem:[%s0 + $0x9c8] sm:$0xff]
  %v367 = vld [vmem:[%s0 + $0x9d0] sm:$0xff]
  %v368 = vld [vmem:[%s0 + $0x9d8] sm:$0xff]
  %v369 = vld [vmem:[%s0 + $0x9e0] sm:$0xff]
  %v370 = vld [vmem:[%s0 + $0x9e8] sm:$0xff]
  %v371 = vld [vmem:[%s0 + $0x9f0] sm:$0xff]
  %v372 = vld [vmem:[%s0 + $0x9f8] sm:$0xff]
  %v373 = vld [vmem:[%s0 + $0xa00] sm:$0xff]
  %v374 = vld [vmem:[%s0 + $0xa08] sm:$0xff]
  %v375 = vld [vmem:[%s0 + $0xa10] sm:$0xff]
  %v376 = vld [vmem:[%s0 + $0xa18] sm:$0xff]
  %v377 = vld [vmem:[%s0 + $0xa20] sm:$0x33]
  %v378 = vld [vmem:[%s0 + $0xa28] sm:$0x33]
  %v379 = vld [vmem:[%s0 + $0xa30] sm:$0x33]
  %v380 = vld [vmem:[%s0 + $0xa38] sm:$0x33]
  %v381 = vld [vmem:[%s0 + $0xa40] sm:$0x33]
  %v382 = vld [vmem:[%s0 + $0xa48] sm:$0x33]
  %v383 = vld [vmem:[%s0 + $0xa50] sm:$0x33]
  %v384 = vld [vmem:[%s0 + $0xa58] sm:$0x33]
  %v385 = vld [vmem:[%s0 + $0xa60] sm:$0x33]
  %v386 = vld [vmem:[%s0 + $0xa68] sm:$0x33]
  %v387 = vld [vmem:[%s0 + $0xa70] sm:$0x33]
  %v388 = vld [vmem:[%s0 + $0xa78] sm:$0x33]
  %v389 = vld [vmem:[%s0 + $0xa80] sm:$0x33]
  %v390 = vld [vmem:[%s0 + $0xa88] sm:$0x33]
  %v391 = vld [vmem:[%s0 + $0xa90] sm:$0x33]
  %v392 = vld [vmem:[%s0 + $0xa98] sm:$0x33]
  %v393 = vld [vmem:[%s0 + $0xaa0] sm:$0x33]
  %v394 = vld [vmem:[%s0 + $0xaa8] sm:$0x33]
  %v395 = vld [vmem:[%s1] sm:$0xf]
  %v396 = vld [vmem:[%s1 + $0x4] sm:$0xf]
  %v397 = vld [vmem:[%s1 + $0x8] sm:$0xf]
  %v398 = vld [vmem:[%s1 + $0xc] sm:$0xf]
  %v399 = vld [vmem:[%s1 + $0x10] sm:$0xf]
  %v400 = vld [vmem:[%s1 + $0x14] sm:$0xf]
  %v401 = vld [vmem:[%s1 + $0x18] sm:$0xf]
  %v402 = vld [vmem:[%s1 + $0x1c] sm:$0xf]
  %v403 = vld [vmem:[%s1 + $0x20] sm:$0xf]
  %v404 = vld [vmem:[%s1 + $0x24] sm:$0xf]
  %v405 = vld [vmem:[%s1 + $0x28] sm:$0xf]
  %v406 = vld [vmem:[%s1 + $0x2c] sm:$0xf]
  %v407 = vld [vmem:[%s1 + $0x30] sm:$0xf]
  %v408 = vld [vmem:[%s1 + $0x34] sm:$0xf]
  %v409 = vld [vmem:[%s1 + $0x38] sm:$0xf]
  %v410 = vld [vmem:[%s1 + $0x3c] sm:$0xf]
  %v411 = vld [vmem:[%s1 + $0x40] sm:$0xf]
  %v412 = vld [vmem:[%s1 + $0x44] sm:$0xf]
  %v413 = vld [vmem:[%s1 + $0x48] sm:$0xf]
  %v414 = vld [vmem:[%s1 + $0x4c] sm:$0xf]
  %v415 = vld [vmem:[%s1 + $0x50] sm:$0xf]
  %v416 = vld [vmem:[%s1 + $0x54] sm:$0xf]
  %v417 = vld [vmem:[%s1 + $0x58] sm:$0xf]
  %v418 = vld [vmem:[%s1 + $0x5c] sm:$0xf]
  %v419 = vld [vmem:[%s1 + $0x60] sm:$0xf]
  %v420 = vld [vmem:[%s1 + $0x64] sm:$0xf]
  %v421 = vld [vmem:[%s1 + $0x68] sm:$0xf]
  %v422 = vld [vmem:[%s1 + $0x6c] sm:$0xf]
  %v423 = vld [vmem:[%s1 + $0x70] sm:$0xf]
  %v424 = vld [vmem:[%s1 + $0x74] sm:$0xf]
  %v425 = vld [vmem:[%s1 + $0x78] sm:$0xf]
  %v426 = vld [vmem:[%s1 + $0x7c] sm:$0xf]
  %v427 = vld [vmem:[%s1 + $0x80] sm:$0xf]
  %v428 = vld [vmem:[%s1 + $0x84] sm:$0xf]
  %v429 = vld [vmem:[%s1 + $0x88] sm:$0xf]
  %v430 = vld [vmem:[%s1 + $0x8c] sm:$0xf]
  %v431 = vld [vmem:[%s1 + $0x90] sm:$0xf]
  %v432 = vld [vmem:[%s1 + $0x94] sm:$0xf]
  %v433 = vld [vmem:[%s1 + $0x98] sm:$0xf]
  %v434 = vld [vmem:[%s1 + $0x9c] sm:$0xf]
  %v435 = vld [vmem:[%s1 + $0xa0] sm:$0xf]
  %v436 = vld [vmem:[%s1 + $0xa4] sm:$0xf]
  %v437 = vld [vmem:[%s1 + $0xa8] sm:$0xf]
  %v438 = vld [vmem:[%s1 + $0xac] sm:$0xf]
  %v439 = vld [vmem:[%s1 + $0xb0] sm:$0xf]
  %v440 = vld [vmem:[%s1 + $0xb4] sm:$0xf]
  %v441 = vld [vmem:[%s1 + $0xb8] sm:$0xf]
  %v442 = vld [vmem:[%s1 + $0xbc] sm:$0xf]
  %v443 = vld [vmem:[%s1 + $0xc0] sm:$0xf]
  %v444 = vld [vmem:[%s1 + $0xc4] sm:$0xf]
  %v445 = vld [vmem:[%s1 + $0xc8] sm:$0xf]
  %v446 = vld [vmem:[%s1 + $0xcc] sm:$0xf]
  %v447 = vld [vmem:[%s1 + $0xd0] sm:$0xf]
  %v448 = vld [vmem:[%s1 + $0xd4] sm:$0xf]
  %v449 = vld [vmem:[%s1 + $0xd8] sm:$0xf]
  %v450 = vld [vmem:[%s1 + $0xdc] sm:$0xf]
  %v451 = vld [vmem:[%s1 + $0xe0] sm:$0xf]
  %v452 = vld [vmem:[%s1 + $0xe4] sm:$0xf]
  %v453 = vld [vmem:[%s1 + $0xe8] sm:$0xf]
  %v454 = vld [vmem:[%s1 + $0xec] sm:$0xf]
  %v455 = vld [vmem:[%s1 + $0xf0] sm:$0xf]
  %v456 = vld [vmem:[%s1 + $0xf4] sm:$0xf]
  %v457 = vld [vmem:[%s1 + $0xf8] sm:$0xf]
  %v458 = vld [vmem:[%s1 + $0xfc] sm:$0xf]
  %v459 = vld [vmem:[%s1 + $0x100] sm:$0xf]
  %v460 = vld [vmem:[%s1 + $0x104] sm:$0xf]
  %v461 = vld [vmem:[%s1 + $0x108] sm:$0xf]
  %v462 = vld [vmem:[%s1 + $0x10c] sm:$0xf]
  %v463 = vld [vmem:[%s1 + $0x110] sm:$0xf]
  %v464 = vld [vmem:[%s1 + $0x114] sm:$0xf]
  %v465 = vld [vmem:[%s1 + $0x118] sm:$0xf]
  %v466 = vld [vmem:[%s1 + $0x11c] sm:$0xf]
  %v467 = vld [vmem:[%s1 + $0x120] sm:$0xf]
  %v468 = vld [vmem:[%s1 + $0x124] sm:$0xf]
  %v469 = vld [vmem:[%s1 + $0x128] sm:$0xf]
  %v470 = vld [vmem:[%s1 + $0x12c] sm:$0xf]
  %v471 = vld [vmem:[%s1 + $0x130] sm:$0xf]
  %v472 = vld [vmem:[%s1 + $0x134] sm:$0xf]
  %v473 = vld [vmem:[%s1 + $0x138] sm:$0xf]
  %v474 = vld [vmem:[%s1 + $0x13c] sm:$0xf]
  %v475 = vld [vmem:[%s1 + $0x140] sm:$0xf]
  %v476 = vld [vmem:[%s1 + $0x144] sm:$0xf]
  %v477 = vld [vmem:[%s1 + $0x148] sm:$0xf]
  %v478 = vld [vmem:[%s1 + $0x14c] sm:$0xf]
  %v479 = vld [vmem:[%s1 + $0x150] sm:$0xf]
  %v480 = vld [vmem:[%s1 + $0x154] sm:$0xf]
  %v481 = vld [vmem:[%s1 + $0x158] sm:$0xf]
  %v482 = vld [vmem:[%s1 + $0x15c] sm:$0xf]
  %v483 = vld [vmem:[%s1 + $0x160] sm:$0xf]
  %v484 = vld [vmem:[%s1 + $0x164] sm:$0xf]
  %v485 = vld [vmem:[%s1 + $0x168] sm:$0xf]
  %v486 = vld [vmem:[%s1 + $0x16c] sm:$0xf]
  %v487 = vld [vmem:[%s1 + $0x170] sm:$0xf]
  %v488 = vld [vmem:[%s1 + $0x174] sm:$0xf]
  %v489 = vld [vmem:[%s1 + $0x178] sm:$0xf]
  %v490 = vld [vmem:[%s1 + $0x17c] sm:$0xf]
  %v491 = vld [vmem:[%s1 + $0x180] sm:$0xf]
  %v492 = vld [vmem:[%s1 + $0x184] sm:$0xf]
  %v493 = vld [vmem:[%s1 + $0x188] sm:$0xf]
  %v494 = vld [vmem:[%s1 + $0x18c] sm:$0xf]
  %v495 = vld [vmem:[%s1 + $0x190] sm:$0xf]
  %v496 = vld [vmem:[%s1 + $0x194] sm:$0xf]
  %v497 = vld [vmem:[%s1 + $0x198] sm:$0xf]
  %v498 = vld [vmem:[%s1 + $0x19c] sm:$0xf]
  %v499 = vld [vmem:[%s1 + $0x1a0] sm:$0xf]
  %v500 = vld [vmem:[%s1 + $0x1a4] sm:$0xf]
  %v501 = vld [vmem:[%s1 + $0x1a8] sm:$0xf]
  %v502 = vld [vmem:[%s1 + $0x1ac] sm:$0xf]
  %v503 = vld [vmem:[%s1 + $0x1b0] sm:$0xf]
  %v504 = vld [vmem:[%s1 + $0x1b4] sm:$0xf]
  %v505 = vld [vmem:[%s1 + $0x1b8] sm:$0xf]
  %v506 = vld [vmem:[%s1 + $0x1bc] sm:$0xf]
  %v507 = vld [vmem:[%s1 + $0x1c0] sm:$0xf]
  %v508 = vld [vmem:[%s1 + $0x1c4] sm:$0xf]
  %v509 = vld [vmem:[%s1 + $0x1c8] sm:$0xf]
  %v510 = vld [vmem:[%s1 + $0x1cc] sm:$0xf]
  %v511 = vld [vmem:[%s1 + $0x1d0] sm:$0xf]
  %v512 = vld [vmem:[%s1 + $0x1d4] sm:$0xf]
  %v513 = vld [vmem:[%s1 + $0x1d8] sm:$0xf]
  %v514 = vld [vmem:[%s1 + $0x1dc] sm:$0xf]
  %v515 = vld [vmem:[%s1 + $0x1e0] sm:$0xf]
  %v516 = vld [vmem:[%s1 + $0x1e4] sm:$0xf]
  %v517 = vld [vmem:[%s1 + $0x1e8] sm:$0xf]
  %v518 = vld [vmem:[%s1 + $0x1ec] sm:$0xf]
  %v519 = vld [vmem:[%s1 + $0x1f0] sm:$0xf]
  %v520 = vld [vmem:[%s1 + $0x1f4] sm:$0xf]
  %v521 = vld [vmem:[%s1 + $0x1f8] sm:$0xf]
  %v522 = vld [vmem:[%s1 + $0x1fc] sm:$0xf]
  %v523 = vld [vmem:[%s1 + $0x200] sm:$0xf]
  %v524 = vld [vmem:[%s1 + $0x204] sm:$0xf]
  %v525 = vld [vmem:[%s1 + $0x208] sm:$0xf]
  %v526 = vld [vmem:[%s1 + $0x20c] sm:$0xf]
  %v527 = vld [vmem:[%s1 + $0x210] sm:$0xf]
  %v528 = vld [vmem:[%s1 + $0x214] sm:$0xf]
  %v529 = vld [vmem:[%s1 + $0x218] sm:$0xf]
  %v530 = vld [vmem:[%s1 + $0x21c] sm:$0xf]
  %v531 = vld [vmem:[%s1 + $0x220] sm:$0xf]
  %v532 = vld [vmem:[%s1 + $0x224] sm:$0xf]
  %v533 = vld [vmem:[%s1 + $0x228] sm:$0xf]
  %v534 = vld [vmem:[%s1 + $0x22c] sm:$0xf]
  %v535 = vld [vmem:[%s1 + $0x230] sm:$0xf]
  %v536 = vld [vmem:[%s1 + $0x234] sm:$0xf]
  %v537 = vld [vmem:[%s1 + $0x238] sm:$0xf]
  %v538 = vld [vmem:[%s1 + $0x23c] sm:$0xf]
  %v539 = vld [vmem:[%s1 + $0x240] sm:$0xf]
  %v540 = vld [vmem:[%s1 + $0x244] sm:$0xf]
  %v541 = vld [vmem:[%s1 + $0x248] sm:$0xf]
  %v542 = vld [vmem:[%s1 + $0x24c] sm:$0xf]
  %v543 = vld [vmem:[%s1 + $0x250] sm:$0xf]
  %v544 = vld [vmem:[%s1 + $0x254] sm:$0xf]
  %v545 = vld [vmem:[%s1 + $0x258] sm:$0xf]
  %v546 = vld [vmem:[%s1 + $0x25c] sm:$0xf]
  %v547 = vld [vmem:[%s1 + $0x260] sm:$0xf]
  %v548 = vld [vmem:[%s1 + $0x264] sm:$0xf]
  %v549 = vld [vmem:[%s1 + $0x268] sm:$0xf]
  %v550 = vld [vmem:[%s1 + $0x26c] sm:$0xf]
  %v551 = vld [vmem:[%s1 + $0x270] sm:$0xf]
  %v552 = vld [vmem:[%s1 + $0x274] sm:$0xf]
  %v553 = vld [vmem:[%s1 + $0x278] sm:$0xf]
  %v554 = vld [vmem:[%s1 + $0x27c] sm:$0xf]
  %v555 = vld [vmem:[%s1 + $0x280] sm:$0xf]
  %v556 = vld [vmem:[%s1 + $0x284] sm:$0xf]
  %v557 = vld [vmem:[%s1 + $0x288] sm:$0xf]
  %v558 = vld [vmem:[%s1 + $0x28c] sm:$0xf]
  %v559 = vld [vmem:[%s1 + $0x290] sm:$0xf]
  %v560 = vld [vmem:[%s1 + $0x294] sm:$0xf]
  %v561 = vld [vmem:[%s1 + $0x298] sm:$0xf]
  %v562 = vld [vmem:[%s1 + $0x29c] sm:$0xf]
  %v563 = vld [vmem:[%s1 + $0x2a0] sm:$0xf]
  %v564 = vld [vmem:[%s1 + $0x2a4] sm:$0xf]
  %v565 = vld [vmem:[%s1 + $0x2a8] sm:$0xf]
  %v566 = vld [vmem:[%s1 + $0x2ac] sm:$0xf]
  %v567 = vld [vmem:[%s1 + $0x2b0] sm:$0xf]
  %v568 = vld [vmem:[%s1 + $0x2b4] sm:$0xf]
  %v569 = vld [vmem:[%s1 + $0x2b8] sm:$0xf]
  %v570 = vld [vmem:[%s1 + $0x2bc] sm:$0xf]
  %v571 = vld [vmem:[%s1 + $0x2c0] sm:$0xf]
  %v572 = vld [vmem:[%s1 + $0x2c4] sm:$0xf]
  %v573 = vld [vmem:[%s1 + $0x2c8] sm:$0xf]
  %v574 = vld [vmem:[%s1 + $0x2cc] sm:$0xf]
  %v575 = vld [vmem:[%s1 + $0x2d0] sm:$0xf]
  %v576 = vld [vmem:[%s1 + $0x2d4] sm:$0xf]
  %v577 = vld [vmem:[%s1 + $0x2d8] sm:$0xf]
  %v578 = vld [vmem:[%s1 + $0x2dc] sm:$0xf]
  %v579 = vld [vmem:[%s1 + $0x2e0] sm:$0xf]
  %v580 = vld [vmem:[%s1 + $0x2e4] sm:$0xf]
  %v581 = vld [vmem:[%s1 + $0x2e8] sm:$0xf]
  %v582 = vld [vmem:[%s1 + $0x2ec] sm:$0xf]
  %v583 = vld [vmem:[%s1 + $0x2f0] sm:$0xf]
  %v584 = vld [vmem:[%s1 + $0x2f4] sm:$0xf]
  %v585 = vld [vmem:[%s1 + $0x2f8] sm:$0xf]
  %v586 = vld [vmem:[%s1 + $0x2fc] sm:$0xf]
  %v587 = vld [vmem:[%s1 + $0x300] sm:$0xf]
  %v588 = vld [vmem:[%s1 + $0x304] sm:$0xf]
  %v589 = vld [vmem:[%s1 + $0x308] sm:$0xf]
  %v590 = vld [vmem:[%s1 + $0x30c] sm:$0xf]
  %v591 = vld [vmem:[%s1 + $0x310] sm:$0xf]
  %v592 = vld [vmem:[%s1 + $0x314] sm:$0xf]
  %v593 = vld [vmem:[%s1 + $0x318] sm:$0xf]
  %v594 = vld [vmem:[%s1 + $0x31c] sm:$0xf]
  %v595 = vld [vmem:[%s1 + $0x320] sm:$0xf]
  %v596 = vld [vmem:[%s1 + $0x324] sm:$0xf]
  %v597 = vld [vmem:[%s1 + $0x328] sm:$0xf]
  %v598 = vld [vmem:[%s1 + $0x32c] sm:$0xf]
  %v599 = vld [vmem:[%s1 + $0x330] sm:$0xf]
  %v600 = vld [vmem:[%s1 + $0x334] sm:$0xf]
  %v601 = vld [vmem:[%s1 + $0x338] sm:$0xf]
  %v602 = vld [vmem:[%s1 + $0x33c] sm:$0xf]
  %v603 = vld [vmem:[%s1 + $0x340] sm:$0xf]
  %v604 = vld [vmem:[%s1 + $0x344] sm:$0xf]
  %v605 = vld [vmem:[%s1 + $0x348] sm:$0xf]
  %v606 = vld [vmem:[%s1 + $0x34c] sm:$0xf]
  %v607 = vld [vmem:[%s1 + $0x350] sm:$0xf]
  %v608 = vld [vmem:[%s1 + $0x354] sm:$0xf]
  %v609 = vld [vmem:[%s1 + $0x358] sm:$0xf]
  %v610 = vld [vmem:[%s1 + $0x35c] sm:$0xf]
  %v611 = vld [vmem:[%s1 + $0x360] sm:$0xf]
  %v612 = vld [vmem:[%s1 + $0x364] sm:$0xf]
  %v613 = vld [vmem:[%s1 + $0x368] sm:$0xf]
  %v614 = vld [vmem:[%s1 + $0x36c] sm:$0xf]
  %v615 = vld [vmem:[%s1 + $0x370] sm:$0xf]
  %v616 = vld [vmem:[%s1 + $0x374] sm:$0xf]
  %v617 = vld [vmem:[%s1 + $0x378] sm:$0xf]
  %v618 = vld [vmem:[%s1 + $0x37c] sm:$0xf]
  %v619 = vld [vmem:[%s1 + $0x380] sm:$0xf]
  %v620 = vld [vmem:[%s1 + $0x384] sm:$0xf]
  %v621 = vld [vmem:[%s1 + $0x388] sm:$0xf]
  %v622 = vld [vmem:[%s1 + $0x38c] sm:$0xf]
  %v623 = vld [vmem:[%s1 + $0x390] sm:$0xf]
  %v624 = vld [vmem:[%s1 + $0x394] sm:$0xf]
  %v625 = vld [vmem:[%s1 + $0x398] sm:$0xf]
  %v626 = vld [vmem:[%s1 + $0x39c] sm:$0xf]
  %v627 = vld [vmem:[%s1 + $0x3a0] sm:$0xf]
  %v628 = vld [vmem:[%s1 + $0x3a4] sm:$0xf]
  %v629 = vld [vmem:[%s1 + $0x3a8] sm:$0xf]
  %v630 = vld [vmem:[%s1 + $0x3ac] sm:$0xf]
  %v631 = vld [vmem:[%s1 + $0x3b0] sm:$0xf]
  %v632 = vld [vmem:[%s1 + $0x3b4] sm:$0xf]
  %v633 = vld [vmem:[%s1 + $0x3b8] sm:$0xf]
  %v634 = vld [vmem:[%s1 + $0x3bc] sm:$0xf]
  %v635 = vld [vmem:[%s1 + $0x3c0] sm:$0xf]
  %v636 = vld [vmem:[%s1 + $0x3c4] sm:$0xf]
  %v637 = vld [vmem:[%s1 + $0x3c8] sm:$0xf]
  %v638 = vld [vmem:[%s1 + $0x3cc] sm:$0xf]
  %v639 = vld [vmem:[%s1 + $0x3d0] sm:$0xf]
  %v640 = vld [vmem:[%s1 + $0x3d4] sm:$0xf]
  %v641 = vld [vmem:[%s1 + $0x3d8] sm:$0xf]
  %v642 = vld [vmem:[%s1 + $0x3dc] sm:$0xf]
  %v643 = vld [vmem:[%s1 + $0x3e0] sm:$0xf]
  %v644 = vld [vmem:[%s1 + $0x3e4] sm:$0xf]
  %v645 = vld [vmem:[%s1 + $0x3e8] sm:$0xf]
  %v646 = vld [vmem:[%s1 + $0x3ec] sm:$0xf]
  %v647 = vld [vmem:[%s1 + $0x3f0] sm:$0xf]
  %v648 = vld [vmem:[%s1 + $0x3f4] sm:$0xf]
  %v649 = vld [vmem:[%s1 + $0x3f8] sm:$0xf]
  %v650 = vld [vmem:[%s1 + $0x3fc] sm:$0xf]
  %v651 = vld [vmem:[%s1 + $0x400] sm:$0xf]
  %v652 = vld [vmem:[%s1 + $0x404] sm:$0xf]
  %v653 = vld [vmem:[%s1 + $0x408] sm:$0xf]
  %v654 = vld [vmem:[%s1 + $0x40c] sm:$0xf]
  %v655 = vld [vmem:[%s1 + $0x410] sm:$0xf]
  %v656 = vld [vmem:[%s1 + $0x414] sm:$0xf]
  %v657 = vld [vmem:[%s1 + $0x418] sm:$0xf]
  %v658 = vld [vmem:[%s1 + $0x41c] sm:$0xf]
  %v659 = vld [vmem:[%s1 + $0x420] sm:$0xf]
  %v660 = vld [vmem:[%s1 + $0x424] sm:$0xf]
  %v661 = vld [vmem:[%s1 + $0x428] sm:$0xf]
  %v662 = vld [vmem:[%s1 + $0x42c] sm:$0xf]
  %v663 = vld [vmem:[%s1 + $0x430] sm:$0xf]
  %v664 = vld [vmem:[%s1 + $0x434] sm:$0xf]
  %v665 = vld [vmem:[%s1 + $0x438] sm:$0xf]
  %v666 = vld [vmem:[%s1 + $0x43c] sm:$0xf]
  %v667 = vld [vmem:[%s1 + $0x440] sm:$0xf]
  %v668 = vld [vmem:[%s1 + $0x444] sm:$0xf]
  %v669 = vld [vmem:[%s1 + $0x448] sm:$0xf]
  %v670 = vld [vmem:[%s1 + $0x44c] sm:$0xf]
  %v671 = vld [vmem:[%s1 + $0x450] sm:$0xf]
  %v672 = vld [vmem:[%s1 + $0x454] sm:$0xf]
  %v673 = vld [vmem:[%s1 + $0x458] sm:$0xf]
  %v674 = vld [vmem:[%s1 + $0x45c] sm:$0xf]
  %v675 = vld [vmem:[%s1 + $0x460] sm:$0xf]
  %v676 = vld [vmem:[%s1 + $0x464] sm:$0xf]
  %v677 = vld [vmem:[%s1 + $0x468] sm:$0xf]
  %v678 = vld [vmem:[%s1 + $0x46c] sm:$0xf]
  %v679 = vld [vmem:[%s1 + $0x470] sm:$0xf]
  %v680 = vld [vmem:[%s1 + $0x474] sm:$0xf]
  %v681 = vld [vmem:[%s1 + $0x478] sm:$0xf]
  %v682 = vld [vmem:[%s1 + $0x47c] sm:$0xf]
  %v683 = vld [vmem:[%s1 + $0x480] sm:$0xf]
  %v684 = vld [vmem:[%s1 + $0x484] sm:$0xf]
  %v685 = vld [vmem:[%s1 + $0x488] sm:$0xf]
  %v686 = vld [vmem:[%s1 + $0x48c] sm:$0xf]
  %v687 = vld [vmem:[%s1 + $0x490] sm:$0xf]
  %v688 = vld [vmem:[%s1 + $0x494] sm:$0xf]
  %v689 = vld [vmem:[%s1 + $0x498] sm:$0xf]
  %v690 = vld [vmem:[%s1 + $0x49c] sm:$0xf]
  %v691 = vld [vmem:[%s1 + $0x4a0] sm:$0xf]
  %v692 = vld [vmem:[%s1 + $0x4a4] sm:$0xf]
  %v693 = vld [vmem:[%s1 + $0x4a8] sm:$0xf]
  %v694 = vld [vmem:[%s1 + $0x4ac] sm:$0xf]
  %v695 = vld [vmem:[%s1 + $0x4b0] sm:$0xf]
  %v696 = vld [vmem:[%s1 + $0x4b4] sm:$0xf]
  %v697 = vld [vmem:[%s1 + $0x4b8] sm:$0xf]
  %v698 = vld [vmem:[%s1 + $0x4bc] sm:$0xf]
  %v699 = vld [vmem:[%s1 + $0x4c0] sm:$0xf]
  %v700 = vld [vmem:[%s1 + $0x4c4] sm:$0xf]
  %v701 = vld [vmem:[%s1 + $0x4c8] sm:$0xf]
  %v702 = vld [vmem:[%s1 + $0x4cc] sm:$0xf]
  %v703 = vld [vmem:[%s1 + $0x4d0] sm:$0xf]
  %v704 = vld [vmem:[%s1 + $0x4d4] sm:$0xf]
  %v705 = vld [vmem:[%s1 + $0x4d8] sm:$0xf]
  %v706 = vld [vmem:[%s1 + $0x4dc] sm:$0xf]
  %v707 = vld [vmem:[%s1 + $0x4e0] sm:$0xf]
  %v708 = vld [vmem:[%s1 + $0x4e4] sm:$0xf]
  %v709 = vld [vmem:[%s1 + $0x4e8] sm:$0xf]
  %v710 = vld [vmem:[%s1 + $0x4ec] sm:$0xf]
  %v711 = vld [vmem:[%s1 + $0x4f0] sm:$0xf]
  %v712 = vld [vmem:[%s1 + $0x4f4] sm:$0xf]
  %v713 = vld [vmem:[%s1 + $0x4f8] sm:$0xf]
  %v714 = vld [vmem:[%s1 + $0x4fc] sm:$0xf]
  %v715 = vld [vmem:[%s1 + $0x500] sm:$0xf]
  %v716 = vld [vmem:[%s1 + $0x504] sm:$0xf]
  %v717 = vld [vmem:[%s1 + $0x508] sm:$0xf]
  %v718 = vld [vmem:[%s1 + $0x50c] sm:$0xf]
  %v719 = vld [vmem:[%s1 + $0x510] sm:$0xf]
  %v720 = vld [vmem:[%s1 + $0x514] sm:$0xf]
  %v721 = vld [vmem:[%s1 + $0x518] sm:$0xf]
  %v722 = vld [vmem:[%s1 + $0x51c] sm:$0xf]
  %v723 = vld [vmem:[%s1 + $0x520] sm:$0xf]
  %v724 = vld [vmem:[%s1 + $0x524] sm:$0xf]
  %v725 = vld [vmem:[%s1 + $0x528] sm:$0xf]
  %v726 = vld [vmem:[%s1 + $0x52c] sm:$0xf]
  %v727 = vld [vmem:[%s1 + $0x530] sm:$0xf]
  %v728 = vld [vmem:[%s1 + $0x534] sm:$0xf]
  %v729 = vld [vmem:[%s1 + $0x538] sm:$0xf]
  %v730 = vld [vmem:[%s1 + $0x53c] sm:$0xf]
  %v731 = vld [vmem:[%s1 + $0x540] sm:$0xf]
  %v732 = vld [vmem:[%s1 + $0x544] sm:$0xf]
  %v733 = vld [vmem:[%s1 + $0x548] sm:$0xf]
  %v734 = vld [vmem:[%s1 + $0x54c] sm:$0xf]
  %v735 = vld [vmem:[%s1 + $0x550] sm:$0xf]
  %v736 = vld [vmem:[%s1 + $0x554] sm:$0xf]
  %v737 = vld [vmem:[%s1 + $0x558] sm:$0xf]
  %v738 = vld [vmem:[%s1 + $0x55c] sm:$0xf]
  %v739 = vld [vmem:[%s1 + $0x560] sm:$0xf]
  %v740 = vld [vmem:[%s1 + $0x564] sm:$0xf]
  %v741 = vld [vmem:[%s1 + $0x568] sm:$0xf]
  %v742 = vld [vmem:[%s1 + $0x56c] sm:$0xf]
  %v743 = vld [vmem:[%s1 + $0x570] sm:$0xf]
  %v744 = vld [vmem:[%s1 + $0x574] sm:$0xf]
  %v745 = vld [vmem:[%s1 + $0x578] sm:$0xf]
  %v746 = vld [vmem:[%s1 + $0x57c] sm:$0xf]
  %v747 = vld [vmem:[%s1 + $0x580] sm:$0xf]
  %v748 = vld [vmem:[%s1 + $0x584] sm:$0xf]
  %v749 = vld [vmem:[%s1 + $0x588] sm:$0xf]
  %v750 = vld [vmem:[%s1 + $0x58c] sm:$0xf]
  %v751 = vld [vmem:[%s1 + $0x590] sm:$0xf]
  %v752 = vld [vmem:[%s1 + $0x594] sm:$0xf]
  %v753 = vld [vmem:[%s1 + $0x598] sm:$0xf]
  %v754 = vld [vmem:[%s1 + $0x59c] sm:$0xf]
  %v755 = vld [vmem:[%s1 + $0x5a0] sm:$0xf]
  %v756 = vld [vmem:[%s1 + $0x5a4] sm:$0xf]
  %v757 = vld [vmem:[%s1 + $0x5a8] sm:$0xf]
  %v758 = vld [vmem:[%s1 + $0x5ac] sm:$0xf]
  %v759 = vld [vmem:[%s1 + $0x5b0] sm:$0xf]
  %v760 = vld [vmem:[%s1 + $0x5b4] sm:$0xf]
  %v761 = vld [vmem:[%s1 + $0x5b8] sm:$0xf]
  %v762 = vld [vmem:[%s1 + $0x5bc] sm:$0xf]
  %v763 = vld [vmem:[%s1 + $0x5c0] sm:$0xf]
  %v764 = vld [vmem:[%s1 + $0x5c4] sm:$0xf]
  %v765 = vld [vmem:[%s1 + $0x5c8] sm:$0xf]
  %v766 = vld [vmem:[%s1 + $0x5cc] sm:$0xf]
  %v767 = vld [vmem:[%s1 + $0x5d0] sm:$0xf]
  %v768 = vld [vmem:[%s1 + $0x5d4] sm:$0xf]
  %v769 = vld [vmem:[%s1 + $0x5d8] sm:$0xf]
  %v770 = vld [vmem:[%s1 + $0x5dc] sm:$0xf]
  %v771 = vld [vmem:[%s1 + $0x5e0] sm:$0xf]
  %v772 = vld [vmem:[%s1 + $0x5e4] sm:$0xf]
  %v773 = vld [vmem:[%s1 + $0x5e8] sm:$0xf]
  %v774 = vld [vmem:[%s1 + $0x5ec] sm:$0xf]
  %v775 = vld [vmem:[%s1 + $0x5f0] sm:$0xf]
  %v776 = vld [vmem:[%s1 + $0x5f4] sm:$0xf]
  %v777 = vld [vmem:[%s1 + $0x5f8] sm:$0xf]
  %v778 = vld [vmem:[%s1 + $0x5fc] sm:$0xf]
  %v779 = vld [vmem:[%s1 + $0x600] sm:$0xf]
  %v780 = vld [vmem:[%s1 + $0x604] sm:$0xf]
  %v781 = vld [vmem:[%s1 + $0x608] sm:$0xf]
  %v782 = vld [vmem:[%s1 + $0x60c] sm:$0xf]
  %v783 = vld [vmem:[%s1 + $0x610] sm:$0xf]
  %v784 = vld [vmem:[%s1 + $0x614] sm:$0xf]
  %v785 = vld [vmem:[%s1 + $0x618] sm:$0xf]
  %v786 = vld [vmem:[%s1 + $0x61c] sm:$0xf]
  %v787 = vld [vmem:[%s1 + $0x620] sm:$0xf]
  %v788 = vld [vmem:[%s1 + $0x624] sm:$0xf]
  %v789 = vld [vmem:[%s1 + $0x628] sm:$0xf]
  %v790 = vld [vmem:[%s1 + $0x62c] sm:$0xf]
  %v791 = vld [vmem:[%s1 + $0x630] sm:$0xf]
  %v792 = vld [vmem:[%s1 + $0x634] sm:$0xf]
  %v793 = vld [vmem:[%s1 + $0x638] sm:$0xf]
  %v794 = vld [vmem:[%s1 + $0x63c] sm:$0xf]
  %v795 = vld [vmem:[%s1 + $0x640] sm:$0xf]
  %v796 = vld [vmem:[%s1 + $0x644] sm:$0xf]
  %v797 = vld [vmem:[%s1 + $0x648] sm:$0xf]
  %v798 = vld [vmem:[%s1 + $0x64c] sm:$0xf]
  %v799 = vld [vmem:[%s1 + $0x650] sm:$0xf]
  %v800 = vld [vmem:[%s1 + $0x654] sm:$0xf]
  %v801 = vld [vmem:[%s1 + $0x658] sm:$0xf]
  %v802 = vld [vmem:[%s1 + $0x65c] sm:$0xf]
  %v803 = vld [vmem:[%s1 + $0x660] sm:$0xf]
  %v804 = vld [vmem:[%s1 + $0x664] sm:$0xf]
  %v805 = vld [vmem:[%s1 + $0x668] sm:$0xf]
  %v806 = vld [vmem:[%s1 + $0x66c] sm:$0xf]
  %v807 = vld [vmem:[%s1 + $0x670] sm:$0xf]
  %v808 = vld [vmem:[%s1 + $0x674] sm:$0xf]
  %v809 = vld [vmem:[%s1 + $0x678] sm:$0xf]
  %v810 = vld [vmem:[%s1 + $0x67c] sm:$0xf]
  %v811 = vld [vmem:[%s1 + $0x680] sm:$0xf]
  %v812 = vld [vmem:[%s1 + $0x684] sm:$0xf]
  %v813 = vld [vmem:[%s1 + $0x688] sm:$0xf]
  %v814 = vld [vmem:[%s1 + $0x68c] sm:$0xf]
  %v815 = vld [vmem:[%s1 + $0x690] sm:$0xf]
  %v816 = vld [vmem:[%s1 + $0x694] sm:$0xf]
  %v817 = vld [vmem:[%s1 + $0x698] sm:$0xf]
  %v818 = vld [vmem:[%s1 + $0x69c] sm:$0xf]
  %v819 = vld [vmem:[%s1 + $0x6a0] sm:$0xf]
  %v820 = vld [vmem:[%s1 + $0x6a4] sm:$0xf]
  %v821 = vld [vmem:[%s1 + $0x6a8] sm:$0xf]
  %v822 = vld [vmem:[%s1 + $0x6ac] sm:$0xf]
  %v823 = vld [vmem:[%s1 + $0x6b0] sm:$0xf]
  %v824 = vld [vmem:[%s1 + $0x6b4] sm:$0xf]
  %v825 = vld [vmem:[%s1 + $0x6b8] sm:$0xf]
  %v826 = vld [vmem:[%s1 + $0x6bc] sm:$0xf]
  %v827 = vld [vmem:[%s1 + $0x6c0] sm:$0xf]
  %v828 = vld [vmem:[%s1 + $0x6c4] sm:$0xf]
  %v829 = vld [vmem:[%s1 + $0x6c8] sm:$0xf]
  %v830 = vld [vmem:[%s1 + $0x6cc] sm:$0xf]
  %v831 = vld [vmem:[%s1 + $0x6d0] sm:$0xf]
  %v832 = vld [vmem:[%s1 + $0x6d4] sm:$0xf]
  %v833 = vld [vmem:[%s1 + $0x6d8] sm:$0xf]
  %v834 = vld [vmem:[%s1 + $0x6dc] sm:$0xf]
  %v835 = vld [vmem:[%s1 + $0x6e0] sm:$0xf]
  %v836 = vld [vmem:[%s1 + $0x6e4] sm:$0xf]
  %v837 = vld [vmem:[%s1 + $0x6e8] sm:$0xf]
  %v838 = vld [vmem:[%s1 + $0x6ec] sm:$0xf]
  %v839 = vld [vmem:[%s1 + $0x6f0] sm:$0xf]
  %v840 = vld [vmem:[%s1 + $0x6f4] sm:$0xf]
  %v841 = vld [vmem:[%s1 + $0x6f8] sm:$0xf]
  %v842 = vld [vmem:[%s1 + $0x6fc] sm:$0xf]
  %v843 = vld [vmem:[%s1 + $0x700] sm:$0xf]
  %v844 = vld [vmem:[%s1 + $0x704] sm:$0xf]
  %v845 = vld [vmem:[%s1 + $0x708] sm:$0xf]
  %v846 = vld [vmem:[%s1 + $0x70c] sm:$0xf]
  %v847 = vld [vmem:[%s1 + $0x710] sm:$0xf]
  %v848 = vld [vmem:[%s1 + $0x714] sm:$0xf]
  %v849 = vld [vmem:[%s1 + $0x718] sm:$0xf]
  %v850 = vld [vmem:[%s1 + $0x71c] sm:$0xf]
  %v851 = vld [vmem:[%s1 + $0x720] sm:$0xf]
  %v852 = vld [vmem:[%s1 + $0x724] sm:$0xf]
  %v853 = vld [vmem:[%s1 + $0x728] sm:$0xf]
  %v854 = vld [vmem:[%s1 + $0x72c] sm:$0xf]
  %v855 = vld [vmem:[%s1 + $0x730] sm:$0xf]
  %v856 = vld [vmem:[%s1 + $0x734] sm:$0xf]
  %v857 = vld [vmem:[%s1 + $0x738] sm:$0xf]
  %v858 = vld [vmem:[%s1 + $0x73c] sm:$0xf]
  %v859 = vld [vmem:[%s1 + $0x740] sm:$0xf]
  %v860 = vld [vmem:[%s1 + $0x744] sm:$0xf]
  %v861 = vld [vmem:[%s1 + $0x748] sm:$0xf]
  %v862 = vld [vmem:[%s1 + $0x74c] sm:$0xf]
  %v863 = vld [vmem:[%s1 + $0x750] sm:$0xf]
  %v864 = vld [vmem:[%s1 + $0x754] sm:$0xf]
  %v865 = vld [vmem:[%s1 + $0x758] sm:$0xf]
  %v866 = vld [vmem:[%s1 + $0x75c] sm:$0xf]
  %v867 = vld [vmem:[%s1 + $0x760] sm:$0xf]
  %v868 = vld [vmem:[%s1 + $0x764] sm:$0xf]
  %v869 = vld [vmem:[%s1 + $0x768] sm:$0xf]
  %v870 = vld [vmem:[%s1 + $0x76c] sm:$0xf]
  %v871 = vld [vmem:[%s1 + $0x770] sm:$0xf]
  %v872 = vld [vmem:[%s1 + $0x774] sm:$0xf]
  %v873 = vld [vmem:[%s1 + $0x778] sm:$0xf]
  %v874 = vld [vmem:[%s1 + $0x77c] sm:$0xf]
  %v875 = vld [vmem:[%s1 + $0x780] sm:$0xf]
  %v876 = vld [vmem:[%s1 + $0x784] sm:$0xf]
  %v877 = vld [vmem:[%s1 + $0x788] sm:$0xf]
  %v878 = vld [vmem:[%s1 + $0x78c] sm:$0xf]
  %v879 = vld [vmem:[%s1 + $0x790] sm:$0xf]
  %v880 = vld [vmem:[%s1 + $0x794] sm:$0xf]
  %v881 = vld [vmem:[%s1 + $0x798] sm:$0xf]
  %v882 = vld [vmem:[%s1 + $0x79c] sm:$0xf]
  %v883 = vld [vmem:[%s1 + $0x7a0] sm:$0xf]
  %v884 = vld [vmem:[%s1 + $0x7a4] sm:$0xf]
  %v885 = vld [vmem:[%s1 + $0x7a8] sm:$0xf]
  %v886 = vld [vmem:[%s1 + $0x7ac] sm:$0xf]
  %v887 = vld [vmem:[%s1 + $0x7b0] sm:$0xf]
  %v888 = vld [vmem:[%s1 + $0x7b4] sm:$0xf]
  %v889 = vld [vmem:[%s1 + $0x7b8] sm:$0xf]
  %v890 = vld [vmem:[%s1 + $0x7bc] sm:$0xf]
  %v891 = vld [vmem:[%s1 + $0x7c0] sm:$0xf]
  %v892 = vld [vmem:[%s1 + $0x7c4] sm:$0xf]
  %v893 = vld [vmem:[%s1 + $0x7c8] sm:$0xf]
  %v894 = vld [vmem:[%s1 + $0x7cc] sm:$0xf]
  %v895 = vld [vmem:[%s1 + $0x7d0] sm:$0xf]
  %v896 = vld [vmem:[%s1 + $0x7d4] sm:$0xf]
  %v897 = vld [vmem:[%s1 + $0x7d8] sm:$0xf]
  %v898 = vld [vmem:[%s1 + $0x7dc] sm:$0xf]
  %v899 = vld [vmem:[%s1 + $0x7e0] sm:$0xf]
  %v900 = vld [vmem:[%s1 + $0x7e4] sm:$0xf]
  %v901 = vld [vmem:[%s1 + $0x7e8] sm:$0xf]
  %v902 = vld [vmem:[%s1 + $0x7ec] sm:$0xf]
  %v903 = vld [vmem:[%s1 + $0x7f0] sm:$0xf]
  %v904 = vld [vmem:[%s1 + $0x7f4] sm:$0xf]
  %v905 = vld [vmem:[%s1 + $0x7f8] sm:$0xf]
  %v906 = vld [vmem:[%s1 + $0x7fc] sm:$0xf]
  %v907 = vld [vmem:[%s1 + $0x800] sm:$0xf]
  %v908 = vld [vmem:[%s1 + $0x804] sm:$0xf]
  %v909 = vld [vmem:[%s1 + $0x808] sm:$0xf]
  %v910 = vld [vmem:[%s1 + $0x80c] sm:$0xf]
  %v911 = vld [vmem:[%s1 + $0x810] sm:$0xf]
  %v912 = vld [vmem:[%s1 + $0x814] sm:$0xf]
  %v913 = vld [vmem:[%s1 + $0x818] sm:$0xf]
  %v914 = vld [vmem:[%s1 + $0x81c] sm:$0xf]
  %v915 = vld [vmem:[%s1 + $0x820] sm:$0xf]
  %v916 = vld [vmem:[%s1 + $0x824] sm:$0xf]
  %v917 = vld [vmem:[%s1 + $0x828] sm:$0xf]
  %v918 = vld [vmem:[%s1 + $0x82c] sm:$0xf]
  %v919 = vld [vmem:[%s1 + $0x830] sm:$0xf]
  %v920 = vld [vmem:[%s1 + $0x834] sm:$0xf]
  %v921 = vld [vmem:[%s1 + $0x838] sm:$0xf]
  %v922 = vld [vmem:[%s1 + $0x83c] sm:$0xf]
  %v923 = vld [vmem:[%s1 + $0x840] sm:$0xf]
  %v924 = vld [vmem:[%s1 + $0x844] sm:$0xf]
  %v925 = vld [vmem:[%s1 + $0x848] sm:$0xf]
  %v926 = vld [vmem:[%s1 + $0x84c] sm:$0xf]
  %v927 = vld [vmem:[%s1 + $0x850] sm:$0xf]
  %v928 = vld [vmem:[%s1 + $0x854] sm:$0xf]
  %v929 = vld [vmem:[%s1 + $0x858] sm:$0xf]
  %v930 = vld [vmem:[%s1 + $0x85c] sm:$0xf]
  %v931 = vld [vmem:[%s1 + $0x860] sm:$0xf]
  %v932 = vld [vmem:[%s1 + $0x864] sm:$0xf]
  %v933 = vld [vmem:[%s1 + $0x868] sm:$0xf]
  %v934 = vld [vmem:[%s1 + $0x86c] sm:$0xf]
  %v935 = vld [vmem:[%s1 + $0x870] sm:$0xf]
  %v936 = vld [vmem:[%s1 + $0x874] sm:$0xf]
  %v937 = vld [vmem:[%s1 + $0x878] sm:$0xf]
  %v938 = vld [vmem:[%s1 + $0x87c] sm:$0xf]
  %v939 = vld [vmem:[%s1 + $0x880] sm:$0xf]
  %v940 = vld [vmem:[%s1 + $0x884] sm:$0xf]
  %v941 = vld [vmem:[%s1 + $0x888] sm:$0xf]
  %v942 = vld [vmem:[%s1 + $0x88c] sm:$0xf]
  %v943 = vld [vmem:[%s1 + $0x890] sm:$0xf]
  %v944 = vld [vmem:[%s1 + $0x894] sm:$0xf]
  %v945 = vld [vmem:[%s1 + $0x898] sm:$0xf]
  %v946 = vld [vmem:[%s1 + $0x89c] sm:$0xf]
  %v947 = vld [vmem:[%s1 + $0x8a0] sm:$0xf]
  %v948 = vld [vmem:[%s1 + $0x8a4] sm:$0xf]
  %v949 = vld [vmem:[%s1 + $0x8a8] sm:$0xf]
  %v950 = vld [vmem:[%s1 + $0x8ac] sm:$0xf]
  %v951 = vld [vmem:[%s1 + $0x8b0] sm:$0xf]
  %v952 = vld [vmem:[%s1 + $0x8b4] sm:$0xf]
  %v953 = vld [vmem:[%s1 + $0x8b8] sm:$0xf]
  %v954 = vld [vmem:[%s1 + $0x8bc] sm:$0xf]
  %v955 = vld [vmem:[%s1 + $0x8c0] sm:$0xf]
  %v956 = vld [vmem:[%s1 + $0x8c4] sm:$0xf]
  %v957 = vld [vmem:[%s1 + $0x8c8] sm:$0xf]
  %v958 = vld [vmem:[%s1 + $0x8cc] sm:$0xf]
  %v959 = vld [vmem:[%s1 + $0x8d0] sm:$0xf]
  %v960 = vld [vmem:[%s1 + $0x8d4] sm:$0xf]
  %v961 = vld [vmem:[%s1 + $0x8d8] sm:$0xf]
  %v962 = vld [vmem:[%s1 + $0x8dc] sm:$0xf]
  %v963 = vld [vmem:[%s1 + $0x8e0] sm:$0xf]
  %v964 = vld [vmem:[%s1 + $0x8e4] sm:$0xf]
  %v965 = vld [vmem:[%s1 + $0x8e8] sm:$0xf]
  %v966 = vld [vmem:[%s1 + $0x8ec] sm:$0xf]
  %v967 = vld [vmem:[%s1 + $0x8f0] sm:$0xf]
  %v968 = vld [vmem:[%s1 + $0x8f4] sm:$0xf]
  %v969 = vld [vmem:[%s1 + $0x8f8] sm:$0xf]
  %v970 = vld [vmem:[%s1 + $0x8fc] sm:$0xf]
  %v1313 = vunpack.c.l.b16 %v53
  %v1314 = vunpack.c.h.b16 %v53
  %v1315 = vunpack.c.l.b16 %v54
  %v1316 = vunpack.c.h.b16 %v54
  %v1317 = vunpack.c.l.b16 %v55
  %v1318 = vunpack.c.h.b16 %v55
  %v1319 = vunpack.c.l.b16 %v56
  %v1320 = vunpack.c.h.b16 %v56
  %v1321 = vunpack.c.l.b16 %v57
  %v1322 = vunpack.c.h.b16 %v57
  %v1323 = vunpack.c.l.b16 %v58
  %v1324 = vunpack.c.h.b16 %v58
  %v1325 = vunpack.c.l.b16 %v59
  %v1326 = vunpack.c.h.b16 %v59
  %v1327 = vunpack.c.l.b16 %v60
  %v1328 = vunpack.c.h.b16 %v60
  %v1329 = vunpack.c.l.b16 %v61
  %v1330 = vunpack.c.h.b16 %v61
  %v1331 = vunpack.c.l.b16 %v62
  %v1332 = vunpack.c.h.b16 %v62
  %v1333 = vunpack.c.l.b16 %v63
  %v1334 = vunpack.c.h.b16 %v63
  %v1335 = vunpack.c.l.b16 %v64
  %v1336 = vunpack.c.h.b16 %v64
  %v1337 = vunpack.c.l.b16 %v65
  %v1338 = vunpack.c.h.b16 %v65
  %v1339 = vunpack.c.l.b16 %v66
  %v1340 = vunpack.c.h.b16 %v66
  %v1341 = vunpack.c.l.b16 %v67
  %v1342 = vunpack.c.h.b16 %v67
  %v1343 = vunpack.c.l.b16 %v68
  %v1344 = vunpack.c.h.b16 %v68
  %v1345 = vunpack.c.l.b16 %v69
  %v1346 = vunpack.c.h.b16 %v69
  %v1347 = vunpack.c.l.b16 %v70
  %v1348 = vunpack.c.h.b16 %v70
  %v1349 = vunpack.c.l.b16 %v71
  %v1350 = vunpack.c.h.b16 %v71
  %v1351 = vunpack.c.l.b16 %v72
  %v1352 = vunpack.c.h.b16 %v72
  %v1353 = vunpack.c.l.b16 %v73
  %v1354 = vunpack.c.h.b16 %v73
  %v1355 = vunpack.c.l.b16 %v74
  %v1356 = vunpack.c.h.b16 %v74
  %v1357 = vunpack.c.l.b16 %v75
  %v1358 = vunpack.c.h.b16 %v75
  %v1359 = vunpack.c.l.b16 %v76
  %v1360 = vunpack.c.h.b16 %v76
  %v1361 = vunpack.c.l.b16 %v77
  %v1362 = vunpack.c.h.b16 %v77
  %v1363 = vunpack.c.l.b16 %v78
  %v1364 = vunpack.c.h.b16 %v78
  %v1365 = vunpack.c.l.b16 %v79
  %v1366 = vunpack.c.h.b16 %v79
  %v1367 = vunpack.c.l.b16 %v80
  %v1368 = vunpack.c.h.b16 %v80
  %v1369 = vunpack.c.l.b16 %v81
  %v1370 = vunpack.c.h.b16 %v81
  %v1371 = vunpack.c.l.b16 %v82
  %v1372 = vunpack.c.h.b16 %v82
  %v1373 = vunpack.c.l.b16 %v83
  %v1374 = vunpack.c.h.b16 %v83
  %v1375 = vunpack.c.l.b16 %v84
  %v1376 = vunpack.c.h.b16 %v84
  %v1377 = vunpack.c.l.b16 %v85
  %v1378 = vunpack.c.h.b16 %v85
  %v1379 = vunpack.c.l.b16 %v86
  %v1380 = vunpack.c.h.b16 %v86
  %v1381 = vunpack.c.l.b16 %v87
  %v1382 = vunpack.c.h.b16 %v87
  %v1383 = vunpack.c.l.b16 %v88
  %v1384 = vunpack.c.h.b16 %v88
  %v1385 = vunpack.c.l.b16 %v89
  %v1386 = vunpack.c.h.b16 %v89
  %v1387 = vunpack.c.l.b16 %v90
  %v1388 = vunpack.c.h.b16 %v90
  %v1389 = vunpack.c.l.b16 %v91
  %v1390 = vunpack.c.h.b16 %v91
  %v1391 = vunpack.c.l.b16 %v92
  %v1392 = vunpack.c.h.b16 %v92
  %v1393 = vunpack.c.l.b16 %v93
  %v1394 = vunpack.c.h.b16 %v93
  %v1395 = vunpack.c.l.b16 %v94
  %v1396 = vunpack.c.h.b16 %v94
  %v1397 = vunpack.c.l.b16 %v95
  %v1398 = vunpack.c.h.b16 %v95
  %v1399 = vunpack.c.l.b16 %v96
  %v1400 = vunpack.c.h.b16 %v96
  %v1401 = vunpack.c.l.b16 %v97
  %v1402 = vunpack.c.h.b16 %v97
  %v1403 = vunpack.c.l.b16 %v98
  %v1404 = vunpack.c.h.b16 %v98
  %v1405 = vunpack.c.l.b16 %v99
  %v1406 = vunpack.c.h.b16 %v99
  %v1407 = vunpack.c.l.b16 %v100
  %v1408 = vunpack.c.h.b16 %v100
  %v1409 = vunpack.c.l.b16 %v101
  %v1410 = vunpack.c.h.b16 %v101
  %v1411 = vunpack.c.l.b16 %v102
  %v1412 = vunpack.c.h.b16 %v102
  %v1413 = vunpack.c.l.b16 %v103
  %v1414 = vunpack.c.h.b16 %v103
  %v1415 = vunpack.c.l.b16 %v104
  %v1416 = vunpack.c.h.b16 %v104
  %v1417 = vunpack.c.l.b16 %v105
  %v1418 = vunpack.c.h.b16 %v105
  %v1419 = vunpack.c.l.b16 %v106
  %v1420 = vunpack.c.h.b16 %v106
  %v1421 = vunpack.c.l.b16 %v107
  %v1422 = vunpack.c.h.b16 %v107
  %v1423 = vunpack.c.l.b16 %v108
  %v1424 = vunpack.c.h.b16 %v108
  %v1425 = vunpack.c.l.b16 %v109
  %v1426 = vunpack.c.h.b16 %v109
  %v1427 = vunpack.c.l.b16 %v110
  %v1428 = vunpack.c.h.b16 %v110
  %v1429 = vunpack.c.l.b16 %v111
  %v1430 = vunpack.c.h.b16 %v111
  %v1431 = vunpack.c.l.b16 %v112
  %v1432 = vunpack.c.h.b16 %v112
  %v1433 = vunpack.c.l.b16 %v113
  %v1434 = vunpack.c.h.b16 %v113
  %v1435 = vunpack.c.l.b16 %v114
  %v1436 = vunpack.c.h.b16 %v114
  %v1437 = vunpack.c.l.b16 %v115
  %v1438 = vunpack.c.h.b16 %v115
  %v1439 = vunpack.c.l.b16 %v116
  %v1440 = vunpack.c.h.b16 %v116
  %v1441 = vunpack.c.l.b16 %v117
  %v1442 = vunpack.c.h.b16 %v117
  %v1443 = vunpack.c.l.b16 %v118
  %v1444 = vunpack.c.h.b16 %v118
  %v1445 = vunpack.c.l.b16 %v119
  %v1446 = vunpack.c.h.b16 %v119
  %v1447 = vunpack.c.l.b16 %v120
  %v1448 = vunpack.c.h.b16 %v120
  %v1449 = vunpack.c.l.b16 %v121
  %v1450 = vunpack.c.h.b16 %v121
  %v1451 = vunpack.c.l.b16 %v122
  %v1452 = vunpack.c.h.b16 %v122
  %v1453 = vunpack.c.l.b16 %v123
  %v1454 = vunpack.c.h.b16 %v123
  %v1455 = vunpack.c.l.b16 %v124
  %v1456 = vunpack.c.h.b16 %v124
  %v1457 = vunpack.c.l.b16 %v125
  %v1458 = vunpack.c.h.b16 %v125
  %v1459 = vunpack.c.l.b16 %v126
  %v1460 = vunpack.c.h.b16 %v126
  %v1461 = vunpack.c.l.b16 %v127
  %v1462 = vunpack.c.h.b16 %v127
  %v1463 = vunpack.c.l.b16 %v128
  %v1464 = vunpack.c.h.b16 %v128
  %v1465 = vunpack.c.l.b16 %v129
  %v1466 = vunpack.c.h.b16 %v129
  %v1467 = vunpack.c.l.b16 %v130
  %v1468 = vunpack.c.h.b16 %v130
  %v1469 = vunpack.c.l.b16 %v131
  %v1470 = vunpack.c.h.b16 %v131
  %v1471 = vunpack.c.l.b16 %v132
  %v1472 = vunpack.c.h.b16 %v132
  %v1473 = vunpack.c.l.b16 %v133
  %v1474 = vunpack.c.h.b16 %v133
  %v1475 = vunpack.c.l.b16 %v134
  %v1476 = vunpack.c.h.b16 %v134
  %v1477 = vunpack.c.l.b16 %v135
  %v1478 = vunpack.c.h.b16 %v135
  %v1479 = vunpack.c.l.b16 %v136
  %v1480 = vunpack.c.h.b16 %v136
  %v1481 = vunpack.c.l.b16 %v137
  %v1482 = vunpack.c.h.b16 %v137
  %v1483 = vunpack.c.l.b16 %v138
  %v1484 = vunpack.c.h.b16 %v138
  %v1485 = vunpack.c.l.b16 %v139
  %v1486 = vunpack.c.h.b16 %v139
  %v1487 = vunpack.c.l.b16 %v140
  %v1488 = vunpack.c.h.b16 %v140
  %v1489 = vunpack.c.l.b16 %v141
  %v1490 = vunpack.c.h.b16 %v141
  %v1491 = vunpack.c.l.b16 %v142
  %v1492 = vunpack.c.h.b16 %v142
  %v1493 = vunpack.c.l.b16 %v143
  %v1494 = vunpack.c.h.b16 %v143
  %v1495 = vunpack.c.l.b16 %v144
  %v1496 = vunpack.c.h.b16 %v144
  %v1497 = vunpack.c.l.b16 %v145
  %v1498 = vunpack.c.h.b16 %v145
  %v1499 = vunpack.c.l.b16 %v146
  %v1500 = vunpack.c.h.b16 %v146
  %v1501 = vunpack.c.l.b16 %v147
  %v1502 = vunpack.c.h.b16 %v147
  %v1503 = vunpack.c.l.b16 %v148
  %v1504 = vunpack.c.h.b16 %v148
  %v1505 = vunpack.c.l.b16 %v149
  %v1506 = vunpack.c.h.b16 %v149
  %v1507 = vunpack.c.l.b16 %v150
  %v1508 = vunpack.c.h.b16 %v150
  %v1509 = vunpack.c.l.b16 %v151
  %v1510 = vunpack.c.h.b16 %v151
  %v1511 = vunpack.c.l.b16 %v152
  %v1512 = vunpack.c.h.b16 %v152
  %v1513 = vunpack.c.l.b16 %v153
  %v1514 = vunpack.c.h.b16 %v153
  %v1515 = vunpack.c.l.b16 %v154
  %v1516 = vunpack.c.h.b16 %v154
  %v1517 = vunpack.c.l.b16 %v155
  %v1518 = vunpack.c.h.b16 %v155
  %v1519 = vunpack.c.l.b16 %v156
  %v1520 = vunpack.c.h.b16 %v156
  %v1521 = vunpack.c.l.b16 %v157
  %v1522 = vunpack.c.h.b16 %v157
  %v1523 = vunpack.c.l.b16 %v158
  %v1524 = vunpack.c.h.b16 %v158
  %v1525 = vunpack.c.l.b16 %v159
  %v1526 = vunpack.c.h.b16 %v159
  %v1527 = vunpack.c.l.b16 %v160
  %v1528 = vunpack.c.h.b16 %v160
  %v1529 = vunpack.c.l.b16 %v161
  %v1530 = vunpack.c.h.b16 %v161
  %v1531 = vunpack.c.l.b16 %v162
  %v1532 = vunpack.c.h.b16 %v162
  %v1533 = vunpack.c.l.b16 %v163
  %v1534 = vunpack.c.h.b16 %v163
  %v1535 = vunpack.c.l.b16 %v164
  %v1536 = vunpack.c.h.b16 %v164
  %v1537 = vunpack.c.l.b16 %v165
  %v1538 = vunpack.c.h.b16 %v165
  %v1539 = vunpack.c.l.b16 %v166
  %v1540 = vunpack.c.h.b16 %v166
  %v1541 = vunpack.c.l.b16 %v167
  %v1542 = vunpack.c.h.b16 %v167
  %v1543 = vunpack.c.l.b16 %v168
  %v1544 = vunpack.c.h.b16 %v168
  %v1545 = vunpack.c.l.b16 %v169
  %v1546 = vunpack.c.h.b16 %v169
  %v1547 = vunpack.c.l.b16 %v170
  %v1548 = vunpack.c.h.b16 %v170
  %v1549 = vunpack.c.l.b16 %v171
  %v1550 = vunpack.c.h.b16 %v171
  %v1551 = vunpack.c.l.b16 %v172
  %v1552 = vunpack.c.h.b16 %v172
  %v1553 = vunpack.c.l.b16 %v173
  %v1554 = vunpack.c.h.b16 %v173
  %v1555 = vunpack.c.l.b16 %v174
  %v1556 = vunpack.c.h.b16 %v174
  %v1557 = vunpack.c.l.b16 %v175
  %v1558 = vunpack.c.h.b16 %v175
  %v1559 = vunpack.c.l.b16 %v176
  %v1560 = vunpack.c.h.b16 %v176
  %v1561 = vunpack.c.l.b16 %v177
  %v1562 = vunpack.c.h.b16 %v177
  %v1563 = vunpack.c.l.b16 %v178
  %v1564 = vunpack.c.h.b16 %v178
  %v1565 = vunpack.c.l.b16 %v179
  %v1566 = vunpack.c.h.b16 %v179
  %v1567 = vunpack.c.l.b16 %v180
  %v1568 = vunpack.c.h.b16 %v180
  %v1569 = vunpack.c.l.b16 %v181
  %v1570 = vunpack.c.h.b16 %v181
  %v1571 = vunpack.c.l.b16 %v182
  %v1572 = vunpack.c.h.b16 %v182
  %v1573 = vunpack.c.l.b16 %v183
  %v1574 = vunpack.c.h.b16 %v183
  %v1575 = vunpack.c.l.b16 %v184
  %v1576 = vunpack.c.h.b16 %v184
  %v1577 = vunpack.c.l.b16 %v185
  %v1578 = vunpack.c.h.b16 %v185
  %v1579 = vunpack.c.l.b16 %v186
  %v1580 = vunpack.c.h.b16 %v186
  %v1581 = vunpack.c.l.b16 %v187
  %v1582 = vunpack.c.h.b16 %v187
  %v1583 = vunpack.c.l.b16 %v188
  %v1584 = vunpack.c.h.b16 %v188
  %v1585 = vunpack.c.l.b16 %v189
  %v1586 = vunpack.c.h.b16 %v189
  %v1587 = vunpack.c.l.b16 %v190
  %v1588 = vunpack.c.h.b16 %v190
  %v1589 = vunpack.c.l.b16 %v191
  %v1590 = vunpack.c.h.b16 %v191
  %v1591 = vunpack.c.l.b16 %v192
  %v1592 = vunpack.c.h.b16 %v192
  %v1593 = vunpack.c.l.b16 %v193
  %v1594 = vunpack.c.h.b16 %v193
  %v1595 = vunpack.c.l.b16 %v194
  %v1596 = vunpack.c.h.b16 %v194
  %v1597 = vunpack.c.l.b16 %v195
  %v1598 = vunpack.c.h.b16 %v195
  %v1599 = vunpack.c.l.b16 %v196
  %v1600 = vunpack.c.h.b16 %v196
  %v1601 = vunpack.c.l.b16 %v197
  %v1602 = vunpack.c.h.b16 %v197
  %v1603 = vunpack.c.l.b16 %v198
  %v1604 = vunpack.c.h.b16 %v198
  %v1605 = vunpack.c.l.b16 %v199
  %v1606 = vunpack.c.h.b16 %v199
  %v1607 = vunpack.c.l.b16 %v200
  %v1608 = vunpack.c.h.b16 %v200
  %v1609 = vunpack.c.l.b16 %v201
  %v1610 = vunpack.c.h.b16 %v201
  %v1611 = vunpack.c.l.b16 %v202
  %v1612 = vunpack.c.h.b16 %v202
  %v1613 = vunpack.c.l.b16 %v203
  %v1614 = vunpack.c.h.b16 %v203
  %v1615 = vunpack.c.l.b16 %v204
  %v1616 = vunpack.c.h.b16 %v204
  %v1617 = vunpack.c.l.b16 %v205
  %v1618 = vunpack.c.h.b16 %v205
  %v1619 = vunpack.c.l.b16 %v206
  %v1620 = vunpack.c.h.b16 %v206
  %v1621 = vunpack.c.l.b16 %v207
  %v1622 = vunpack.c.h.b16 %v207
  %v1623 = vunpack.c.l.b16 %v208
  %v1624 = vunpack.c.h.b16 %v208
  %v1625 = vunpack.c.l.b16 %v209
  %v1626 = vunpack.c.h.b16 %v209
  %v1627 = vunpack.c.l.b16 %v210
  %v1628 = vunpack.c.h.b16 %v210
  %v1629 = vunpack.c.l.b16 %v211
  %v1630 = vunpack.c.h.b16 %v211
  %v1631 = vunpack.c.l.b16 %v212
  %v1632 = vunpack.c.h.b16 %v212
  %v1633 = vunpack.c.l.b16 %v213
  %v1634 = vunpack.c.h.b16 %v213
  %v1635 = vunpack.c.l.b16 %v214
  %v1636 = vunpack.c.h.b16 %v214
  %v1637 = vunpack.c.l.b16 %v215
  %v1638 = vunpack.c.h.b16 %v215
  %v1639 = vunpack.c.l.b16 %v216
  %v1640 = vunpack.c.h.b16 %v216
  %v1641 = vunpack.c.l.b16 %v217
  %v1642 = vunpack.c.h.b16 %v217
  %v1643 = vunpack.c.l.b16 %v218
  %v1644 = vunpack.c.h.b16 %v218
  %v1645 = vunpack.c.l.b16 %v219
  %v1646 = vunpack.c.h.b16 %v219
  %v1647 = vunpack.c.l.b16 %v220
  %v1648 = vunpack.c.h.b16 %v220
  %v1649 = vunpack.c.l.b16 %v221
  %v1650 = vunpack.c.h.b16 %v221
  %v1651 = vunpack.c.l.b16 %v222
  %v1652 = vunpack.c.h.b16 %v222
  %v1653 = vunpack.c.l.b16 %v223
  %v1654 = vunpack.c.h.b16 %v223
  %v1655 = vunpack.c.l.b16 %v224
  %v1656 = vunpack.c.h.b16 %v224
  %v1657 = vunpack.c.l.b16 %v225
  %v1658 = vunpack.c.h.b16 %v225
  %v1659 = vunpack.c.l.b16 %v226
  %v1660 = vunpack.c.h.b16 %v226
  %v1661 = vunpack.c.l.b16 %v227
  %v1662 = vunpack.c.h.b16 %v227
  %v1663 = vunpack.c.l.b16 %v228
  %v1664 = vunpack.c.h.b16 %v228
  %v1665 = vunpack.c.l.b16 %v229
  %v1666 = vunpack.c.h.b16 %v229
  %v1667 = vunpack.c.l.b16 %v230
  %v1668 = vunpack.c.h.b16 %v230
  %v1669 = vunpack.c.l.b16 %v231
  %v1670 = vunpack.c.h.b16 %v231
  %v1671 = vunpack.c.l.b16 %v232
  %v1672 = vunpack.c.h.b16 %v232
  %v1673 = vunpack.c.l.b16 %v233
  %v1674 = vunpack.c.h.b16 %v233
  %v1675 = vunpack.c.l.b16 %v234
  %v1676 = vunpack.c.h.b16 %v234
  %v1677 = vunpack.c.l.b16 %v235
  %v1678 = vunpack.c.h.b16 %v235
  %v1679 = vunpack.c.l.b16 %v236
  %v1680 = vunpack.c.h.b16 %v236
  %v1681 = vunpack.c.l.b16 %v237
  %v1682 = vunpack.c.h.b16 %v237
  %v1683 = vunpack.c.l.b16 %v238
  %v1684 = vunpack.c.h.b16 %v238
  %v1685 = vunpack.c.l.b16 %v239
  %v1686 = vunpack.c.h.b16 %v239
  %v1687 = vunpack.c.l.b16 %v240
  %v1688 = vunpack.c.h.b16 %v240
  %v1689 = vunpack.c.l.b16 %v241
  %v1690 = vunpack.c.h.b16 %v241
  %v1691 = vunpack.c.l.b16 %v242
  %v1692 = vunpack.c.h.b16 %v242
  %v1693 = vunpack.c.l.b16 %v243
  %v1694 = vunpack.c.h.b16 %v243
  %v1695 = vunpack.c.l.b16 %v244
  %v1696 = vunpack.c.h.b16 %v244
  %v1697 = vunpack.c.l.b16 %v245
  %v1698 = vunpack.c.h.b16 %v245
  %v1699 = vunpack.c.l.b16 %v246
  %v1700 = vunpack.c.h.b16 %v246
  %v1701 = vunpack.c.l.b16 %v247
  %v1702 = vunpack.c.h.b16 %v247
  %v1703 = vunpack.c.l.b16 %v248
  %v1704 = vunpack.c.h.b16 %v248
  %v1705 = vunpack.c.l.b16 %v249
  %v1706 = vunpack.c.h.b16 %v249
  %v1707 = vunpack.c.l.b16 %v250
  %v1708 = vunpack.c.h.b16 %v250
  %v1709 = vunpack.c.l.b16 %v251
  %v1710 = vunpack.c.h.b16 %v251
  %v1711 = vunpack.c.l.b16 %v252
  %v1712 = vunpack.c.h.b16 %v252
  %v1713 = vunpack.c.l.b16 %v253
  %v1714 = vunpack.c.h.b16 %v253
  %v1715 = vunpack.c.l.b16 %v254
  %v1716 = vunpack.c.h.b16 %v254
  %v1717 = vunpack.c.l.b16 %v255
  %v1718 = vunpack.c.h.b16 %v255
  %v1719 = vunpack.c.l.b16 %v256
  %v1720 = vunpack.c.h.b16 %v256
  %v1721 = vunpack.c.l.b16 %v257
  %v1722 = vunpack.c.h.b16 %v257
  %v1723 = vunpack.c.l.b16 %v258
  %v1724 = vunpack.c.h.b16 %v258
  %v1725 = vunpack.c.l.b16 %v259
  %v1726 = vunpack.c.h.b16 %v259
  %v1727 = vunpack.c.l.b16 %v260
  %v1728 = vunpack.c.h.b16 %v260
  %v1729 = vunpack.c.l.b16 %v261
  %v1730 = vunpack.c.h.b16 %v261
  %v1731 = vunpack.c.l.b16 %v262
  %v1732 = vunpack.c.h.b16 %v262
  %v1733 = vunpack.c.l.b16 %v263
  %v1734 = vunpack.c.h.b16 %v263
  %v1735 = vunpack.c.l.b16 %v264
  %v1736 = vunpack.c.h.b16 %v264
  %v1737 = vunpack.c.l.b16 %v265
  %v1738 = vunpack.c.h.b16 %v265
  %v1739 = vunpack.c.l.b16 %v266
  %v1740 = vunpack.c.h.b16 %v266
  %v1741 = vunpack.c.l.b16 %v267
  %v1742 = vunpack.c.h.b16 %v267
  %v1743 = vunpack.c.l.b16 %v268
  %v1744 = vunpack.c.h.b16 %v268
  %v1745 = vunpack.c.l.b16 %v269
  %v1746 = vunpack.c.h.b16 %v269
  %v1747 = vunpack.c.l.b16 %v270
  %v1748 = vunpack.c.h.b16 %v270
  %v1749 = vunpack.c.l.b16 %v271
  %v1750 = vunpack.c.h.b16 %v271
  %v1751 = vunpack.c.l.b16 %v272
  %v1752 = vunpack.c.h.b16 %v272
  %v1753 = vunpack.c.l.b16 %v273
  %v1754 = vunpack.c.h.b16 %v273
  %v1755 = vunpack.c.l.b16 %v274
  %v1756 = vunpack.c.h.b16 %v274
  %v1757 = vunpack.c.l.b16 %v275
  %v1758 = vunpack.c.h.b16 %v275
  %v1759 = vunpack.c.l.b16 %v276
  %v1760 = vunpack.c.h.b16 %v276
  %v1761 = vunpack.c.l.b16 %v277
  %v1762 = vunpack.c.h.b16 %v277
  %v1763 = vunpack.c.l.b16 %v278
  %v1764 = vunpack.c.h.b16 %v278
  %v1765 = vunpack.c.l.b16 %v279
  %v1766 = vunpack.c.h.b16 %v279
  %v1767 = vunpack.c.l.b16 %v280
  %v1768 = vunpack.c.h.b16 %v280
  %v1769 = vunpack.c.l.b16 %v281
  %v1770 = vunpack.c.h.b16 %v281
  %v1771 = vunpack.c.l.b16 %v282
  %v1772 = vunpack.c.h.b16 %v282
  %v1773 = vunpack.c.l.b16 %v283
  %v1774 = vunpack.c.h.b16 %v283
  %v1775 = vunpack.c.l.b16 %v284
  %v1776 = vunpack.c.h.b16 %v284
  %v1777 = vunpack.c.l.b16 %v285
  %v1778 = vunpack.c.h.b16 %v285
  %v1779 = vunpack.c.l.b16 %v286
  %v1780 = vunpack.c.h.b16 %v286
  %v1781 = vunpack.c.l.b16 %v287
  %v1782 = vunpack.c.h.b16 %v287
  %v1783 = vunpack.c.l.b16 %v288
  %v1784 = vunpack.c.h.b16 %v288
  %v1785 = vunpack.c.l.b16 %v289
  %v1786 = vunpack.c.h.b16 %v289
  %v1787 = vunpack.c.l.b16 %v290
  %v1788 = vunpack.c.h.b16 %v290
  %v1789 = vunpack.c.l.b16 %v291
  %v1790 = vunpack.c.h.b16 %v291
  %v1791 = vunpack.c.l.b16 %v292
  %v1792 = vunpack.c.h.b16 %v292
  %v1793 = vunpack.c.l.b16 %v293
  %v1794 = vunpack.c.h.b16 %v293
  %v1795 = vunpack.c.l.b16 %v294
  %v1796 = vunpack.c.h.b16 %v294
  %v1797 = vunpack.c.l.b16 %v295
  %v1798 = vunpack.c.h.b16 %v295
  %v1799 = vunpack.c.l.b16 %v296
  %v1800 = vunpack.c.h.b16 %v296
  %v1801 = vunpack.c.l.b16 %v297
  %v1802 = vunpack.c.h.b16 %v297
  %v1803 = vunpack.c.l.b16 %v298
  %v1804 = vunpack.c.h.b16 %v298
  %v1805 = vunpack.c.l.b16 %v299
  %v1806 = vunpack.c.h.b16 %v299
  %v1807 = vunpack.c.l.b16 %v300
  %v1808 = vunpack.c.h.b16 %v300
  %v1809 = vunpack.c.l.b16 %v301
  %v1810 = vunpack.c.h.b16 %v301
  %v1811 = vunpack.c.l.b16 %v302
  %v1812 = vunpack.c.h.b16 %v302
  %v1813 = vunpack.c.l.b16 %v303
  %v1814 = vunpack.c.h.b16 %v303
  %v1815 = vunpack.c.l.b16 %v304
  %v1816 = vunpack.c.h.b16 %v304
  %v1817 = vunpack.c.l.b16 %v305
  %v1818 = vunpack.c.h.b16 %v305
  %v1819 = vunpack.c.l.b16 %v306
  %v1820 = vunpack.c.h.b16 %v306
  %v1821 = vunpack.c.l.b16 %v307
  %v1822 = vunpack.c.h.b16 %v307
  %v1823 = vunpack.c.l.b16 %v308
  %v1824 = vunpack.c.h.b16 %v308
  %v1825 = vunpack.c.l.b16 %v309
  %v1826 = vunpack.c.h.b16 %v309
  %v1827 = vunpack.c.l.b16 %v310
  %v1828 = vunpack.c.h.b16 %v310
  %v1829 = vunpack.c.l.b16 %v311
  %v1830 = vunpack.c.h.b16 %v311
  %v1831 = vunpack.c.l.b16 %v312
  %v1832 = vunpack.c.h.b16 %v312
  %v1833 = vunpack.c.l.b16 %v313
  %v1834 = vunpack.c.h.b16 %v313
  %v1835 = vunpack.c.l.b16 %v314
  %v1836 = vunpack.c.h.b16 %v314
  %v1837 = vunpack.c.l.b16 %v315
  %v1838 = vunpack.c.h.b16 %v315
  %v1839 = vunpack.c.l.b16 %v316
  %v1840 = vunpack.c.h.b16 %v316
  %v1841 = vunpack.c.l.b16 %v317
  %v1842 = vunpack.c.h.b16 %v317
  %v1843 = vunpack.c.l.b16 %v318
  %v1844 = vunpack.c.h.b16 %v318
  %v1845 = vunpack.c.l.b16 %v319
  %v1846 = vunpack.c.h.b16 %v319
  %v1847 = vunpack.c.l.b16 %v320
  %v1848 = vunpack.c.h.b16 %v320
  %v1849 = vunpack.c.l.b16 %v321
  %v1850 = vunpack.c.h.b16 %v321
  %v1851 = vunpack.c.l.b16 %v322
  %v1852 = vunpack.c.h.b16 %v322
  %v1853 = vunpack.c.l.b16 %v323
  %v1854 = vunpack.c.h.b16 %v323
  %v1855 = vunpack.c.l.b16 %v324
  %v1856 = vunpack.c.h.b16 %v324
  %v1857 = vunpack.c.l.b16 %v325
  %v1858 = vunpack.c.h.b16 %v325
  %v1859 = vunpack.c.l.b16 %v326
  %v1860 = vunpack.c.h.b16 %v326
  %v1861 = vunpack.c.l.b16 %v327
  %v1862 = vunpack.c.h.b16 %v327
  %v1863 = vunpack.c.l.b16 %v328
  %v1864 = vunpack.c.h.b16 %v328
  %v1865 = vunpack.c.l.b16 %v329
  %v1866 = vunpack.c.h.b16 %v329
  %v1867 = vunpack.c.l.b16 %v330
  %v1868 = vunpack.c.h.b16 %v330
  %v1869 = vunpack.c.l.b16 %v331
  %v1870 = vunpack.c.h.b16 %v331
  %v1871 = vunpack.c.l.b16 %v332
  %v1872 = vunpack.c.h.b16 %v332
  %v1873 = vunpack.c.l.b16 %v333
  %v1874 = vunpack.c.h.b16 %v333
  %v1875 = vunpack.c.l.b16 %v334
  %v1876 = vunpack.c.h.b16 %v334
  %v1877 = vunpack.c.l.b16 %v335
  %v1878 = vunpack.c.h.b16 %v335
  %v1879 = vunpack.c.l.b16 %v336
  %v1880 = vunpack.c.h.b16 %v336
  %v1881 = vunpack.c.l.b16 %v337
  %v1882 = vunpack.c.h.b16 %v337
  %v1883 = vunpack.c.l.b16 %v338
  %v1884 = vunpack.c.h.b16 %v338
  %v1885 = vunpack.c.l.b16 %v339
  %v1886 = vunpack.c.h.b16 %v339
  %v1887 = vunpack.c.l.b16 %v340
  %v1888 = vunpack.c.h.b16 %v340
  %v1889 = vunpack.c.l.b16 %v341
  %v1890 = vunpack.c.h.b16 %v341
  %v1891 = vunpack.c.l.b16 %v342
  %v1892 = vunpack.c.h.b16 %v342
  %v1893 = vunpack.c.l.b16 %v343
  %v1894 = vunpack.c.h.b16 %v343
  %v1895 = vunpack.c.l.b16 %v344
  %v1896 = vunpack.c.h.b16 %v344
  %v1897 = vunpack.c.l.b16 %v345
  %v1898 = vunpack.c.h.b16 %v345
  %v1899 = vunpack.c.l.b16 %v346
  %v1900 = vunpack.c.h.b16 %v346
  %v1901 = vunpack.c.l.b16 %v347
  %v1902 = vunpack.c.h.b16 %v347
  %v1903 = vunpack.c.l.b16 %v348
  %v1904 = vunpack.c.h.b16 %v348
  %v1905 = vunpack.c.l.b16 %v349
  %v1906 = vunpack.c.h.b16 %v349
  %v1907 = vunpack.c.l.b16 %v350
  %v1908 = vunpack.c.h.b16 %v350
  %v1909 = vunpack.c.l.b16 %v351
  %v1910 = vunpack.c.h.b16 %v351
  %v1911 = vunpack.c.l.b16 %v352
  %v1912 = vunpack.c.h.b16 %v352
  %v1913 = vunpack.c.l.b16 %v353
  %v1914 = vunpack.c.h.b16 %v353
  %v1915 = vunpack.c.l.b16 %v354
  %v1916 = vunpack.c.h.b16 %v354
  %v1917 = vunpack.c.l.b16 %v355
  %v1918 = vunpack.c.h.b16 %v355
  %v1919 = vunpack.c.l.b16 %v356
  %v1920 = vunpack.c.h.b16 %v356
  %v1921 = vunpack.c.l.b16 %v357
  %v1922 = vunpack.c.h.b16 %v357
  %v1923 = vunpack.c.l.b16 %v358
  %v1924 = vunpack.c.h.b16 %v358
  %v1925 = vunpack.c.l.b16 %v359
  %v1926 = vunpack.c.h.b16 %v359
  %v1927 = vunpack.c.l.b16 %v360
  %v1928 = vunpack.c.h.b16 %v360
  %v1929 = vunpack.c.l.b16 %v361
  %v1930 = vunpack.c.h.b16 %v361
  %v1931 = vunpack.c.l.b16 %v362
  %v1932 = vunpack.c.h.b16 %v362
  %v1933 = vunpack.c.l.b16 %v363
  %v1934 = vunpack.c.h.b16 %v363
  %v1935 = vunpack.c.l.b16 %v364
  %v1936 = vunpack.c.h.b16 %v364
  %v1937 = vunpack.c.l.b16 %v365
  %v1938 = vunpack.c.h.b16 %v365
  %v1939 = vunpack.c.l.b16 %v366
  %v1940 = vunpack.c.h.b16 %v366
  %v1941 = vunpack.c.l.b16 %v367
  %v1942 = vunpack.c.h.b16 %v367
  %v1943 = vunpack.c.l.b16 %v368
  %v1944 = vunpack.c.h.b16 %v368
  %v1945 = vunpack.c.l.b16 %v369
  %v1946 = vunpack.c.h.b16 %v369
  %v1947 = vunpack.c.l.b16 %v370
  %v1948 = vunpack.c.h.b16 %v370
  %v1949 = vunpack.c.l.b16 %v371
  %v1950 = vunpack.c.h.b16 %v371
  %v1951 = vunpack.c.l.b16 %v372
  %v1952 = vunpack.c.h.b16 %v372
  %v1953 = vunpack.c.l.b16 %v373
  %v1954 = vunpack.c.h.b16 %v373
  %v1955 = vunpack.c.l.b16 %v374
  %v1956 = vunpack.c.h.b16 %v374
  %v1957 = vunpack.c.l.b16 %v375
  %v1958 = vunpack.c.h.b16 %v375
  %v1959 = vunpack.c.l.b16 %v376
  %v1960 = vunpack.c.h.b16 %v376
  %v1961 = vunpack.c.l.b16 %v377
  %v1962 = vunpack.c.h.b16 %v377
  %v1963 = vunpack.c.l.b16 %v378
  %v1964 = vunpack.c.h.b16 %v378
  %v1965 = vunpack.c.l.b16 %v379
  %v1966 = vunpack.c.h.b16 %v379
  %v1967 = vunpack.c.l.b16 %v380
  %v1968 = vunpack.c.h.b16 %v380
  %v1969 = vunpack.c.l.b16 %v381
  %v1970 = vunpack.c.h.b16 %v381
  %v1971 = vunpack.c.l.b16 %v382
  %v1972 = vunpack.c.h.b16 %v382
  %v1973 = vunpack.c.l.b16 %v383
  %v1974 = vunpack.c.h.b16 %v383
  %v1975 = vunpack.c.l.b16 %v384
  %v1976 = vunpack.c.h.b16 %v384
  %v1977 = vunpack.c.l.b16 %v385
  %v1978 = vunpack.c.h.b16 %v385
  %v1979 = vunpack.c.l.b16 %v386
  %v1980 = vunpack.c.h.b16 %v386
  %v1981 = vunpack.c.l.b16 %v387
  %v1982 = vunpack.c.h.b16 %v387
  %v1983 = vunpack.c.l.b16 %v388
  %v1984 = vunpack.c.h.b16 %v388
  %v1985 = vunpack.c.l.b16 %v389
  %v1986 = vunpack.c.h.b16 %v389
  %v1987 = vunpack.c.l.b16 %v390
  %v1988 = vunpack.c.h.b16 %v390
  %v1989 = vunpack.c.l.b16 %v391
  %v1990 = vunpack.c.h.b16 %v391
  %v1991 = vunpack.c.l.b16 %v392
  %v1992 = vunpack.c.h.b16 %v392
  %v1993 = vunpack.c.l.b16 %v393
  %v1994 = vunpack.c.h.b16 %v393
  %v1995 = vunpack.c.l.b16 %v394
  %v1996 = vunpack.c.h.b16 %v394
  %v1997 = vpack.c.b16 %v1349, %v1313
  %v1998 = vpack.c.b16 %v1350, %v1314
  %v1999 = vpack.c.b16 %v1351, %v1315
  %v2000 = vpack.c.b16 %v1352, %v1316
  %v2001 = vpack.c.b16 %v1353, %v1317
  %v2002 = vpack.c.b16 %v1354, %v1318
  %v2003 = vpack.c.b16 %v1355, %v1319
  %v2004 = vpack.c.b16 %v1356, %v1320
  %v2005 = vpack.c.b16 %v1357, %v1321
  %v2006 = vpack.c.b16 %v1358, %v1322
  %v2007 = vpack.c.b16 %v1359, %v1323
  %v2008 = vpack.c.b16 %v1360, %v1324
  %v2009 = vpack.c.b16 %v1361, %v1325
  %v2010 = vpack.c.b16 %v1362, %v1326
  %v2011 = vpack.c.b16 %v1363, %v1327
  %v2012 = vpack.c.b16 %v1364, %v1328
  %v2013 = vpack.c.b16 %v1365, %v1329
  %v2014 = vpack.c.b16 %v1366, %v1330
  %v2015 = vpack.c.b16 %v1367, %v1331
  %v2016 = vpack.c.b16 %v1368, %v1332
  %v2017 = vpack.c.b16 %v1369, %v1333
  %v2018 = vpack.c.b16 %v1370, %v1334
  %v2019 = vpack.c.b16 %v1371, %v1335
  %v2020 = vpack.c.b16 %v1372, %v1336
  %v2021 = vpack.c.b16 %v1373, %v1337
  %v2022 = vpack.c.b16 %v1374, %v1338
  %v2023 = vpack.c.b16 %v1375, %v1339
  %v2024 = vpack.c.b16 %v1376, %v1340
  %v2025 = vpack.c.b16 %v1377, %v1341
  %v2026 = vpack.c.b16 %v1378, %v1342
  %v2027 = vpack.c.b16 %v1379, %v1343
  %v2028 = vpack.c.b16 %v1380, %v1344
  %v2029 = vpack.c.b16 %v1381, %v1345
  %v2030 = vpack.c.b16 %v1382, %v1346
  %v2031 = vpack.c.b16 %v1383, %v1347
  %v2032 = vpack.c.b16 %v1384, %v1348
  %v2033 = vpack.c.b16 %v1421, %v1385
  %v2034 = vpack.c.b16 %v1422, %v1386
  %v2035 = vpack.c.b16 %v1423, %v1387
  %v2036 = vpack.c.b16 %v1424, %v1388
  %v2037 = vpack.c.b16 %v1425, %v1389
  %v2038 = vpack.c.b16 %v1426, %v1390
  %v2039 = vpack.c.b16 %v1427, %v1391
  %v2040 = vpack.c.b16 %v1428, %v1392
  %v2041 = vpack.c.b16 %v1429, %v1393
  %v2042 = vpack.c.b16 %v1430, %v1394
  %v2043 = vpack.c.b16 %v1431, %v1395
  %v2044 = vpack.c.b16 %v1432, %v1396
  %v2045 = vpack.c.b16 %v1433, %v1397
  %v2046 = vpack.c.b16 %v1434, %v1398
  %v2047 = vpack.c.b16 %v1435, %v1399
  %v2048 = vpack.c.b16 %v1436, %v1400
  %v2049 = vpack.c.b16 %v1437, %v1401
  %v2050 = vpack.c.b16 %v1438, %v1402
  %v2051 = vpack.c.b16 %v1439, %v1403
  %v2052 = vpack.c.b16 %v1440, %v1404
  %v2053 = vpack.c.b16 %v1441, %v1405
  %v2054 = vpack.c.b16 %v1442, %v1406
  %v2055 = vpack.c.b16 %v1443, %v1407
  %v2056 = vpack.c.b16 %v1444, %v1408
  %v2057 = vpack.c.b16 %v1445, %v1409
  %v2058 = vpack.c.b16 %v1446, %v1410
  %v2059 = vpack.c.b16 %v1447, %v1411
  %v2060 = vpack.c.b16 %v1448, %v1412
  %v2061 = vpack.c.b16 %v1449, %v1413
  %v2062 = vpack.c.b16 %v1450, %v1414
  %v2063 = vpack.c.b16 %v1451, %v1415
  %v2064 = vpack.c.b16 %v1452, %v1416
  %v2065 = vpack.c.b16 %v1453, %v1417
  %v2066 = vpack.c.b16 %v1454, %v1418
  %v2067 = vpack.c.b16 %v1455, %v1419
  %v2068 = vpack.c.b16 %v1456, %v1420
  %v2069 = vpack.c.b16 %v1493, %v1457
  %v2070 = vpack.c.b16 %v1494, %v1458
  %v2071 = vpack.c.b16 %v1495, %v1459
  %v2072 = vpack.c.b16 %v1496, %v1460
  %v2073 = vpack.c.b16 %v1497, %v1461
  %v2074 = vpack.c.b16 %v1498, %v1462
  %v2075 = vpack.c.b16 %v1499, %v1463
  %v2076 = vpack.c.b16 %v1500, %v1464
  %v2077 = vpack.c.b16 %v1501, %v1465
  %v2078 = vpack.c.b16 %v1502, %v1466
  %v2079 = vpack.c.b16 %v1503, %v1467
  %v2080 = vpack.c.b16 %v1504, %v1468
  %v2081 = vpack.c.b16 %v1505, %v1469
  %v2082 = vpack.c.b16 %v1506, %v1470
  %v2083 = vpack.c.b16 %v1507, %v1471
  %v2084 = vpack.c.b16 %v1508, %v1472
  %v2085 = vpack.c.b16 %v1509, %v1473
  %v2086 = vpack.c.b16 %v1510, %v1474
  %v2087 = vpack.c.b16 %v1511, %v1475
  %v2088 = vpack.c.b16 %v1512, %v1476
  %v2089 = vpack.c.b16 %v1513, %v1477
  %v2090 = vpack.c.b16 %v1514, %v1478
  %v2091 = vpack.c.b16 %v1515, %v1479
  %v2092 = vpack.c.b16 %v1516, %v1480
  %v2093 = vpack.c.b16 %v1517, %v1481
  %v2094 = vpack.c.b16 %v1518, %v1482
  %v2095 = vpack.c.b16 %v1519, %v1483
  %v2096 = vpack.c.b16 %v1520, %v1484
  %v2097 = vpack.c.b16 %v1521, %v1485
  %v2098 = vpack.c.b16 %v1522, %v1486
  %v2099 = vpack.c.b16 %v1523, %v1487
  %v2100 = vpack.c.b16 %v1524, %v1488
  %v2101 = vpack.c.b16 %v1525, %v1489
  %v2102 = vpack.c.b16 %v1526, %v1490
  %v2103 = vpack.c.b16 %v1527, %v1491
  %v2104 = vpack.c.b16 %v1528, %v1492
  %v2105 = vpack.c.b16 %v1565, %v1529
  %v2106 = vpack.c.b16 %v1566, %v1530
  %v2107 = vpack.c.b16 %v1567, %v1531
  %v2108 = vpack.c.b16 %v1568, %v1532
  %v2109 = vpack.c.b16 %v1569, %v1533
  %v2110 = vpack.c.b16 %v1570, %v1534
  %v2111 = vpack.c.b16 %v1571, %v1535
  %v2112 = vpack.c.b16 %v1572, %v1536
  %v2113 = vpack.c.b16 %v1573, %v1537
  %v2114 = vpack.c.b16 %v1574, %v1538
  %v2115 = vpack.c.b16 %v1575, %v1539
  %v2116 = vpack.c.b16 %v1576, %v1540
  %v2117 = vpack.c.b16 %v1577, %v1541
  %v2118 = vpack.c.b16 %v1578, %v1542
  %v2119 = vpack.c.b16 %v1579, %v1543
  %v2120 = vpack.c.b16 %v1580, %v1544
  %v2121 = vpack.c.b16 %v1581, %v1545
  %v2122 = vpack.c.b16 %v1582, %v1546
  %v2123 = vpack.c.b16 %v1583, %v1547
  %v2124 = vpack.c.b16 %v1584, %v1548
  %v2125 = vpack.c.b16 %v1585, %v1549
  %v2126 = vpack.c.b16 %v1586, %v1550
  %v2127 = vpack.c.b16 %v1587, %v1551
  %v2128 = vpack.c.b16 %v1588, %v1552
  %v2129 = vpack.c.b16 %v1589, %v1553
  %v2130 = vpack.c.b16 %v1590, %v1554
  %v2131 = vpack.c.b16 %v1591, %v1555
  %v2132 = vpack.c.b16 %v1592, %v1556
  %v2133 = vpack.c.b16 %v1593, %v1557
  %v2134 = vpack.c.b16 %v1594, %v1558
  %v2135 = vpack.c.b16 %v1595, %v1559
  %v2136 = vpack.c.b16 %v1596, %v1560
  %v2137 = vpack.c.b16 %v1597, %v1561
  %v2138 = vpack.c.b16 %v1598, %v1562
  %v2139 = vpack.c.b16 %v1599, %v1563
  %v2140 = vpack.c.b16 %v1600, %v1564
  %v2141 = vpack.c.b16 %v1637, %v1601
  %v2142 = vpack.c.b16 %v1638, %v1602
  %v2143 = vpack.c.b16 %v1639, %v1603
  %v2144 = vpack.c.b16 %v1640, %v1604
  %v2145 = vpack.c.b16 %v1641, %v1605
  %v2146 = vpack.c.b16 %v1642, %v1606
  %v2147 = vpack.c.b16 %v1643, %v1607
  %v2148 = vpack.c.b16 %v1644, %v1608
  %v2149 = vpack.c.b16 %v1645, %v1609
  %v2150 = vpack.c.b16 %v1646, %v1610
  %v2151 = vpack.c.b16 %v1647, %v1611
  %v2152 = vpack.c.b16 %v1648, %v1612
  %v2153 = vpack.c.b16 %v1649, %v1613
  %v2154 = vpack.c.b16 %v1650, %v1614
  %v2155 = vpack.c.b16 %v1651, %v1615
  %v2156 = vpack.c.b16 %v1652, %v1616
  %v2157 = vpack.c.b16 %v1653, %v1617
  %v2158 = vpack.c.b16 %v1654, %v1618
  %v2159 = vpack.c.b16 %v1655, %v1619
  %v2160 = vpack.c.b16 %v1656, %v1620
  %v2161 = vpack.c.b16 %v1657, %v1621
  %v2162 = vpack.c.b16 %v1658, %v1622
  %v2163 = vpack.c.b16 %v1659, %v1623
  %v2164 = vpack.c.b16 %v1660, %v1624
  %v2165 = vpack.c.b16 %v1661, %v1625
  %v2166 = vpack.c.b16 %v1662, %v1626
  %v2167 = vpack.c.b16 %v1663, %v1627
  %v2168 = vpack.c.b16 %v1664, %v1628
  %v2169 = vpack.c.b16 %v1665, %v1629
  %v2170 = vpack.c.b16 %v1666, %v1630
  %v2171 = vpack.c.b16 %v1667, %v1631
  %v2172 = vpack.c.b16 %v1668, %v1632
  %v2173 = vpack.c.b16 %v1669, %v1633
  %v2174 = vpack.c.b16 %v1670, %v1634
  %v2175 = vpack.c.b16 %v1671, %v1635
  %v2176 = vpack.c.b16 %v1672, %v1636
  %v2177 = vpack.c.b16 %v1709, %v1673
  %v2178 = vpack.c.b16 %v1710, %v1674
  %v2179 = vpack.c.b16 %v1711, %v1675
  %v2180 = vpack.c.b16 %v1712, %v1676
  %v2181 = vpack.c.b16 %v1713, %v1677
  %v2182 = vpack.c.b16 %v1714, %v1678
  %v2183 = vpack.c.b16 %v1715, %v1679
  %v2184 = vpack.c.b16 %v1716, %v1680
  %v2185 = vpack.c.b16 %v1717, %v1681
  %v2186 = vpack.c.b16 %v1718, %v1682
  %v2187 = vpack.c.b16 %v1719, %v1683
  %v2188 = vpack.c.b16 %v1720, %v1684
  %v2189 = vpack.c.b16 %v1721, %v1685
  %v2190 = vpack.c.b16 %v1722, %v1686
  %v2191 = vpack.c.b16 %v1723, %v1687
  %v2192 = vpack.c.b16 %v1724, %v1688
  %v2193 = vpack.c.b16 %v1725, %v1689
  %v2194 = vpack.c.b16 %v1726, %v1690
  %v2195 = vpack.c.b16 %v1727, %v1691
  %v2196 = vpack.c.b16 %v1728, %v1692
  %v2197 = vpack.c.b16 %v1729, %v1693
  %v2198 = vpack.c.b16 %v1730, %v1694
  %v2199 = vpack.c.b16 %v1731, %v1695
  %v2200 = vpack.c.b16 %v1732, %v1696
  %v2201 = vpack.c.b16 %v1733, %v1697
  %v2202 = vpack.c.b16 %v1734, %v1698
  %v2203 = vpack.c.b16 %v1735, %v1699
  %v2204 = vpack.c.b16 %v1736, %v1700
  %v2205 = vpack.c.b16 %v1737, %v1701
  %v2206 = vpack.c.b16 %v1738, %v1702
  %v2207 = vpack.c.b16 %v1739, %v1703
  %v2208 = vpack.c.b16 %v1740, %v1704
  %v2209 = vpack.c.b16 %v1741, %v1705
  %v2210 = vpack.c.b16 %v1742, %v1706
  %v2211 = vpack.c.b16 %v1743, %v1707
  %v2212 = vpack.c.b16 %v1744, %v1708
  %v2213 = vpack.c.b16 %v1781, %v1745
  %v2214 = vpack.c.b16 %v1782, %v1746
  %v2215 = vpack.c.b16 %v1783, %v1747
  %v2216 = vpack.c.b16 %v1784, %v1748
  %v2217 = vpack.c.b16 %v1785, %v1749
  %v2218 = vpack.c.b16 %v1786, %v1750
  %v2219 = vpack.c.b16 %v1787, %v1751
  %v2220 = vpack.c.b16 %v1788, %v1752
  %v2221 = vpack.c.b16 %v1789, %v1753
  %v2222 = vpack.c.b16 %v1790, %v1754
  %v2223 = vpack.c.b16 %v1791, %v1755
  %v2224 = vpack.c.b16 %v1792, %v1756
  %v2225 = vpack.c.b16 %v1793, %v1757
  %v2226 = vpack.c.b16 %v1794, %v1758
  %v2227 = vpack.c.b16 %v1795, %v1759
  %v2228 = vpack.c.b16 %v1796, %v1760
  %v2229 = vpack.c.b16 %v1797, %v1761
  %v2230 = vpack.c.b16 %v1798, %v1762
  %v2231 = vpack.c.b16 %v1799, %v1763
  %v2232 = vpack.c.b16 %v1800, %v1764
  %v2233 = vpack.c.b16 %v1801, %v1765
  %v2234 = vpack.c.b16 %v1802, %v1766
  %v2235 = vpack.c.b16 %v1803, %v1767
  %v2236 = vpack.c.b16 %v1804, %v1768
  %v2237 = vpack.c.b16 %v1805, %v1769
  %v2238 = vpack.c.b16 %v1806, %v1770
  %v2239 = vpack.c.b16 %v1807, %v1771
  %v2240 = vpack.c.b16 %v1808, %v1772
  %v2241 = vpack.c.b16 %v1809, %v1773
  %v2242 = vpack.c.b16 %v1810, %v1774
  %v2243 = vpack.c.b16 %v1811, %v1775
  %v2244 = vpack.c.b16 %v1812, %v1776
  %v2245 = vpack.c.b16 %v1813, %v1777
  %v2246 = vpack.c.b16 %v1814, %v1778
  %v2247 = vpack.c.b16 %v1815, %v1779
  %v2248 = vpack.c.b16 %v1816, %v1780
  %v2249 = vpack.c.b16 %v1853, %v1817
  %v2250 = vpack.c.b16 %v1854, %v1818
  %v2251 = vpack.c.b16 %v1855, %v1819
  %v2252 = vpack.c.b16 %v1856, %v1820
  %v2253 = vpack.c.b16 %v1857, %v1821
  %v2254 = vpack.c.b16 %v1858, %v1822
  %v2255 = vpack.c.b16 %v1859, %v1823
  %v2256 = vpack.c.b16 %v1860, %v1824
  %v2257 = vpack.c.b16 %v1861, %v1825
  %v2258 = vpack.c.b16 %v1862, %v1826
  %v2259 = vpack.c.b16 %v1863, %v1827
  %v2260 = vpack.c.b16 %v1864, %v1828
  %v2261 = vpack.c.b16 %v1865, %v1829
  %v2262 = vpack.c.b16 %v1866, %v1830
  %v2263 = vpack.c.b16 %v1867, %v1831
  %v2264 = vpack.c.b16 %v1868, %v1832
  %v2265 = vpack.c.b16 %v1869, %v1833
  %v2266 = vpack.c.b16 %v1870, %v1834
  %v2267 = vpack.c.b16 %v1871, %v1835
  %v2268 = vpack.c.b16 %v1872, %v1836
  %v2269 = vpack.c.b16 %v1873, %v1837
  %v2270 = vpack.c.b16 %v1874, %v1838
  %v2271 = vpack.c.b16 %v1875, %v1839
  %v2272 = vpack.c.b16 %v1876, %v1840
  %v2273 = vpack.c.b16 %v1877, %v1841
  %v2274 = vpack.c.b16 %v1878, %v1842
  %v2275 = vpack.c.b16 %v1879, %v1843
  %v2276 = vpack.c.b16 %v1880, %v1844
  %v2277 = vpack.c.b16 %v1881, %v1845
  %v2278 = vpack.c.b16 %v1882, %v1846
  %v2279 = vpack.c.b16 %v1883, %v1847
  %v2280 = vpack.c.b16 %v1884, %v1848
  %v2281 = vpack.c.b16 %v1885, %v1849
  %v2282 = vpack.c.b16 %v1886, %v1850
  %v2283 = vpack.c.b16 %v1887, %v1851
  %v2284 = vpack.c.b16 %v1888, %v1852
  %v2285 = vpack.c.b16 %v1925, %v1889
  %v2286 = vpack.c.b16 %v1926, %v1890
  %v2287 = vpack.c.b16 %v1927, %v1891
  %v2288 = vpack.c.b16 %v1928, %v1892
  %v2289 = vpack.c.b16 %v1929, %v1893
  %v2290 = vpack.c.b16 %v1930, %v1894
  %v2291 = vpack.c.b16 %v1931, %v1895
  %v2292 = vpack.c.b16 %v1932, %v1896
  %v2293 = vpack.c.b16 %v1933, %v1897
  %v2294 = vpack.c.b16 %v1934, %v1898
  %v2295 = vpack.c.b16 %v1935, %v1899
  %v2296 = vpack.c.b16 %v1936, %v1900
  %v2297 = vpack.c.b16 %v1937, %v1901
  %v2298 = vpack.c.b16 %v1938, %v1902
  %v2299 = vpack.c.b16 %v1939, %v1903
  %v2300 = vpack.c.b16 %v1940, %v1904
  %v2301 = vpack.c.b16 %v1941, %v1905
  %v2302 = vpack.c.b16 %v1942, %v1906
  %v2303 = vpack.c.b16 %v1943, %v1907
  %v2304 = vpack.c.b16 %v1944, %v1908
  %v2305 = vpack.c.b16 %v1945, %v1909
  %v2306 = vpack.c.b16 %v1946, %v1910
  %v2307 = vpack.c.b16 %v1947, %v1911
  %v2308 = vpack.c.b16 %v1948, %v1912
  %v2309 = vpack.c.b16 %v1949, %v1913
  %v2310 = vpack.c.b16 %v1950, %v1914
  %v2311 = vpack.c.b16 %v1951, %v1915
  %v2312 = vpack.c.b16 %v1952, %v1916
  %v2313 = vpack.c.b16 %v1953, %v1917
  %v2314 = vpack.c.b16 %v1954, %v1918
  %v2315 = vpack.c.b16 %v1955, %v1919
  %v2316 = vpack.c.b16 %v1956, %v1920
  %v2317 = vpack.c.b16 %v1957, %v1921
  %v2318 = vpack.c.b16 %v1958, %v1922
  %v2319 = vpack.c.b16 %v1959, %v1923
  %v2320 = vpack.c.b16 %v1960, %v1924
  %v2321 = vpack.c.b16 %v1961, %v1961
  %v2322 = vpack.c.b16 %v1962, %v1962
  %v2323 = vpack.c.b16 %v1963, %v1963
  %v2324 = vpack.c.b16 %v1964, %v1964
  %v2325 = vpack.c.b16 %v1965, %v1965
  %v2326 = vpack.c.b16 %v1966, %v1966
  %v2327 = vpack.c.b16 %v1967, %v1967
  %v2328 = vpack.c.b16 %v1968, %v1968
  %v2329 = vpack.c.b16 %v1969, %v1969
  %v2330 = vpack.c.b16 %v1970, %v1970
  %v2331 = vpack.c.b16 %v1971, %v1971
  %v2332 = vpack.c.b16 %v1972, %v1972
  %v2333 = vpack.c.b16 %v1973, %v1973
  %v2334 = vpack.c.b16 %v1974, %v1974
  %v2335 = vpack.c.b16 %v1975, %v1975
  %v2336 = vpack.c.b16 %v1976, %v1976
  %v2337 = vpack.c.b16 %v1977, %v1977
  %v2338 = vpack.c.b16 %v1978, %v1978
  %v2339 = vpack.c.b16 %v1979, %v1979
  %v2340 = vpack.c.b16 %v1980, %v1980
  %v2341 = vpack.c.b16 %v1981, %v1981
  %v2342 = vpack.c.b16 %v1982, %v1982
  %v2343 = vpack.c.b16 %v1983, %v1983
  %v2344 = vpack.c.b16 %v1984, %v1984
  %v2345 = vpack.c.b16 %v1985, %v1985
  %v2346 = vpack.c.b16 %v1986, %v1986
  %v2347 = vpack.c.b16 %v1987, %v1987
  %v2348 = vpack.c.b16 %v1988, %v1988
  %v2349 = vpack.c.b16 %v1989, %v1989
  %v2350 = vpack.c.b16 %v1990, %v1990
  %v2351 = vpack.c.b16 %v1991, %v1991
  %v2352 = vpack.c.b16 %v1992, %v1992
  %v2353 = vpack.c.b16 %v1993, %v1993
  %v2354 = vpack.c.b16 %v1994, %v1994
  %v2355 = vpack.c.b16 %v1995, %v1995
  %v2356 = vpack.c.b16 %v1996, %v1996
  %v3293 = vunpack.c.l.b16 %v395
  %v3294 = vunpack.c.l.b16 %v396
  %v3295 = vunpack.c.l.b16 %v397
  %v3296 = vunpack.c.l.b16 %v398
  %v3297 = vunpack.c.l.b16 %v399
  %v3298 = vunpack.c.l.b16 %v400
  %v3299 = vunpack.c.l.b16 %v401
  %v3300 = vunpack.c.l.b16 %v402
  %v3301 = vunpack.c.l.b16 %v403
  %v3302 = vunpack.c.l.b16 %v404
  %v3303 = vunpack.c.l.b16 %v405
  %v3304 = vunpack.c.l.b16 %v406
  %v3305 = vunpack.c.l.b16 %v407
  %v3306 = vunpack.c.l.b16 %v408
  %v3307 = vunpack.c.l.b16 %v409
  %v3308 = vunpack.c.l.b16 %v410
  %v3309 = vunpack.c.l.b16 %v411
  %v3310 = vunpack.c.l.b16 %v412
  %v3311 = vunpack.c.l.b16 %v413
  %v3312 = vunpack.c.l.b16 %v414
  %v3313 = vunpack.c.l.b16 %v415
  %v3314 = vunpack.c.l.b16 %v416
  %v3315 = vunpack.c.l.b16 %v417
  %v3316 = vunpack.c.l.b16 %v418
  %v3317 = vunpack.c.l.b16 %v419
  %v3318 = vunpack.c.l.b16 %v420
  %v3319 = vunpack.c.l.b16 %v421
  %v3320 = vunpack.c.l.b16 %v422
  %v3321 = vunpack.c.l.b16 %v423
  %v3322 = vunpack.c.l.b16 %v424
  %v3323 = vunpack.c.l.b16 %v425
  %v3324 = vunpack.c.l.b16 %v426
  %v3325 = vunpack.c.l.b16 %v427
  %v3326 = vunpack.c.l.b16 %v428
  %v3327 = vunpack.c.l.b16 %v429
  %v3328 = vunpack.c.l.b16 %v430
  %v3329 = vunpack.c.l.b16 %v431
  %v3330 = vunpack.c.l.b16 %v432
  %v3331 = vunpack.c.l.b16 %v433
  %v3332 = vunpack.c.l.b16 %v434
  %v3333 = vunpack.c.l.b16 %v435
  %v3334 = vunpack.c.l.b16 %v436
  %v3335 = vunpack.c.l.b16 %v437
  %v3336 = vunpack.c.l.b16 %v438
  %v3337 = vunpack.c.l.b16 %v439
  %v3338 = vunpack.c.l.b16 %v440
  %v3339 = vunpack.c.l.b16 %v441
  %v3340 = vunpack.c.l.b16 %v442
  %v3341 = vunpack.c.l.b16 %v443
  %v3342 = vunpack.c.l.b16 %v444
  %v3343 = vunpack.c.l.b16 %v445
  %v3344 = vunpack.c.l.b16 %v446
  %v3345 = vunpack.c.l.b16 %v447
  %v3346 = vunpack.c.l.b16 %v448
  %v3347 = vunpack.c.l.b16 %v449
  %v3348 = vunpack.c.l.b16 %v450
  %v3349 = vunpack.c.l.b16 %v451
  %v3350 = vunpack.c.l.b16 %v452
  %v3351 = vunpack.c.l.b16 %v453
  %v3352 = vunpack.c.l.b16 %v454
  %v3353 = vunpack.c.l.b16 %v455
  %v3354 = vunpack.c.l.b16 %v456
  %v3355 = vunpack.c.l.b16 %v457
  %v3356 = vunpack.c.l.b16 %v458
  %v3357 = vunpack.c.l.b16 %v459
  %v3358 = vunpack.c.l.b16 %v460
  %v3359 = vunpack.c.l.b16 %v461
  %v3360 = vunpack.c.l.b16 %v462
  %v3361 = vunpack.c.l.b16 %v463
  %v3362 = vunpack.c.l.b16 %v464
  %v3363 = vunpack.c.l.b16 %v465
  %v3364 = vunpack.c.l.b16 %v466
  %v3365 = vunpack.c.l.b16 %v467
  %v3366 = vunpack.c.l.b16 %v468
  %v3367 = vunpack.c.l.b16 %v469
  %v3368 = vunpack.c.l.b16 %v470
  %v3369 = vunpack.c.l.b16 %v471
  %v3370 = vunpack.c.l.b16 %v472
  %v3371 = vunpack.c.l.b16 %v473
  %v3372 = vunpack.c.l.b16 %v474
  %v3373 = vunpack.c.l.b16 %v475
  %v3374 = vunpack.c.l.b16 %v476
  %v3375 = vunpack.c.l.b16 %v477
  %v3376 = vunpack.c.l.b16 %v478
  %v3377 = vunpack.c.l.b16 %v479
  %v3378 = vunpack.c.l.b16 %v480
  %v3379 = vunpack.c.l.b16 %v481
  %v3380 = vunpack.c.l.b16 %v482
  %v3381 = vunpack.c.l.b16 %v483
  %v3382 = vunpack.c.l.b16 %v484
  %v3383 = vunpack.c.l.b16 %v485
  %v3384 = vunpack.c.l.b16 %v486
  %v3385 = vunpack.c.l.b16 %v487
  %v3386 = vunpack.c.l.b16 %v488
  %v3387 = vunpack.c.l.b16 %v489
  %v3388 = vunpack.c.l.b16 %v490
  %v3389 = vunpack.c.l.b16 %v491
  %v3390 = vunpack.c.l.b16 %v492
  %v3391 = vunpack.c.l.b16 %v493
  %v3392 = vunpack.c.l.b16 %v494
  %v3393 = vunpack.c.l.b16 %v495
  %v3394 = vunpack.c.l.b16 %v496
  %v3395 = vunpack.c.l.b16 %v497
  %v3396 = vunpack.c.l.b16 %v498
  %v3397 = vunpack.c.l.b16 %v499
  %v3398 = vunpack.c.l.b16 %v500
  %v3399 = vunpack.c.l.b16 %v501
  %v3400 = vunpack.c.l.b16 %v502
  %v3401 = vunpack.c.l.b16 %v503
  %v3402 = vunpack.c.l.b16 %v504
  %v3403 = vunpack.c.l.b16 %v505
  %v3404 = vunpack.c.l.b16 %v506
  %v3405 = vunpack.c.l.b16 %v507
  %v3406 = vunpack.c.l.b16 %v508
  %v3407 = vunpack.c.l.b16 %v509
  %v3408 = vunpack.c.l.b16 %v510
  %v3409 = vunpack.c.l.b16 %v511
  %v3410 = vunpack.c.l.b16 %v512
  %v3411 = vunpack.c.l.b16 %v513
  %v3412 = vunpack.c.l.b16 %v514
  %v3413 = vunpack.c.l.b16 %v515
  %v3414 = vunpack.c.l.b16 %v516
  %v3415 = vunpack.c.l.b16 %v517
  %v3416 = vunpack.c.l.b16 %v518
  %v3417 = vunpack.c.l.b16 %v519
  %v3418 = vunpack.c.l.b16 %v520
  %v3419 = vunpack.c.l.b16 %v521
  %v3420 = vunpack.c.l.b16 %v522
  %v3421 = vunpack.c.l.b16 %v523
  %v3422 = vunpack.c.l.b16 %v524
  %v3423 = vunpack.c.l.b16 %v525
  %v3424 = vunpack.c.l.b16 %v526
  %v3425 = vunpack.c.l.b16 %v527
  %v3426 = vunpack.c.l.b16 %v528
  %v3427 = vunpack.c.l.b16 %v529
  %v3428 = vunpack.c.l.b16 %v530
  %v3429 = vunpack.c.l.b16 %v531
  %v3430 = vunpack.c.l.b16 %v532
  %v3431 = vunpack.c.l.b16 %v533
  %v3432 = vunpack.c.l.b16 %v534
  %v3433 = vunpack.c.l.b16 %v535
  %v3434 = vunpack.c.l.b16 %v536
  %v3435 = vunpack.c.l.b16 %v537
  %v3436 = vunpack.c.l.b16 %v538
  %v3437 = vunpack.c.l.b16 %v539
  %v3438 = vunpack.c.l.b16 %v540
  %v3439 = vunpack.c.l.b16 %v541
  %v3440 = vunpack.c.l.b16 %v542
  %v3441 = vunpack.c.l.b16 %v543
  %v3442 = vunpack.c.l.b16 %v544
  %v3443 = vunpack.c.l.b16 %v545
  %v3444 = vunpack.c.l.b16 %v546
  %v3445 = vunpack.c.l.b16 %v547
  %v3446 = vunpack.c.l.b16 %v548
  %v3447 = vunpack.c.l.b16 %v549
  %v3448 = vunpack.c.l.b16 %v550
  %v3449 = vunpack.c.l.b16 %v551
  %v3450 = vunpack.c.l.b16 %v552
  %v3451 = vunpack.c.l.b16 %v553
  %v3452 = vunpack.c.l.b16 %v554
  %v3453 = vunpack.c.l.b16 %v555
  %v3454 = vunpack.c.l.b16 %v556
  %v3455 = vunpack.c.l.b16 %v557
  %v3456 = vunpack.c.l.b16 %v558
  %v3457 = vunpack.c.l.b16 %v559
  %v3458 = vunpack.c.l.b16 %v560
  %v3459 = vunpack.c.l.b16 %v561
  %v3460 = vunpack.c.l.b16 %v562
  %v3461 = vunpack.c.l.b16 %v563
  %v3462 = vunpack.c.l.b16 %v564
  %v3463 = vunpack.c.l.b16 %v565
  %v3464 = vunpack.c.l.b16 %v566
  %v3465 = vunpack.c.l.b16 %v567
  %v3466 = vunpack.c.l.b16 %v568
  %v3467 = vunpack.c.l.b16 %v569
  %v3468 = vunpack.c.l.b16 %v570
  %v3469 = vunpack.c.l.b16 %v571
  %v3470 = vunpack.c.l.b16 %v572
  %v3471 = vunpack.c.l.b16 %v573
  %v3472 = vunpack.c.l.b16 %v574
  %v3473 = vunpack.c.l.b16 %v575
  %v3474 = vunpack.c.l.b16 %v576
  %v3475 = vunpack.c.l.b16 %v577
  %v3476 = vunpack.c.l.b16 %v578
  %v3477 = vunpack.c.l.b16 %v579
  %v3478 = vunpack.c.l.b16 %v580
  %v3479 = vunpack.c.l.b16 %v581
  %v3480 = vunpack.c.l.b16 %v582
  %v3481 = vunpack.c.l.b16 %v583
  %v3482 = vunpack.c.l.b16 %v584
  %v3483 = vunpack.c.l.b16 %v585
  %v3484 = vunpack.c.l.b16 %v586
  %v3485 = vunpack.c.l.b16 %v587
  %v3486 = vunpack.c.l.b16 %v588
  %v3487 = vunpack.c.l.b16 %v589
  %v3488 = vunpack.c.l.b16 %v590
  %v3489 = vunpack.c.l.b16 %v591
  %v3490 = vunpack.c.l.b16 %v592
  %v3491 = vunpack.c.l.b16 %v593
  %v3492 = vunpack.c.l.b16 %v594
  %v3493 = vunpack.c.l.b16 %v595
  %v3494 = vunpack.c.l.b16 %v596
  %v3495 = vunpack.c.l.b16 %v597
  %v3496 = vunpack.c.l.b16 %v598
  %v3497 = vunpack.c.l.b16 %v599
  %v3498 = vunpack.c.l.b16 %v600
  %v3499 = vunpack.c.l.b16 %v601
  %v3500 = vunpack.c.l.b16 %v602
  %v3501 = vunpack.c.l.b16 %v603
  %v3502 = vunpack.c.l.b16 %v604
  %v3503 = vunpack.c.l.b16 %v605
  %v3504 = vunpack.c.l.b16 %v606
  %v3505 = vunpack.c.l.b16 %v607
  %v3506 = vunpack.c.l.b16 %v608
  %v3507 = vunpack.c.l.b16 %v609
  %v3508 = vunpack.c.l.b16 %v610
  %v3509 = vunpack.c.l.b16 %v611
  %v3510 = vunpack.c.l.b16 %v612
  %v3511 = vunpack.c.l.b16 %v613
  %v3512 = vunpack.c.l.b16 %v614
  %v3513 = vunpack.c.l.b16 %v615
  %v3514 = vunpack.c.l.b16 %v616
  %v3515 = vunpack.c.l.b16 %v617
  %v3516 = vunpack.c.l.b16 %v618
  %v3517 = vunpack.c.l.b16 %v619
  %v3518 = vunpack.c.l.b16 %v620
  %v3519 = vunpack.c.l.b16 %v621
  %v3520 = vunpack.c.l.b16 %v622
  %v3521 = vunpack.c.l.b16 %v623
  %v3522 = vunpack.c.l.b16 %v624
  %v3523 = vunpack.c.l.b16 %v625
  %v3524 = vunpack.c.l.b16 %v626
  %v3525 = vunpack.c.l.b16 %v627
  %v3526 = vunpack.c.l.b16 %v628
  %v3527 = vunpack.c.l.b16 %v629
  %v3528 = vunpack.c.l.b16 %v630
  %v3529 = vunpack.c.l.b16 %v631
  %v3530 = vunpack.c.l.b16 %v632
  %v3531 = vunpack.c.l.b16 %v633
  %v3532 = vunpack.c.l.b16 %v634
  %v3533 = vunpack.c.l.b16 %v635
  %v3534 = vunpack.c.l.b16 %v636
  %v3535 = vunpack.c.l.b16 %v637
  %v3536 = vunpack.c.l.b16 %v638
  %v3537 = vunpack.c.l.b16 %v639
  %v3538 = vunpack.c.l.b16 %v640
  %v3539 = vunpack.c.l.b16 %v641
  %v3540 = vunpack.c.l.b16 %v642
  %v3541 = vunpack.c.l.b16 %v643
  %v3542 = vunpack.c.l.b16 %v644
  %v3543 = vunpack.c.l.b16 %v645
  %v3544 = vunpack.c.l.b16 %v646
  %v3545 = vunpack.c.l.b16 %v647
  %v3546 = vunpack.c.l.b16 %v648
  %v3547 = vunpack.c.l.b16 %v649
  %v3548 = vunpack.c.l.b16 %v650
  %v3549 = vunpack.c.l.b16 %v651
  %v3550 = vunpack.c.l.b16 %v652
  %v3551 = vunpack.c.l.b16 %v653
  %v3552 = vunpack.c.l.b16 %v654
  %v3553 = vunpack.c.l.b16 %v655
  %v3554 = vunpack.c.l.b16 %v656
  %v3555 = vunpack.c.l.b16 %v657
  %v3556 = vunpack.c.l.b16 %v658
  %v3557 = vunpack.c.l.b16 %v659
  %v3558 = vunpack.c.l.b16 %v660
  %v3559 = vunpack.c.l.b16 %v661
  %v3560 = vunpack.c.l.b16 %v662
  %v3561 = vunpack.c.l.b16 %v663
  %v3562 = vunpack.c.l.b16 %v664
  %v3563 = vunpack.c.l.b16 %v665
  %v3564 = vunpack.c.l.b16 %v666
  %v3565 = vunpack.c.l.b16 %v667
  %v3566 = vunpack.c.l.b16 %v668
  %v3567 = vunpack.c.l.b16 %v669
  %v3568 = vunpack.c.l.b16 %v670
  %v3569 = vunpack.c.l.b16 %v671
  %v3570 = vunpack.c.l.b16 %v672
  %v3571 = vunpack.c.l.b16 %v673
  %v3572 = vunpack.c.l.b16 %v674
  %v3573 = vunpack.c.l.b16 %v675
  %v3574 = vunpack.c.l.b16 %v676
  %v3575 = vunpack.c.l.b16 %v677
  %v3576 = vunpack.c.l.b16 %v678
  %v3577 = vunpack.c.l.b16 %v679
  %v3578 = vunpack.c.l.b16 %v680
  %v3579 = vunpack.c.l.b16 %v681
  %v3580 = vunpack.c.l.b16 %v682
  %v3581 = vunpack.c.l.b16 %v683
  %v3582 = vunpack.c.l.b16 %v684
  %v3583 = vunpack.c.l.b16 %v685
  %v3584 = vunpack.c.l.b16 %v686
  %v3585 = vunpack.c.l.b16 %v687
  %v3586 = vunpack.c.l.b16 %v688
  %v3587 = vunpack.c.l.b16 %v689
  %v3588 = vunpack.c.l.b16 %v690
  %v3589 = vunpack.c.l.b16 %v691
  %v3590 = vunpack.c.l.b16 %v692
  %v3591 = vunpack.c.l.b16 %v693
  %v3592 = vunpack.c.l.b16 %v694
  %v3593 = vunpack.c.l.b16 %v695
  %v3594 = vunpack.c.l.b16 %v696
  %v3595 = vunpack.c.l.b16 %v697
  %v3596 = vunpack.c.l.b16 %v698
  %v3597 = vunpack.c.l.b16 %v699
  %v3598 = vunpack.c.l.b16 %v700
  %v3599 = vunpack.c.l.b16 %v701
  %v3600 = vunpack.c.l.b16 %v702
  %v3601 = vunpack.c.l.b16 %v703
  %v3602 = vunpack.c.l.b16 %v704
  %v3603 = vunpack.c.l.b16 %v705
  %v3604 = vunpack.c.l.b16 %v706
  %v3605 = vunpack.c.l.b16 %v707
  %v3606 = vunpack.c.l.b16 %v708
  %v3607 = vunpack.c.l.b16 %v709
  %v3608 = vunpack.c.l.b16 %v710
  %v3609 = vunpack.c.l.b16 %v711
  %v3610 = vunpack.c.l.b16 %v712
  %v3611 = vunpack.c.l.b16 %v713
  %v3612 = vunpack.c.l.b16 %v714
  %v3613 = vunpack.c.l.b16 %v715
  %v3614 = vunpack.c.l.b16 %v716
  %v3615 = vunpack.c.l.b16 %v717
  %v3616 = vunpack.c.l.b16 %v718
  %v3617 = vunpack.c.l.b16 %v719
  %v3618 = vunpack.c.l.b16 %v720
  %v3619 = vunpack.c.l.b16 %v721
  %v3620 = vunpack.c.l.b16 %v722
  %v3621 = vunpack.c.l.b16 %v723
  %v3622 = vunpack.c.l.b16 %v724
  %v3623 = vunpack.c.l.b16 %v725
  %v3624 = vunpack.c.l.b16 %v726
  %v3625 = vunpack.c.l.b16 %v727
  %v3626 = vunpack.c.l.b16 %v728
  %v3627 = vunpack.c.l.b16 %v729
  %v3628 = vunpack.c.l.b16 %v730
  %v3629 = vunpack.c.l.b16 %v731
  %v3630 = vunpack.c.l.b16 %v732
  %v3631 = vunpack.c.l.b16 %v733
  %v3632 = vunpack.c.l.b16 %v734
  %v3633 = vunpack.c.l.b16 %v735
  %v3634 = vunpack.c.l.b16 %v736
  %v3635 = vunpack.c.l.b16 %v737
  %v3636 = vunpack.c.l.b16 %v738
  %v3637 = vunpack.c.l.b16 %v739
  %v3638 = vunpack.c.l.b16 %v740
  %v3639 = vunpack.c.l.b16 %v741
  %v3640 = vunpack.c.l.b16 %v742
  %v3641 = vunpack.c.l.b16 %v743
  %v3642 = vunpack.c.l.b16 %v744
  %v3643 = vunpack.c.l.b16 %v745
  %v3644 = vunpack.c.l.b16 %v746
  %v3645 = vunpack.c.l.b16 %v747
  %v3646 = vunpack.c.l.b16 %v748
  %v3647 = vunpack.c.l.b16 %v749
  %v3648 = vunpack.c.l.b16 %v750
  %v3649 = vunpack.c.l.b16 %v751
  %v3650 = vunpack.c.l.b16 %v752
  %v3651 = vunpack.c.l.b16 %v753
  %v3652 = vunpack.c.l.b16 %v754
  %v3653 = vunpack.c.l.b16 %v755
  %v3654 = vunpack.c.l.b16 %v756
  %v3655 = vunpack.c.l.b16 %v757
  %v3656 = vunpack.c.l.b16 %v758
  %v3657 = vunpack.c.l.b16 %v759
  %v3658 = vunpack.c.l.b16 %v760
  %v3659 = vunpack.c.l.b16 %v761
  %v3660 = vunpack.c.l.b16 %v762
  %v3661 = vunpack.c.l.b16 %v763
  %v3662 = vunpack.c.l.b16 %v764
  %v3663 = vunpack.c.l.b16 %v765
  %v3664 = vunpack.c.l.b16 %v766
  %v3665 = vunpack.c.l.b16 %v767
  %v3666 = vunpack.c.l.b16 %v768
  %v3667 = vunpack.c.l.b16 %v769
  %v3668 = vunpack.c.l.b16 %v770
  %v3669 = vunpack.c.l.b16 %v771
  %v3670 = vunpack.c.l.b16 %v772
  %v3671 = vunpack.c.l.b16 %v773
  %v3672 = vunpack.c.l.b16 %v774
  %v3673 = vunpack.c.l.b16 %v775
  %v3674 = vunpack.c.l.b16 %v776
  %v3675 = vunpack.c.l.b16 %v777
  %v3676 = vunpack.c.l.b16 %v778
  %v3677 = vunpack.c.l.b16 %v779
  %v3678 = vunpack.c.l.b16 %v780
  %v3679 = vunpack.c.l.b16 %v781
  %v3680 = vunpack.c.l.b16 %v782
  %v3681 = vunpack.c.l.b16 %v783
  %v3682 = vunpack.c.l.b16 %v784
  %v3683 = vunpack.c.l.b16 %v785
  %v3684 = vunpack.c.l.b16 %v786
  %v3685 = vunpack.c.l.b16 %v787
  %v3686 = vunpack.c.l.b16 %v788
  %v3687 = vunpack.c.l.b16 %v789
  %v3688 = vunpack.c.l.b16 %v790
  %v3689 = vunpack.c.l.b16 %v791
  %v3690 = vunpack.c.l.b16 %v792
  %v3691 = vunpack.c.l.b16 %v793
  %v3692 = vunpack.c.l.b16 %v794
  %v3693 = vunpack.c.l.b16 %v795
  %v3694 = vunpack.c.l.b16 %v796
  %v3695 = vunpack.c.l.b16 %v797
  %v3696 = vunpack.c.l.b16 %v798
  %v3697 = vunpack.c.l.b16 %v799
  %v3698 = vunpack.c.l.b16 %v800
  %v3699 = vunpack.c.l.b16 %v801
  %v3700 = vunpack.c.l.b16 %v802
  %v3701 = vunpack.c.l.b16 %v803
  %v3702 = vunpack.c.l.b16 %v804
  %v3703 = vunpack.c.l.b16 %v805
  %v3704 = vunpack.c.l.b16 %v806
  %v3705 = vunpack.c.l.b16 %v807
  %v3706 = vunpack.c.l.b16 %v808
  %v3707 = vunpack.c.l.b16 %v809
  %v3708 = vunpack.c.l.b16 %v810
  %v3709 = vunpack.c.l.b16 %v811
  %v3710 = vunpack.c.l.b16 %v812
  %v3711 = vunpack.c.l.b16 %v813
  %v3712 = vunpack.c.l.b16 %v814
  %v3713 = vunpack.c.l.b16 %v815
  %v3714 = vunpack.c.l.b16 %v816
  %v3715 = vunpack.c.l.b16 %v817
  %v3716 = vunpack.c.l.b16 %v818
  %v3717 = vunpack.c.l.b16 %v819
  %v3718 = vunpack.c.l.b16 %v820
  %v3719 = vunpack.c.l.b16 %v821
  %v3720 = vunpack.c.l.b16 %v822
  %v3721 = vunpack.c.l.b16 %v823
  %v3722 = vunpack.c.l.b16 %v824
  %v3723 = vunpack.c.l.b16 %v825
  %v3724 = vunpack.c.l.b16 %v826
  %v3725 = vunpack.c.l.b16 %v827
  %v3726 = vunpack.c.l.b16 %v828
  %v3727 = vunpack.c.l.b16 %v829
  %v3728 = vunpack.c.l.b16 %v830
  %v3729 = vunpack.c.l.b16 %v831
  %v3730 = vunpack.c.l.b16 %v832
  %v3731 = vunpack.c.l.b16 %v833
  %v3732 = vunpack.c.l.b16 %v834
  %v3733 = vunpack.c.l.b16 %v835
  %v3734 = vunpack.c.l.b16 %v836
  %v3735 = vunpack.c.l.b16 %v837
  %v3736 = vunpack.c.l.b16 %v838
  %v3737 = vunpack.c.l.b16 %v839
  %v3738 = vunpack.c.l.b16 %v840
  %v3739 = vunpack.c.l.b16 %v841
  %v3740 = vunpack.c.l.b16 %v842
  %v3741 = vunpack.c.l.b16 %v843
  %v3742 = vunpack.c.l.b16 %v844
  %v3743 = vunpack.c.l.b16 %v845
  %v3744 = vunpack.c.l.b16 %v846
  %v3745 = vunpack.c.l.b16 %v847
  %v3746 = vunpack.c.l.b16 %v848
  %v3747 = vunpack.c.l.b16 %v849
  %v3748 = vunpack.c.l.b16 %v850
  %v3749 = vunpack.c.l.b16 %v851
  %v3750 = vunpack.c.l.b16 %v852
  %v3751 = vunpack.c.l.b16 %v853
  %v3752 = vunpack.c.l.b16 %v854
  %v3753 = vunpack.c.l.b16 %v855
  %v3754 = vunpack.c.l.b16 %v856
  %v3755 = vunpack.c.l.b16 %v857
  %v3756 = vunpack.c.l.b16 %v858
  %v3757 = vunpack.c.l.b16 %v859
  %v3758 = vunpack.c.l.b16 %v860
  %v3759 = vunpack.c.l.b16 %v861
  %v3760 = vunpack.c.l.b16 %v862
  %v3761 = vunpack.c.l.b16 %v863
  %v3762 = vunpack.c.l.b16 %v864
  %v3763 = vunpack.c.l.b16 %v865
  %v3764 = vunpack.c.l.b16 %v866
  %v3765 = vunpack.c.l.b16 %v867
  %v3766 = vunpack.c.l.b16 %v868
  %v3767 = vunpack.c.l.b16 %v869
  %v3768 = vunpack.c.l.b16 %v870
  %v3769 = vunpack.c.l.b16 %v871
  %v3770 = vunpack.c.l.b16 %v872
  %v3771 = vunpack.c.l.b16 %v873
  %v3772 = vunpack.c.l.b16 %v874
  %v3773 = vunpack.c.l.b16 %v875
  %v3774 = vunpack.c.l.b16 %v876
  %v3775 = vunpack.c.l.b16 %v877
  %v3776 = vunpack.c.l.b16 %v878
  %v3777 = vunpack.c.l.b16 %v879
  %v3778 = vunpack.c.l.b16 %v880
  %v3779 = vunpack.c.l.b16 %v881
  %v3780 = vunpack.c.l.b16 %v882
  %v3781 = vunpack.c.l.b16 %v883
  %v3782 = vunpack.c.l.b16 %v884
  %v3783 = vunpack.c.l.b16 %v885
  %v3784 = vunpack.c.l.b16 %v886
  %v3785 = vunpack.c.l.b16 %v887
  %v3786 = vunpack.c.l.b16 %v888
  %v3787 = vunpack.c.l.b16 %v889
  %v3788 = vunpack.c.l.b16 %v890
  %v3789 = vunpack.c.l.b16 %v891
  %v3790 = vunpack.c.l.b16 %v892
  %v3791 = vunpack.c.l.b16 %v893
  %v3792 = vunpack.c.l.b16 %v894
  %v3793 = vunpack.c.l.b16 %v895
  %v3794 = vunpack.c.l.b16 %v896
  %v3795 = vunpack.c.l.b16 %v897
  %v3796 = vunpack.c.l.b16 %v898
  %v3797 = vunpack.c.l.b16 %v899
  %v3798 = vunpack.c.l.b16 %v900
  %v3799 = vunpack.c.l.b16 %v901
  %v3800 = vunpack.c.l.b16 %v902
  %v3801 = vunpack.c.l.b16 %v903
  %v3802 = vunpack.c.l.b16 %v904
  %v3803 = vunpack.c.l.b16 %v905
  %v3804 = vunpack.c.l.b16 %v906
  %v3805 = vunpack.c.l.b16 %v907
  %v3806 = vunpack.c.l.b16 %v908
  %v3807 = vunpack.c.l.b16 %v909
  %v3808 = vunpack.c.l.b16 %v910
  %v3809 = vunpack.c.l.b16 %v911
  %v3810 = vunpack.c.l.b16 %v912
  %v3811 = vunpack.c.l.b16 %v913
  %v3812 = vunpack.c.l.b16 %v914
  %v3813 = vunpack.c.l.b16 %v915
  %v3814 = vunpack.c.l.b16 %v916
  %v3815 = vunpack.c.l.b16 %v917
  %v3816 = vunpack.c.l.b16 %v918
  %v3817 = vunpack.c.l.b16 %v919
  %v3818 = vunpack.c.l.b16 %v920
  %v3819 = vunpack.c.l.b16 %v921
  %v3820 = vunpack.c.l.b16 %v922
  %v3821 = vunpack.c.l.b16 %v923
  %v3822 = vunpack.c.l.b16 %v924
  %v3823 = vunpack.c.l.b16 %v925
  %v3824 = vunpack.c.l.b16 %v926
  %v3825 = vunpack.c.l.b16 %v927
  %v3826 = vunpack.c.l.b16 %v928
  %v3827 = vunpack.c.l.b16 %v929
  %v3828 = vunpack.c.l.b16 %v930
  %v3829 = vunpack.c.l.b16 %v931
  %v3830 = vunpack.c.l.b16 %v932
  %v3831 = vunpack.c.l.b16 %v933
  %v3832 = vunpack.c.l.b16 %v934
  %v3833 = vunpack.c.l.b16 %v935
  %v3834 = vunpack.c.l.b16 %v936
  %v3835 = vunpack.c.l.b16 %v937
  %v3836 = vunpack.c.l.b16 %v938
  %v3837 = vunpack.c.l.b16 %v939
  %v3838 = vunpack.c.l.b16 %v940
  %v3839 = vunpack.c.l.b16 %v941
  %v3840 = vunpack.c.l.b16 %v942
  %v3841 = vunpack.c.l.b16 %v943
  %v3842 = vunpack.c.l.b16 %v944
  %v3843 = vunpack.c.l.b16 %v945
  %v3844 = vunpack.c.l.b16 %v946
  %v3845 = vunpack.c.l.b16 %v947
  %v3846 = vunpack.c.l.b16 %v948
  %v3847 = vunpack.c.l.b16 %v949
  %v3848 = vunpack.c.l.b16 %v950
  %v3849 = vunpack.c.l.b16 %v951
  %v3850 = vunpack.c.l.b16 %v952
  %v3851 = vunpack.c.l.b16 %v953
  %v3852 = vunpack.c.l.b16 %v954
  %v3853 = vunpack.c.l.b16 %v955
  %v3854 = vunpack.c.l.b16 %v956
  %v3855 = vunpack.c.l.b16 %v957
  %v3856 = vunpack.c.l.b16 %v958
  %v3857 = vunpack.c.l.b16 %v959
  %v3858 = vunpack.c.l.b16 %v960
  %v3859 = vunpack.c.l.b16 %v961
  %v3860 = vunpack.c.l.b16 %v962
  %v3861 = vunpack.c.l.b16 %v963
  %v3862 = vunpack.c.l.b16 %v964
  %v3863 = vunpack.c.l.b16 %v965
  %v3864 = vunpack.c.l.b16 %v966
  %v3865 = vunpack.c.l.b16 %v967
  %v3866 = vunpack.c.l.b16 %v968
  %v3867 = vunpack.c.l.b16 %v969
  %v3868 = vunpack.c.l.b16 %v970
  %v3869 = vpack.c.b16 %v3294, %v3293
  %v3870 = vpack.c.b16 %v3296, %v3295
  %v3871 = vpack.c.b16 %v3298, %v3297
  %v3872 = vpack.c.b16 %v3300, %v3299
  %v3873 = vpack.c.b16 %v3302, %v3301
  %v3874 = vpack.c.b16 %v3304, %v3303
  %v3875 = vpack.c.b16 %v3306, %v3305
  %v3876 = vpack.c.b16 %v3308, %v3307
  %v3877 = vpack.c.b16 %v3310, %v3309
  %v3878 = vpack.c.b16 %v3312, %v3311
  %v3879 = vpack.c.b16 %v3314, %v3313
  %v3880 = vpack.c.b16 %v3316, %v3315
  %v3881 = vpack.c.b16 %v3318, %v3317
  %v3882 = vpack.c.b16 %v3320, %v3319
  %v3883 = vpack.c.b16 %v3322, %v3321
  %v3884 = vpack.c.b16 %v3324, %v3323
  %v3885 = vpack.c.b16 %v3326, %v3325
  %v3886 = vpack.c.b16 %v3328, %v3327
  %v3887 = vpack.c.b16 %v3330, %v3329
  %v3888 = vpack.c.b16 %v3332, %v3331
  %v3889 = vpack.c.b16 %v3334, %v3333
  %v3890 = vpack.c.b16 %v3336, %v3335
  %v3891 = vpack.c.b16 %v3338, %v3337
  %v3892 = vpack.c.b16 %v3340, %v3339
  %v3893 = vpack.c.b16 %v3342, %v3341
  %v3894 = vpack.c.b16 %v3344, %v3343
  %v3895 = vpack.c.b16 %v3346, %v3345
  %v3896 = vpack.c.b16 %v3348, %v3347
  %v3897 = vpack.c.b16 %v3350, %v3349
  %v3898 = vpack.c.b16 %v3352, %v3351
  %v3899 = vpack.c.b16 %v3354, %v3353
  %v3900 = vpack.c.b16 %v3356, %v3355
  %v3901 = vpack.c.b16 %v3358, %v3357
  %v3902 = vpack.c.b16 %v3360, %v3359
  %v3903 = vpack.c.b16 %v3362, %v3361
  %v3904 = vpack.c.b16 %v3364, %v3363
  %v3905 = vpack.c.b16 %v3366, %v3365
  %v3906 = vpack.c.b16 %v3368, %v3367
  %v3907 = vpack.c.b16 %v3370, %v3369
  %v3908 = vpack.c.b16 %v3372, %v3371
  %v3909 = vpack.c.b16 %v3374, %v3373
  %v3910 = vpack.c.b16 %v3376, %v3375
  %v3911 = vpack.c.b16 %v3378, %v3377
  %v3912 = vpack.c.b16 %v3380, %v3379
  %v3913 = vpack.c.b16 %v3382, %v3381
  %v3914 = vpack.c.b16 %v3384, %v3383
  %v3915 = vpack.c.b16 %v3386, %v3385
  %v3916 = vpack.c.b16 %v3388, %v3387
  %v3917 = vpack.c.b16 %v3390, %v3389
  %v3918 = vpack.c.b16 %v3392, %v3391
  %v3919 = vpack.c.b16 %v3394, %v3393
  %v3920 = vpack.c.b16 %v3396, %v3395
  %v3921 = vpack.c.b16 %v3398, %v3397
  %v3922 = vpack.c.b16 %v3400, %v3399
  %v3923 = vpack.c.b16 %v3402, %v3401
  %v3924 = vpack.c.b16 %v3404, %v3403
  %v3925 = vpack.c.b16 %v3406, %v3405
  %v3926 = vpack.c.b16 %v3408, %v3407
  %v3927 = vpack.c.b16 %v3410, %v3409
  %v3928 = vpack.c.b16 %v3412, %v3411
  %v3929 = vpack.c.b16 %v3414, %v3413
  %v3930 = vpack.c.b16 %v3416, %v3415
  %v3931 = vpack.c.b16 %v3418, %v3417
  %v3932 = vpack.c.b16 %v3420, %v3419
  %v3933 = vpack.c.b16 %v3422, %v3421
  %v3934 = vpack.c.b16 %v3424, %v3423
  %v3935 = vpack.c.b16 %v3426, %v3425
  %v3936 = vpack.c.b16 %v3428, %v3427
  %v3937 = vpack.c.b16 %v3430, %v3429
  %v3938 = vpack.c.b16 %v3432, %v3431
  %v3939 = vpack.c.b16 %v3434, %v3433
  %v3940 = vpack.c.b16 %v3436, %v3435
  %v3941 = vpack.c.b16 %v3438, %v3437
  %v3942 = vpack.c.b16 %v3440, %v3439
  %v3943 = vpack.c.b16 %v3442, %v3441
  %v3944 = vpack.c.b16 %v3444, %v3443
  %v3945 = vpack.c.b16 %v3446, %v3445
  %v3946 = vpack.c.b16 %v3448, %v3447
  %v3947 = vpack.c.b16 %v3450, %v3449
  %v3948 = vpack.c.b16 %v3452, %v3451
  %v3949 = vpack.c.b16 %v3454, %v3453
  %v3950 = vpack.c.b16 %v3456, %v3455
  %v3951 = vpack.c.b16 %v3458, %v3457
  %v3952 = vpack.c.b16 %v3460, %v3459
  %v3953 = vpack.c.b16 %v3462, %v3461
  %v3954 = vpack.c.b16 %v3464, %v3463
  %v3955 = vpack.c.b16 %v3466, %v3465
  %v3956 = vpack.c.b16 %v3468, %v3467
  %v3957 = vpack.c.b16 %v3470, %v3469
  %v3958 = vpack.c.b16 %v3472, %v3471
  %v3959 = vpack.c.b16 %v3474, %v3473
  %v3960 = vpack.c.b16 %v3476, %v3475
  %v3961 = vpack.c.b16 %v3478, %v3477
  %v3962 = vpack.c.b16 %v3480, %v3479
  %v3963 = vpack.c.b16 %v3482, %v3481
  %v3964 = vpack.c.b16 %v3484, %v3483
  %v3965 = vpack.c.b16 %v3486, %v3485
  %v3966 = vpack.c.b16 %v3488, %v3487
  %v3967 = vpack.c.b16 %v3490, %v3489
  %v3968 = vpack.c.b16 %v3492, %v3491
  %v3969 = vpack.c.b16 %v3494, %v3493
  %v3970 = vpack.c.b16 %v3496, %v3495
  %v3971 = vpack.c.b16 %v3498, %v3497
  %v3972 = vpack.c.b16 %v3500, %v3499
  %v3973 = vpack.c.b16 %v3502, %v3501
  %v3974 = vpack.c.b16 %v3504, %v3503
  %v3975 = vpack.c.b16 %v3506, %v3505
  %v3976 = vpack.c.b16 %v3508, %v3507
  %v3977 = vpack.c.b16 %v3510, %v3509
  %v3978 = vpack.c.b16 %v3512, %v3511
  %v3979 = vpack.c.b16 %v3514, %v3513
  %v3980 = vpack.c.b16 %v3516, %v3515
  %v3981 = vpack.c.b16 %v3518, %v3517
  %v3982 = vpack.c.b16 %v3520, %v3519
  %v3983 = vpack.c.b16 %v3522, %v3521
  %v3984 = vpack.c.b16 %v3524, %v3523
  %v3985 = vpack.c.b16 %v3526, %v3525
  %v3986 = vpack.c.b16 %v3528, %v3527
  %v3987 = vpack.c.b16 %v3530, %v3529
  %v3988 = vpack.c.b16 %v3532, %v3531
  %v3989 = vpack.c.b16 %v3534, %v3533
  %v3990 = vpack.c.b16 %v3536, %v3535
  %v3991 = vpack.c.b16 %v3538, %v3537
  %v3992 = vpack.c.b16 %v3540, %v3539
  %v3993 = vpack.c.b16 %v3542, %v3541
  %v3994 = vpack.c.b16 %v3544, %v3543
  %v3995 = vpack.c.b16 %v3546, %v3545
  %v3996 = vpack.c.b16 %v3548, %v3547
  %v3997 = vpack.c.b16 %v3550, %v3549
  %v3998 = vpack.c.b16 %v3552, %v3551
  %v3999 = vpack.c.b16 %v3554, %v3553
  %v4000 = vpack.c.b16 %v3556, %v3555
  %v4001 = vpack.c.b16 %v3558, %v3557
  %v4002 = vpack.c.b16 %v3560, %v3559
  %v4003 = vpack.c.b16 %v3562, %v3561
  %v4004 = vpack.c.b16 %v3564, %v3563
  %v4005 = vpack.c.b16 %v3566, %v3565
  %v4006 = vpack.c.b16 %v3568, %v3567
  %v4007 = vpack.c.b16 %v3570, %v3569
  %v4008 = vpack.c.b16 %v3572, %v3571
  %v4009 = vpack.c.b16 %v3574, %v3573
  %v4010 = vpack.c.b16 %v3576, %v3575
  %v4011 = vpack.c.b16 %v3578, %v3577
  %v4012 = vpack.c.b16 %v3580, %v3579
  %v4013 = vpack.c.b16 %v3582, %v3581
  %v4014 = vpack.c.b16 %v3584, %v3583
  %v4015 = vpack.c.b16 %v3586, %v3585
  %v4016 = vpack.c.b16 %v3588, %v3587
  %v4017 = vpack.c.b16 %v3590, %v3589
  %v4018 = vpack.c.b16 %v3592, %v3591
  %v4019 = vpack.c.b16 %v3594, %v3593
  %v4020 = vpack.c.b16 %v3596, %v3595
  %v4021 = vpack.c.b16 %v3598, %v3597
  %v4022 = vpack.c.b16 %v3600, %v3599
  %v4023 = vpack.c.b16 %v3602, %v3601
  %v4024 = vpack.c.b16 %v3604, %v3603
  %v4025 = vpack.c.b16 %v3606, %v3605
  %v4026 = vpack.c.b16 %v3608, %v3607
  %v4027 = vpack.c.b16 %v3610, %v3609
  %v4028 = vpack.c.b16 %v3612, %v3611
  %v4029 = vpack.c.b16 %v3614, %v3613
  %v4030 = vpack.c.b16 %v3616, %v3615
  %v4031 = vpack.c.b16 %v3618, %v3617
  %v4032 = vpack.c.b16 %v3620, %v3619
  %v4033 = vpack.c.b16 %v3622, %v3621
  %v4034 = vpack.c.b16 %v3624, %v3623
  %v4035 = vpack.c.b16 %v3626, %v3625
  %v4036 = vpack.c.b16 %v3628, %v3627
  %v4037 = vpack.c.b16 %v3630, %v3629
  %v4038 = vpack.c.b16 %v3632, %v3631
  %v4039 = vpack.c.b16 %v3634, %v3633
  %v4040 = vpack.c.b16 %v3636, %v3635
  %v4041 = vpack.c.b16 %v3638, %v3637
  %v4042 = vpack.c.b16 %v3640, %v3639
  %v4043 = vpack.c.b16 %v3642, %v3641
  %v4044 = vpack.c.b16 %v3644, %v3643
  %v4045 = vpack.c.b16 %v3646, %v3645
  %v4046 = vpack.c.b16 %v3648, %v3647
  %v4047 = vpack.c.b16 %v3650, %v3649
  %v4048 = vpack.c.b16 %v3652, %v3651
  %v4049 = vpack.c.b16 %v3654, %v3653
  %v4050 = vpack.c.b16 %v3656, %v3655
  %v4051 = vpack.c.b16 %v3658, %v3657
  %v4052 = vpack.c.b16 %v3660, %v3659
  %v4053 = vpack.c.b16 %v3662, %v3661
  %v4054 = vpack.c.b16 %v3664, %v3663
  %v4055 = vpack.c.b16 %v3666, %v3665
  %v4056 = vpack.c.b16 %v3668, %v3667
  %v4057 = vpack.c.b16 %v3670, %v3669
  %v4058 = vpack.c.b16 %v3672, %v3671
  %v4059 = vpack.c.b16 %v3674, %v3673
  %v4060 = vpack.c.b16 %v3676, %v3675
  %v4061 = vpack.c.b16 %v3678, %v3677
  %v4062 = vpack.c.b16 %v3680, %v3679
  %v4063 = vpack.c.b16 %v3682, %v3681
  %v4064 = vpack.c.b16 %v3684, %v3683
  %v4065 = vpack.c.b16 %v3686, %v3685
  %v4066 = vpack.c.b16 %v3688, %v3687
  %v4067 = vpack.c.b16 %v3690, %v3689
  %v4068 = vpack.c.b16 %v3692, %v3691
  %v4069 = vpack.c.b16 %v3694, %v3693
  %v4070 = vpack.c.b16 %v3696, %v3695
  %v4071 = vpack.c.b16 %v3698, %v3697
  %v4072 = vpack.c.b16 %v3700, %v3699
  %v4073 = vpack.c.b16 %v3702, %v3701
  %v4074 = vpack.c.b16 %v3704, %v3703
  %v4075 = vpack.c.b16 %v3706, %v3705
  %v4076 = vpack.c.b16 %v3708, %v3707
  %v4077 = vpack.c.b16 %v3710, %v3709
  %v4078 = vpack.c.b16 %v3712, %v3711
  %v4079 = vpack.c.b16 %v3714, %v3713
  %v4080 = vpack.c.b16 %v3716, %v3715
  %v4081 = vpack.c.b16 %v3718, %v3717
  %v4082 = vpack.c.b16 %v3720, %v3719
  %v4083 = vpack.c.b16 %v3722, %v3721
  %v4084 = vpack.c.b16 %v3724, %v3723
  %v4085 = vpack.c.b16 %v3726, %v3725
  %v4086 = vpack.c.b16 %v3728, %v3727
  %v4087 = vpack.c.b16 %v3730, %v3729
  %v4088 = vpack.c.b16 %v3732, %v3731
  %v4089 = vpack.c.b16 %v3734, %v3733
  %v4090 = vpack.c.b16 %v3736, %v3735
  %v4091 = vpack.c.b16 %v3738, %v3737
  %v4092 = vpack.c.b16 %v3740, %v3739
  %v4093 = vpack.c.b16 %v3742, %v3741
  %v4094 = vpack.c.b16 %v3744, %v3743
  %v4095 = vpack.c.b16 %v3746, %v3745
  %v4096 = vpack.c.b16 %v3748, %v3747
  %v4097 = vpack.c.b16 %v3750, %v3749
  %v4098 = vpack.c.b16 %v3752, %v3751
  %v4099 = vpack.c.b16 %v3754, %v3753
  %v4100 = vpack.c.b16 %v3756, %v3755
  %v4101 = vpack.c.b16 %v3758, %v3757
  %v4102 = vpack.c.b16 %v3760, %v3759
  %v4103 = vpack.c.b16 %v3762, %v3761
  %v4104 = vpack.c.b16 %v3764, %v3763
  %v4105 = vpack.c.b16 %v3766, %v3765
  %v4106 = vpack.c.b16 %v3768, %v3767
  %v4107 = vpack.c.b16 %v3770, %v3769
  %v4108 = vpack.c.b16 %v3772, %v3771
  %v4109 = vpack.c.b16 %v3774, %v3773
  %v4110 = vpack.c.b16 %v3776, %v3775
  %v4111 = vpack.c.b16 %v3778, %v3777
  %v4112 = vpack.c.b16 %v3780, %v3779
  %v4113 = vpack.c.b16 %v3782, %v3781
  %v4114 = vpack.c.b16 %v3784, %v3783
  %v4115 = vpack.c.b16 %v3786, %v3785
  %v4116 = vpack.c.b16 %v3788, %v3787
  %v4117 = vpack.c.b16 %v3790, %v3789
  %v4118 = vpack.c.b16 %v3792, %v3791
  %v4119 = vpack.c.b16 %v3794, %v3793
  %v4120 = vpack.c.b16 %v3796, %v3795
  %v4121 = vpack.c.b16 %v3798, %v3797
  %v4122 = vpack.c.b16 %v3800, %v3799
  %v4123 = vpack.c.b16 %v3802, %v3801
  %v4124 = vpack.c.b16 %v3804, %v3803
  %v4125 = vpack.c.b16 %v3806, %v3805
  %v4126 = vpack.c.b16 %v3808, %v3807
  %v4127 = vpack.c.b16 %v3810, %v3809
  %v4128 = vpack.c.b16 %v3812, %v3811
  %v4129 = vpack.c.b16 %v3814, %v3813
  %v4130 = vpack.c.b16 %v3816, %v3815
  %v4131 = vpack.c.b16 %v3818, %v3817
  %v4132 = vpack.c.b16 %v3820, %v3819
  %v4133 = vpack.c.b16 %v3822, %v3821
  %v4134 = vpack.c.b16 %v3824, %v3823
  %v4135 = vpack.c.b16 %v3826, %v3825
  %v4136 = vpack.c.b16 %v3828, %v3827
  %v4137 = vpack.c.b16 %v3830, %v3829
  %v4138 = vpack.c.b16 %v3832, %v3831
  %v4139 = vpack.c.b16 %v3834, %v3833
  %v4140 = vpack.c.b16 %v3836, %v3835
  %v4141 = vpack.c.b16 %v3838, %v3837
  %v4142 = vpack.c.b16 %v3840, %v3839
  %v4143 = vpack.c.b16 %v3842, %v3841
  %v4144 = vpack.c.b16 %v3844, %v3843
  %v4145 = vpack.c.b16 %v3846, %v3845
  %v4146 = vpack.c.b16 %v3848, %v3847
  %v4147 = vpack.c.b16 %v3850, %v3849
  %v4148 = vpack.c.b16 %v3852, %v3851
  %v4149 = vpack.c.b16 %v3854, %v3853
  %v4150 = vpack.c.b16 %v3856, %v3855
  %v4151 = vpack.c.b16 %v3858, %v3857
  %v4152 = vpack.c.b16 %v3860, %v3859
  %v4153 = vpack.c.b16 %v3862, %v3861
  %v4154 = vpack.c.b16 %v3864, %v3863
  %v4155 = vpack.c.b16 %v3866, %v3865
  %v4156 = vpack.c.b16 %v3868, %v3867
  %4445 = vmatpush.bf16.msra.mxu0 %v3876
  %4446 = vmatpush.bf16.msra.mxu0 %v3875
  %4447 = vmatpush.bf16.msra.mxu0 %v3874
  %4448 = vmatpush.bf16.msra.mxu0 %v3873
  %4449 = vmatpush.bf16.msra.mxu0 %v3872
  %4450 = vmatpush.bf16.msra.mxu0 %v3871
  %4451 = vmatpush.bf16.msra.mxu0 %v3870
  %4452 = vmatpush.bf16.msra.mxu0 %v3869
  %4453 = vmatmul.bf16.gmra.mxu0 %v1997
  %v4454 = vpop.f32.mrf.mxu0
  %v4455 = vadd.f32 0.0, %v4454
  %v4456 = vpop.f32.mrf.mxu0
  %v4457 = vadd.f32 0.0, %v4456
  %4458 = vmatmul.bf16.gmra.mxu0 %v2033
  %v4459 = vpop.f32.mrf.mxu0
  %v4460 = vadd.f32 0.0, %v4459
  %v4461 = vpop.f32.mrf.mxu0
  %v4462 = vadd.f32 0.0, %v4461
  %4463 = vmatmul.bf16.gmra.mxu0 %v2069
  %v4464 = vpop.f32.mrf.mxu0
  %v4465 = vadd.f32 0.0, %v4464
  %v4466 = vpop.f32.mrf.mxu0
  %v4467 = vadd.f32 0.0, %v4466
  %4468 = vmatmul.bf16.gmra.mxu0 %v2105
  %v4469 = vpop.f32.mrf.mxu0
  %v4470 = vadd.f32 0.0, %v4469
  %v4471 = vpop.f32.mrf.mxu0
  %v4472 = vadd.f32 0.0, %v4471
  %4473 = vmatmul.bf16.gmra.mxu0 %v2141
  %v4474 = vpop.f32.mrf.mxu0
  %v4475 = vadd.f32 0.0, %v4474
  %v4476 = vpop.f32.mrf.mxu0
  %v4477 = vadd.f32 0.0, %v4476
  %4478 = vmatmul.bf16.gmra.mxu0 %v2177
  %v4479 = vpop.f32.mrf.mxu0
  %v4480 = vadd.f32 0.0, %v4479
  %v4481 = vpop.f32.mrf.mxu0
  %v4482 = vadd.f32 0.0, %v4481
  %4483 = vmatmul.bf16.gmra.mxu0 %v2213
  %v4484 = vpop.f32.mrf.mxu0
  %v4485 = vadd.f32 0.0, %v4484
  %v4486 = vpop.f32.mrf.mxu0
  %v4487 = vadd.f32 0.0, %v4486
  %4488 = vmatmul.bf16.gmra.mxu0 %v2249
  %v4489 = vpop.f32.mrf.mxu0
  %v4490 = vadd.f32 0.0, %v4489
  %v4491 = vpop.f32.mrf.mxu0
  %v4492 = vadd.f32 0.0, %v4491
  %4493 = vmatmul.bf16.gmra.mxu0 %v2285
  %v4494 = vpop.f32.mrf.mxu0
  %v4495 = vadd.f32 0.0, %v4494
  %v4496 = vpop.f32.mrf.mxu0
  %v4497 = vadd.f32 0.0, %v4496
  %4498 = vmatmul.bf16.gmra.mxu0 %v2321
  %v4499 = vpop.f32.mrf.mxu0
  %v4500 = vadd.f32 0.0, %v4499
  %v4501 = vpop.f32.mrf.mxu0
  %4502 = vdwg.mxu0
  %4503 = vmatpush.bf16.msra.mxu0 %v3884
  %4504 = vmatpush.bf16.msra.mxu0 %v3883
  %4505 = vmatpush.bf16.msra.mxu0 %v3882
  %4506 = vmatpush.bf16.msra.mxu0 %v3881
  %4507 = vmatpush.bf16.msra.mxu0 %v3880
  %4508 = vmatpush.bf16.msra.mxu0 %v3879
  %4509 = vmatpush.bf16.msra.mxu0 %v3878
  %4510 = vmatpush.bf16.msra.mxu0 %v3877
  %4511 = vmatmul.bf16.gmra.mxu0 %v1998
  %v4512 = vpop.f32.mrf.mxu0
  %v4513 = vadd.f32 %v4455, %v4512
  %v4514 = vpop.f32.mrf.mxu0
  %v4515 = vadd.f32 %v4457, %v4514
  %4516 = vmatmul.bf16.gmra.mxu0 %v2034
  %v4517 = vpop.f32.mrf.mxu0
  %v4518 = vadd.f32 %v4460, %v4517
  %v4519 = vpop.f32.mrf.mxu0
  %v4520 = vadd.f32 %v4462, %v4519
  %4521 = vmatmul.bf16.gmra.mxu0 %v2070
  %v4522 = vpop.f32.mrf.mxu0
  %v4523 = vadd.f32 %v4465, %v4522
  %v4524 = vpop.f32.mrf.mxu0
  %v4525 = vadd.f32 %v4467, %v4524
  %4526 = vmatmul.bf16.gmra.mxu0 %v2106
  %v4527 = vpop.f32.mrf.mxu0
  %v4528 = vadd.f32 %v4470, %v4527
  %v4529 = vpop.f32.mrf.mxu0
  %v4530 = vadd.f32 %v4472, %v4529
  %4531 = vmatmul.bf16.gmra.mxu0 %v2142
  %v4532 = vpop.f32.mrf.mxu0
  %v4533 = vadd.f32 %v4475, %v4532
  %v4534 = vpop.f32.mrf.mxu0
  %v4535 = vadd.f32 %v4477, %v4534
  %4536 = vmatmul.bf16.gmra.mxu0 %v2178
  %v4537 = vpop.f32.mrf.mxu0
  %v4538 = vadd.f32 %v4480, %v4537
  %v4539 = vpop.f32.mrf.mxu0
  %v4540 = vadd.f32 %v4482, %v4539
  %4541 = vmatmul.bf16.gmra.mxu0 %v2214
  %v4542 = vpop.f32.mrf.mxu0
  %v4543 = vadd.f32 %v4485, %v4542
  %v4544 = vpop.f32.mrf.mxu0
  %v4545 = vadd.f32 %v4487, %v4544
  %4546 = vmatmul.bf16.gmra.mxu0 %v2250
  %v4547 = vpop.f32.mrf.mxu0
  %v4548 = vadd.f32 %v4490, %v4547
  %v4549 = vpop.f32.mrf.mxu0
  %v4550 = vadd.f32 %v4492, %v4549
  %4551 = vmatmul.bf16.gmra.mxu0 %v2286
  %v4552 = vpop.f32.mrf.mxu0
  %v4553 = vadd.f32 %v4495, %v4552
  %v4554 = vpop.f32.mrf.mxu0
  %v4555 = vadd.f32 %v4497, %v4554
  %4556 = vmatmul.bf16.gmra.mxu0 %v2322
  %v4557 = vpop.f32.mrf.mxu0
  %v4558 = vadd.f32 %v4500, %v4557
  %v4559 = vpop.f32.mrf.mxu0
  %4560 = vdwg.mxu0
  %4561 = vmatpush.bf16.msra.mxu0 %v3892
  %4562 = vmatpush.bf16.msra.mxu0 %v3891
  %4563 = vmatpush.bf16.msra.mxu0 %v3890
  %4564 = vmatpush.bf16.msra.mxu0 %v3889
  %4565 = vmatpush.bf16.msra.mxu0 %v3888
  %4566 = vmatpush.bf16.msra.mxu0 %v3887
  %4567 = vmatpush.bf16.msra.mxu0 %v3886
  %4568 = vmatpush.bf16.msra.mxu0 %v3885
  %4569 = vmatmul.bf16.gmra.mxu0 %v1999
  %v4570 = vpop.f32.mrf.mxu0
  %v4571 = vadd.f32 %v4513, %v4570
  %v4572 = vpop.f32.mrf.mxu0
  %v4573 = vadd.f32 %v4515, %v4572
  %4574 = vmatmul.bf16.gmra.mxu0 %v2035
  %v4575 = vpop.f32.mrf.mxu0
  %v4576 = vadd.f32 %v4518, %v4575
  %v4577 = vpop.f32.mrf.mxu0
  %v4578 = vadd.f32 %v4520, %v4577
  %4579 = vmatmul.bf16.gmra.mxu0 %v2071
  %v4580 = vpop.f32.mrf.mxu0
  %v4581 = vadd.f32 %v4523, %v4580
  %v4582 = vpop.f32.mrf.mxu0
  %v4583 = vadd.f32 %v4525, %v4582
  %4584 = vmatmul.bf16.gmra.mxu0 %v2107
  %v4585 = vpop.f32.mrf.mxu0
  %v4586 = vadd.f32 %v4528, %v4585
  %v4587 = vpop.f32.mrf.mxu0
  %v4588 = vadd.f32 %v4530, %v4587
  %4589 = vmatmul.bf16.gmra.mxu0 %v2143
  %v4590 = vpop.f32.mrf.mxu0
  %v4591 = vadd.f32 %v4533, %v4590
  %v4592 = vpop.f32.mrf.mxu0
  %v4593 = vadd.f32 %v4535, %v4592
  %4594 = vmatmul.bf16.gmra.mxu0 %v2179
  %v4595 = vpop.f32.mrf.mxu0
  %v4596 = vadd.f32 %v4538, %v4595
  %v4597 = vpop.f32.mrf.mxu0
  %v4598 = vadd.f32 %v4540, %v4597
  %4599 = vmatmul.bf16.gmra.mxu0 %v2215
  %v4600 = vpop.f32.mrf.mxu0
  %v4601 = vadd.f32 %v4543, %v4600
  %v4602 = vpop.f32.mrf.mxu0
  %v4603 = vadd.f32 %v4545, %v4602
  %4604 = vmatmul.bf16.gmra.mxu0 %v2251
  %v4605 = vpop.f32.mrf.mxu0
  %v4606 = vadd.f32 %v4548, %v4605
  %v4607 = vpop.f32.mrf.mxu0
  %v4608 = vadd.f32 %v4550, %v4607
  %4609 = vmatmul.bf16.gmra.mxu0 %v2287
  %v4610 = vpop.f32.mrf.mxu0
  %v4611 = vadd.f32 %v4553, %v4610
  %v4612 = vpop.f32.mrf.mxu0
  %v4613 = vadd.f32 %v4555, %v4612
  %4614 = vmatmul.bf16.gmra.mxu0 %v2323
  %v4615 = vpop.f32.mrf.mxu0
  %v4616 = vadd.f32 %v4558, %v4615
  %v4617 = vpop.f32.mrf.mxu0
  %4618 = vdwg.mxu0
  %4619 = vmatpush.bf16.msra.mxu0 %v3900
  %4620 = vmatpush.bf16.msra.mxu0 %v3899
  %4621 = vmatpush.bf16.msra.mxu0 %v3898
  %4622 = vmatpush.bf16.msra.mxu0 %v3897
  %4623 = vmatpush.bf16.msra.mxu0 %v3896
  %4624 = vmatpush.bf16.msra.mxu0 %v3895
  %4625 = vmatpush.bf16.msra.mxu0 %v3894
  %4626 = vmatpush.bf16.msra.mxu0 %v3893
  %4627 = vmatmul.bf16.gmra.mxu0 %v2000
  %v4628 = vpop.f32.mrf.mxu0
  %v4629 = vadd.f32 %v4571, %v4628
  %v4630 = vpop.f32.mrf.mxu0
  %v4631 = vadd.f32 %v4573, %v4630
  %4632 = vmatmul.bf16.gmra.mxu0 %v2036
  %v4633 = vpop.f32.mrf.mxu0
  %v4634 = vadd.f32 %v4576, %v4633
  %v4635 = vpop.f32.mrf.mxu0
  %v4636 = vadd.f32 %v4578, %v4635
  %4637 = vmatmul.bf16.gmra.mxu0 %v2072
  %v4638 = vpop.f32.mrf.mxu0
  %v4639 = vadd.f32 %v4581, %v4638
  %v4640 = vpop.f32.mrf.mxu0
  %v4641 = vadd.f32 %v4583, %v4640
  %4642 = vmatmul.bf16.gmra.mxu0 %v2108
  %v4643 = vpop.f32.mrf.mxu0
  %v4644 = vadd.f32 %v4586, %v4643
  %v4645 = vpop.f32.mrf.mxu0
  %v4646 = vadd.f32 %v4588, %v4645
  %4647 = vmatmul.bf16.gmra.mxu0 %v2144
  %v4648 = vpop.f32.mrf.mxu0
  %v4649 = vadd.f32 %v4591, %v4648
  %v4650 = vpop.f32.mrf.mxu0
  %v4651 = vadd.f32 %v4593, %v4650
  %4652 = vmatmul.bf16.gmra.mxu0 %v2180
  %v4653 = vpop.f32.mrf.mxu0
  %v4654 = vadd.f32 %v4596, %v4653
  %v4655 = vpop.f32.mrf.mxu0
  %v4656 = vadd.f32 %v4598, %v4655
  %4657 = vmatmul.bf16.gmra.mxu0 %v2216
  %v4658 = vpop.f32.mrf.mxu0
  %v4659 = vadd.f32 %v4601, %v4658
  %v4660 = vpop.f32.mrf.mxu0
  %v4661 = vadd.f32 %v4603, %v4660
  %4662 = vmatmul.bf16.gmra.mxu0 %v2252
  %v4663 = vpop.f32.mrf.mxu0
  %v4664 = vadd.f32 %v4606, %v4663
  %v4665 = vpop.f32.mrf.mxu0
  %v4666 = vadd.f32 %v4608, %v4665
  %4667 = vmatmul.bf16.gmra.mxu0 %v2288
  %v4668 = vpop.f32.mrf.mxu0
  %v4669 = vadd.f32 %v4611, %v4668
  %v4670 = vpop.f32.mrf.mxu0
  %v4671 = vadd.f32 %v4613, %v4670
  %4672 = vmatmul.bf16.gmra.mxu0 %v2324
  %v4673 = vpop.f32.mrf.mxu0
  %v4674 = vadd.f32 %v4616, %v4673
  %v4675 = vpop.f32.mrf.mxu0
  %4676 = vdwg.mxu0
  %4677 = vmatpush.bf16.msra.mxu0 %v3908
  %4678 = vmatpush.bf16.msra.mxu0 %v3907
  %4679 = vmatpush.bf16.msra.mxu0 %v3906
  %4680 = vmatpush.bf16.msra.mxu0 %v3905
  %4681 = vmatpush.bf16.msra.mxu0 %v3904
  %4682 = vmatpush.bf16.msra.mxu0 %v3903
  %4683 = vmatpush.bf16.msra.mxu0 %v3902
  %4684 = vmatpush.bf16.msra.mxu0 %v3901
  %4685 = vmatmul.bf16.gmra.mxu0 %v2001
  %v4686 = vpop.f32.mrf.mxu0
  %v4687 = vadd.f32 %v4629, %v4686
  %v4688 = vpop.f32.mrf.mxu0
  %v4689 = vadd.f32 %v4631, %v4688
  %4690 = vmatmul.bf16.gmra.mxu0 %v2037
  %v4691 = vpop.f32.mrf.mxu0
  %v4692 = vadd.f32 %v4634, %v4691
  %v4693 = vpop.f32.mrf.mxu0
  %v4694 = vadd.f32 %v4636, %v4693
  %4695 = vmatmul.bf16.gmra.mxu0 %v2073
  %v4696 = vpop.f32.mrf.mxu0
  %v4697 = vadd.f32 %v4639, %v4696
  %v4698 = vpop.f32.mrf.mxu0
  %v4699 = vadd.f32 %v4641, %v4698
  %4700 = vmatmul.bf16.gmra.mxu0 %v2109
  %v4701 = vpop.f32.mrf.mxu0
  %v4702 = vadd.f32 %v4644, %v4701
  %v4703 = vpop.f32.mrf.mxu0
  %v4704 = vadd.f32 %v4646, %v4703
  %4705 = vmatmul.bf16.gmra.mxu0 %v2145
  %v4706 = vpop.f32.mrf.mxu0
  %v4707 = vadd.f32 %v4649, %v4706
  %v4708 = vpop.f32.mrf.mxu0
  %v4709 = vadd.f32 %v4651, %v4708
  %4710 = vmatmul.bf16.gmra.mxu0 %v2181
  %v4711 = vpop.f32.mrf.mxu0
  %v4712 = vadd.f32 %v4654, %v4711
  %v4713 = vpop.f32.mrf.mxu0
  %v4714 = vadd.f32 %v4656, %v4713
  %4715 = vmatmul.bf16.gmra.mxu0 %v2217
  %v4716 = vpop.f32.mrf.mxu0
  %v4717 = vadd.f32 %v4659, %v4716
  %v4718 = vpop.f32.mrf.mxu0
  %v4719 = vadd.f32 %v4661, %v4718
  %4720 = vmatmul.bf16.gmra.mxu0 %v2253
  %v4721 = vpop.f32.mrf.mxu0
  %v4722 = vadd.f32 %v4664, %v4721
  %v4723 = vpop.f32.mrf.mxu0
  %v4724 = vadd.f32 %v4666, %v4723
  %4725 = vmatmul.bf16.gmra.mxu0 %v2289
  %v4726 = vpop.f32.mrf.mxu0
  %v4727 = vadd.f32 %v4669, %v4726
  %v4728 = vpop.f32.mrf.mxu0
  %v4729 = vadd.f32 %v4671, %v4728
  %4730 = vmatmul.bf16.gmra.mxu0 %v2325
  %v4731 = vpop.f32.mrf.mxu0
  %v4732 = vadd.f32 %v4674, %v4731
  %v4733 = vpop.f32.mrf.mxu0
  %4734 = vdwg.mxu0
  %4735 = vmatpush.bf16.msra.mxu0 %v3916
  %4736 = vmatpush.bf16.msra.mxu0 %v3915
  %4737 = vmatpush.bf16.msra.mxu0 %v3914
  %4738 = vmatpush.bf16.msra.mxu0 %v3913
  %4739 = vmatpush.bf16.msra.mxu0 %v3912
  %4740 = vmatpush.bf16.msra.mxu0 %v3911
  %4741 = vmatpush.bf16.msra.mxu0 %v3910
  %4742 = vmatpush.bf16.msra.mxu0 %v3909
  %4743 = vmatmul.bf16.gmra.mxu0 %v2002
  %v4744 = vpop.f32.mrf.mxu0
  %v4745 = vadd.f32 %v4687, %v4744
  %v4746 = vpop.f32.mrf.mxu0
  %v4747 = vadd.f32 %v4689, %v4746
  %4748 = vmatmul.bf16.gmra.mxu0 %v2038
  %v4749 = vpop.f32.mrf.mxu0
  %v4750 = vadd.f32 %v4692, %v4749
  %v4751 = vpop.f32.mrf.mxu0
  %v4752 = vadd.f32 %v4694, %v4751
  %4753 = vmatmul.bf16.gmra.mxu0 %v2074
  %v4754 = vpop.f32.mrf.mxu0
  %v4755 = vadd.f32 %v4697, %v4754
  %v4756 = vpop.f32.mrf.mxu0
  %v4757 = vadd.f32 %v4699, %v4756
  %4758 = vmatmul.bf16.gmra.mxu0 %v2110
  %v4759 = vpop.f32.mrf.mxu0
  %v4760 = vadd.f32 %v4702, %v4759
  %v4761 = vpop.f32.mrf.mxu0
  %v4762 = vadd.f32 %v4704, %v4761
  %4763 = vmatmul.bf16.gmra.mxu0 %v2146
  %v4764 = vpop.f32.mrf.mxu0
  %v4765 = vadd.f32 %v4707, %v4764
  %v4766 = vpop.f32.mrf.mxu0
  %v4767 = vadd.f32 %v4709, %v4766
  %4768 = vmatmul.bf16.gmra.mxu0 %v2182
  %v4769 = vpop.f32.mrf.mxu0
  %v4770 = vadd.f32 %v4712, %v4769
  %v4771 = vpop.f32.mrf.mxu0
  %v4772 = vadd.f32 %v4714, %v4771
  %4773 = vmatmul.bf16.gmra.mxu0 %v2218
  %v4774 = vpop.f32.mrf.mxu0
  %v4775 = vadd.f32 %v4717, %v4774
  %v4776 = vpop.f32.mrf.mxu0
  %v4777 = vadd.f32 %v4719, %v4776
  %4778 = vmatmul.bf16.gmra.mxu0 %v2254
  %v4779 = vpop.f32.mrf.mxu0
  %v4780 = vadd.f32 %v4722, %v4779
  %v4781 = vpop.f32.mrf.mxu0
  %v4782 = vadd.f32 %v4724, %v4781
  %4783 = vmatmul.bf16.gmra.mxu0 %v2290
  %v4784 = vpop.f32.mrf.mxu0
  %v4785 = vadd.f32 %v4727, %v4784
  %v4786 = vpop.f32.mrf.mxu0
  %v4787 = vadd.f32 %v4729, %v4786
  %4788 = vmatmul.bf16.gmra.mxu0 %v2326
  %v4789 = vpop.f32.mrf.mxu0
  %v4790 = vadd.f32 %v4732, %v4789
  %v4791 = vpop.f32.mrf.mxu0
  %4792 = vdwg.mxu0
  %4793 = vmatpush.bf16.msra.mxu0 %v3924
  %4794 = vmatpush.bf16.msra.mxu0 %v3923
  %4795 = vmatpush.bf16.msra.mxu0 %v3922
  %4796 = vmatpush.bf16.msra.mxu0 %v3921
  %4797 = vmatpush.bf16.msra.mxu0 %v3920
  %4798 = vmatpush.bf16.msra.mxu0 %v3919
  %4799 = vmatpush.bf16.msra.mxu0 %v3918
  %4800 = vmatpush.bf16.msra.mxu0 %v3917
  %4801 = vmatmul.bf16.gmra.mxu0 %v2003
  %v4802 = vpop.f32.mrf.mxu0
  %v4803 = vadd.f32 %v4745, %v4802
  %v4804 = vpop.f32.mrf.mxu0
  %v4805 = vadd.f32 %v4747, %v4804
  %4806 = vmatmul.bf16.gmra.mxu0 %v2039
  %v4807 = vpop.f32.mrf.mxu0
  %v4808 = vadd.f32 %v4750, %v4807
  %v4809 = vpop.f32.mrf.mxu0
  %v4810 = vadd.f32 %v4752, %v4809
  %4811 = vmatmul.bf16.gmra.mxu0 %v2075
  %v4812 = vpop.f32.mrf.mxu0
  %v4813 = vadd.f32 %v4755, %v4812
  %v4814 = vpop.f32.mrf.mxu0
  %v4815 = vadd.f32 %v4757, %v4814
  %4816 = vmatmul.bf16.gmra.mxu0 %v2111
  %v4817 = vpop.f32.mrf.mxu0
  %v4818 = vadd.f32 %v4760, %v4817
  %v4819 = vpop.f32.mrf.mxu0
  %v4820 = vadd.f32 %v4762, %v4819
  %4821 = vmatmul.bf16.gmra.mxu0 %v2147
  %v4822 = vpop.f32.mrf.mxu0
  %v4823 = vadd.f32 %v4765, %v4822
  %v4824 = vpop.f32.mrf.mxu0
  %v4825 = vadd.f32 %v4767, %v4824
  %4826 = vmatmul.bf16.gmra.mxu0 %v2183
  %v4827 = vpop.f32.mrf.mxu0
  %v4828 = vadd.f32 %v4770, %v4827
  %v4829 = vpop.f32.mrf.mxu0
  %v4830 = vadd.f32 %v4772, %v4829
  %4831 = vmatmul.bf16.gmra.mxu0 %v2219
  %v4832 = vpop.f32.mrf.mxu0
  %v4833 = vadd.f32 %v4775, %v4832
  %v4834 = vpop.f32.mrf.mxu0
  %v4835 = vadd.f32 %v4777, %v4834
  %4836 = vmatmul.bf16.gmra.mxu0 %v2255
  %v4837 = vpop.f32.mrf.mxu0
  %v4838 = vadd.f32 %v4780, %v4837
  %v4839 = vpop.f32.mrf.mxu0
  %v4840 = vadd.f32 %v4782, %v4839
  %4841 = vmatmul.bf16.gmra.mxu0 %v2291
  %v4842 = vpop.f32.mrf.mxu0
  %v4843 = vadd.f32 %v4785, %v4842
  %v4844 = vpop.f32.mrf.mxu0
  %v4845 = vadd.f32 %v4787, %v4844
  %4846 = vmatmul.bf16.gmra.mxu0 %v2327
  %v4847 = vpop.f32.mrf.mxu0
  %v4848 = vadd.f32 %v4790, %v4847
  %v4849 = vpop.f32.mrf.mxu0
  %4850 = vdwg.mxu0
  %4851 = vmatpush.bf16.msra.mxu0 %v3932
  %4852 = vmatpush.bf16.msra.mxu0 %v3931
  %4853 = vmatpush.bf16.msra.mxu0 %v3930
  %4854 = vmatpush.bf16.msra.mxu0 %v3929
  %4855 = vmatpush.bf16.msra.mxu0 %v3928
  %4856 = vmatpush.bf16.msra.mxu0 %v3927
  %4857 = vmatpush.bf16.msra.mxu0 %v3926
  %4858 = vmatpush.bf16.msra.mxu0 %v3925
  %4859 = vmatmul.bf16.gmra.mxu0 %v2004
  %v4860 = vpop.f32.mrf.mxu0
  %v4861 = vadd.f32 %v4803, %v4860
  %v4862 = vpop.f32.mrf.mxu0
  %v4863 = vadd.f32 %v4805, %v4862
  %4864 = vmatmul.bf16.gmra.mxu0 %v2040
  %v4865 = vpop.f32.mrf.mxu0
  %v4866 = vadd.f32 %v4808, %v4865
  %v4867 = vpop.f32.mrf.mxu0
  %v4868 = vadd.f32 %v4810, %v4867
  %4869 = vmatmul.bf16.gmra.mxu0 %v2076
  %v4870 = vpop.f32.mrf.mxu0
  %v4871 = vadd.f32 %v4813, %v4870
  %v4872 = vpop.f32.mrf.mxu0
  %v4873 = vadd.f32 %v4815, %v4872
  %4874 = vmatmul.bf16.gmra.mxu0 %v2112
  %v4875 = vpop.f32.mrf.mxu0
  %v4876 = vadd.f32 %v4818, %v4875
  %v4877 = vpop.f32.mrf.mxu0
  %v4878 = vadd.f32 %v4820, %v4877
  %4879 = vmatmul.bf16.gmra.mxu0 %v2148
  %v4880 = vpop.f32.mrf.mxu0
  %v4881 = vadd.f32 %v4823, %v4880
  %v4882 = vpop.f32.mrf.mxu0
  %v4883 = vadd.f32 %v4825, %v4882
  %4884 = vmatmul.bf16.gmra.mxu0 %v2184
  %v4885 = vpop.f32.mrf.mxu0
  %v4886 = vadd.f32 %v4828, %v4885
  %v4887 = vpop.f32.mrf.mxu0
  %v4888 = vadd.f32 %v4830, %v4887
  %4889 = vmatmul.bf16.gmra.mxu0 %v2220
  %v4890 = vpop.f32.mrf.mxu0
  %v4891 = vadd.f32 %v4833, %v4890
  %v4892 = vpop.f32.mrf.mxu0
  %v4893 = vadd.f32 %v4835, %v4892
  %4894 = vmatmul.bf16.gmra.mxu0 %v2256
  %v4895 = vpop.f32.mrf.mxu0
  %v4896 = vadd.f32 %v4838, %v4895
  %v4897 = vpop.f32.mrf.mxu0
  %v4898 = vadd.f32 %v4840, %v4897
  %4899 = vmatmul.bf16.gmra.mxu0 %v2292
  %v4900 = vpop.f32.mrf.mxu0
  %v4901 = vadd.f32 %v4843, %v4900
  %v4902 = vpop.f32.mrf.mxu0
  %v4903 = vadd.f32 %v4845, %v4902
  %4904 = vmatmul.bf16.gmra.mxu0 %v2328
  %v4905 = vpop.f32.mrf.mxu0
  %v4906 = vadd.f32 %v4848, %v4905
  %v4907 = vpop.f32.mrf.mxu0
  %4908 = vdwg.mxu0
  %4909 = vmatpush.bf16.msra.mxu0 %v3940
  %4910 = vmatpush.bf16.msra.mxu0 %v3939
  %4911 = vmatpush.bf16.msra.mxu0 %v3938
  %4912 = vmatpush.bf16.msra.mxu0 %v3937
  %4913 = vmatpush.bf16.msra.mxu0 %v3936
  %4914 = vmatpush.bf16.msra.mxu0 %v3935
  %4915 = vmatpush.bf16.msra.mxu0 %v3934
  %4916 = vmatpush.bf16.msra.mxu0 %v3933
  %4917 = vmatmul.bf16.gmra.mxu0 %v2005
  %v4918 = vpop.f32.mrf.mxu0
  %v4919 = vadd.f32 %v4861, %v4918
  %v4920 = vpop.f32.mrf.mxu0
  %v4921 = vadd.f32 %v4863, %v4920
  %4922 = vmatmul.bf16.gmra.mxu0 %v2041
  %v4923 = vpop.f32.mrf.mxu0
  %v4924 = vadd.f32 %v4866, %v4923
  %v4925 = vpop.f32.mrf.mxu0
  %v4926 = vadd.f32 %v4868, %v4925
  %4927 = vmatmul.bf16.gmra.mxu0 %v2077
  %v4928 = vpop.f32.mrf.mxu0
  %v4929 = vadd.f32 %v4871, %v4928
  %v4930 = vpop.f32.mrf.mxu0
  %v4931 = vadd.f32 %v4873, %v4930
  %4932 = vmatmul.bf16.gmra.mxu0 %v2113
  %v4933 = vpop.f32.mrf.mxu0
  %v4934 = vadd.f32 %v4876, %v4933
  %v4935 = vpop.f32.mrf.mxu0
  %v4936 = vadd.f32 %v4878, %v4935
  %4937 = vmatmul.bf16.gmra.mxu0 %v2149
  %v4938 = vpop.f32.mrf.mxu0
  %v4939 = vadd.f32 %v4881, %v4938
  %v4940 = vpop.f32.mrf.mxu0
  %v4941 = vadd.f32 %v4883, %v4940
  %4942 = vmatmul.bf16.gmra.mxu0 %v2185
  %v4943 = vpop.f32.mrf.mxu0
  %v4944 = vadd.f32 %v4886, %v4943
  %v4945 = vpop.f32.mrf.mxu0
  %v4946 = vadd.f32 %v4888, %v4945
  %4947 = vmatmul.bf16.gmra.mxu0 %v2221
  %v4948 = vpop.f32.mrf.mxu0
  %v4949 = vadd.f32 %v4891, %v4948
  %v4950 = vpop.f32.mrf.mxu0
  %v4951 = vadd.f32 %v4893, %v4950
  %4952 = vmatmul.bf16.gmra.mxu0 %v2257
  %v4953 = vpop.f32.mrf.mxu0
  %v4954 = vadd.f32 %v4896, %v4953
  %v4955 = vpop.f32.mrf.mxu0
  %v4956 = vadd.f32 %v4898, %v4955
  %4957 = vmatmul.bf16.gmra.mxu0 %v2293
  %v4958 = vpop.f32.mrf.mxu0
  %v4959 = vadd.f32 %v4901, %v4958
  %v4960 = vpop.f32.mrf.mxu0
  %v4961 = vadd.f32 %v4903, %v4960
  %4962 = vmatmul.bf16.gmra.mxu0 %v2329
  %v4963 = vpop.f32.mrf.mxu0
  %v4964 = vadd.f32 %v4906, %v4963
  %v4965 = vpop.f32.mrf.mxu0
  %4966 = vdwg.mxu0
  %4967 = vmatpush.bf16.msra.mxu0 %v3948
  %4968 = vmatpush.bf16.msra.mxu0 %v3947
  %4969 = vmatpush.bf16.msra.mxu0 %v3946
  %4970 = vmatpush.bf16.msra.mxu0 %v3945
  %4971 = vmatpush.bf16.msra.mxu0 %v3944
  %4972 = vmatpush.bf16.msra.mxu0 %v3943
  %4973 = vmatpush.bf16.msra.mxu0 %v3942
  %4974 = vmatpush.bf16.msra.mxu0 %v3941
  %4975 = vmatmul.bf16.gmra.mxu0 %v2006
  %v4976 = vpop.f32.mrf.mxu0
  %v4977 = vadd.f32 %v4919, %v4976
  %v4978 = vpop.f32.mrf.mxu0
  %v4979 = vadd.f32 %v4921, %v4978
  %4980 = vmatmul.bf16.gmra.mxu0 %v2042
  %v4981 = vpop.f32.mrf.mxu0
  %v4982 = vadd.f32 %v4924, %v4981
  %v4983 = vpop.f32.mrf.mxu0
  %v4984 = vadd.f32 %v4926, %v4983
  %4985 = vmatmul.bf16.gmra.mxu0 %v2078
  %v4986 = vpop.f32.mrf.mxu0
  %v4987 = vadd.f32 %v4929, %v4986
  %v4988 = vpop.f32.mrf.mxu0
  %v4989 = vadd.f32 %v4931, %v4988
  %4990 = vmatmul.bf16.gmra.mxu0 %v2114
  %v4991 = vpop.f32.mrf.mxu0
  %v4992 = vadd.f32 %v4934, %v4991
  %v4993 = vpop.f32.mrf.mxu0
  %v4994 = vadd.f32 %v4936, %v4993
  %4995 = vmatmul.bf16.gmra.mxu0 %v2150
  %v4996 = vpop.f32.mrf.mxu0
  %v4997 = vadd.f32 %v4939, %v4996
  %v4998 = vpop.f32.mrf.mxu0
  %v4999 = vadd.f32 %v4941, %v4998
  %5000 = vmatmul.bf16.gmra.mxu0 %v2186
  %v5001 = vpop.f32.mrf.mxu0
  %v5002 = vadd.f32 %v4944, %v5001
  %v5003 = vpop.f32.mrf.mxu0
  %v5004 = vadd.f32 %v4946, %v5003
  %5005 = vmatmul.bf16.gmra.mxu0 %v2222
  %v5006 = vpop.f32.mrf.mxu0
  %v5007 = vadd.f32 %v4949, %v5006
  %v5008 = vpop.f32.mrf.mxu0
  %v5009 = vadd.f32 %v4951, %v5008
  %5010 = vmatmul.bf16.gmra.mxu0 %v2258
  %v5011 = vpop.f32.mrf.mxu0
  %v5012 = vadd.f32 %v4954, %v5011
  %v5013 = vpop.f32.mrf.mxu0
  %v5014 = vadd.f32 %v4956, %v5013
  %5015 = vmatmul.bf16.gmra.mxu0 %v2294
  %v5016 = vpop.f32.mrf.mxu0
  %v5017 = vadd.f32 %v4959, %v5016
  %v5018 = vpop.f32.mrf.mxu0
  %v5019 = vadd.f32 %v4961, %v5018
  %5020 = vmatmul.bf16.gmra.mxu0 %v2330
  %v5021 = vpop.f32.mrf.mxu0
  %v5022 = vadd.f32 %v4964, %v5021
  %v5023 = vpop.f32.mrf.mxu0
  %5024 = vdwg.mxu0
  %5025 = vmatpush.bf16.msra.mxu0 %v3956
  %5026 = vmatpush.bf16.msra.mxu0 %v3955
  %5027 = vmatpush.bf16.msra.mxu0 %v3954
  %5028 = vmatpush.bf16.msra.mxu0 %v3953
  %5029 = vmatpush.bf16.msra.mxu0 %v3952
  %5030 = vmatpush.bf16.msra.mxu0 %v3951
  %5031 = vmatpush.bf16.msra.mxu0 %v3950
  %5032 = vmatpush.bf16.msra.mxu0 %v3949
  %5033 = vmatmul.bf16.gmra.mxu0 %v2007
  %v5034 = vpop.f32.mrf.mxu0
  %v5035 = vadd.f32 %v4977, %v5034
  %v5036 = vpop.f32.mrf.mxu0
  %v5037 = vadd.f32 %v4979, %v5036
  %5038 = vmatmul.bf16.gmra.mxu0 %v2043
  %v5039 = vpop.f32.mrf.mxu0
  %v5040 = vadd.f32 %v4982, %v5039
  %v5041 = vpop.f32.mrf.mxu0
  %v5042 = vadd.f32 %v4984, %v5041
  %5043 = vmatmul.bf16.gmra.mxu0 %v2079
  %v5044 = vpop.f32.mrf.mxu0
  %v5045 = vadd.f32 %v4987, %v5044
  %v5046 = vpop.f32.mrf.mxu0
  %v5047 = vadd.f32 %v4989, %v5046
  %5048 = vmatmul.bf16.gmra.mxu0 %v2115
  %v5049 = vpop.f32.mrf.mxu0
  %v5050 = vadd.f32 %v4992, %v5049
  %v5051 = vpop.f32.mrf.mxu0
  %v5052 = vadd.f32 %v4994, %v5051
  %5053 = vmatmul.bf16.gmra.mxu0 %v2151
  %v5054 = vpop.f32.mrf.mxu0
  %v5055 = vadd.f32 %v4997, %v5054
  %v5056 = vpop.f32.mrf.mxu0
  %v5057 = vadd.f32 %v4999, %v5056
  %5058 = vmatmul.bf16.gmra.mxu0 %v2187
  %v5059 = vpop.f32.mrf.mxu0
  %v5060 = vadd.f32 %v5002, %v5059
  %v5061 = vpop.f32.mrf.mxu0
  %v5062 = vadd.f32 %v5004, %v5061
  %5063 = vmatmul.bf16.gmra.mxu0 %v2223
  %v5064 = vpop.f32.mrf.mxu0
  %v5065 = vadd.f32 %v5007, %v5064
  %v5066 = vpop.f32.mrf.mxu0
  %v5067 = vadd.f32 %v5009, %v5066
  %5068 = vmatmul.bf16.gmra.mxu0 %v2259
  %v5069 = vpop.f32.mrf.mxu0
  %v5070 = vadd.f32 %v5012, %v5069
  %v5071 = vpop.f32.mrf.mxu0
  %v5072 = vadd.f32 %v5014, %v5071
  %5073 = vmatmul.bf16.gmra.mxu0 %v2295
  %v5074 = vpop.f32.mrf.mxu0
  %v5075 = vadd.f32 %v5017, %v5074
  %v5076 = vpop.f32.mrf.mxu0
  %v5077 = vadd.f32 %v5019, %v5076
  %5078 = vmatmul.bf16.gmra.mxu0 %v2331
  %v5079 = vpop.f32.mrf.mxu0
  %v5080 = vadd.f32 %v5022, %v5079
  %v5081 = vpop.f32.mrf.mxu0
  %5082 = vdwg.mxu0
  %5083 = vmatpush.bf16.msra.mxu0 %v3964
  %5084 = vmatpush.bf16.msra.mxu0 %v3963
  %5085 = vmatpush.bf16.msra.mxu0 %v3962
  %5086 = vmatpush.bf16.msra.mxu0 %v3961
  %5087 = vmatpush.bf16.msra.mxu0 %v3960
  %5088 = vmatpush.bf16.msra.mxu0 %v3959
  %5089 = vmatpush.bf16.msra.mxu0 %v3958
  %5090 = vmatpush.bf16.msra.mxu0 %v3957
  %5091 = vmatmul.bf16.gmra.mxu0 %v2008
  %v5092 = vpop.f32.mrf.mxu0
  %v5093 = vadd.f32 %v5035, %v5092
  %v5094 = vpop.f32.mrf.mxu0
  %v5095 = vadd.f32 %v5037, %v5094
  %5096 = vmatmul.bf16.gmra.mxu0 %v2044
  %v5097 = vpop.f32.mrf.mxu0
  %v5098 = vadd.f32 %v5040, %v5097
  %v5099 = vpop.f32.mrf.mxu0
  %v5100 = vadd.f32 %v5042, %v5099
  %5101 = vmatmul.bf16.gmra.mxu0 %v2080
  %v5102 = vpop.f32.mrf.mxu0
  %v5103 = vadd.f32 %v5045, %v5102
  %v5104 = vpop.f32.mrf.mxu0
  %v5105 = vadd.f32 %v5047, %v5104
  %5106 = vmatmul.bf16.gmra.mxu0 %v2116
  %v5107 = vpop.f32.mrf.mxu0
  %v5108 = vadd.f32 %v5050, %v5107
  %v5109 = vpop.f32.mrf.mxu0
  %v5110 = vadd.f32 %v5052, %v5109
  %5111 = vmatmul.bf16.gmra.mxu0 %v2152
  %v5112 = vpop.f32.mrf.mxu0
  %v5113 = vadd.f32 %v5055, %v5112
  %v5114 = vpop.f32.mrf.mxu0
  %v5115 = vadd.f32 %v5057, %v5114
  %5116 = vmatmul.bf16.gmra.mxu0 %v2188
  %v5117 = vpop.f32.mrf.mxu0
  %v5118 = vadd.f32 %v5060, %v5117
  %v5119 = vpop.f32.mrf.mxu0
  %v5120 = vadd.f32 %v5062, %v5119
  %5121 = vmatmul.bf16.gmra.mxu0 %v2224
  %v5122 = vpop.f32.mrf.mxu0
  %v5123 = vadd.f32 %v5065, %v5122
  %v5124 = vpop.f32.mrf.mxu0
  %v5125 = vadd.f32 %v5067, %v5124
  %5126 = vmatmul.bf16.gmra.mxu0 %v2260
  %v5127 = vpop.f32.mrf.mxu0
  %v5128 = vadd.f32 %v5070, %v5127
  %v5129 = vpop.f32.mrf.mxu0
  %v5130 = vadd.f32 %v5072, %v5129
  %5131 = vmatmul.bf16.gmra.mxu0 %v2296
  %v5132 = vpop.f32.mrf.mxu0
  %v5133 = vadd.f32 %v5075, %v5132
  %v5134 = vpop.f32.mrf.mxu0
  %v5135 = vadd.f32 %v5077, %v5134
  %5136 = vmatmul.bf16.gmra.mxu0 %v2332
  %v5137 = vpop.f32.mrf.mxu0
  %v5138 = vadd.f32 %v5080, %v5137
  %v5139 = vpop.f32.mrf.mxu0
  %5140 = vdwg.mxu0
  %5141 = vmatpush.bf16.msra.mxu0 %v3972
  %5142 = vmatpush.bf16.msra.mxu0 %v3971
  %5143 = vmatpush.bf16.msra.mxu0 %v3970
  %5144 = vmatpush.bf16.msra.mxu0 %v3969
  %5145 = vmatpush.bf16.msra.mxu0 %v3968
  %5146 = vmatpush.bf16.msra.mxu0 %v3967
  %5147 = vmatpush.bf16.msra.mxu0 %v3966
  %5148 = vmatpush.bf16.msra.mxu0 %v3965
  %5149 = vmatmul.bf16.gmra.mxu0 %v2009
  %v5150 = vpop.f32.mrf.mxu0
  %v5151 = vadd.f32 %v5093, %v5150
  %v5152 = vpop.f32.mrf.mxu0
  %v5153 = vadd.f32 %v5095, %v5152
  %5154 = vmatmul.bf16.gmra.mxu0 %v2045
  %v5155 = vpop.f32.mrf.mxu0
  %v5156 = vadd.f32 %v5098, %v5155
  %v5157 = vpop.f32.mrf.mxu0
  %v5158 = vadd.f32 %v5100, %v5157
  %5159 = vmatmul.bf16.gmra.mxu0 %v2081
  %v5160 = vpop.f32.mrf.mxu0
  %v5161 = vadd.f32 %v5103, %v5160
  %v5162 = vpop.f32.mrf.mxu0
  %v5163 = vadd.f32 %v5105, %v5162
  %5164 = vmatmul.bf16.gmra.mxu0 %v2117
  %v5165 = vpop.f32.mrf.mxu0
  %v5166 = vadd.f32 %v5108, %v5165
  %v5167 = vpop.f32.mrf.mxu0
  %v5168 = vadd.f32 %v5110, %v5167
  %5169 = vmatmul.bf16.gmra.mxu0 %v2153
  %v5170 = vpop.f32.mrf.mxu0
  %v5171 = vadd.f32 %v5113, %v5170
  %v5172 = vpop.f32.mrf.mxu0
  %v5173 = vadd.f32 %v5115, %v5172
  %5174 = vmatmul.bf16.gmra.mxu0 %v2189
  %v5175 = vpop.f32.mrf.mxu0
  %v5176 = vadd.f32 %v5118, %v5175
  %v5177 = vpop.f32.mrf.mxu0
  %v5178 = vadd.f32 %v5120, %v5177
  %5179 = vmatmul.bf16.gmra.mxu0 %v2225
  %v5180 = vpop.f32.mrf.mxu0
  %v5181 = vadd.f32 %v5123, %v5180
  %v5182 = vpop.f32.mrf.mxu0
  %v5183 = vadd.f32 %v5125, %v5182
  %5184 = vmatmul.bf16.gmra.mxu0 %v2261
  %v5185 = vpop.f32.mrf.mxu0
  %v5186 = vadd.f32 %v5128, %v5185
  %v5187 = vpop.f32.mrf.mxu0
  %v5188 = vadd.f32 %v5130, %v5187
  %5189 = vmatmul.bf16.gmra.mxu0 %v2297
  %v5190 = vpop.f32.mrf.mxu0
  %v5191 = vadd.f32 %v5133, %v5190
  %v5192 = vpop.f32.mrf.mxu0
  %v5193 = vadd.f32 %v5135, %v5192
  %5194 = vmatmul.bf16.gmra.mxu0 %v2333
  %v5195 = vpop.f32.mrf.mxu0
  %v5196 = vadd.f32 %v5138, %v5195
  %v5197 = vpop.f32.mrf.mxu0
  %5198 = vdwg.mxu0
  %5199 = vmatpush.bf16.msra.mxu0 %v3980
  %5200 = vmatpush.bf16.msra.mxu0 %v3979
  %5201 = vmatpush.bf16.msra.mxu0 %v3978
  %5202 = vmatpush.bf16.msra.mxu0 %v3977
  %5203 = vmatpush.bf16.msra.mxu0 %v3976
  %5204 = vmatpush.bf16.msra.mxu0 %v3975
  %5205 = vmatpush.bf16.msra.mxu0 %v3974
  %5206 = vmatpush.bf16.msra.mxu0 %v3973
  %5207 = vmatmul.bf16.gmra.mxu0 %v2010
  %v5208 = vpop.f32.mrf.mxu0
  %v5209 = vadd.f32 %v5151, %v5208
  %v5210 = vpop.f32.mrf.mxu0
  %v5211 = vadd.f32 %v5153, %v5210
  %5212 = vmatmul.bf16.gmra.mxu0 %v2046
  %v5213 = vpop.f32.mrf.mxu0
  %v5214 = vadd.f32 %v5156, %v5213
  %v5215 = vpop.f32.mrf.mxu0
  %v5216 = vadd.f32 %v5158, %v5215
  %5217 = vmatmul.bf16.gmra.mxu0 %v2082
  %v5218 = vpop.f32.mrf.mxu0
  %v5219 = vadd.f32 %v5161, %v5218
  %v5220 = vpop.f32.mrf.mxu0
  %v5221 = vadd.f32 %v5163, %v5220
  %5222 = vmatmul.bf16.gmra.mxu0 %v2118
  %v5223 = vpop.f32.mrf.mxu0
  %v5224 = vadd.f32 %v5166, %v5223
  %v5225 = vpop.f32.mrf.mxu0
  %v5226 = vadd.f32 %v5168, %v5225
  %5227 = vmatmul.bf16.gmra.mxu0 %v2154
  %v5228 = vpop.f32.mrf.mxu0
  %v5229 = vadd.f32 %v5171, %v5228
  %v5230 = vpop.f32.mrf.mxu0
  %v5231 = vadd.f32 %v5173, %v5230
  %5232 = vmatmul.bf16.gmra.mxu0 %v2190
  %v5233 = vpop.f32.mrf.mxu0
  %v5234 = vadd.f32 %v5176, %v5233
  %v5235 = vpop.f32.mrf.mxu0
  %v5236 = vadd.f32 %v5178, %v5235
  %5237 = vmatmul.bf16.gmra.mxu0 %v2226
  %v5238 = vpop.f32.mrf.mxu0
  %v5239 = vadd.f32 %v5181, %v5238
  %v5240 = vpop.f32.mrf.mxu0
  %v5241 = vadd.f32 %v5183, %v5240
  %5242 = vmatmul.bf16.gmra.mxu0 %v2262
  %v5243 = vpop.f32.mrf.mxu0
  %v5244 = vadd.f32 %v5186, %v5243
  %v5245 = vpop.f32.mrf.mxu0
  %v5246 = vadd.f32 %v5188, %v5245
  %5247 = vmatmul.bf16.gmra.mxu0 %v2298
  %v5248 = vpop.f32.mrf.mxu0
  %v5249 = vadd.f32 %v5191, %v5248
  %v5250 = vpop.f32.mrf.mxu0
  %v5251 = vadd.f32 %v5193, %v5250
  %5252 = vmatmul.bf16.gmra.mxu0 %v2334
  %v5253 = vpop.f32.mrf.mxu0
  %v5254 = vadd.f32 %v5196, %v5253
  %v5255 = vpop.f32.mrf.mxu0
  %5256 = vdwg.mxu0
  %5257 = vmatpush.bf16.msra.mxu0 %v3988
  %5258 = vmatpush.bf16.msra.mxu0 %v3987
  %5259 = vmatpush.bf16.msra.mxu0 %v3986
  %5260 = vmatpush.bf16.msra.mxu0 %v3985
  %5261 = vmatpush.bf16.msra.mxu0 %v3984
  %5262 = vmatpush.bf16.msra.mxu0 %v3983
  %5263 = vmatpush.bf16.msra.mxu0 %v3982
  %5264 = vmatpush.bf16.msra.mxu0 %v3981
  %5265 = vmatmul.bf16.gmra.mxu0 %v2011
  %v5266 = vpop.f32.mrf.mxu0
  %v5267 = vadd.f32 %v5209, %v5266
  %v5268 = vpop.f32.mrf.mxu0
  %v5269 = vadd.f32 %v5211, %v5268
  %5270 = vmatmul.bf16.gmra.mxu0 %v2047
  %v5271 = vpop.f32.mrf.mxu0
  %v5272 = vadd.f32 %v5214, %v5271
  %v5273 = vpop.f32.mrf.mxu0
  %v5274 = vadd.f32 %v5216, %v5273
  %5275 = vmatmul.bf16.gmra.mxu0 %v2083
  %v5276 = vpop.f32.mrf.mxu0
  %v5277 = vadd.f32 %v5219, %v5276
  %v5278 = vpop.f32.mrf.mxu0
  %v5279 = vadd.f32 %v5221, %v5278
  %5280 = vmatmul.bf16.gmra.mxu0 %v2119
  %v5281 = vpop.f32.mrf.mxu0
  %v5282 = vadd.f32 %v5224, %v5281
  %v5283 = vpop.f32.mrf.mxu0
  %v5284 = vadd.f32 %v5226, %v5283
  %5285 = vmatmul.bf16.gmra.mxu0 %v2155
  %v5286 = vpop.f32.mrf.mxu0
  %v5287 = vadd.f32 %v5229, %v5286
  %v5288 = vpop.f32.mrf.mxu0
  %v5289 = vadd.f32 %v5231, %v5288
  %5290 = vmatmul.bf16.gmra.mxu0 %v2191
  %v5291 = vpop.f32.mrf.mxu0
  %v5292 = vadd.f32 %v5234, %v5291
  %v5293 = vpop.f32.mrf.mxu0
  %v5294 = vadd.f32 %v5236, %v5293
  %5295 = vmatmul.bf16.gmra.mxu0 %v2227
  %v5296 = vpop.f32.mrf.mxu0
  %v5297 = vadd.f32 %v5239, %v5296
  %v5298 = vpop.f32.mrf.mxu0
  %v5299 = vadd.f32 %v5241, %v5298
  %5300 = vmatmul.bf16.gmra.mxu0 %v2263
  %v5301 = vpop.f32.mrf.mxu0
  %v5302 = vadd.f32 %v5244, %v5301
  %v5303 = vpop.f32.mrf.mxu0
  %v5304 = vadd.f32 %v5246, %v5303
  %5305 = vmatmul.bf16.gmra.mxu0 %v2299
  %v5306 = vpop.f32.mrf.mxu0
  %v5307 = vadd.f32 %v5249, %v5306
  %v5308 = vpop.f32.mrf.mxu0
  %v5309 = vadd.f32 %v5251, %v5308
  %5310 = vmatmul.bf16.gmra.mxu0 %v2335
  %v5311 = vpop.f32.mrf.mxu0
  %v5312 = vadd.f32 %v5254, %v5311
  %v5313 = vpop.f32.mrf.mxu0
  %5314 = vdwg.mxu0
  %5315 = vmatpush.bf16.msra.mxu0 %v3996
  %5316 = vmatpush.bf16.msra.mxu0 %v3995
  %5317 = vmatpush.bf16.msra.mxu0 %v3994
  %5318 = vmatpush.bf16.msra.mxu0 %v3993
  %5319 = vmatpush.bf16.msra.mxu0 %v3992
  %5320 = vmatpush.bf16.msra.mxu0 %v3991
  %5321 = vmatpush.bf16.msra.mxu0 %v3990
  %5322 = vmatpush.bf16.msra.mxu0 %v3989
  %5323 = vmatmul.bf16.gmra.mxu0 %v2012
  %v5324 = vpop.f32.mrf.mxu0
  %v5325 = vadd.f32 %v5267, %v5324
  %v5326 = vpop.f32.mrf.mxu0
  %v5327 = vadd.f32 %v5269, %v5326
  %5328 = vmatmul.bf16.gmra.mxu0 %v2048
  %v5329 = vpop.f32.mrf.mxu0
  %v5330 = vadd.f32 %v5272, %v5329
  %v5331 = vpop.f32.mrf.mxu0
  %v5332 = vadd.f32 %v5274, %v5331
  %5333 = vmatmul.bf16.gmra.mxu0 %v2084
  %v5334 = vpop.f32.mrf.mxu0
  %v5335 = vadd.f32 %v5277, %v5334
  %v5336 = vpop.f32.mrf.mxu0
  %v5337 = vadd.f32 %v5279, %v5336
  %5338 = vmatmul.bf16.gmra.mxu0 %v2120
  %v5339 = vpop.f32.mrf.mxu0
  %v5340 = vadd.f32 %v5282, %v5339
  %v5341 = vpop.f32.mrf.mxu0
  %v5342 = vadd.f32 %v5284, %v5341
  %5343 = vmatmul.bf16.gmra.mxu0 %v2156
  %v5344 = vpop.f32.mrf.mxu0
  %v5345 = vadd.f32 %v5287, %v5344
  %v5346 = vpop.f32.mrf.mxu0
  %v5347 = vadd.f32 %v5289, %v5346
  %5348 = vmatmul.bf16.gmra.mxu0 %v2192
  %v5349 = vpop.f32.mrf.mxu0
  %v5350 = vadd.f32 %v5292, %v5349
  %v5351 = vpop.f32.mrf.mxu0
  %v5352 = vadd.f32 %v5294, %v5351
  %5353 = vmatmul.bf16.gmra.mxu0 %v2228
  %v5354 = vpop.f32.mrf.mxu0
  %v5355 = vadd.f32 %v5297, %v5354
  %v5356 = vpop.f32.mrf.mxu0
  %v5357 = vadd.f32 %v5299, %v5356
  %5358 = vmatmul.bf16.gmra.mxu0 %v2264
  %v5359 = vpop.f32.mrf.mxu0
  %v5360 = vadd.f32 %v5302, %v5359
  %v5361 = vpop.f32.mrf.mxu0
  %v5362 = vadd.f32 %v5304, %v5361
  %5363 = vmatmul.bf16.gmra.mxu0 %v2300
  %v5364 = vpop.f32.mrf.mxu0
  %v5365 = vadd.f32 %v5307, %v5364
  %v5366 = vpop.f32.mrf.mxu0
  %v5367 = vadd.f32 %v5309, %v5366
  %5368 = vmatmul.bf16.gmra.mxu0 %v2336
  %v5369 = vpop.f32.mrf.mxu0
  %v5370 = vadd.f32 %v5312, %v5369
  %v5371 = vpop.f32.mrf.mxu0
  %5372 = vdwg.mxu0
  %5373 = vmatpush.bf16.msra.mxu0 %v4004
  %5374 = vmatpush.bf16.msra.mxu0 %v4003
  %5375 = vmatpush.bf16.msra.mxu0 %v4002
  %5376 = vmatpush.bf16.msra.mxu0 %v4001
  %5377 = vmatpush.bf16.msra.mxu0 %v4000
  %5378 = vmatpush.bf16.msra.mxu0 %v3999
  %5379 = vmatpush.bf16.msra.mxu0 %v3998
  %5380 = vmatpush.bf16.msra.mxu0 %v3997
  %5381 = vmatmul.bf16.gmra.mxu0 %v2013
  %v5382 = vpop.f32.mrf.mxu0
  %v5383 = vadd.f32 %v5325, %v5382
  %v5384 = vpop.f32.mrf.mxu0
  %v5385 = vadd.f32 %v5327, %v5384
  %5386 = vmatmul.bf16.gmra.mxu0 %v2049
  %v5387 = vpop.f32.mrf.mxu0
  %v5388 = vadd.f32 %v5330, %v5387
  %v5389 = vpop.f32.mrf.mxu0
  %v5390 = vadd.f32 %v5332, %v5389
  %5391 = vmatmul.bf16.gmra.mxu0 %v2085
  %v5392 = vpop.f32.mrf.mxu0
  %v5393 = vadd.f32 %v5335, %v5392
  %v5394 = vpop.f32.mrf.mxu0
  %v5395 = vadd.f32 %v5337, %v5394
  %5396 = vmatmul.bf16.gmra.mxu0 %v2121
  %v5397 = vpop.f32.mrf.mxu0
  %v5398 = vadd.f32 %v5340, %v5397
  %v5399 = vpop.f32.mrf.mxu0
  %v5400 = vadd.f32 %v5342, %v5399
  %5401 = vmatmul.bf16.gmra.mxu0 %v2157
  %v5402 = vpop.f32.mrf.mxu0
  %v5403 = vadd.f32 %v5345, %v5402
  %v5404 = vpop.f32.mrf.mxu0
  %v5405 = vadd.f32 %v5347, %v5404
  %5406 = vmatmul.bf16.gmra.mxu0 %v2193
  %v5407 = vpop.f32.mrf.mxu0
  %v5408 = vadd.f32 %v5350, %v5407
  %v5409 = vpop.f32.mrf.mxu0
  %v5410 = vadd.f32 %v5352, %v5409
  %5411 = vmatmul.bf16.gmra.mxu0 %v2229
  %v5412 = vpop.f32.mrf.mxu0
  %v5413 = vadd.f32 %v5355, %v5412
  %v5414 = vpop.f32.mrf.mxu0
  %v5415 = vadd.f32 %v5357, %v5414
  %5416 = vmatmul.bf16.gmra.mxu0 %v2265
  %v5417 = vpop.f32.mrf.mxu0
  %v5418 = vadd.f32 %v5360, %v5417
  %v5419 = vpop.f32.mrf.mxu0
  %v5420 = vadd.f32 %v5362, %v5419
  %5421 = vmatmul.bf16.gmra.mxu0 %v2301
  %v5422 = vpop.f32.mrf.mxu0
  %v5423 = vadd.f32 %v5365, %v5422
  %v5424 = vpop.f32.mrf.mxu0
  %v5425 = vadd.f32 %v5367, %v5424
  %5426 = vmatmul.bf16.gmra.mxu0 %v2337
  %v5427 = vpop.f32.mrf.mxu0
  %v5428 = vadd.f32 %v5370, %v5427
  %v5429 = vpop.f32.mrf.mxu0
  %5430 = vdwg.mxu0
  %5431 = vmatpush.bf16.msra.mxu0 %v4012
  %5432 = vmatpush.bf16.msra.mxu0 %v4011
  %5433 = vmatpush.bf16.msra.mxu0 %v4010
  %5434 = vmatpush.bf16.msra.mxu0 %v4009
  %5435 = vmatpush.bf16.msra.mxu0 %v4008
  %5436 = vmatpush.bf16.msra.mxu0 %v4007
  %5437 = vmatpush.bf16.msra.mxu0 %v4006
  %5438 = vmatpush.bf16.msra.mxu0 %v4005
  %5439 = vmatmul.bf16.gmra.mxu0 %v2014
  %v5440 = vpop.f32.mrf.mxu0
  %v5441 = vadd.f32 %v5383, %v5440
  %v5442 = vpop.f32.mrf.mxu0
  %v5443 = vadd.f32 %v5385, %v5442
  %5444 = vmatmul.bf16.gmra.mxu0 %v2050
  %v5445 = vpop.f32.mrf.mxu0
  %v5446 = vadd.f32 %v5388, %v5445
  %v5447 = vpop.f32.mrf.mxu0
  %v5448 = vadd.f32 %v5390, %v5447
  %5449 = vmatmul.bf16.gmra.mxu0 %v2086
  %v5450 = vpop.f32.mrf.mxu0
  %v5451 = vadd.f32 %v5393, %v5450
  %v5452 = vpop.f32.mrf.mxu0
  %v5453 = vadd.f32 %v5395, %v5452
  %5454 = vmatmul.bf16.gmra.mxu0 %v2122
  %v5455 = vpop.f32.mrf.mxu0
  %v5456 = vadd.f32 %v5398, %v5455
  %v5457 = vpop.f32.mrf.mxu0
  %v5458 = vadd.f32 %v5400, %v5457
  %5459 = vmatmul.bf16.gmra.mxu0 %v2158
  %v5460 = vpop.f32.mrf.mxu0
  %v5461 = vadd.f32 %v5403, %v5460
  %v5462 = vpop.f32.mrf.mxu0
  %v5463 = vadd.f32 %v5405, %v5462
  %5464 = vmatmul.bf16.gmra.mxu0 %v2194
  %v5465 = vpop.f32.mrf.mxu0
  %v5466 = vadd.f32 %v5408, %v5465
  %v5467 = vpop.f32.mrf.mxu0
  %v5468 = vadd.f32 %v5410, %v5467
  %5469 = vmatmul.bf16.gmra.mxu0 %v2230
  %v5470 = vpop.f32.mrf.mxu0
  %v5471 = vadd.f32 %v5413, %v5470
  %v5472 = vpop.f32.mrf.mxu0
  %v5473 = vadd.f32 %v5415, %v5472
  %5474 = vmatmul.bf16.gmra.mxu0 %v2266
  %v5475 = vpop.f32.mrf.mxu0
  %v5476 = vadd.f32 %v5418, %v5475
  %v5477 = vpop.f32.mrf.mxu0
  %v5478 = vadd.f32 %v5420, %v5477
  %5479 = vmatmul.bf16.gmra.mxu0 %v2302
  %v5480 = vpop.f32.mrf.mxu0
  %v5481 = vadd.f32 %v5423, %v5480
  %v5482 = vpop.f32.mrf.mxu0
  %v5483 = vadd.f32 %v5425, %v5482
  %5484 = vmatmul.bf16.gmra.mxu0 %v2338
  %v5485 = vpop.f32.mrf.mxu0
  %v5486 = vadd.f32 %v5428, %v5485
  %v5487 = vpop.f32.mrf.mxu0
  %5488 = vdwg.mxu0
  %5489 = vmatpush.bf16.msra.mxu0 %v4020
  %5490 = vmatpush.bf16.msra.mxu0 %v4019
  %5491 = vmatpush.bf16.msra.mxu0 %v4018
  %5492 = vmatpush.bf16.msra.mxu0 %v4017
  %5493 = vmatpush.bf16.msra.mxu0 %v4016
  %5494 = vmatpush.bf16.msra.mxu0 %v4015
  %5495 = vmatpush.bf16.msra.mxu0 %v4014
  %5496 = vmatpush.bf16.msra.mxu0 %v4013
  %5497 = vmatmul.bf16.gmra.mxu0 %v2015
  %v5498 = vpop.f32.mrf.mxu0
  %v5499 = vadd.f32 %v5441, %v5498
  %v5500 = vpop.f32.mrf.mxu0
  %v5501 = vadd.f32 %v5443, %v5500
  %5502 = vmatmul.bf16.gmra.mxu0 %v2051
  %v5503 = vpop.f32.mrf.mxu0
  %v5504 = vadd.f32 %v5446, %v5503
  %v5505 = vpop.f32.mrf.mxu0
  %v5506 = vadd.f32 %v5448, %v5505
  %5507 = vmatmul.bf16.gmra.mxu0 %v2087
  %v5508 = vpop.f32.mrf.mxu0
  %v5509 = vadd.f32 %v5451, %v5508
  %v5510 = vpop.f32.mrf.mxu0
  %v5511 = vadd.f32 %v5453, %v5510
  %5512 = vmatmul.bf16.gmra.mxu0 %v2123
  %v5513 = vpop.f32.mrf.mxu0
  %v5514 = vadd.f32 %v5456, %v5513
  %v5515 = vpop.f32.mrf.mxu0
  %v5516 = vadd.f32 %v5458, %v5515
  %5517 = vmatmul.bf16.gmra.mxu0 %v2159
  %v5518 = vpop.f32.mrf.mxu0
  %v5519 = vadd.f32 %v5461, %v5518
  %v5520 = vpop.f32.mrf.mxu0
  %v5521 = vadd.f32 %v5463, %v5520
  %5522 = vmatmul.bf16.gmra.mxu0 %v2195
  %v5523 = vpop.f32.mrf.mxu0
  %v5524 = vadd.f32 %v5466, %v5523
  %v5525 = vpop.f32.mrf.mxu0
  %v5526 = vadd.f32 %v5468, %v5525
  %5527 = vmatmul.bf16.gmra.mxu0 %v2231
  %v5528 = vpop.f32.mrf.mxu0
  %v5529 = vadd.f32 %v5471, %v5528
  %v5530 = vpop.f32.mrf.mxu0
  %v5531 = vadd.f32 %v5473, %v5530
  %5532 = vmatmul.bf16.gmra.mxu0 %v2267
  %v5533 = vpop.f32.mrf.mxu0
  %v5534 = vadd.f32 %v5476, %v5533
  %v5535 = vpop.f32.mrf.mxu0
  %v5536 = vadd.f32 %v5478, %v5535
  %5537 = vmatmul.bf16.gmra.mxu0 %v2303
  %v5538 = vpop.f32.mrf.mxu0
  %v5539 = vadd.f32 %v5481, %v5538
  %v5540 = vpop.f32.mrf.mxu0
  %v5541 = vadd.f32 %v5483, %v5540
  %5542 = vmatmul.bf16.gmra.mxu0 %v2339
  %v5543 = vpop.f32.mrf.mxu0
  %v5544 = vadd.f32 %v5486, %v5543
  %v5545 = vpop.f32.mrf.mxu0
  %5546 = vdwg.mxu0
  %5547 = vmatpush.bf16.msra.mxu0 %v4028
  %5548 = vmatpush.bf16.msra.mxu0 %v4027
  %5549 = vmatpush.bf16.msra.mxu0 %v4026
  %5550 = vmatpush.bf16.msra.mxu0 %v4025
  %5551 = vmatpush.bf16.msra.mxu0 %v4024
  %5552 = vmatpush.bf16.msra.mxu0 %v4023
  %5553 = vmatpush.bf16.msra.mxu0 %v4022
  %5554 = vmatpush.bf16.msra.mxu0 %v4021
  %5555 = vmatmul.bf16.gmra.mxu0 %v2016
  %v5556 = vpop.f32.mrf.mxu0
  %v5557 = vadd.f32 %v5499, %v5556
  %v5558 = vpop.f32.mrf.mxu0
  %v5559 = vadd.f32 %v5501, %v5558
  %5560 = vmatmul.bf16.gmra.mxu0 %v2052
  %v5561 = vpop.f32.mrf.mxu0
  %v5562 = vadd.f32 %v5504, %v5561
  %v5563 = vpop.f32.mrf.mxu0
  %v5564 = vadd.f32 %v5506, %v5563
  %5565 = vmatmul.bf16.gmra.mxu0 %v2088
  %v5566 = vpop.f32.mrf.mxu0
  %v5567 = vadd.f32 %v5509, %v5566
  %v5568 = vpop.f32.mrf.mxu0
  %v5569 = vadd.f32 %v5511, %v5568
  %5570 = vmatmul.bf16.gmra.mxu0 %v2124
  %v5571 = vpop.f32.mrf.mxu0
  %v5572 = vadd.f32 %v5514, %v5571
  %v5573 = vpop.f32.mrf.mxu0
  %v5574 = vadd.f32 %v5516, %v5573
  %5575 = vmatmul.bf16.gmra.mxu0 %v2160
  %v5576 = vpop.f32.mrf.mxu0
  %v5577 = vadd.f32 %v5519, %v5576
  %v5578 = vpop.f32.mrf.mxu0
  %v5579 = vadd.f32 %v5521, %v5578
  %5580 = vmatmul.bf16.gmra.mxu0 %v2196
  %v5581 = vpop.f32.mrf.mxu0
  %v5582 = vadd.f32 %v5524, %v5581
  %v5583 = vpop.f32.mrf.mxu0
  %v5584 = vadd.f32 %v5526, %v5583
  %5585 = vmatmul.bf16.gmra.mxu0 %v2232
  %v5586 = vpop.f32.mrf.mxu0
  %v5587 = vadd.f32 %v5529, %v5586
  %v5588 = vpop.f32.mrf.mxu0
  %v5589 = vadd.f32 %v5531, %v5588
  %5590 = vmatmul.bf16.gmra.mxu0 %v2268
  %v5591 = vpop.f32.mrf.mxu0
  %v5592 = vadd.f32 %v5534, %v5591
  %v5593 = vpop.f32.mrf.mxu0
  %v5594 = vadd.f32 %v5536, %v5593
  %5595 = vmatmul.bf16.gmra.mxu0 %v2304
  %v5596 = vpop.f32.mrf.mxu0
  %v5597 = vadd.f32 %v5539, %v5596
  %v5598 = vpop.f32.mrf.mxu0
  %v5599 = vadd.f32 %v5541, %v5598
  %5600 = vmatmul.bf16.gmra.mxu0 %v2340
  %v5601 = vpop.f32.mrf.mxu0
  %v5602 = vadd.f32 %v5544, %v5601
  %v5603 = vpop.f32.mrf.mxu0
  %5604 = vdwg.mxu0
  %5605 = vmatpush.bf16.msra.mxu0 %v4036
  %5606 = vmatpush.bf16.msra.mxu0 %v4035
  %5607 = vmatpush.bf16.msra.mxu0 %v4034
  %5608 = vmatpush.bf16.msra.mxu0 %v4033
  %5609 = vmatpush.bf16.msra.mxu0 %v4032
  %5610 = vmatpush.bf16.msra.mxu0 %v4031
  %5611 = vmatpush.bf16.msra.mxu0 %v4030
  %5612 = vmatpush.bf16.msra.mxu0 %v4029
  %5613 = vmatmul.bf16.gmra.mxu0 %v2017
  %v5614 = vpop.f32.mrf.mxu0
  %v5615 = vadd.f32 %v5557, %v5614
  %v5616 = vpop.f32.mrf.mxu0
  %v5617 = vadd.f32 %v5559, %v5616
  %5618 = vmatmul.bf16.gmra.mxu0 %v2053
  %v5619 = vpop.f32.mrf.mxu0
  %v5620 = vadd.f32 %v5562, %v5619
  %v5621 = vpop.f32.mrf.mxu0
  %v5622 = vadd.f32 %v5564, %v5621
  %5623 = vmatmul.bf16.gmra.mxu0 %v2089
  %v5624 = vpop.f32.mrf.mxu0
  %v5625 = vadd.f32 %v5567, %v5624
  %v5626 = vpop.f32.mrf.mxu0
  %v5627 = vadd.f32 %v5569, %v5626
  %5628 = vmatmul.bf16.gmra.mxu0 %v2125
  %v5629 = vpop.f32.mrf.mxu0
  %v5630 = vadd.f32 %v5572, %v5629
  %v5631 = vpop.f32.mrf.mxu0
  %v5632 = vadd.f32 %v5574, %v5631
  %5633 = vmatmul.bf16.gmra.mxu0 %v2161
  %v5634 = vpop.f32.mrf.mxu0
  %v5635 = vadd.f32 %v5577, %v5634
  %v5636 = vpop.f32.mrf.mxu0
  %v5637 = vadd.f32 %v5579, %v5636
  %5638 = vmatmul.bf16.gmra.mxu0 %v2197
  %v5639 = vpop.f32.mrf.mxu0
  %v5640 = vadd.f32 %v5582, %v5639
  %v5641 = vpop.f32.mrf.mxu0
  %v5642 = vadd.f32 %v5584, %v5641
  %5643 = vmatmul.bf16.gmra.mxu0 %v2233
  %v5644 = vpop.f32.mrf.mxu0
  %v5645 = vadd.f32 %v5587, %v5644
  %v5646 = vpop.f32.mrf.mxu0
  %v5647 = vadd.f32 %v5589, %v5646
  %5648 = vmatmul.bf16.gmra.mxu0 %v2269
  %v5649 = vpop.f32.mrf.mxu0
  %v5650 = vadd.f32 %v5592, %v5649
  %v5651 = vpop.f32.mrf.mxu0
  %v5652 = vadd.f32 %v5594, %v5651
  %5653 = vmatmul.bf16.gmra.mxu0 %v2305
  %v5654 = vpop.f32.mrf.mxu0
  %v5655 = vadd.f32 %v5597, %v5654
  %v5656 = vpop.f32.mrf.mxu0
  %v5657 = vadd.f32 %v5599, %v5656
  %5658 = vmatmul.bf16.gmra.mxu0 %v2341
  %v5659 = vpop.f32.mrf.mxu0
  %v5660 = vadd.f32 %v5602, %v5659
  %v5661 = vpop.f32.mrf.mxu0
  %5662 = vdwg.mxu0
  %5663 = vmatpush.bf16.msra.mxu0 %v4044
  %5664 = vmatpush.bf16.msra.mxu0 %v4043
  %5665 = vmatpush.bf16.msra.mxu0 %v4042
  %5666 = vmatpush.bf16.msra.mxu0 %v4041
  %5667 = vmatpush.bf16.msra.mxu0 %v4040
  %5668 = vmatpush.bf16.msra.mxu0 %v4039
  %5669 = vmatpush.bf16.msra.mxu0 %v4038
  %5670 = vmatpush.bf16.msra.mxu0 %v4037
  %5671 = vmatmul.bf16.gmra.mxu0 %v2018
  %v5672 = vpop.f32.mrf.mxu0
  %v5673 = vadd.f32 %v5615, %v5672
  %v5674 = vpop.f32.mrf.mxu0
  %v5675 = vadd.f32 %v5617, %v5674
  %5676 = vmatmul.bf16.gmra.mxu0 %v2054
  %v5677 = vpop.f32.mrf.mxu0
  %v5678 = vadd.f32 %v5620, %v5677
  %v5679 = vpop.f32.mrf.mxu0
  %v5680 = vadd.f32 %v5622, %v5679
  %5681 = vmatmul.bf16.gmra.mxu0 %v2090
  %v5682 = vpop.f32.mrf.mxu0
  %v5683 = vadd.f32 %v5625, %v5682
  %v5684 = vpop.f32.mrf.mxu0
  %v5685 = vadd.f32 %v5627, %v5684
  %5686 = vmatmul.bf16.gmra.mxu0 %v2126
  %v5687 = vpop.f32.mrf.mxu0
  %v5688 = vadd.f32 %v5630, %v5687
  %v5689 = vpop.f32.mrf.mxu0
  %v5690 = vadd.f32 %v5632, %v5689
  %5691 = vmatmul.bf16.gmra.mxu0 %v2162
  %v5692 = vpop.f32.mrf.mxu0
  %v5693 = vadd.f32 %v5635, %v5692
  %v5694 = vpop.f32.mrf.mxu0
  %v5695 = vadd.f32 %v5637, %v5694
  %5696 = vmatmul.bf16.gmra.mxu0 %v2198
  %v5697 = vpop.f32.mrf.mxu0
  %v5698 = vadd.f32 %v5640, %v5697
  %v5699 = vpop.f32.mrf.mxu0
  %v5700 = vadd.f32 %v5642, %v5699
  %5701 = vmatmul.bf16.gmra.mxu0 %v2234
  %v5702 = vpop.f32.mrf.mxu0
  %v5703 = vadd.f32 %v5645, %v5702
  %v5704 = vpop.f32.mrf.mxu0
  %v5705 = vadd.f32 %v5647, %v5704
  %5706 = vmatmul.bf16.gmra.mxu0 %v2270
  %v5707 = vpop.f32.mrf.mxu0
  %v5708 = vadd.f32 %v5650, %v5707
  %v5709 = vpop.f32.mrf.mxu0
  %v5710 = vadd.f32 %v5652, %v5709
  %5711 = vmatmul.bf16.gmra.mxu0 %v2306
  %v5712 = vpop.f32.mrf.mxu0
  %v5713 = vadd.f32 %v5655, %v5712
  %v5714 = vpop.f32.mrf.mxu0
  %v5715 = vadd.f32 %v5657, %v5714
  %5716 = vmatmul.bf16.gmra.mxu0 %v2342
  %v5717 = vpop.f32.mrf.mxu0
  %v5718 = vadd.f32 %v5660, %v5717
  %v5719 = vpop.f32.mrf.mxu0
  %5720 = vdwg.mxu0
  %5721 = vmatpush.bf16.msra.mxu0 %v4052
  %5722 = vmatpush.bf16.msra.mxu0 %v4051
  %5723 = vmatpush.bf16.msra.mxu0 %v4050
  %5724 = vmatpush.bf16.msra.mxu0 %v4049
  %5725 = vmatpush.bf16.msra.mxu0 %v4048
  %5726 = vmatpush.bf16.msra.mxu0 %v4047
  %5727 = vmatpush.bf16.msra.mxu0 %v4046
  %5728 = vmatpush.bf16.msra.mxu0 %v4045
  %5729 = vmatmul.bf16.gmra.mxu0 %v2019
  %v5730 = vpop.f32.mrf.mxu0
  %v5731 = vadd.f32 %v5673, %v5730
  %v5732 = vpop.f32.mrf.mxu0
  %v5733 = vadd.f32 %v5675, %v5732
  %5734 = vmatmul.bf16.gmra.mxu0 %v2055
  %v5735 = vpop.f32.mrf.mxu0
  %v5736 = vadd.f32 %v5678, %v5735
  %v5737 = vpop.f32.mrf.mxu0
  %v5738 = vadd.f32 %v5680, %v5737
  %5739 = vmatmul.bf16.gmra.mxu0 %v2091
  %v5740 = vpop.f32.mrf.mxu0
  %v5741 = vadd.f32 %v5683, %v5740
  %v5742 = vpop.f32.mrf.mxu0
  %v5743 = vadd.f32 %v5685, %v5742
  %5744 = vmatmul.bf16.gmra.mxu0 %v2127
  %v5745 = vpop.f32.mrf.mxu0
  %v5746 = vadd.f32 %v5688, %v5745
  %v5747 = vpop.f32.mrf.mxu0
  %v5748 = vadd.f32 %v5690, %v5747
  %5749 = vmatmul.bf16.gmra.mxu0 %v2163
  %v5750 = vpop.f32.mrf.mxu0
  %v5751 = vadd.f32 %v5693, %v5750
  %v5752 = vpop.f32.mrf.mxu0
  %v5753 = vadd.f32 %v5695, %v5752
  %5754 = vmatmul.bf16.gmra.mxu0 %v2199
  %v5755 = vpop.f32.mrf.mxu0
  %v5756 = vadd.f32 %v5698, %v5755
  %v5757 = vpop.f32.mrf.mxu0
  %v5758 = vadd.f32 %v5700, %v5757
  %5759 = vmatmul.bf16.gmra.mxu0 %v2235
  %v5760 = vpop.f32.mrf.mxu0
  %v5761 = vadd.f32 %v5703, %v5760
  %v5762 = vpop.f32.mrf.mxu0
  %v5763 = vadd.f32 %v5705, %v5762
  %5764 = vmatmul.bf16.gmra.mxu0 %v2271
  %v5765 = vpop.f32.mrf.mxu0
  %v5766 = vadd.f32 %v5708, %v5765
  %v5767 = vpop.f32.mrf.mxu0
  %v5768 = vadd.f32 %v5710, %v5767
  %5769 = vmatmul.bf16.gmra.mxu0 %v2307
  %v5770 = vpop.f32.mrf.mxu0
  %v5771 = vadd.f32 %v5713, %v5770
  %v5772 = vpop.f32.mrf.mxu0
  %v5773 = vadd.f32 %v5715, %v5772
  %5774 = vmatmul.bf16.gmra.mxu0 %v2343
  %v5775 = vpop.f32.mrf.mxu0
  %v5776 = vadd.f32 %v5718, %v5775
  %v5777 = vpop.f32.mrf.mxu0
  %5778 = vdwg.mxu0
  %5779 = vmatpush.bf16.msra.mxu0 %v4060
  %5780 = vmatpush.bf16.msra.mxu0 %v4059
  %5781 = vmatpush.bf16.msra.mxu0 %v4058
  %5782 = vmatpush.bf16.msra.mxu0 %v4057
  %5783 = vmatpush.bf16.msra.mxu0 %v4056
  %5784 = vmatpush.bf16.msra.mxu0 %v4055
  %5785 = vmatpush.bf16.msra.mxu0 %v4054
  %5786 = vmatpush.bf16.msra.mxu0 %v4053
  %5787 = vmatmul.bf16.gmra.mxu0 %v2020
  %v5788 = vpop.f32.mrf.mxu0
  %v5789 = vadd.f32 %v5731, %v5788
  %v5790 = vpop.f32.mrf.mxu0
  %v5791 = vadd.f32 %v5733, %v5790
  %5792 = vmatmul.bf16.gmra.mxu0 %v2056
  %v5793 = vpop.f32.mrf.mxu0
  %v5794 = vadd.f32 %v5736, %v5793
  %v5795 = vpop.f32.mrf.mxu0
  %v5796 = vadd.f32 %v5738, %v5795
  %5797 = vmatmul.bf16.gmra.mxu0 %v2092
  %v5798 = vpop.f32.mrf.mxu0
  %v5799 = vadd.f32 %v5741, %v5798
  %v5800 = vpop.f32.mrf.mxu0
  %v5801 = vadd.f32 %v5743, %v5800
  %5802 = vmatmul.bf16.gmra.mxu0 %v2128
  %v5803 = vpop.f32.mrf.mxu0
  %v5804 = vadd.f32 %v5746, %v5803
  %v5805 = vpop.f32.mrf.mxu0
  %v5806 = vadd.f32 %v5748, %v5805
  %5807 = vmatmul.bf16.gmra.mxu0 %v2164
  %v5808 = vpop.f32.mrf.mxu0
  %v5809 = vadd.f32 %v5751, %v5808
  %v5810 = vpop.f32.mrf.mxu0
  %v5811 = vadd.f32 %v5753, %v5810
  %5812 = vmatmul.bf16.gmra.mxu0 %v2200
  %v5813 = vpop.f32.mrf.mxu0
  %v5814 = vadd.f32 %v5756, %v5813
  %v5815 = vpop.f32.mrf.mxu0
  %v5816 = vadd.f32 %v5758, %v5815
  %5817 = vmatmul.bf16.gmra.mxu0 %v2236
  %v5818 = vpop.f32.mrf.mxu0
  %v5819 = vadd.f32 %v5761, %v5818
  %v5820 = vpop.f32.mrf.mxu0
  %v5821 = vadd.f32 %v5763, %v5820
  %5822 = vmatmul.bf16.gmra.mxu0 %v2272
  %v5823 = vpop.f32.mrf.mxu0
  %v5824 = vadd.f32 %v5766, %v5823
  %v5825 = vpop.f32.mrf.mxu0
  %v5826 = vadd.f32 %v5768, %v5825
  %5827 = vmatmul.bf16.gmra.mxu0 %v2308
  %v5828 = vpop.f32.mrf.mxu0
  %v5829 = vadd.f32 %v5771, %v5828
  %v5830 = vpop.f32.mrf.mxu0
  %v5831 = vadd.f32 %v5773, %v5830
  %5832 = vmatmul.bf16.gmra.mxu0 %v2344
  %v5833 = vpop.f32.mrf.mxu0
  %v5834 = vadd.f32 %v5776, %v5833
  %v5835 = vpop.f32.mrf.mxu0
  %5836 = vdwg.mxu0
  %5837 = vmatpush.bf16.msra.mxu0 %v4068
  %5838 = vmatpush.bf16.msra.mxu0 %v4067
  %5839 = vmatpush.bf16.msra.mxu0 %v4066
  %5840 = vmatpush.bf16.msra.mxu0 %v4065
  %5841 = vmatpush.bf16.msra.mxu0 %v4064
  %5842 = vmatpush.bf16.msra.mxu0 %v4063
  %5843 = vmatpush.bf16.msra.mxu0 %v4062
  %5844 = vmatpush.bf16.msra.mxu0 %v4061
  %5845 = vmatmul.bf16.gmra.mxu0 %v2021
  %v5846 = vpop.f32.mrf.mxu0
  %v5847 = vadd.f32 %v5789, %v5846
  %v5848 = vpop.f32.mrf.mxu0
  %v5849 = vadd.f32 %v5791, %v5848
  %5850 = vmatmul.bf16.gmra.mxu0 %v2057
  %v5851 = vpop.f32.mrf.mxu0
  %v5852 = vadd.f32 %v5794, %v5851
  %v5853 = vpop.f32.mrf.mxu0
  %v5854 = vadd.f32 %v5796, %v5853
  %5855 = vmatmul.bf16.gmra.mxu0 %v2093
  %v5856 = vpop.f32.mrf.mxu0
  %v5857 = vadd.f32 %v5799, %v5856
  %v5858 = vpop.f32.mrf.mxu0
  %v5859 = vadd.f32 %v5801, %v5858
  %5860 = vmatmul.bf16.gmra.mxu0 %v2129
  %v5861 = vpop.f32.mrf.mxu0
  %v5862 = vadd.f32 %v5804, %v5861
  %v5863 = vpop.f32.mrf.mxu0
  %v5864 = vadd.f32 %v5806, %v5863
  %5865 = vmatmul.bf16.gmra.mxu0 %v2165
  %v5866 = vpop.f32.mrf.mxu0
  %v5867 = vadd.f32 %v5809, %v5866
  %v5868 = vpop.f32.mrf.mxu0
  %v5869 = vadd.f32 %v5811, %v5868
  %5870 = vmatmul.bf16.gmra.mxu0 %v2201
  %v5871 = vpop.f32.mrf.mxu0
  %v5872 = vadd.f32 %v5814, %v5871
  %v5873 = vpop.f32.mrf.mxu0
  %v5874 = vadd.f32 %v5816, %v5873
  %5875 = vmatmul.bf16.gmra.mxu0 %v2237
  %v5876 = vpop.f32.mrf.mxu0
  %v5877 = vadd.f32 %v5819, %v5876
  %v5878 = vpop.f32.mrf.mxu0
  %v5879 = vadd.f32 %v5821, %v5878
  %5880 = vmatmul.bf16.gmra.mxu0 %v2273
  %v5881 = vpop.f32.mrf.mxu0
  %v5882 = vadd.f32 %v5824, %v5881
  %v5883 = vpop.f32.mrf.mxu0
  %v5884 = vadd.f32 %v5826, %v5883
  %5885 = vmatmul.bf16.gmra.mxu0 %v2309
  %v5886 = vpop.f32.mrf.mxu0
  %v5887 = vadd.f32 %v5829, %v5886
  %v5888 = vpop.f32.mrf.mxu0
  %v5889 = vadd.f32 %v5831, %v5888
  %5890 = vmatmul.bf16.gmra.mxu0 %v2345
  %v5891 = vpop.f32.mrf.mxu0
  %v5892 = vadd.f32 %v5834, %v5891
  %v5893 = vpop.f32.mrf.mxu0
  %5894 = vdwg.mxu0
  %5895 = vmatpush.bf16.msra.mxu0 %v4076
  %5896 = vmatpush.bf16.msra.mxu0 %v4075
  %5897 = vmatpush.bf16.msra.mxu0 %v4074
  %5898 = vmatpush.bf16.msra.mxu0 %v4073
  %5899 = vmatpush.bf16.msra.mxu0 %v4072
  %5900 = vmatpush.bf16.msra.mxu0 %v4071
  %5901 = vmatpush.bf16.msra.mxu0 %v4070
  %5902 = vmatpush.bf16.msra.mxu0 %v4069
  %5903 = vmatmul.bf16.gmra.mxu0 %v2022
  %v5904 = vpop.f32.mrf.mxu0
  %v5905 = vadd.f32 %v5847, %v5904
  %v5906 = vpop.f32.mrf.mxu0
  %v5907 = vadd.f32 %v5849, %v5906
  %5908 = vmatmul.bf16.gmra.mxu0 %v2058
  %v5909 = vpop.f32.mrf.mxu0
  %v5910 = vadd.f32 %v5852, %v5909
  %v5911 = vpop.f32.mrf.mxu0
  %v5912 = vadd.f32 %v5854, %v5911
  %5913 = vmatmul.bf16.gmra.mxu0 %v2094
  %v5914 = vpop.f32.mrf.mxu0
  %v5915 = vadd.f32 %v5857, %v5914
  %v5916 = vpop.f32.mrf.mxu0
  %v5917 = vadd.f32 %v5859, %v5916
  %5918 = vmatmul.bf16.gmra.mxu0 %v2130
  %v5919 = vpop.f32.mrf.mxu0
  %v5920 = vadd.f32 %v5862, %v5919
  %v5921 = vpop.f32.mrf.mxu0
  %v5922 = vadd.f32 %v5864, %v5921
  %5923 = vmatmul.bf16.gmra.mxu0 %v2166
  %v5924 = vpop.f32.mrf.mxu0
  %v5925 = vadd.f32 %v5867, %v5924
  %v5926 = vpop.f32.mrf.mxu0
  %v5927 = vadd.f32 %v5869, %v5926
  %5928 = vmatmul.bf16.gmra.mxu0 %v2202
  %v5929 = vpop.f32.mrf.mxu0
  %v5930 = vadd.f32 %v5872, %v5929
  %v5931 = vpop.f32.mrf.mxu0
  %v5932 = vadd.f32 %v5874, %v5931
  %5933 = vmatmul.bf16.gmra.mxu0 %v2238
  %v5934 = vpop.f32.mrf.mxu0
  %v5935 = vadd.f32 %v5877, %v5934
  %v5936 = vpop.f32.mrf.mxu0
  %v5937 = vadd.f32 %v5879, %v5936
  %5938 = vmatmul.bf16.gmra.mxu0 %v2274
  %v5939 = vpop.f32.mrf.mxu0
  %v5940 = vadd.f32 %v5882, %v5939
  %v5941 = vpop.f32.mrf.mxu0
  %v5942 = vadd.f32 %v5884, %v5941
  %5943 = vmatmul.bf16.gmra.mxu0 %v2310
  %v5944 = vpop.f32.mrf.mxu0
  %v5945 = vadd.f32 %v5887, %v5944
  %v5946 = vpop.f32.mrf.mxu0
  %v5947 = vadd.f32 %v5889, %v5946
  %5948 = vmatmul.bf16.gmra.mxu0 %v2346
  %v5949 = vpop.f32.mrf.mxu0
  %v5950 = vadd.f32 %v5892, %v5949
  %v5951 = vpop.f32.mrf.mxu0
  %5952 = vdwg.mxu0
  %5953 = vmatpush.bf16.msra.mxu0 %v4084
  %5954 = vmatpush.bf16.msra.mxu0 %v4083
  %5955 = vmatpush.bf16.msra.mxu0 %v4082
  %5956 = vmatpush.bf16.msra.mxu0 %v4081
  %5957 = vmatpush.bf16.msra.mxu0 %v4080
  %5958 = vmatpush.bf16.msra.mxu0 %v4079
  %5959 = vmatpush.bf16.msra.mxu0 %v4078
  %5960 = vmatpush.bf16.msra.mxu0 %v4077
  %5961 = vmatmul.bf16.gmra.mxu0 %v2023
  %v5962 = vpop.f32.mrf.mxu0
  %v5963 = vadd.f32 %v5905, %v5962
  %v5964 = vpop.f32.mrf.mxu0
  %v5965 = vadd.f32 %v5907, %v5964
  %5966 = vmatmul.bf16.gmra.mxu0 %v2059
  %v5967 = vpop.f32.mrf.mxu0
  %v5968 = vadd.f32 %v5910, %v5967
  %v5969 = vpop.f32.mrf.mxu0
  %v5970 = vadd.f32 %v5912, %v5969
  %5971 = vmatmul.bf16.gmra.mxu0 %v2095
  %v5972 = vpop.f32.mrf.mxu0
  %v5973 = vadd.f32 %v5915, %v5972
  %v5974 = vpop.f32.mrf.mxu0
  %v5975 = vadd.f32 %v5917, %v5974
  %5976 = vmatmul.bf16.gmra.mxu0 %v2131
  %v5977 = vpop.f32.mrf.mxu0
  %v5978 = vadd.f32 %v5920, %v5977
  %v5979 = vpop.f32.mrf.mxu0
  %v5980 = vadd.f32 %v5922, %v5979
  %5981 = vmatmul.bf16.gmra.mxu0 %v2167
  %v5982 = vpop.f32.mrf.mxu0
  %v5983 = vadd.f32 %v5925, %v5982
  %v5984 = vpop.f32.mrf.mxu0
  %v5985 = vadd.f32 %v5927, %v5984
  %5986 = vmatmul.bf16.gmra.mxu0 %v2203
  %v5987 = vpop.f32.mrf.mxu0
  %v5988 = vadd.f32 %v5930, %v5987
  %v5989 = vpop.f32.mrf.mxu0
  %v5990 = vadd.f32 %v5932, %v5989
  %5991 = vmatmul.bf16.gmra.mxu0 %v2239
  %v5992 = vpop.f32.mrf.mxu0
  %v5993 = vadd.f32 %v5935, %v5992
  %v5994 = vpop.f32.mrf.mxu0
  %v5995 = vadd.f32 %v5937, %v5994
  %5996 = vmatmul.bf16.gmra.mxu0 %v2275
  %v5997 = vpop.f32.mrf.mxu0
  %v5998 = vadd.f32 %v5940, %v5997
  %v5999 = vpop.f32.mrf.mxu0
  %v6000 = vadd.f32 %v5942, %v5999
  %6001 = vmatmul.bf16.gmra.mxu0 %v2311
  %v6002 = vpop.f32.mrf.mxu0
  %v6003 = vadd.f32 %v5945, %v6002
  %v6004 = vpop.f32.mrf.mxu0
  %v6005 = vadd.f32 %v5947, %v6004
  %6006 = vmatmul.bf16.gmra.mxu0 %v2347
  %v6007 = vpop.f32.mrf.mxu0
  %v6008 = vadd.f32 %v5950, %v6007
  %v6009 = vpop.f32.mrf.mxu0
  %6010 = vdwg.mxu0
  %6011 = vmatpush.bf16.msra.mxu0 %v4092
  %6012 = vmatpush.bf16.msra.mxu0 %v4091
  %6013 = vmatpush.bf16.msra.mxu0 %v4090
  %6014 = vmatpush.bf16.msra.mxu0 %v4089
  %6015 = vmatpush.bf16.msra.mxu0 %v4088
  %6016 = vmatpush.bf16.msra.mxu0 %v4087
  %6017 = vmatpush.bf16.msra.mxu0 %v4086
  %6018 = vmatpush.bf16.msra.mxu0 %v4085
  %6019 = vmatmul.bf16.gmra.mxu0 %v2024
  %v6020 = vpop.f32.mrf.mxu0
  %v6021 = vadd.f32 %v5963, %v6020
  %v6022 = vpop.f32.mrf.mxu0
  %v6023 = vadd.f32 %v5965, %v6022
  %6024 = vmatmul.bf16.gmra.mxu0 %v2060
  %v6025 = vpop.f32.mrf.mxu0
  %v6026 = vadd.f32 %v5968, %v6025
  %v6027 = vpop.f32.mrf.mxu0
  %v6028 = vadd.f32 %v5970, %v6027
  %6029 = vmatmul.bf16.gmra.mxu0 %v2096
  %v6030 = vpop.f32.mrf.mxu0
  %v6031 = vadd.f32 %v5973, %v6030
  %v6032 = vpop.f32.mrf.mxu0
  %v6033 = vadd.f32 %v5975, %v6032
  %6034 = vmatmul.bf16.gmra.mxu0 %v2132
  %v6035 = vpop.f32.mrf.mxu0
  %v6036 = vadd.f32 %v5978, %v6035
  %v6037 = vpop.f32.mrf.mxu0
  %v6038 = vadd.f32 %v5980, %v6037
  %6039 = vmatmul.bf16.gmra.mxu0 %v2168
  %v6040 = vpop.f32.mrf.mxu0
  %v6041 = vadd.f32 %v5983, %v6040
  %v6042 = vpop.f32.mrf.mxu0
  %v6043 = vadd.f32 %v5985, %v6042
  %6044 = vmatmul.bf16.gmra.mxu0 %v2204
  %v6045 = vpop.f32.mrf.mxu0
  %v6046 = vadd.f32 %v5988, %v6045
  %v6047 = vpop.f32.mrf.mxu0
  %v6048 = vadd.f32 %v5990, %v6047
  %6049 = vmatmul.bf16.gmra.mxu0 %v2240
  %v6050 = vpop.f32.mrf.mxu0
  %v6051 = vadd.f32 %v5993, %v6050
  %v6052 = vpop.f32.mrf.mxu0
  %v6053 = vadd.f32 %v5995, %v6052
  %6054 = vmatmul.bf16.gmra.mxu0 %v2276
  %v6055 = vpop.f32.mrf.mxu0
  %v6056 = vadd.f32 %v5998, %v6055
  %v6057 = vpop.f32.mrf.mxu0
  %v6058 = vadd.f32 %v6000, %v6057
  %6059 = vmatmul.bf16.gmra.mxu0 %v2312
  %v6060 = vpop.f32.mrf.mxu0
  %v6061 = vadd.f32 %v6003, %v6060
  %v6062 = vpop.f32.mrf.mxu0
  %v6063 = vadd.f32 %v6005, %v6062
  %6064 = vmatmul.bf16.gmra.mxu0 %v2348
  %v6065 = vpop.f32.mrf.mxu0
  %v6066 = vadd.f32 %v6008, %v6065
  %v6067 = vpop.f32.mrf.mxu0
  %6068 = vdwg.mxu0
  %6069 = vmatpush.bf16.msra.mxu0 %v4100
  %6070 = vmatpush.bf16.msra.mxu0 %v4099
  %6071 = vmatpush.bf16.msra.mxu0 %v4098
  %6072 = vmatpush.bf16.msra.mxu0 %v4097
  %6073 = vmatpush.bf16.msra.mxu0 %v4096
  %6074 = vmatpush.bf16.msra.mxu0 %v4095
  %6075 = vmatpush.bf16.msra.mxu0 %v4094
  %6076 = vmatpush.bf16.msra.mxu0 %v4093
  %6077 = vmatmul.bf16.gmra.mxu0 %v2025
  %v6078 = vpop.f32.mrf.mxu0
  %v6079 = vadd.f32 %v6021, %v6078
  %v6080 = vpop.f32.mrf.mxu0
  %v6081 = vadd.f32 %v6023, %v6080
  %6082 = vmatmul.bf16.gmra.mxu0 %v2061
  %v6083 = vpop.f32.mrf.mxu0
  %v6084 = vadd.f32 %v6026, %v6083
  %v6085 = vpop.f32.mrf.mxu0
  %v6086 = vadd.f32 %v6028, %v6085
  %6087 = vmatmul.bf16.gmra.mxu0 %v2097
  %v6088 = vpop.f32.mrf.mxu0
  %v6089 = vadd.f32 %v6031, %v6088
  %v6090 = vpop.f32.mrf.mxu0
  %v6091 = vadd.f32 %v6033, %v6090
  %6092 = vmatmul.bf16.gmra.mxu0 %v2133
  %v6093 = vpop.f32.mrf.mxu0
  %v6094 = vadd.f32 %v6036, %v6093
  %v6095 = vpop.f32.mrf.mxu0
  %v6096 = vadd.f32 %v6038, %v6095
  %6097 = vmatmul.bf16.gmra.mxu0 %v2169
  %v6098 = vpop.f32.mrf.mxu0
  %v6099 = vadd.f32 %v6041, %v6098
  %v6100 = vpop.f32.mrf.mxu0
  %v6101 = vadd.f32 %v6043, %v6100
  %6102 = vmatmul.bf16.gmra.mxu0 %v2205
  %v6103 = vpop.f32.mrf.mxu0
  %v6104 = vadd.f32 %v6046, %v6103
  %v6105 = vpop.f32.mrf.mxu0
  %v6106 = vadd.f32 %v6048, %v6105
  %6107 = vmatmul.bf16.gmra.mxu0 %v2241
  %v6108 = vpop.f32.mrf.mxu0
  %v6109 = vadd.f32 %v6051, %v6108
  %v6110 = vpop.f32.mrf.mxu0
  %v6111 = vadd.f32 %v6053, %v6110
  %6112 = vmatmul.bf16.gmra.mxu0 %v2277
  %v6113 = vpop.f32.mrf.mxu0
  %v6114 = vadd.f32 %v6056, %v6113
  %v6115 = vpop.f32.mrf.mxu0
  %v6116 = vadd.f32 %v6058, %v6115
  %6117 = vmatmul.bf16.gmra.mxu0 %v2313
  %v6118 = vpop.f32.mrf.mxu0
  %v6119 = vadd.f32 %v6061, %v6118
  %v6120 = vpop.f32.mrf.mxu0
  %v6121 = vadd.f32 %v6063, %v6120
  %6122 = vmatmul.bf16.gmra.mxu0 %v2349
  %v6123 = vpop.f32.mrf.mxu0
  %v6124 = vadd.f32 %v6066, %v6123
  %v6125 = vpop.f32.mrf.mxu0
  %6126 = vdwg.mxu0
  %6127 = vmatpush.bf16.msra.mxu0 %v4108
  %6128 = vmatpush.bf16.msra.mxu0 %v4107
  %6129 = vmatpush.bf16.msra.mxu0 %v4106
  %6130 = vmatpush.bf16.msra.mxu0 %v4105
  %6131 = vmatpush.bf16.msra.mxu0 %v4104
  %6132 = vmatpush.bf16.msra.mxu0 %v4103
  %6133 = vmatpush.bf16.msra.mxu0 %v4102
  %6134 = vmatpush.bf16.msra.mxu0 %v4101
  %6135 = vmatmul.bf16.gmra.mxu0 %v2026
  %v6136 = vpop.f32.mrf.mxu0
  %v6137 = vadd.f32 %v6079, %v6136
  %v6138 = vpop.f32.mrf.mxu0
  %v6139 = vadd.f32 %v6081, %v6138
  %6140 = vmatmul.bf16.gmra.mxu0 %v2062
  %v6141 = vpop.f32.mrf.mxu0
  %v6142 = vadd.f32 %v6084, %v6141
  %v6143 = vpop.f32.mrf.mxu0
  %v6144 = vadd.f32 %v6086, %v6143
  %6145 = vmatmul.bf16.gmra.mxu0 %v2098
  %v6146 = vpop.f32.mrf.mxu0
  %v6147 = vadd.f32 %v6089, %v6146
  %v6148 = vpop.f32.mrf.mxu0
  %v6149 = vadd.f32 %v6091, %v6148
  %6150 = vmatmul.bf16.gmra.mxu0 %v2134
  %v6151 = vpop.f32.mrf.mxu0
  %v6152 = vadd.f32 %v6094, %v6151
  %v6153 = vpop.f32.mrf.mxu0
  %v6154 = vadd.f32 %v6096, %v6153
  %6155 = vmatmul.bf16.gmra.mxu0 %v2170
  %v6156 = vpop.f32.mrf.mxu0
  %v6157 = vadd.f32 %v6099, %v6156
  %v6158 = vpop.f32.mrf.mxu0
  %v6159 = vadd.f32 %v6101, %v6158
  %6160 = vmatmul.bf16.gmra.mxu0 %v2206
  %v6161 = vpop.f32.mrf.mxu0
  %v6162 = vadd.f32 %v6104, %v6161
  %v6163 = vpop.f32.mrf.mxu0
  %v6164 = vadd.f32 %v6106, %v6163
  %6165 = vmatmul.bf16.gmra.mxu0 %v2242
  %v6166 = vpop.f32.mrf.mxu0
  %v6167 = vadd.f32 %v6109, %v6166
  %v6168 = vpop.f32.mrf.mxu0
  %v6169 = vadd.f32 %v6111, %v6168
  %6170 = vmatmul.bf16.gmra.mxu0 %v2278
  %v6171 = vpop.f32.mrf.mxu0
  %v6172 = vadd.f32 %v6114, %v6171
  %v6173 = vpop.f32.mrf.mxu0
  %v6174 = vadd.f32 %v6116, %v6173
  %6175 = vmatmul.bf16.gmra.mxu0 %v2314
  %v6176 = vpop.f32.mrf.mxu0
  %v6177 = vadd.f32 %v6119, %v6176
  %v6178 = vpop.f32.mrf.mxu0
  %v6179 = vadd.f32 %v6121, %v6178
  %6180 = vmatmul.bf16.gmra.mxu0 %v2350
  %v6181 = vpop.f32.mrf.mxu0
  %v6182 = vadd.f32 %v6124, %v6181
  %v6183 = vpop.f32.mrf.mxu0
  %6184 = vdwg.mxu0
  %6185 = vmatpush.bf16.msra.mxu0 %v4116
  %6186 = vmatpush.bf16.msra.mxu0 %v4115
  %6187 = vmatpush.bf16.msra.mxu0 %v4114
  %6188 = vmatpush.bf16.msra.mxu0 %v4113
  %6189 = vmatpush.bf16.msra.mxu0 %v4112
  %6190 = vmatpush.bf16.msra.mxu0 %v4111
  %6191 = vmatpush.bf16.msra.mxu0 %v4110
  %6192 = vmatpush.bf16.msra.mxu0 %v4109
  %6193 = vmatmul.bf16.gmra.mxu0 %v2027
  %v6194 = vpop.f32.mrf.mxu0
  %v6195 = vadd.f32 %v6137, %v6194
  %v6196 = vpop.f32.mrf.mxu0
  %v6197 = vadd.f32 %v6139, %v6196
  %6198 = vmatmul.bf16.gmra.mxu0 %v2063
  %v6199 = vpop.f32.mrf.mxu0
  %v6200 = vadd.f32 %v6142, %v6199
  %v6201 = vpop.f32.mrf.mxu0
  %v6202 = vadd.f32 %v6144, %v6201
  %6203 = vmatmul.bf16.gmra.mxu0 %v2099
  %v6204 = vpop.f32.mrf.mxu0
  %v6205 = vadd.f32 %v6147, %v6204
  %v6206 = vpop.f32.mrf.mxu0
  %v6207 = vadd.f32 %v6149, %v6206
  %6208 = vmatmul.bf16.gmra.mxu0 %v2135
  %v6209 = vpop.f32.mrf.mxu0
  %v6210 = vadd.f32 %v6152, %v6209
  %v6211 = vpop.f32.mrf.mxu0
  %v6212 = vadd.f32 %v6154, %v6211
  %6213 = vmatmul.bf16.gmra.mxu0 %v2171
  %v6214 = vpop.f32.mrf.mxu0
  %v6215 = vadd.f32 %v6157, %v6214
  %v6216 = vpop.f32.mrf.mxu0
  %v6217 = vadd.f32 %v6159, %v6216
  %6218 = vmatmul.bf16.gmra.mxu0 %v2207
  %v6219 = vpop.f32.mrf.mxu0
  %v6220 = vadd.f32 %v6162, %v6219
  %v6221 = vpop.f32.mrf.mxu0
  %v6222 = vadd.f32 %v6164, %v6221
  %6223 = vmatmul.bf16.gmra.mxu0 %v2243
  %v6224 = vpop.f32.mrf.mxu0
  %v6225 = vadd.f32 %v6167, %v6224
  %v6226 = vpop.f32.mrf.mxu0
  %v6227 = vadd.f32 %v6169, %v6226
  %6228 = vmatmul.bf16.gmra.mxu0 %v2279
  %v6229 = vpop.f32.mrf.mxu0
  %v6230 = vadd.f32 %v6172, %v6229
  %v6231 = vpop.f32.mrf.mxu0
  %v6232 = vadd.f32 %v6174, %v6231
  %6233 = vmatmul.bf16.gmra.mxu0 %v2315
  %v6234 = vpop.f32.mrf.mxu0
  %v6235 = vadd.f32 %v6177, %v6234
  %v6236 = vpop.f32.mrf.mxu0
  %v6237 = vadd.f32 %v6179, %v6236
  %6238 = vmatmul.bf16.gmra.mxu0 %v2351
  %v6239 = vpop.f32.mrf.mxu0
  %v6240 = vadd.f32 %v6182, %v6239
  %v6241 = vpop.f32.mrf.mxu0
  %6242 = vdwg.mxu0
  %6243 = vmatpush.bf16.msra.mxu0 %v4124
  %6244 = vmatpush.bf16.msra.mxu0 %v4123
  %6245 = vmatpush.bf16.msra.mxu0 %v4122
  %6246 = vmatpush.bf16.msra.mxu0 %v4121
  %6247 = vmatpush.bf16.msra.mxu0 %v4120
  %6248 = vmatpush.bf16.msra.mxu0 %v4119
  %6249 = vmatpush.bf16.msra.mxu0 %v4118
  %6250 = vmatpush.bf16.msra.mxu0 %v4117
  %6251 = vmatmul.bf16.gmra.mxu0 %v2028
  %v6252 = vpop.f32.mrf.mxu0
  %v6253 = vadd.f32 %v6195, %v6252
  %v6254 = vpop.f32.mrf.mxu0
  %v6255 = vadd.f32 %v6197, %v6254
  %6256 = vmatmul.bf16.gmra.mxu0 %v2064
  %v6257 = vpop.f32.mrf.mxu0
  %v6258 = vadd.f32 %v6200, %v6257
  %v6259 = vpop.f32.mrf.mxu0
  %v6260 = vadd.f32 %v6202, %v6259
  %6261 = vmatmul.bf16.gmra.mxu0 %v2100
  %v6262 = vpop.f32.mrf.mxu0
  %v6263 = vadd.f32 %v6205, %v6262
  %v6264 = vpop.f32.mrf.mxu0
  %v6265 = vadd.f32 %v6207, %v6264
  %6266 = vmatmul.bf16.gmra.mxu0 %v2136
  %v6267 = vpop.f32.mrf.mxu0
  %v6268 = vadd.f32 %v6210, %v6267
  %v6269 = vpop.f32.mrf.mxu0
  %v6270 = vadd.f32 %v6212, %v6269
  %6271 = vmatmul.bf16.gmra.mxu0 %v2172
  %v6272 = vpop.f32.mrf.mxu0
  %v6273 = vadd.f32 %v6215, %v6272
  %v6274 = vpop.f32.mrf.mxu0
  %v6275 = vadd.f32 %v6217, %v6274
  %6276 = vmatmul.bf16.gmra.mxu0 %v2208
  %v6277 = vpop.f32.mrf.mxu0
  %v6278 = vadd.f32 %v6220, %v6277
  %v6279 = vpop.f32.mrf.mxu0
  %v6280 = vadd.f32 %v6222, %v6279
  %6281 = vmatmul.bf16.gmra.mxu0 %v2244
  %v6282 = vpop.f32.mrf.mxu0
  %v6283 = vadd.f32 %v6225, %v6282
  %v6284 = vpop.f32.mrf.mxu0
  %v6285 = vadd.f32 %v6227, %v6284
  %6286 = vmatmul.bf16.gmra.mxu0 %v2280
  %v6287 = vpop.f32.mrf.mxu0
  %v6288 = vadd.f32 %v6230, %v6287
  %v6289 = vpop.f32.mrf.mxu0
  %v6290 = vadd.f32 %v6232, %v6289
  %6291 = vmatmul.bf16.gmra.mxu0 %v2316
  %v6292 = vpop.f32.mrf.mxu0
  %v6293 = vadd.f32 %v6235, %v6292
  %v6294 = vpop.f32.mrf.mxu0
  %v6295 = vadd.f32 %v6237, %v6294
  %6296 = vmatmul.bf16.gmra.mxu0 %v2352
  %v6297 = vpop.f32.mrf.mxu0
  %v6298 = vadd.f32 %v6240, %v6297
  %v6299 = vpop.f32.mrf.mxu0
  %6300 = vdwg.mxu0
  %6301 = vmatpush.bf16.msra.mxu0 %v4132
  %6302 = vmatpush.bf16.msra.mxu0 %v4131
  %6303 = vmatpush.bf16.msra.mxu0 %v4130
  %6304 = vmatpush.bf16.msra.mxu0 %v4129
  %6305 = vmatpush.bf16.msra.mxu0 %v4128
  %6306 = vmatpush.bf16.msra.mxu0 %v4127
  %6307 = vmatpush.bf16.msra.mxu0 %v4126
  %6308 = vmatpush.bf16.msra.mxu0 %v4125
  %6309 = vmatmul.bf16.gmra.mxu0 %v2029
  %v6310 = vpop.f32.mrf.mxu0
  %v6311 = vadd.f32 %v6253, %v6310
  %v6312 = vpop.f32.mrf.mxu0
  %v6313 = vadd.f32 %v6255, %v6312
  %6314 = vmatmul.bf16.gmra.mxu0 %v2065
  %v6315 = vpop.f32.mrf.mxu0
  %v6316 = vadd.f32 %v6258, %v6315
  %v6317 = vpop.f32.mrf.mxu0
  %v6318 = vadd.f32 %v6260, %v6317
  %6319 = vmatmul.bf16.gmra.mxu0 %v2101
  %v6320 = vpop.f32.mrf.mxu0
  %v6321 = vadd.f32 %v6263, %v6320
  %v6322 = vpop.f32.mrf.mxu0
  %v6323 = vadd.f32 %v6265, %v6322
  %6324 = vmatmul.bf16.gmra.mxu0 %v2137
  %v6325 = vpop.f32.mrf.mxu0
  %v6326 = vadd.f32 %v6268, %v6325
  %v6327 = vpop.f32.mrf.mxu0
  %v6328 = vadd.f32 %v6270, %v6327
  %6329 = vmatmul.bf16.gmra.mxu0 %v2173
  %v6330 = vpop.f32.mrf.mxu0
  %v6331 = vadd.f32 %v6273, %v6330
  %v6332 = vpop.f32.mrf.mxu0
  %v6333 = vadd.f32 %v6275, %v6332
  %6334 = vmatmul.bf16.gmra.mxu0 %v2209
  %v6335 = vpop.f32.mrf.mxu0
  %v6336 = vadd.f32 %v6278, %v6335
  %v6337 = vpop.f32.mrf.mxu0
  %v6338 = vadd.f32 %v6280, %v6337
  %6339 = vmatmul.bf16.gmra.mxu0 %v2245
  %v6340 = vpop.f32.mrf.mxu0
  %v6341 = vadd.f32 %v6283, %v6340
  %v6342 = vpop.f32.mrf.mxu0
  %v6343 = vadd.f32 %v6285, %v6342
  %6344 = vmatmul.bf16.gmra.mxu0 %v2281
  %v6345 = vpop.f32.mrf.mxu0
  %v6346 = vadd.f32 %v6288, %v6345
  %v6347 = vpop.f32.mrf.mxu0
  %v6348 = vadd.f32 %v6290, %v6347
  %6349 = vmatmul.bf16.gmra.mxu0 %v2317
  %v6350 = vpop.f32.mrf.mxu0
  %v6351 = vadd.f32 %v6293, %v6350
  %v6352 = vpop.f32.mrf.mxu0
  %v6353 = vadd.f32 %v6295, %v6352
  %6354 = vmatmul.bf16.gmra.mxu0 %v2353
  %v6355 = vpop.f32.mrf.mxu0
  %v6356 = vadd.f32 %v6298, %v6355
  %v6357 = vpop.f32.mrf.mxu0
  %6358 = vdwg.mxu0
  %6359 = vmatpush.bf16.msra.mxu0 %v4140
  %6360 = vmatpush.bf16.msra.mxu0 %v4139
  %6361 = vmatpush.bf16.msra.mxu0 %v4138
  %6362 = vmatpush.bf16.msra.mxu0 %v4137
  %6363 = vmatpush.bf16.msra.mxu0 %v4136
  %6364 = vmatpush.bf16.msra.mxu0 %v4135
  %6365 = vmatpush.bf16.msra.mxu0 %v4134
  %6366 = vmatpush.bf16.msra.mxu0 %v4133
  %6367 = vmatmul.bf16.gmra.mxu0 %v2030
  %v6368 = vpop.f32.mrf.mxu0
  %v6369 = vadd.f32 %v6311, %v6368
  %v6370 = vpop.f32.mrf.mxu0
  %v6371 = vadd.f32 %v6313, %v6370
  %6372 = vmatmul.bf16.gmra.mxu0 %v2066
  %v6373 = vpop.f32.mrf.mxu0
  %v6374 = vadd.f32 %v6316, %v6373
  %v6375 = vpop.f32.mrf.mxu0
  %v6376 = vadd.f32 %v6318, %v6375
  %6377 = vmatmul.bf16.gmra.mxu0 %v2102
  %v6378 = vpop.f32.mrf.mxu0
  %v6379 = vadd.f32 %v6321, %v6378
  %v6380 = vpop.f32.mrf.mxu0
  %v6381 = vadd.f32 %v6323, %v6380
  %6382 = vmatmul.bf16.gmra.mxu0 %v2138
  %v6383 = vpop.f32.mrf.mxu0
  %v6384 = vadd.f32 %v6326, %v6383
  %v6385 = vpop.f32.mrf.mxu0
  %v6386 = vadd.f32 %v6328, %v6385
  %6387 = vmatmul.bf16.gmra.mxu0 %v2174
  %v6388 = vpop.f32.mrf.mxu0
  %v6389 = vadd.f32 %v6331, %v6388
  %v6390 = vpop.f32.mrf.mxu0
  %v6391 = vadd.f32 %v6333, %v6390
  %6392 = vmatmul.bf16.gmra.mxu0 %v2210
  %v6393 = vpop.f32.mrf.mxu0
  %v6394 = vadd.f32 %v6336, %v6393
  %v6395 = vpop.f32.mrf.mxu0
  %v6396 = vadd.f32 %v6338, %v6395
  %6397 = vmatmul.bf16.gmra.mxu0 %v2246
  %v6398 = vpop.f32.mrf.mxu0
  %v6399 = vadd.f32 %v6341, %v6398
  %v6400 = vpop.f32.mrf.mxu0
  %v6401 = vadd.f32 %v6343, %v6400
  %6402 = vmatmul.bf16.gmra.mxu0 %v2282
  %v6403 = vpop.f32.mrf.mxu0
  %v6404 = vadd.f32 %v6346, %v6403
  %v6405 = vpop.f32.mrf.mxu0
  %v6406 = vadd.f32 %v6348, %v6405
  %6407 = vmatmul.bf16.gmra.mxu0 %v2318
  %v6408 = vpop.f32.mrf.mxu0
  %v6409 = vadd.f32 %v6351, %v6408
  %v6410 = vpop.f32.mrf.mxu0
  %v6411 = vadd.f32 %v6353, %v6410
  %6412 = vmatmul.bf16.gmra.mxu0 %v2354
  %v6413 = vpop.f32.mrf.mxu0
  %v6414 = vadd.f32 %v6356, %v6413
  %v6415 = vpop.f32.mrf.mxu0
  %6416 = vdwg.mxu0
  %6417 = vmatpush.bf16.msra.mxu0 %v4148
  %6418 = vmatpush.bf16.msra.mxu0 %v4147
  %6419 = vmatpush.bf16.msra.mxu0 %v4146
  %6420 = vmatpush.bf16.msra.mxu0 %v4145
  %6421 = vmatpush.bf16.msra.mxu0 %v4144
  %6422 = vmatpush.bf16.msra.mxu0 %v4143
  %6423 = vmatpush.bf16.msra.mxu0 %v4142
  %6424 = vmatpush.bf16.msra.mxu0 %v4141
  %6425 = vmatmul.bf16.gmra.mxu0 %v2031
  %v6426 = vpop.f32.mrf.mxu0
  %v6427 = vadd.f32 %v6369, %v6426
  %v6428 = vpop.f32.mrf.mxu0
  %v6429 = vadd.f32 %v6371, %v6428
  %6430 = vmatmul.bf16.gmra.mxu0 %v2067
  %v6431 = vpop.f32.mrf.mxu0
  %v6432 = vadd.f32 %v6374, %v6431
  %v6433 = vpop.f32.mrf.mxu0
  %v6434 = vadd.f32 %v6376, %v6433
  %6435 = vmatmul.bf16.gmra.mxu0 %v2103
  %v6436 = vpop.f32.mrf.mxu0
  %v6437 = vadd.f32 %v6379, %v6436
  %v6438 = vpop.f32.mrf.mxu0
  %v6439 = vadd.f32 %v6381, %v6438
  %6440 = vmatmul.bf16.gmra.mxu0 %v2139
  %v6441 = vpop.f32.mrf.mxu0
  %v6442 = vadd.f32 %v6384, %v6441
  %v6443 = vpop.f32.mrf.mxu0
  %v6444 = vadd.f32 %v6386, %v6443
  %6445 = vmatmul.bf16.gmra.mxu0 %v2175
  %v6446 = vpop.f32.mrf.mxu0
  %v6447 = vadd.f32 %v6389, %v6446
  %v6448 = vpop.f32.mrf.mxu0
  %v6449 = vadd.f32 %v6391, %v6448
  %6450 = vmatmul.bf16.gmra.mxu0 %v2211
  %v6451 = vpop.f32.mrf.mxu0
  %v6452 = vadd.f32 %v6394, %v6451
  %v6453 = vpop.f32.mrf.mxu0
  %v6454 = vadd.f32 %v6396, %v6453
  %6455 = vmatmul.bf16.gmra.mxu0 %v2247
  %v6456 = vpop.f32.mrf.mxu0
  %v6457 = vadd.f32 %v6399, %v6456
  %v6458 = vpop.f32.mrf.mxu0
  %v6459 = vadd.f32 %v6401, %v6458
  %6460 = vmatmul.bf16.gmra.mxu0 %v2283
  %v6461 = vpop.f32.mrf.mxu0
  %v6462 = vadd.f32 %v6404, %v6461
  %v6463 = vpop.f32.mrf.mxu0
  %v6464 = vadd.f32 %v6406, %v6463
  %6465 = vmatmul.bf16.gmra.mxu0 %v2319
  %v6466 = vpop.f32.mrf.mxu0
  %v6467 = vadd.f32 %v6409, %v6466
  %v6468 = vpop.f32.mrf.mxu0
  %v6469 = vadd.f32 %v6411, %v6468
  %6470 = vmatmul.bf16.gmra.mxu0 %v2355
  %v6471 = vpop.f32.mrf.mxu0
  %v6472 = vadd.f32 %v6414, %v6471
  %v6473 = vpop.f32.mrf.mxu0
  %6474 = vdwg.mxu0
  %6475 = vmatpush.bf16.msra.mxu0 %v4156
  %6476 = vmatpush.bf16.msra.mxu0 %v4155
  %6477 = vmatpush.bf16.msra.mxu0 %v4154
  %6478 = vmatpush.bf16.msra.mxu0 %v4153
  %6479 = vmatpush.bf16.msra.mxu0 %v4152
  %6480 = vmatpush.bf16.msra.mxu0 %v4151
  %6481 = vmatpush.bf16.msra.mxu0 %v4150
  %6482 = vmatpush.bf16.msra.mxu0 %v4149
  %6483 = vmatmul.bf16.gmra.mxu0 %v2032
  %v6484 = vpop.f32.mrf.mxu0
  %v6485 = vadd.f32 %v6427, %v6484
  %v6486 = vpop.f32.mrf.mxu0
  %v6487 = vadd.f32 %v6429, %v6486
  %6488 = vmatmul.bf16.gmra.mxu0 %v2068
  %v6489 = vpop.f32.mrf.mxu0
  %v6490 = vadd.f32 %v6432, %v6489
  %v6491 = vpop.f32.mrf.mxu0
  %v6492 = vadd.f32 %v6434, %v6491
  %6493 = vmatmul.bf16.gmra.mxu0 %v2104
  %v6494 = vpop.f32.mrf.mxu0
  %v6495 = vadd.f32 %v6437, %v6494
  %v6496 = vpop.f32.mrf.mxu0
  %v6497 = vadd.f32 %v6439, %v6496
  %6498 = vmatmul.bf16.gmra.mxu0 %v2140
  %v6499 = vpop.f32.mrf.mxu0
  %v6500 = vadd.f32 %v6442, %v6499
  %v6501 = vpop.f32.mrf.mxu0
  %v6502 = vadd.f32 %v6444, %v6501
  %6503 = vmatmul.bf16.gmra.mxu0 %v2176
  %v6504 = vpop.f32.mrf.mxu0
  %v6505 = vadd.f32 %v6447, %v6504
  %v6506 = vpop.f32.mrf.mxu0
  %v6507 = vadd.f32 %v6449, %v6506
  %6508 = vmatmul.bf16.gmra.mxu0 %v2212
  %v6509 = vpop.f32.mrf.mxu0
  %v6510 = vadd.f32 %v6452, %v6509
  %v6511 = vpop.f32.mrf.mxu0
  %v6512 = vadd.f32 %v6454, %v6511
  %6513 = vmatmul.bf16.gmra.mxu0 %v2248
  %v6514 = vpop.f32.mrf.mxu0
  %v6515 = vadd.f32 %v6457, %v6514
  %v6516 = vpop.f32.mrf.mxu0
  %v6517 = vadd.f32 %v6459, %v6516
  %6518 = vmatmul.bf16.gmra.mxu0 %v2284
  %v6519 = vpop.f32.mrf.mxu0
  %v6520 = vadd.f32 %v6462, %v6519
  %v6521 = vpop.f32.mrf.mxu0
  %v6522 = vadd.f32 %v6464, %v6521
  %6523 = vmatmul.bf16.gmra.mxu0 %v2320
  %v6524 = vpop.f32.mrf.mxu0
  %v6525 = vadd.f32 %v6467, %v6524
  %v6526 = vpop.f32.mrf.mxu0
  %v6527 = vadd.f32 %v6469, %v6526
  %6528 = vmatmul.bf16.gmra.mxu0 %v2356
  %v6529 = vpop.f32.mrf.mxu0
  %v6530 = vadd.f32 %v6472, %v6529
  %v6531 = vpop.f32.mrf.mxu0
  %6532 = vdwg.mxu0
  %v6533 = vadd.f32 %v34, %v6485
  %v6534 = vadd.f32 %v35, %v6487
  %v6535 = vadd.f32 %v36, %v6490
  %v6536 = vadd.f32 %v37, %v6492
  %v6537 = vadd.f32 %v38, %v6495
  %v6538 = vadd.f32 %v39, %v6497
  %v6539 = vadd.f32 %v40, %v6500
  %v6540 = vadd.f32 %v41, %v6502
  %v6541 = vadd.f32 %v42, %v6505
  %v6542 = vadd.f32 %v43, %v6507
  %v6543 = vadd.f32 %v44, %v6510
  %v6544 = vadd.f32 %v45, %v6512
  %v6545 = vadd.f32 %v46, %v6515
  %v6546 = vadd.f32 %v47, %v6517
  %v6547 = vadd.f32 %v48, %v6520
  %v6548 = vadd.f32 %v49, %v6522
  %v6549 = vadd.f32 %v50, %v6525
  %v6550 = vadd.f32 %v51, %v6527
  %v6551 = vadd.f32 %v52, %v6530
  %6552 = vst [vmem:[%s2] sm:$0xff] %v6533
  %6553 = vst [vmem:[%s2 + $0x8] sm:$0xff] %v6534
  %6554 = vst [vmem:[%s2 + $0x10] sm:$0xff] %v6535
  %6555 = vst [vmem:[%s2 + $0x18] sm:$0xff] %v6536
  %6556 = vst [vmem:[%s2 + $0x20] sm:$0xff] %v6537
  %6557 = vst [vmem:[%s2 + $0x28] sm:$0xff] %v6538
  %6558 = vst [vmem:[%s2 + $0x30] sm:$0xff] %v6539
  %6559 = vst [vmem:[%s2 + $0x38] sm:$0xff] %v6540
  %6560 = vst [vmem:[%s2 + $0x40] sm:$0xff] %v6541
  %6561 = vst [vmem:[%s2 + $0x48] sm:$0xff] %v6542
  %6562 = vst [vmem:[%s2 + $0x50] sm:$0xff] %v6543
  %6563 = vst [vmem:[%s2 + $0x58] sm:$0xff] %v6544
  %6564 = vst [vmem:[%s2 + $0x60] sm:$0xff] %v6545
  %6565 = vst [vmem:[%s2 + $0x68] sm:$0xff] %v6546
  %6566 = vst [vmem:[%s2 + $0x70] sm:$0xff] %v6547
  %6567 = vst [vmem:[%s2 + $0x78] sm:$0xff] %v6548
  %6568 = vst [vmem:[%s2 + $0x80] sm:$0xff] %v6549
  %6569 = vst [vmem:[%s2 + $0x88] sm:$0xff] %v6550
  %6570 = vst [vmem:[%s2 + $0x90] sm:$0x7] %v6551
  // Predicated region
  $region14: #{relation_network_forward.5} parent=0 // pred_check
    _
  $region15: #{relation_network_forward.5} parent=0 // pred_check_branch
    %6572 = sbr.rel (0) target = $region17
  $region16: #{relation_network_forward.5} parent=0 // pred_region
    _
  $region17: #{relation_network_forward.5} parent=0 // pred_fallthru
    _
  // Predicated region
  $region18: #{relation_network_forward.5} parent=0 // pred_check
    _
  $region19: #{relation_network_forward.5} parent=0 // pred_check_branch
    %6574 = sbr.rel (0) target = $region21
  $region20: #{relation_network_forward.5} parent=0 // pred_region
    _
  $region21: #{relation_network_forward.5} parent=0 // pred_fallthru
    _

// kernel: relation_network_forward.6
$region0: #{relation_network_forward.6}
  #allocation0 [shape = 'u32[]', space=smem, size = 0x4, offset = 0x4, fixed_abs, tag = 'smem constant byte address 0x4 - core index']
  #allocation1 [shape = 'u32[72,128]{1,0:T(1,128)}', space=vmem, size = 0x9000, scoped, tag = 'internal scratch']
  %s0 = inlined_call_operand.vmem [shape: f32[2,49,128], index: 0, kind: input, shape index: {}]
  %s1 = inlined_call_operand.vmem [shape: f32[3,49,128], index: 1, kind: input, shape index: {}]
  %s2 = inlined_call_operand.vmem [shape: f32[1,128], index: 2, kind: input, shape index: {}]
  %s3 = inlined_call_operand.vmem [shape: f32[1,128], index: 3, kind: input, shape index: {}]
  %s4 = inlined_call_operand.vmem [shape: f32[1,128], index: 4, kind: input, shape index: {}]
  %s5 = inlined_call_operand.vmem [shape: bf16[3,2,49,128], index: 5, kind: output, shape index: {}]
  %s6 = sld [smem:[#allocation0]]
  $region30: #{relation_network_forward.6} parent=0
    _
  %s8 = ssub.s32 1, %s6
  %s9 = scalar_select 0, %s8, %s6
  // Predicated region
  $region2: #{relation_network_forward.6} parent=0 // pred_check
    _
  $region3: #{relation_network_forward.6} parent=0 // pred_check_branch
    %11 = sbr.rel (0) target = $region5
  $region4: #{relation_network_forward.6} parent=0 // pred_region
    _
  $region5: #{relation_network_forward.6} parent=0 // pred_fallthru
    _
  // Predicated region
  $region6: #{relation_network_forward.6} parent=0 // pred_check
    _
  $region7: #{relation_network_forward.6} parent=0 // pred_check_branch
    %13 = sbr.rel (0) target = $region9
  $region8: #{relation_network_forward.6} parent=0 // pred_region
    _
  $region9: #{relation_network_forward.6} parent=0 // pred_fallthru
    _
  // Predicated region
  $region10: #{relation_network_forward.6} parent=0 // pred_check
    _
  $region11: #{relation_network_forward.6} parent=0 // pred_check_branch
    %15 = sbr.rel (0) target = $region13
  $region12: #{relation_network_forward.6} parent=0 // pred_region
    _
  $region13: #{relation_network_forward.6} parent=0 // pred_fallthru
    _
  // Predicated region
  $region14: #{relation_network_forward.6} parent=0 // pred_check
    _
  $region15: #{relation_network_forward.6} parent=0 // pred_check_branch
    %17 = sbr.rel (0) target = $region17
  $region16: #{relation_network_forward.6} parent=0 // pred_region
    _
  $region17: #{relation_network_forward.6} parent=0 // pred_fallthru
    _
  // Predicated region
  $region18: #{relation_network_forward.6} parent=0 // pred_check
    _
  $region19: #{relation_network_forward.6} parent=0 // pred_check_branch
    %19 = sbr.rel (0) target = $region21
  $region20: #{relation_network_forward.6} parent=0 // pred_region
    _
  $region21: #{relation_network_forward.6} parent=0 // pred_fallthru
    _
  %v20 = vld [vmem:[%s0] sm:$0xff]
  %v21 = vld [vmem:[%s0 + $0x8] sm:$0xff]
  %v22 = vld [vmem:[%s0 + $0x10] sm:$0xff]
  %v23 = vld [vmem:[%s0 + $0x18] sm:$0xff]
  %v24 = vld [vmem:[%s0 + $0x20] sm:$0xff]
  %v25 = vld [vmem:[%s0 + $0x28] sm:$0xff]
  %v26 = vld [vmem:[%s0 + $0x30] sm:$0x1]
  %v27 = vld [vmem:[%s0 + $0x38] sm:$0xff]
  %v28 = vld [vmem:[%s0 + $0x40] sm:$0xff]
  %v29 = vld [vmem:[%s0 + $0x48] sm:$0xff]
  %v30 = vld [vmem:[%s0 + $0x50] sm:$0xff]
  %v31 = vld [vmem:[%s0 + $0x58] sm:$0xff]
  %v32 = vld [vmem:[%s0 + $0x60] sm:$0xff]
  %v33 = vld [vmem:[%s0 + $0x68] sm:$0x1]
  %v34 = vld [vmem:[%s1] sm:$0xff]
  %v35 = vld [vmem:[%s1 + $0x8] sm:$0xff]
  %v36 = vld [vmem:[%s1 + $0x10] sm:$0xff]
  %v37 = vld [vmem:[%s1 + $0x18] sm:$0xff]
  %v38 = vld [vmem:[%s1 + $0x20] sm:$0xff]
  %v39 = vld [vmem:[%s1 + $0x28] sm:$0xff]
  %v40 = vld [vmem:[%s1 + $0x30] sm:$0x1]
  %v41 = vld [vmem:[%s1 + $0x38] sm:$0xff]
  %v42 = vld [vmem:[%s1 + $0x40] sm:$0xff]
  %v43 = vld [vmem:[%s1 + $0x48] sm:$0xff]
  %v44 = vld [vmem:[%s1 + $0x50] sm:$0xff]
  %v45 = vld [vmem:[%s1 + $0x58] sm:$0xff]
  %v46 = vld [vmem:[%s1 + $0x60] sm:$0xff]
  %v47 = vld [vmem:[%s1 + $0x68] sm:$0x1]
  %v48 = vld [vmem:[%s1 + $0x70] sm:$0xff]
  %v49 = vld [vmem:[%s1 + $0x78] sm:$0xff]
  %v50 = vld [vmem:[%s1 + $0x80] sm:$0xff]
  %v51 = vld [vmem:[%s1 + $0x88] sm:$0xff]
  %v52 = vld [vmem:[%s1 + $0x90] sm:$0xff]
  %v53 = vld [vmem:[%s1 + $0x98] sm:$0xff]
  %v54 = vld [vmem:[%s1 + $0xa0] sm:$0x1]
  %v55 = vadd.f32 %v20, %v34
  %v56 = vadd.f32 %v21, %v35
  %v57 = vadd.f32 %v22, %v36
  %v58 = vadd.f32 %v23, %v37
  %v59 = vadd.f32 %v24, %v38
  %v60 = vadd.f32 %v25, %v39
  %v61 = vadd.f32 %v26, %v40
  %v62 = vadd.f32 %v27, %v34
  %v63 = vadd.f32 %v28, %v35
  %v64 = vadd.f32 %v29, %v36
  %v65 = vadd.f32 %v30, %v37
  %v66 = vadd.f32 %v31, %v38
  %v67 = vadd.f32 %v32, %v39
  %v68 = vadd.f32 %v33, %v40
  %v69 = vadd.f32 %v20, %v41
  %v70 = vadd.f32 %v21, %v42
  %v71 = vadd.f32 %v22, %v43
  %v72 = vadd.f32 %v23, %v44
  %v73 = vadd.f32 %v24, %v45
  %v74 = vadd.f32 %v25, %v46
  %v75 = vadd.f32 %v26, %v47
  %v76 = vadd.f32 %v27, %v41
  %v77 = vadd.f32 %v28, %v42
  %v78 = vadd.f32 %v29, %v43
  %v79 = vadd.f32 %v30, %v44
  %v80 = vadd.f32 %v31, %v45
  %v81 = vadd.f32 %v32, %v46
  %v82 = vadd.f32 %v33, %v47
  %v83 = vadd.f32 %v20, %v48
  %v84 = vadd.f32 %v21, %v49
  %v85 = vadd.f32 %v22, %v50
  %v86 = vadd.f32 %v23, %v51
  %v87 = vadd.f32 %v24, %v52
  %v88 = vadd.f32 %v25, %v53
  %v89 = vadd.f32 %v26, %v54
  %v90 = vadd.f32 %v27, %v48
  %v91 = vadd.f32 %v28, %v49
  %v92 = vadd.f32 %v29, %v50
  %v93 = vadd.f32 %v30, %v51
  %v94 = vadd.f32 %v31, %v52
  %v95 = vadd.f32 %v32, %v53
  %v96 = vadd.f32 %v33, %v54
  %v97 = vld [vmem:[%s2] sm:$0x1]
  %v99 = vperm.slane %v97, 0
  %v101 = vadd.f32 %v55, %v99
  %v102 = vadd.f32 %v56, %v99
  %v103 = vadd.f32 %v57, %v99
  %v104 = vadd.f32 %v58, %v99
  %v105 = vadd.f32 %v59, %v99
  %v106 = vadd.f32 %v60, %v99
  %v107 = vadd.f32 %v61, %v99
  %v108 = vadd.f32 %v62, %v99
  %v109 = vadd.f32 %v63, %v99
  %v110 = vadd.f32 %v64, %v99
  %v111 = vadd.f32 %v65, %v99
  %v112 = vadd.f32 %v66, %v99
  %v113 = vadd.f32 %v67, %v99
  %v114 = vadd.f32 %v68, %v99
  %v115 = vadd.f32 %v69, %v99
  %v116 = vadd.f32 %v70, %v99
  %v117 = vadd.f32 %v71, %v99
  %v118 = vadd.f32 %v72, %v99
  %v119 = vadd.f32 %v73, %v99
  %v120 = vadd.f32 %v74, %v99
  %v121 = vadd.f32 %v75, %v99
  %v122 = vadd.f32 %v76, %v99
  %v123 = vadd.f32 %v77, %v99
  %v124 = vadd.f32 %v78, %v99
  %v125 = vadd.f32 %v79, %v99
  %v126 = vadd.f32 %v80, %v99
  %v127 = vadd.f32 %v81, %v99
  %v128 = vadd.f32 %v82, %v99
  %v129 = vadd.f32 %v83, %v99
  %v130 = vadd.f32 %v84, %v99
  %v131 = vadd.f32 %v85, %v99
  %v132 = vadd.f32 %v86, %v99
  %v133 = vadd.f32 %v87, %v99
  %v134 = vadd.f32 %v88, %v99
  %v135 = vadd.f32 %v89, %v99
  %v136 = vadd.f32 %v90, %v99
  %v137 = vadd.f32 %v91, %v99
  %v138 = vadd.f32 %v92, %v99
  %v139 = vadd.f32 %v93, %v99
  %v140 = vadd.f32 %v94, %v99
  %v141 = vadd.f32 %v95, %v99
  %v142 = vadd.f32 %v96, %v99
  %v143 = vadd.f32 %v101, %v115
  %v144 = vadd.f32 %v143, %v129
  %v145 = vadd.f32 %v102, %v116
  %v146 = vadd.f32 %v145, %v130
  %v147 = vadd.f32 %v103, %v117
  %v148 = vadd.f32 %v147, %v131
  %v149 = vadd.f32 %v104, %v118
  %v150 = vadd.f32 %v149, %v132
  %v151 = vadd.f32 %v105, %v119
  %v152 = vadd.f32 %v151, %v133
  %v153 = vadd.f32 %v106, %v120
  %v154 = vadd.f32 %v153, %v134
  %vm155 = vcmask 1040384
  %v156 = vsel %vm155, %v107, 0.0
  %v157 = vsel %vm155, %v121, 0.0
  %v158 = vadd.f32 %v156, %v157
  %v159 = vsel %vm155, %v135, 0.0
  %v160 = vadd.f32 %v158, %v159
  %v161 = vadd.f32 %v108, %v122
  %v162 = vadd.f32 %v161, %v136
  %v163 = vadd.f32 %v109, %v123
  %v164 = vadd.f32 %v163, %v137
  %v165 = vadd.f32 %v110, %v124
  %v166 = vadd.f32 %v165, %v138
  %v167 = vadd.f32 %v111, %v125
  %v168 = vadd.f32 %v167, %v139
  %v169 = vadd.f32 %v112, %v126
  %v170 = vadd.f32 %v169, %v140
  %v171 = vadd.f32 %v113, %v127
  %v172 = vadd.f32 %v171, %v141
  %v173 = vsel %vm155, %v114, 0.0
  %v174 = vsel %vm155, %v128, 0.0
  %v175 = vadd.f32 %v173, %v174
  %v176 = vsel %vm155, %v142, 0.0
  %v177 = vadd.f32 %v175, %v176
  %v178 = vadd.f32 %v144, %v162
  %v179 = vadd.f32 %v146, %v164
  %v180 = vadd.f32 %v148, %v166
  %v181 = vadd.f32 %v150, %v168
  %v182 = vadd.f32 %v152, %v170
  %v183 = vadd.f32 %v154, %v172
  %v184 = vsel %vm155, %v160, 0.0
  %v185 = vsel %vm155, %v177, 0.0
  %v186 = vadd.f32 %v184, %v185
  %v187 = vadd.f32 %v178, %v179
  %v188 = vadd.f32 %v187, %v180
  %v189 = vadd.f32 %v188, %v181
  %v190 = vadd.f32 %v189, %v182
  %v191 = vadd.f32 %v190, %v183
  %v192 = vsel %vm155, %v186, 0.0
  %v193 = vadd.f32 %v191, %v192
  %v194 = vrot.slane %v193, 4
  %v195 = vadd.f32 %v193, %v194
  %v196 = vrot.slane %v195, 2
  %v197 = vadd.f32 %v195, %v196
  %v198 = vrot.slane %v197, 1
  %v199 = vadd.f32 %v197, %v198
  %v200 = vmul.f32 %v199, 0.0034013605
  %v201 = vsub.f32 %v101, %v200
  %v202 = vsub.f32 %v102, %v200
  %v203 = vsub.f32 %v103, %v200
  %v204 = vsub.f32 %v104, %v200
  %v205 = vsub.f32 %v105, %v200
  %v206 = vsub.f32 %v106, %v200
  %v207 = vsub.f32 %v107, %v200
  %v208 = vsub.f32 %v108, %v200
  %v209 = vsub.f32 %v109, %v200
  %v210 = vsub.f32 %v110, %v200
  %v211 = vsub.f32 %v111, %v200
  %v212 = vsub.f32 %v112, %v200
  %v213 = vsub.f32 %v113, %v200
  %v214 = vsub.f32 %v114, %v200
  %v215 = vsub.f32 %v115, %v200
  %v216 = vsub.f32 %v116, %v200
  %v217 = vsub.f32 %v117, %v200
  %v218 = vsub.f32 %v118, %v200
  %v219 = vsub.f32 %v119, %v200
  %v220 = vsub.f32 %v120, %v200
  %v221 = vsub.f32 %v121, %v200
  %v222 = vsub.f32 %v122, %v200
  %v223 = vsub.f32 %v123, %v200
  %v224 = vsub.f32 %v124, %v200
  %v225 = vsub.f32 %v125, %v200
  %v226 = vsub.f32 %v126, %v200
  %v227 = vsub.f32 %v127, %v200
  %v228 = vsub.f32 %v128, %v200
  %v229 = vsub.f32 %v129, %v200
  %v230 = vsub.f32 %v130, %v200
  %v231 = vsub.f32 %v131, %v200
  %v232 = vsub.f32 %v132, %v200
  %v233 = vsub.f32 %v133, %v200
  %v234 = vsub.f32 %v134, %v200
  %v235 = vsub.f32 %v135, %v200
  %v236 = vsub.f32 %v136, %v200
  %v237 = vsub.f32 %v137, %v200
  %v238 = vsub.f32 %v138, %v200
  %v239 = vsub.f32 %v139, %v200
  %v240 = vsub.f32 %v140, %v200
  %v241 = vsub.f32 %v141, %v200
  %v242 = vsub.f32 %v142, %v200
  %v243 = vmul.f32 %v201, %v201
  %v244 = vmul.f32 %v202, %v202
  %v245 = vmul.f32 %v203, %v203
  %v246 = vmul.f32 %v204, %v204
  %v247 = vmul.f32 %v205, %v205
  %v248 = vmul.f32 %v206, %v206
  %v249 = vmul.f32 %v207, %v207
  %v250 = vmul.f32 %v208, %v208
  %v251 = vmul.f32 %v209, %v209
  %v252 = vmul.f32 %v210, %v210
  %v253 = vmul.f32 %v211, %v211
  %v254 = vmul.f32 %v212, %v212
  %v255 = vmul.f32 %v213, %v213
  %v256 = vmul.f32 %v214, %v214
  %v257 = vmul.f32 %v215, %v215
  %v258 = vmul.f32 %v216, %v216
  %v259 = vmul.f32 %v217, %v217
  %v260 = vmul.f32 %v218, %v218
  %v261 = vmul.f32 %v219, %v219
  %v262 = vmul.f32 %v220, %v220
  %v263 = vmul.f32 %v221, %v221
  %v264 = vmul.f32 %v222, %v222
  %v265 = vmul.f32 %v223, %v223
  %v266 = vmul.f32 %v224, %v224
  %v267 = vmul.f32 %v225, %v225
  %v268 = vmul.f32 %v226, %v226
  %v269 = vmul.f32 %v227, %v227
  %v270 = vmul.f32 %v228, %v228
  %v271 = vmul.f32 %v229, %v229
  %v272 = vmul.f32 %v230, %v230
  %v273 = vmul.f32 %v231, %v231
  %v274 = vmul.f32 %v232, %v232
  %v275 = vmul.f32 %v233, %v233
  %v276 = vmul.f32 %v234, %v234
  %v277 = vmul.f32 %v235, %v235
  %v278 = vmul.f32 %v236, %v236
  %v279 = vmul.f32 %v237, %v237
  %v280 = vmul.f32 %v238, %v238
  %v281 = vmul.f32 %v239, %v239
  %v282 = vmul.f32 %v240, %v240
  %v283 = vmul.f32 %v241, %v241
  %v284 = vmul.f32 %v242, %v242
  %v285 = vadd.f32 %v243, %v257
  %v286 = vadd.f32 %v285, %v271
  %v287 = vadd.f32 %v244, %v258
  %v288 = vadd.f32 %v287, %v272
  %v289 = vadd.f32 %v245, %v259
  %v290 = vadd.f32 %v289, %v273
  %v291 = vadd.f32 %v246, %v260
  %v292 = vadd.f32 %v291, %v274
  %v293 = vadd.f32 %v247, %v261
  %v294 = vadd.f32 %v293, %v275
  %v295 = vadd.f32 %v248, %v262
  %v296 = vadd.f32 %v295, %v276
  %v297 = vsel %vm155, %v249, 0.0
  %v298 = vsel %vm155, %v263, 0.0
  %v299 = vadd.f32 %v297, %v298
  %v300 = vsel %vm155, %v277, 0.0
  %v301 = vadd.f32 %v299, %v300
  %v302 = vadd.f32 %v250, %v264
  %v303 = vadd.f32 %v302, %v278
  %v304 = vadd.f32 %v251, %v265
  %v305 = vadd.f32 %v304, %v279
  %v306 = vadd.f32 %v252, %v266
  %v307 = vadd.f32 %v306, %v280
  %v308 = vadd.f32 %v253, %v267
  %v309 = vadd.f32 %v308, %v281
  %v310 = vadd.f32 %v254, %v268
  %v311 = vadd.f32 %v310, %v282
  %v312 = vadd.f32 %v255, %v269
  %v313 = vadd.f32 %v312, %v283
  %v314 = vsel %vm155, %v256, 0.0
  %v315 = vsel %vm155, %v270, 0.0
  %v316 = vadd.f32 %v314, %v315
  %v317 = vsel %vm155, %v284, 0.0
  %v318 = vadd.f32 %v316, %v317
  %v319 = vadd.f32 %v286, %v303
  %v320 = vadd.f32 %v288, %v305
  %v321 = vadd.f32 %v290, %v307
  %v322 = vadd.f32 %v292, %v309
  %v323 = vadd.f32 %v294, %v311
  %v324 = vadd.f32 %v296, %v313
  %v325 = vsel %vm155, %v301, 0.0
  %v326 = vsel %vm155, %v318, 0.0
  %v327 = vadd.f32 %v325, %v326
  %v328 = vadd.f32 %v319, %v320
  %v329 = vadd.f32 %v328, %v321
  %v330 = vadd.f32 %v329, %v322
  %v331 = vadd.f32 %v330, %v323
  %v332 = vadd.f32 %v331, %v324
  %v333 = vsel %vm155, %v327, 0.0
  %v334 = vadd.f32 %v332, %v333
  %v335 = vrot.slane %v334, 4
  %v336 = vadd.f32 %v334, %v335
  %v337 = vrot.slane %v336, 2
  %v338 = vadd.f32 %v336, %v337
  %v339 = vrot.slane %v338, 1
  %v340 = vadd.f32 %v338, %v339
  %v341 = vmul.f32 %v340, 0.0034013605
  %v342 = vadd.f32 %v341, 1e-05
  %v343 = vrsqrt.pop %v342
  %v344 = vmul.f32 %v343, %v342
  %v345 = vmul.f32 %v344, %v343
  %v346 = vmul.f32 0.5, %v345
  %v347 = vsub.f32 1.5, %v346
  %v348 = vmul.f32 %v343, %v347
  %vm349 = vweird.f32 %v342
  %vm350 = vweird.f32 %v343
  %vm351 = vmor %vm349, %vm350
  %v352 = vsel %vm351, %v343, %v348
  %v353 = vmul.f32 %v201, %v352
  %v354 = vmul.f32 %v202, %v352
  %v355 = vmul.f32 %v203, %v352
  %v356 = vmul.f32 %v204, %v352
  %v357 = vmul.f32 %v205, %v352
  %v358 = vmul.f32 %v206, %v352
  %v359 = vmul.f32 %v207, %v352
  %v360 = vmul.f32 %v208, %v352
  %v361 = vmul.f32 %v209, %v352
  %v362 = vmul.f32 %v210, %v352
  %v363 = vmul.f32 %v211, %v352
  %v364 = vmul.f32 %v212, %v352
  %v365 = vmul.f32 %v213, %v352
  %v366 = vmul.f32 %v214, %v352
  %v367 = vmul.f32 %v215, %v352
  %v368 = vmul.f32 %v216, %v352
  %v369 = vmul.f32 %v217, %v352
  %v370 = vmul.f32 %v218, %v352
  %v371 = vmul.f32 %v219, %v352
  %v372 = vmul.f32 %v220, %v352
  %v373 = vmul.f32 %v221, %v352
  %v374 = vmul.f32 %v222, %v352
  %v375 = vmul.f32 %v223, %v352
  %v376 = vmul.f32 %v224, %v352
  %v377 = vmul.f32 %v225, %v352
  %v378 = vmul.f32 %v226, %v352
  %v379 = vmul.f32 %v227, %v352
  %v380 = vmul.f32 %v228, %v352
  %v381 = vmul.f32 %v229, %v352
  %v382 = vmul.f32 %v230, %v352
  %v383 = vmul.f32 %v231, %v352
  %v384 = vmul.f32 %v232, %v352
  %v385 = vmul.f32 %v233, %v352
  %v386 = vmul.f32 %v234, %v352
  %v387 = vmul.f32 %v235, %v352
  %v388 = vmul.f32 %v236, %v352
  %v389 = vmul.f32 %v237, %v352
  %v390 = vmul.f32 %v238, %v352
  %v391 = vmul.f32 %v239, %v352
  %v392 = vmul.f32 %v240, %v352
  %v393 = vmul.f32 %v241, %v352
  %v394 = vmul.f32 %v242, %v352
  %v395 = vld [vmem:[%s3] sm:$0x1]
  %v397 = vperm.slane %v395, 0
  %v399 = vmul.f32 %v353, %v397
  %v400 = vmul.f32 %v354, %v397
  %v401 = vmul.f32 %v355, %v397
  %v402 = vmul.f32 %v356, %v397
  %v403 = vmul.f32 %v357, %v397
  %v404 = vmul.f32 %v358, %v397
  %v405 = vmul.f32 %v359, %v397
  %v406 = vmul.f32 %v360, %v397
  %v407 = vmul.f32 %v361, %v397
  %v408 = vmul.f32 %v362, %v397
  %v409 = vmul.f32 %v363, %v397
  %v410 = vmul.f32 %v364, %v397
  %v411 = vmul.f32 %v365, %v397
  %v412 = vmul.f32 %v366, %v397
  %v413 = vmul.f32 %v367, %v397
  %v414 = vmul.f32 %v368, %v397
  %v415 = vmul.f32 %v369, %v397
  %v416 = vmul.f32 %v370, %v397
  %v417 = vmul.f32 %v371, %v397
  %v418 = vmul.f32 %v372, %v397
  %v419 = vmul.f32 %v373, %v397
  %v420 = vmul.f32 %v374, %v397
  %v421 = vmul.f32 %v375, %v397
  %v422 = vmul.f32 %v376, %v397
  %v423 = vmul.f32 %v377, %v397
  %v424 = vmul.f32 %v378, %v397
  %v425 = vmul.f32 %v379, %v397
  %v426 = vmul.f32 %v380, %v397
  %v427 = vmul.f32 %v381, %v397
  %v428 = vmul.f32 %v382, %v397
  %v429 = vmul.f32 %v383, %v397
  %v430 = vmul.f32 %v384, %v397
  %v431 = vmul.f32 %v385, %v397
  %v432 = vmul.f32 %v386, %v397
  %v433 = vmul.f32 %v387, %v397
  %v434 = vmul.f32 %v388, %v397
  %v435 = vmul.f32 %v389, %v397
  %v436 = vmul.f32 %v390, %v397
  %v437 = vmul.f32 %v391, %v397
  %v438 = vmul.f32 %v392, %v397
  %v439 = vmul.f32 %v393, %v397
  %v440 = vmul.f32 %v394, %v397
  %v441 = vld [vmem:[%s4] sm:$0x1]
  %v443 = vperm.slane %v441, 0
  %v445 = vadd.f32 %v399, %v443
  %v446 = vadd.f32 %v400, %v443
  %v447 = vadd.f32 %v401, %v443
  %v448 = vadd.f32 %v402, %v443
  %v449 = vadd.f32 %v403, %v443
  %v450 = vadd.f32 %v404, %v443
  %v451 = vadd.f32 %v405, %v443
  %v452 = vadd.f32 %v406, %v443
  %v453 = vadd.f32 %v407, %v443
  %v454 = vadd.f32 %v408, %v443
  %v455 = vadd.f32 %v409, %v443
  %v456 = vadd.f32 %v410, %v443
  %v457 = vadd.f32 %v411, %v443
  %v458 = vadd.f32 %v412, %v443
  %v459 = vadd.f32 %v413, %v443
  %v460 = vadd.f32 %v414, %v443
  %v461 = vadd.f32 %v415, %v443
  %v462 = vadd.f32 %v416, %v443
  %v463 = vadd.f32 %v417, %v443
  %v464 = vadd.f32 %v418, %v443
  %v465 = vadd.f32 %v419, %v443
  %v466 = vadd.f32 %v420, %v443
  %v467 = vadd.f32 %v421, %v443
  %v468 = vadd.f32 %v422, %v443
  %v469 = vadd.f32 %v423, %v443
  %v470 = vadd.f32 %v424, %v443
  %v471 = vadd.f32 %v425, %v443
  %v472 = vadd.f32 %v426, %v443
  %v473 = vadd.f32 %v427, %v443
  %v474 = vadd.f32 %v428, %v443
  %v475 = vadd.f32 %v429, %v443
  %v476 = vadd.f32 %v430, %v443
  %v477 = vadd.f32 %v431, %v443
  %v478 = vadd.f32 %v432, %v443
  %v479 = vadd.f32 %v433, %v443
  %v480 = vadd.f32 %v434, %v443
  %v481 = vadd.f32 %v435, %v443
  %v482 = vadd.f32 %v436, %v443
  %v483 = vadd.f32 %v437, %v443
  %v484 = vadd.f32 %v438, %v443
  %v485 = vadd.f32 %v439, %v443
  %v486 = vadd.f32 %v440, %v443
  %v487 = vmax.f32 %v445, 0.0
  %v488 = vmax.f32 %v446, 0.0
  %v489 = vmax.f32 %v447, 0.0
  %v490 = vmax.f32 %v448, 0.0
  %v491 = vmax.f32 %v449, 0.0
  %v492 = vmax.f32 %v450, 0.0
  %v493 = vmax.f32 %v451, 0.0
  %v494 = vmax.f32 %v452, 0.0
  %v495 = vmax.f32 %v453, 0.0
  %v496 = vmax.f32 %v454, 0.0
  %v497 = vmax.f32 %v455, 0.0
  %v498 = vmax.f32 %v456, 0.0
  %v499 = vmax.f32 %v457, 0.0
  %v500 = vmax.f32 %v458, 0.0
  %v501 = vmax.f32 %v459, 0.0
  %v502 = vmax.f32 %v460, 0.0
  %v503 = vmax.f32 %v461, 0.0
  %v504 = vmax.f32 %v462, 0.0
  %v505 = vmax.f32 %v463, 0.0
  %v506 = vmax.f32 %v464, 0.0
  %v507 = vmax.f32 %v465, 0.0
  %v508 = vmax.f32 %v466, 0.0
  %v509 = vmax.f32 %v467, 0.0
  %v510 = vmax.f32 %v468, 0.0
  %v511 = vmax.f32 %v469, 0.0
  %v512 = vmax.f32 %v470, 0.0
  %v513 = vmax.f32 %v471, 0.0
  %v514 = vmax.f32 %v472, 0.0
  %v515 = vmax.f32 %v473, 0.0
  %v516 = vmax.f32 %v474, 0.0
  %v517 = vmax.f32 %v475, 0.0
  %v518 = vmax.f32 %v476, 0.0
  %v519 = vmax.f32 %v477, 0.0
  %v520 = vmax.f32 %v478, 0.0
  %v521 = vmax.f32 %v479, 0.0
  %v522 = vmax.f32 %v480, 0.0
  %v523 = vmax.f32 %v481, 0.0
  %v524 = vmax.f32 %v482, 0.0
  %v525 = vmax.f32 %v483, 0.0
  %v526 = vmax.f32 %v484, 0.0
  %v527 = vmax.f32 %v485, 0.0
  %v528 = vmax.f32 %v486, 0.0
  %v529 = vpack.c.bf16 %v487, %v487
  %v530 = vpack.c.bf16 %v488, %v488
  %v531 = vpack.c.bf16 %v489, %v489
  %v532 = vpack.c.bf16 %v490, %v490
  %v533 = vpack.c.bf16 %v491, %v491
  %v534 = vpack.c.bf16 %v492, %v492
  %v535 = vpack.c.bf16 %v493, %v493
  %v536 = vpack.c.bf16 %v494, %v494
  %v537 = vpack.c.bf16 %v495, %v495
  %v538 = vpack.c.bf16 %v496, %v496
  %v539 = vpack.c.bf16 %v497, %v497
  %v540 = vpack.c.bf16 %v498, %v498
  %v541 = vpack.c.bf16 %v499, %v499
  %v542 = vpack.c.bf16 %v500, %v500
  %v543 = vpack.c.bf16 %v501, %v501
  %v544 = vpack.c.bf16 %v502, %v502
  %v545 = vpack.c.bf16 %v503, %v503
  %v546 = vpack.c.bf16 %v504, %v504
  %v547 = vpack.c.bf16 %v505, %v505
  %v548 = vpack.c.bf16 %v506, %v506
  %v549 = vpack.c.bf16 %v507, %v507
  %v550 = vpack.c.bf16 %v508, %v508
  %v551 = vpack.c.bf16 %v509, %v509
  %v552 = vpack.c.bf16 %v510, %v510
  %v553 = vpack.c.bf16 %v511, %v511
  %v554 = vpack.c.bf16 %v512, %v512
  %v555 = vpack.c.bf16 %v513, %v513
  %v556 = vpack.c.bf16 %v514, %v514
  %v557 = vpack.c.bf16 %v515, %v515
  %v558 = vpack.c.bf16 %v516, %v516
  %v559 = vpack.c.bf16 %v517, %v517
  %v560 = vpack.c.bf16 %v518, %v518
  %v561 = vpack.c.bf16 %v519, %v519
  %v562 = vpack.c.bf16 %v520, %v520
  %v563 = vpack.c.bf16 %v521, %v521
  %v564 = vpack.c.bf16 %v522, %v522
  %v565 = vpack.c.bf16 %v523, %v523
  %v566 = vpack.c.bf16 %v524, %v524
  %v567 = vpack.c.bf16 %v525, %v525
  %v568 = vpack.c.bf16 %v526, %v526
  %v569 = vpack.c.bf16 %v527, %v527
  %v570 = vpack.c.bf16 %v528, %v528
  %571 = vst [vmem:[%s5] sm:$0xf] %v529
  %572 = vst [vmem:[%s5 + $0x4] sm:$0xf] %v530
  %573 = vst [vmem:[%s5 + $0x8] sm:$0xf] %v531
  %574 = vst [vmem:[%s5 + $0xc] sm:$0xf] %v532
  %575 = vst [vmem:[%s5 + $0x10] sm:$0xf] %v533
  %576 = vst [vmem:[%s5 + $0x14] sm:$0xf] %v534
  %vm577 = vcmask 1040384
  %vm578 = vsmask.f32 256
  %vm579 = vmand %vm577, %vm578
  %v580 = vld [vmem:[%s5 + $0x18] sm:$0x1]
  %v581 = vsel %vm579, %v535, %v580
  %582 = vst [vmem:[%s5 + $0x18] sm:$0x1] %v581
  %583 = vst [vmem:[%s5 + $0x1c] sm:$0xf] %v536
  %584 = vst [vmem:[%s5 + $0x20] sm:$0xf] %v537
  %585 = vst [vmem:[%s5 + $0x24] sm:$0xf] %v538
  %586 = vst [vmem:[%s5 + $0x28] sm:$0xf] %v539
  %587 = vst [vmem:[%s5 + $0x2c] sm:$0xf] %v540
  %588 = vst [vmem:[%s5 + $0x30] sm:$0xf] %v541
  %v589 = vld [vmem:[%s5 + $0x34] sm:$0x1]
  %v590 = vsel %vm579, %v542, %v589
  %591 = vst [vmem:[%s5 + $0x34] sm:$0x1] %v590
  %592 = vst [vmem:[%s5 + $0x38] sm:$0xf] %v543
  %593 = vst [vmem:[%s5 + $0x3c] sm:$0xf] %v544
  %594 = vst [vmem:[%s5 + $0x40] sm:$0xf] %v545
  %595 = vst [vmem:[%s5 + $0x44] sm:$0xf] %v546
  %596 = vst [vmem:[%s5 + $0x48] sm:$0xf] %v547
  %597 = vst [vmem:[%s5 + $0x4c] sm:$0xf] %v548
  %v598 = vld [vmem:[%s5 + $0x50] sm:$0x1]
  %v599 = vsel %vm579, %v549, %v598
  %600 = vst [vmem:[%s5 + $0x50] sm:$0x1] %v599
  %601 = vst [vmem:[%s5 + $0x54] sm:$0xf] %v550
  %602 = vst [vmem:[%s5 + $0x58] sm:$0xf] %v551
  %603 = vst [vmem:[%s5 + $0x5c] sm:$0xf] %v552
  %604 = vst [vmem:[%s5 + $0x60] sm:$0xf] %v553
  %605 = vst [vmem:[%s5 + $0x64] sm:$0xf] %v554
  %606 = vst [vmem:[%s5 + $0x68] sm:$0xf] %v555
  %v607 = vld [vmem:[%s5 + $0x6c] sm:$0x1]
  %v608 = vsel %vm579, %v556, %v607
  %609 = vst [vmem:[%s5 + $0x6c] sm:$0x1] %v608
  %610 = vst [vmem:[%s5 + $0x70] sm:$0xf] %v557
  %611 = vst [vmem:[%s5 + $0x74] sm:$0xf] %v558
  %612 = vst [vmem:[%s5 + $0x78] sm:$0xf] %v559
  %613 = vst [vmem:[%s5 + $0x7c] sm:$0xf] %v560
  %614 = vst [vmem:[%s5 + $0x80] sm:$0xf] %v561
  %615 = vst [vmem:[%s5 + $0x84] sm:$0xf] %v562
  %v616 = vld [vmem:[%s5 + $0x88] sm:$0x1]
  %v617 = vsel %vm579, %v563, %v616
  %618 = vst [vmem:[%s5 + $0x88] sm:$0x1] %v617
  %619 = vst [vmem:[%s5 + $0x8c] sm:$0xf] %v564
  %620 = vst [vmem:[%s5 + $0x90] sm:$0xf] %v565
  %621 = vst [vmem:[%s5 + $0x94] sm:$0xf] %v566
  %622 = vst [vmem:[%s5 + $0x98] sm:$0xf] %v567
  %623 = vst [vmem:[%s5 + $0x9c] sm:$0xf] %v568
  %624 = vst [vmem:[%s5 + $0xa0] sm:$0xf] %v569
  %v625 = vld [vmem:[%s5 + $0xa4] sm:$0x1]
  %v626 = vsel %vm579, %v570, %v625
  %627 = vst [vmem:[%s5 + $0xa4] sm:$0x1] %v626
  // Predicated region
  $region22: #{relation_network_forward.6} parent=0 // pred_check
    _
  $region23: #{relation_network_forward.6} parent=0 // pred_check_branch
    %629 = sbr.rel (0) target = $region25
  $region24: #{relation_network_forward.6} parent=0 // pred_region
    _
  $region25: #{relation_network_forward.6} parent=0 // pred_fallthru
    _
  // Predicated region
  $region26: #{relation_network_forward.6} parent=0 // pred_check
    _
  $region27: #{relation_network_forward.6} parent=0 // pred_check_branch
    %631 = sbr.rel (0) target = $region29
  $region28: #{relation_network_forward.6} parent=0 // pred_region
    _
  $region29: #{relation_network_forward.6} parent=0 // pred_fallthru
    _

// kernel: relation_network_forward.4
$region0: #{relation_network_forward.4}
  #allocation0 [shape = 'u32[]', space=smem, size = 0x4, offset = 0x4, fixed_abs, tag = 'smem constant byte address 0x4 - core index']
  #allocation1 [shape = 'u32[72,128]{1,0:T(1,128)}', space=vmem, size = 0x9000, scoped, tag = 'internal scratch']
  %s0 = inlined_call_operand.vmem [shape: bf16[98,4608], index: 0, kind: input, shape index: {}]
  %s1 = inlined_call_operand.vmem [shape: bf16[4608,128], index: 1, kind: input, shape index: {}]
  %s2 = inlined_call_operand.vmem [shape: f32[98,128], index: 2, kind: output, shape index: {}]
  %s3 = sld [smem:[#allocation0]]
  $region22: #{relation_network_forward.4} parent=0
    _
  %s5 = ssub.s32 1, %s3
  %s6 = scalar_select 0, %s5, %s3
  // Predicated region
  $region2: #{relation_network_forward.4} parent=0 // pred_check
    _
  $region3: #{relation_network_forward.4} parent=0 // pred_check_branch
    %8 = sbr.rel (0) target = $region5
  $region4: #{relation_network_forward.4} parent=0 // pred_region
    _
  $region5: #{relation_network_forward.4} parent=0 // pred_fallthru
    _
  // Predicated region
  $region6: #{relation_network_forward.4} parent=0 // pred_check
    _
  $region7: #{relation_network_forward.4} parent=0 // pred_check_branch
    %10 = sbr.rel (0) target = $region9
  $region8: #{relation_network_forward.4} parent=0 // pred_region
    _
  $region9: #{relation_network_forward.4} parent=0 // pred_fallthru
    _
  %p11 = scmp.eq.s32.totalorder 0, 0
  // Predicated region
  $region10: #{relation_network_forward.4} parent=0 // pred_check
    %p12 = pneg %p11
  $region11: #{relation_network_forward.4} parent=0 // pred_check_branch
    %14 = sbr.rel (%p12) target = $region13
  $region12: #{relation_network_forward.4} parent=0 // pred_region
    %15 = vst [vmem:[%s2] sm:$0xff] 0.0
    %16 = vst [vmem:[%s2 + $0x8] sm:$0xff] 0.0
    %17 = vst [vmem:[%s2 + $0x10] sm:$0xff] 0.0
    %18 = vst [vmem:[%s2 + $0x18] sm:$0xff] 0.0
    %19 = vst [vmem:[%s2 + $0x20] sm:$0xff] 0.0
    %20 = vst [vmem:[%s2 + $0x28] sm:$0xff] 0.0
    %21 = vst [vmem:[%s2 + $0x30] sm:$0xff] 0.0
    %22 = vst [vmem:[%s2 + $0x38] sm:$0xff] 0.0
    %23 = vst [vmem:[%s2 + $0x40] sm:$0xff] 0.0
    %24 = vst [vmem:[%s2 + $0x48] sm:$0xff] 0.0
    %25 = vst [vmem:[%s2 + $0x50] sm:$0xff] 0.0
    %26 = vst [vmem:[%s2 + $0x58] sm:$0xff] 0.0
    %27 = vst [vmem:[%s2 + $0x60] sm:$0x3] 0.0
  $region13: #{relation_network_forward.4} parent=0 // pred_fallthru
    _
  %v28 = vld [vmem:[%s2] sm:$0xff]
  %v29 = vld [vmem:[%s2 + $0x8] sm:$0xff]
  %v30 = vld [vmem:[%s2 + $0x10] sm:$0xff]
  %v31 = vld [vmem:[%s2 + $0x18] sm:$0xff]
  %v32 = vld [vmem:[%s2 + $0x20] sm:$0xff]
  %v33 = vld [vmem:[%s2 + $0x28] sm:$0xff]
  %v34 = vld [vmem:[%s2 + $0x30] sm:$0xff]
  %v35 = vld [vmem:[%s2 + $0x38] sm:$0xff]
  %v36 = vld [vmem:[%s2 + $0x40] sm:$0xff]
  %v37 = vld [vmem:[%s2 + $0x48] sm:$0xff]
  %v38 = vld [vmem:[%s2 + $0x50] sm:$0xff]
  %v39 = vld [vmem:[%s2 + $0x58] sm:$0xff]
  %v40 = vld [vmem:[%s2 + $0x60] sm:$0x3]
  %v41 = vld [vmem:[%s0] sm:$0xff]
  %v42 = vld [vmem:[%s0 + $0x8] sm:$0xff]
  %v43 = vld [vmem:[%s0 + $0x10] sm:$0xff]
  %v44 = vld [vmem:[%s0 + $0x18] sm:$0xff]
  %v45 = vld [vmem:[%s0 + $0x20] sm:$0xff]
  %v46 = vld [vmem:[%s0 + $0x28] sm:$0xff]
  %v47 = vld [vmem:[%s0 + $0x30] sm:$0xff]
  %v48 = vld [vmem:[%s0 + $0x38] sm:$0xff]
  %v49 = vld [vmem:[%s0 + $0x40] sm:$0xff]
  %v50 = vld [vmem:[%s0 + $0x48] sm:$0xff]
  %v51 = vld [vmem:[%s0 + $0x50] sm:$0xff]
  %v52 = vld [vmem:[%s0 + $0x58] sm:$0xff]
  %v53 = vld [vmem:[%s0 + $0x60] sm:$0xff]
  %v54 = vld [vmem:[%s0 + $0x68] sm:$0xff]
  %v55 = vld [vmem:[%s0 + $0x70] sm:$0xff]
  %v56 = vld [vmem:[%s0 + $0x78] sm:$0xff]
  %v57 = vld [vmem:[%s0 + $0x80] sm:$0xff]
  %v58 = vld [vmem:[%s0 + $0x88] sm:$0xff]
  %v59 = vld [vmem:[%s0 + $0x90] sm:$0xff]
  %v60 = vld [vmem:[%s0 + $0x98] sm:$0xff]
  %v61 = vld [vmem:[%s0 + $0xa0] sm:$0xff]
  %v62 = vld [vmem:[%s0 + $0xa8] sm:$0xff]
  %v63 = vld [vmem:[%s0 + $0xb0] sm:$0xff]
  %v64 = vld [vmem:[%s0 + $0xb8] sm:$0xff]
  %v65 = vld [vmem:[%s0 + $0xc0] sm:$0xff]
  %v66 = vld [vmem:[%s0 + $0xc8] sm:$0xff]
  %v67 = vld [vmem:[%s0 + $0xd0] sm:$0xff]
  %v68 = vld [vmem:[%s0 + $0xd8] sm:$0xff]
  %v69 = vld [vmem:[%s0 + $0xe0] sm:$0xff]
  %v70 = vld [vmem:[%s0 + $0xe8] sm:$0xff]
  %v71 = vld [vmem:[%s0 + $0xf0] sm:$0xff]
  %v72 = vld [vmem:[%s0 + $0xf8] sm:$0xff]
  %v73 = vld [vmem:[%s0 + $0x100] sm:$0xff]
  %v74 = vld [vmem:[%s0 + $0x108] sm:$0xff]
  %v75 = vld [vmem:[%s0 + $0x110] sm:$0xff]
  %v76 = vld [vmem:[%s0 + $0x118] sm:$0xff]
  %v77 = vld [vmem:[%s0 + $0x120] sm:$0xff]
  %v78 = vld [vmem:[%s0 + $0x128] sm:$0xff]
  %v79 = vld [vmem:[%s0 + $0x130] sm:$0xff]
  %v80 = vld [vmem:[%s0 + $0x138] sm:$0xff]
  %v81 = vld [vmem:[%s0 + $0x140] sm:$0xff]
  %v82 = vld [vmem:[%s0 + $0x148] sm:$0xff]
  %v83 = vld [vmem:[%s0 + $0x150] sm:$0xff]
  %v84 = vld [vmem:[%s0 + $0x158] sm:$0xff]
  %v85 = vld [vmem:[%s0 + $0x160] sm:$0xff]
  %v86 = vld [vmem:[%s0 + $0x168] sm:$0xff]
  %v87 = vld [vmem:[%s0 + $0x170] sm:$0xff]
  %v88 = vld [vmem:[%s0 + $0x178] sm:$0xff]
  %v89 = vld [vmem:[%s0 + $0x180] sm:$0xff]
  %v90 = vld [vmem:[%s0 + $0x188] sm:$0xff]
  %v91 = vld [vmem:[%s0 + $0x190] sm:$0xff]
  %v92 = vld [vmem:[%s0 + $0x198] sm:$0xff]
  %v93 = vld [vmem:[%s0 + $0x1a0] sm:$0xff]
  %v94 = vld [vmem:[%s0 + $0x1a8] sm:$0xff]
  %v95 = vld [vmem:[%s0 + $0x1b0] sm:$0xff]
  %v96 = vld [vmem:[%s0 + $0x1b8] sm:$0xff]
  %v97 = vld [vmem:[%s0 + $0x1c0] sm:$0xff]
  %v98 = vld [vmem:[%s0 + $0x1c8] sm:$0xff]
  %v99 = vld [vmem:[%s0 + $0x1d0] sm:$0xff]
  %v100 = vld [vmem:[%s0 + $0x1d8] sm:$0xff]
  %v101 = vld [vmem:[%s0 + $0x1e0] sm:$0xff]
  %v102 = vld [vmem:[%s0 + $0x1e8] sm:$0xff]
  %v103 = vld [vmem:[%s0 + $0x1f0] sm:$0xff]
  %v104 = vld [vmem:[%s0 + $0x1f8] sm:$0xff]
  %v105 = vld [vmem:[%s0 + $0x200] sm:$0xff]
  %v106 = vld [vmem:[%s0 + $0x208] sm:$0xff]
  %v107 = vld [vmem:[%s0 + $0x210] sm:$0xff]
  %v108 = vld [vmem:[%s0 + $0x218] sm:$0xff]
  %v109 = vld [vmem:[%s0 + $0x220] sm:$0xff]
  %v110 = vld [vmem:[%s0 + $0x228] sm:$0xff]
  %v111 = vld [vmem:[%s0 + $0x230] sm:$0xff]
  %v112 = vld [vmem:[%s0 + $0x238] sm:$0xff]
  %v113 = vld [vmem:[%s0 + $0x240] sm:$0xff]
  %v114 = vld [vmem:[%s0 + $0x248] sm:$0xff]
  %v115 = vld [vmem:[%s0 + $0x250] sm:$0xff]
  %v116 = vld [vmem:[%s0 + $0x258] sm:$0xff]
  %v117 = vld [vmem:[%s0 + $0x260] sm:$0xff]
  %v118 = vld [vmem:[%s0 + $0x268] sm:$0xff]
  %v119 = vld [vmem:[%s0 + $0x270] sm:$0xff]
  %v120 = vld [vmem:[%s0 + $0x278] sm:$0xff]
  %v121 = vld [vmem:[%s0 + $0x280] sm:$0xff]
  %v122 = vld [vmem:[%s0 + $0x288] sm:$0xff]
  %v123 = vld [vmem:[%s0 + $0x290] sm:$0xff]
  %v124 = vld [vmem:[%s0 + $0x298] sm:$0xff]
  %v125 = vld [vmem:[%s0 + $0x2a0] sm:$0xff]
  %v126 = vld [vmem:[%s0 + $0x2a8] sm:$0xff]
  %v127 = vld [vmem:[%s0 + $0x2b0] sm:$0xff]
  %v128 = vld [vmem:[%s0 + $0x2b8] sm:$0xff]
  %v129 = vld [vmem:[%s0 + $0x2c0] sm:$0xff]
  %v130 = vld [vmem:[%s0 + $0x2c8] sm:$0xff]
  %v131 = vld [vmem:[%s0 + $0x2d0] sm:$0xff]
  %v132 = vld [vmem:[%s0 + $0x2d8] sm:$0xff]
  %v133 = vld [vmem:[%s0 + $0x2e0] sm:$0xff]
  %v134 = vld [vmem:[%s0 + $0x2e8] sm:$0xff]
  %v135 = vld [vmem:[%s0 + $0x2f0] sm:$0xff]
  %v136 = vld [vmem:[%s0 + $0x2f8] sm:$0xff]
  %v137 = vld [vmem:[%s0 + $0x300] sm:$0xff]
  %v138 = vld [vmem:[%s0 + $0x308] sm:$0xff]
  %v139 = vld [vmem:[%s0 + $0x310] sm:$0xff]
  %v140 = vld [vmem:[%s0 + $0x318] sm:$0xff]
  %v141 = vld [vmem:[%s0 + $0x320] sm:$0xff]
  %v142 = vld [vmem:[%s0 + $0x328] sm:$0xff]
  %v143 = vld [vmem:[%s0 + $0x330] sm:$0xff]
  %v144 = vld [vmem:[%s0 + $0x338] sm:$0xff]
  %v145 = vld [vmem:[%s0 + $0x340] sm:$0xff]
  %v146 = vld [vmem:[%s0 + $0x348] sm:$0xff]
  %v147 = vld [vmem:[%s0 + $0x350] sm:$0xff]
  %v148 = vld [vmem:[%s0 + $0x358] sm:$0xff]
  %v149 = vld [vmem:[%s0 + $0x360] sm:$0xff]
  %v150 = vld [vmem:[%s0 + $0x368] sm:$0xff]
  %v151 = vld [vmem:[%s0 + $0x370] sm:$0xff]
  %v152 = vld [vmem:[%s0 + $0x378] sm:$0xff]
  %v153 = vld [vmem:[%s0 + $0x380] sm:$0xff]
  %v154 = vld [vmem:[%s0 + $0x388] sm:$0xff]
  %v155 = vld [vmem:[%s0 + $0x390] sm:$0xff]
  %v156 = vld [vmem:[%s0 + $0x398] sm:$0xff]
  %v157 = vld [vmem:[%s0 + $0x3a0] sm:$0xff]
  %v158 = vld [vmem:[%s0 + $0x3a8] sm:$0xff]
  %v159 = vld [vmem:[%s0 + $0x3b0] sm:$0xff]
  %v160 = vld [vmem:[%s0 + $0x3b8] sm:$0xff]
  %v161 = vld [vmem:[%s0 + $0x3c0] sm:$0xff]
  %v162 = vld [vmem:[%s0 + $0x3c8] sm:$0xff]
  %v163 = vld [vmem:[%s0 + $0x3d0] sm:$0xff]
  %v164 = vld [vmem:[%s0 + $0x3d8] sm:$0xff]
  %v165 = vld [vmem:[%s0 + $0x3e0] sm:$0xff]
  %v166 = vld [vmem:[%s0 + $0x3e8] sm:$0xff]
  %v167 = vld [vmem:[%s0 + $0x3f0] sm:$0xff]
  %v168 = vld [vmem:[%s0 + $0x3f8] sm:$0xff]
  %v169 = vld [vmem:[%s0 + $0x400] sm:$0xff]
  %v170 = vld [vmem:[%s0 + $0x408] sm:$0xff]
  %v171 = vld [vmem:[%s0 + $0x410] sm:$0xff]
  %v172 = vld [vmem:[%s0 + $0x418] sm:$0xff]
  %v173 = vld [vmem:[%s0 + $0x420] sm:$0xff]
  %v174 = vld [vmem:[%s0 + $0x428] sm:$0xff]
  %v175 = vld [vmem:[%s0 + $0x430] sm:$0xff]
  %v176 = vld [vmem:[%s0 + $0x438] sm:$0xff]
  %v177 = vld [vmem:[%s0 + $0x440] sm:$0xff]
  %v178 = vld [vmem:[%s0 + $0x448] sm:$0xff]
  %v179 = vld [vmem:[%s0 + $0x450] sm:$0xff]
  %v180 = vld [vmem:[%s0 + $0x458] sm:$0xff]
  %v181 = vld [vmem:[%s0 + $0x460] sm:$0xff]
  %v182 = vld [vmem:[%s0 + $0x468] sm:$0xff]
  %v183 = vld [vmem:[%s0 + $0x470] sm:$0xff]
  %v184 = vld [vmem:[%s0 + $0x478] sm:$0xff]
  %v185 = vld [vmem:[%s0 + $0x480] sm:$0xff]
  %v186 = vld [vmem:[%s0 + $0x488] sm:$0xff]
  %v187 = vld [vmem:[%s0 + $0x490] sm:$0xff]
  %v188 = vld [vmem:[%s0 + $0x498] sm:$0xff]
  %v189 = vld [vmem:[%s0 + $0x4a0] sm:$0xff]
  %v190 = vld [vmem:[%s0 + $0x4a8] sm:$0xff]
  %v191 = vld [vmem:[%s0 + $0x4b0] sm:$0xff]
  %v192 = vld [vmem:[%s0 + $0x4b8] sm:$0xff]
  %v193 = vld [vmem:[%s0 + $0x4c0] sm:$0xff]
  %v194 = vld [vmem:[%s0 + $0x4c8] sm:$0xff]
  %v195 = vld [vmem:[%s0 + $0x4d0] sm:$0xff]
  %v196 = vld [vmem:[%s0 + $0x4d8] sm:$0xff]
  %v197 = vld [vmem:[%s0 + $0x4e0] sm:$0xff]
  %v198 = vld [vmem:[%s0 + $0x4e8] sm:$0xff]
  %v199 = vld [vmem:[%s0 + $0x4f0] sm:$0xff]
  %v200 = vld [vmem:[%s0 + $0x4f8] sm:$0xff]
  %v201 = vld [vmem:[%s0 + $0x500] sm:$0xff]
  %v202 = vld [vmem:[%s0 + $0x508] sm:$0xff]
  %v203 = vld [vmem:[%s0 + $0x510] sm:$0xff]
  %v204 = vld [vmem:[%s0 + $0x518] sm:$0xff]
  %v205 = vld [vmem:[%s0 + $0x520] sm:$0xff]
  %v206 = vld [vmem:[%s0 + $0x528] sm:$0xff]
  %v207 = vld [vmem:[%s0 + $0x530] sm:$0xff]
  %v208 = vld [vmem:[%s0 + $0x538] sm:$0xff]
  %v209 = vld [vmem:[%s0 + $0x540] sm:$0xff]
  %v210 = vld [vmem:[%s0 + $0x548] sm:$0xff]
  %v211 = vld [vmem:[%s0 + $0x550] sm:$0xff]
  %v212 = vld [vmem:[%s0 + $0x558] sm:$0xff]
  %v213 = vld [vmem:[%s0 + $0x560] sm:$0xff]
  %v214 = vld [vmem:[%s0 + $0x568] sm:$0xff]
  %v215 = vld [vmem:[%s0 + $0x570] sm:$0xff]
  %v216 = vld [vmem:[%s0 + $0x578] sm:$0xff]
  %v217 = vld [vmem:[%s0 + $0x580] sm:$0xff]
  %v218 = vld [vmem:[%s0 + $0x588] sm:$0xff]
  %v219 = vld [vmem:[%s0 + $0x590] sm:$0xff]
  %v220 = vld [vmem:[%s0 + $0x598] sm:$0xff]
  %v221 = vld [vmem:[%s0 + $0x5a0] sm:$0xff]
  %v222 = vld [vmem:[%s0 + $0x5a8] sm:$0xff]
  %v223 = vld [vmem:[%s0 + $0x5b0] sm:$0xff]
  %v224 = vld [vmem:[%s0 + $0x5b8] sm:$0xff]
  %v225 = vld [vmem:[%s0 + $0x5c0] sm:$0xff]
  %v226 = vld [vmem:[%s0 + $0x5c8] sm:$0xff]
  %v227 = vld [vmem:[%s0 + $0x5d0] sm:$0xff]
  %v228 = vld [vmem:[%s0 + $0x5d8] sm:$0xff]
  %v229 = vld [vmem:[%s0 + $0x5e0] sm:$0xff]
  %v230 = vld [vmem:[%s0 + $0x5e8] sm:$0xff]
  %v231 = vld [vmem:[%s0 + $0x5f0] sm:$0xff]
  %v232 = vld [vmem:[%s0 + $0x5f8] sm:$0xff]
  %v233 = vld [vmem:[%s0 + $0x600] sm:$0xff]
  %v234 = vld [vmem:[%s0 + $0x608] sm:$0xff]
  %v235 = vld [vmem:[%s0 + $0x610] sm:$0xff]
  %v236 = vld [vmem:[%s0 + $0x618] sm:$0xff]
  %v237 = vld [vmem:[%s0 + $0x620] sm:$0xff]
  %v238 = vld [vmem:[%s0 + $0x628] sm:$0xff]
  %v239 = vld [vmem:[%s0 + $0x630] sm:$0xff]
  %v240 = vld [vmem:[%s0 + $0x638] sm:$0xff]
  %v241 = vld [vmem:[%s0 + $0x640] sm:$0xff]
  %v242 = vld [vmem:[%s0 + $0x648] sm:$0xff]
  %v243 = vld [vmem:[%s0 + $0x650] sm:$0xff]
  %v244 = vld [vmem:[%s0 + $0x658] sm:$0xff]
  %v245 = vld [vmem:[%s0 + $0x660] sm:$0xff]
  %v246 = vld [vmem:[%s0 + $0x668] sm:$0xff]
  %v247 = vld [vmem:[%s0 + $0x670] sm:$0xff]
  %v248 = vld [vmem:[%s0 + $0x678] sm:$0xff]
  %v249 = vld [vmem:[%s0 + $0x680] sm:$0xff]
  %v250 = vld [vmem:[%s0 + $0x688] sm:$0xff]
  %v251 = vld [vmem:[%s0 + $0x690] sm:$0xff]
  %v252 = vld [vmem:[%s0 + $0x698] sm:$0xff]
  %v253 = vld [vmem:[%s0 + $0x6a0] sm:$0xff]
  %v254 = vld [vmem:[%s0 + $0x6a8] sm:$0xff]
  %v255 = vld [vmem:[%s0 + $0x6b0] sm:$0xff]
  %v256 = vld [vmem:[%s0 + $0x6b8] sm:$0xff]
  %v257 = vld [vmem:[%s0 + $0x6c0] sm:$0x11]
  %v258 = vld [vmem:[%s0 + $0x6c8] sm:$0x11]
  %v259 = vld [vmem:[%s0 + $0x6d0] sm:$0x11]
  %v260 = vld [vmem:[%s0 + $0x6d8] sm:$0x11]
  %v261 = vld [vmem:[%s0 + $0x6e0] sm:$0x11]
  %v262 = vld [vmem:[%s0 + $0x6e8] sm:$0x11]
  %v263 = vld [vmem:[%s0 + $0x6f0] sm:$0x11]
  %v264 = vld [vmem:[%s0 + $0x6f8] sm:$0x11]
  %v265 = vld [vmem:[%s0 + $0x700] sm:$0x11]
  %v266 = vld [vmem:[%s0 + $0x708] sm:$0x11]
  %v267 = vld [vmem:[%s0 + $0x710] sm:$0x11]
  %v268 = vld [vmem:[%s0 + $0x718] sm:$0x11]
  %v269 = vld [vmem:[%s0 + $0x720] sm:$0x11]
  %v270 = vld [vmem:[%s0 + $0x728] sm:$0x11]
  %v271 = vld [vmem:[%s0 + $0x730] sm:$0x11]
  %v272 = vld [vmem:[%s0 + $0x738] sm:$0x11]
  %v273 = vld [vmem:[%s0 + $0x740] sm:$0x11]
  %v274 = vld [vmem:[%s0 + $0x748] sm:$0x11]
  %v275 = vld [vmem:[%s1] sm:$0xf]
  %v276 = vld [vmem:[%s1 + $0x4] sm:$0xf]
  %v277 = vld [vmem:[%s1 + $0x8] sm:$0xf]
  %v278 = vld [vmem:[%s1 + $0xc] sm:$0xf]
  %v279 = vld [vmem:[%s1 + $0x10] sm:$0xf]
  %v280 = vld [vmem:[%s1 + $0x14] sm:$0xf]
  %v281 = vld [vmem:[%s1 + $0x18] sm:$0xf]
  %v282 = vld [vmem:[%s1 + $0x1c] sm:$0xf]
  %v283 = vld [vmem:[%s1 + $0x20] sm:$0xf]
  %v284 = vld [vmem:[%s1 + $0x24] sm:$0xf]
  %v285 = vld [vmem:[%s1 + $0x28] sm:$0xf]
  %v286 = vld [vmem:[%s1 + $0x2c] sm:$0xf]
  %v287 = vld [vmem:[%s1 + $0x30] sm:$0xf]
  %v288 = vld [vmem:[%s1 + $0x34] sm:$0xf]
  %v289 = vld [vmem:[%s1 + $0x38] sm:$0xf]
  %v290 = vld [vmem:[%s1 + $0x3c] sm:$0xf]
  %v291 = vld [vmem:[%s1 + $0x40] sm:$0xf]
  %v292 = vld [vmem:[%s1 + $0x44] sm:$0xf]
  %v293 = vld [vmem:[%s1 + $0x48] sm:$0xf]
  %v294 = vld [vmem:[%s1 + $0x4c] sm:$0xf]
  %v295 = vld [vmem:[%s1 + $0x50] sm:$0xf]
  %v296 = vld [vmem:[%s1 + $0x54] sm:$0xf]
  %v297 = vld [vmem:[%s1 + $0x58] sm:$0xf]
  %v298 = vld [vmem:[%s1 + $0x5c] sm:$0xf]
  %v299 = vld [vmem:[%s1 + $0x60] sm:$0xf]
  %v300 = vld [vmem:[%s1 + $0x64] sm:$0xf]
  %v301 = vld [vmem:[%s1 + $0x68] sm:$0xf]
  %v302 = vld [vmem:[%s1 + $0x6c] sm:$0xf]
  %v303 = vld [vmem:[%s1 + $0x70] sm:$0xf]
  %v304 = vld [vmem:[%s1 + $0x74] sm:$0xf]
  %v305 = vld [vmem:[%s1 + $0x78] sm:$0xf]
  %v306 = vld [vmem:[%s1 + $0x7c] sm:$0xf]
  %v307 = vld [vmem:[%s1 + $0x80] sm:$0xf]
  %v308 = vld [vmem:[%s1 + $0x84] sm:$0xf]
  %v309 = vld [vmem:[%s1 + $0x88] sm:$0xf]
  %v310 = vld [vmem:[%s1 + $0x8c] sm:$0xf]
  %v311 = vld [vmem:[%s1 + $0x90] sm:$0xf]
  %v312 = vld [vmem:[%s1 + $0x94] sm:$0xf]
  %v313 = vld [vmem:[%s1 + $0x98] sm:$0xf]
  %v314 = vld [vmem:[%s1 + $0x9c] sm:$0xf]
  %v315 = vld [vmem:[%s1 + $0xa0] sm:$0xf]
  %v316 = vld [vmem:[%s1 + $0xa4] sm:$0xf]
  %v317 = vld [vmem:[%s1 + $0xa8] sm:$0xf]
  %v318 = vld [vmem:[%s1 + $0xac] sm:$0xf]
  %v319 = vld [vmem:[%s1 + $0xb0] sm:$0xf]
  %v320 = vld [vmem:[%s1 + $0xb4] sm:$0xf]
  %v321 = vld [vmem:[%s1 + $0xb8] sm:$0xf]
  %v322 = vld [vmem:[%s1 + $0xbc] sm:$0xf]
  %v323 = vld [vmem:[%s1 + $0xc0] sm:$0xf]
  %v324 = vld [vmem:[%s1 + $0xc4] sm:$0xf]
  %v325 = vld [vmem:[%s1 + $0xc8] sm:$0xf]
  %v326 = vld [vmem:[%s1 + $0xcc] sm:$0xf]
  %v327 = vld [vmem:[%s1 + $0xd0] sm:$0xf]
  %v328 = vld [vmem:[%s1 + $0xd4] sm:$0xf]
  %v329 = vld [vmem:[%s1 + $0xd8] sm:$0xf]
  %v330 = vld [vmem:[%s1 + $0xdc] sm:$0xf]
  %v331 = vld [vmem:[%s1 + $0xe0] sm:$0xf]
  %v332 = vld [vmem:[%s1 + $0xe4] sm:$0xf]
  %v333 = vld [vmem:[%s1 + $0xe8] sm:$0xf]
  %v334 = vld [vmem:[%s1 + $0xec] sm:$0xf]
  %v335 = vld [vmem:[%s1 + $0xf0] sm:$0xf]
  %v336 = vld [vmem:[%s1 + $0xf4] sm:$0xf]
  %v337 = vld [vmem:[%s1 + $0xf8] sm:$0xf]
  %v338 = vld [vmem:[%s1 + $0xfc] sm:$0xf]
  %v339 = vld [vmem:[%s1 + $0x100] sm:$0xf]
  %v340 = vld [vmem:[%s1 + $0x104] sm:$0xf]
  %v341 = vld [vmem:[%s1 + $0x108] sm:$0xf]
  %v342 = vld [vmem:[%s1 + $0x10c] sm:$0xf]
  %v343 = vld [vmem:[%s1 + $0x110] sm:$0xf]
  %v344 = vld [vmem:[%s1 + $0x114] sm:$0xf]
  %v345 = vld [vmem:[%s1 + $0x118] sm:$0xf]
  %v346 = vld [vmem:[%s1 + $0x11c] sm:$0xf]
  %v347 = vld [vmem:[%s1 + $0x120] sm:$0xf]
  %v348 = vld [vmem:[%s1 + $0x124] sm:$0xf]
  %v349 = vld [vmem:[%s1 + $0x128] sm:$0xf]
  %v350 = vld [vmem:[%s1 + $0x12c] sm:$0xf]
  %v351 = vld [vmem:[%s1 + $0x130] sm:$0xf]
  %v352 = vld [vmem:[%s1 + $0x134] sm:$0xf]
  %v353 = vld [vmem:[%s1 + $0x138] sm:$0xf]
  %v354 = vld [vmem:[%s1 + $0x13c] sm:$0xf]
  %v355 = vld [vmem:[%s1 + $0x140] sm:$0xf]
  %v356 = vld [vmem:[%s1 + $0x144] sm:$0xf]
  %v357 = vld [vmem:[%s1 + $0x148] sm:$0xf]
  %v358 = vld [vmem:[%s1 + $0x14c] sm:$0xf]
  %v359 = vld [vmem:[%s1 + $0x150] sm:$0xf]
  %v360 = vld [vmem:[%s1 + $0x154] sm:$0xf]
  %v361 = vld [vmem:[%s1 + $0x158] sm:$0xf]
  %v362 = vld [vmem:[%s1 + $0x15c] sm:$0xf]
  %v363 = vld [vmem:[%s1 + $0x160] sm:$0xf]
  %v364 = vld [vmem:[%s1 + $0x164] sm:$0xf]
  %v365 = vld [vmem:[%s1 + $0x168] sm:$0xf]
  %v366 = vld [vmem:[%s1 + $0x16c] sm:$0xf]
  %v367 = vld [vmem:[%s1 + $0x170] sm:$0xf]
  %v368 = vld [vmem:[%s1 + $0x174] sm:$0xf]
  %v369 = vld [vmem:[%s1 + $0x178] sm:$0xf]
  %v370 = vld [vmem:[%s1 + $0x17c] sm:$0xf]
  %v371 = vld [vmem:[%s1 + $0x180] sm:$0xf]
  %v372 = vld [vmem:[%s1 + $0x184] sm:$0xf]
  %v373 = vld [vmem:[%s1 + $0x188] sm:$0xf]
  %v374 = vld [vmem:[%s1 + $0x18c] sm:$0xf]
  %v375 = vld [vmem:[%s1 + $0x190] sm:$0xf]
  %v376 = vld [vmem:[%s1 + $0x194] sm:$0xf]
  %v377 = vld [vmem:[%s1 + $0x198] sm:$0xf]
  %v378 = vld [vmem:[%s1 + $0x19c] sm:$0xf]
  %v379 = vld [vmem:[%s1 + $0x1a0] sm:$0xf]
  %v380 = vld [vmem:[%s1 + $0x1a4] sm:$0xf]
  %v381 = vld [vmem:[%s1 + $0x1a8] sm:$0xf]
  %v382 = vld [vmem:[%s1 + $0x1ac] sm:$0xf]
  %v383 = vld [vmem:[%s1 + $0x1b0] sm:$0xf]
  %v384 = vld [vmem:[%s1 + $0x1b4] sm:$0xf]
  %v385 = vld [vmem:[%s1 + $0x1b8] sm:$0xf]
  %v386 = vld [vmem:[%s1 + $0x1bc] sm:$0xf]
  %v387 = vld [vmem:[%s1 + $0x1c0] sm:$0xf]
  %v388 = vld [vmem:[%s1 + $0x1c4] sm:$0xf]
  %v389 = vld [vmem:[%s1 + $0x1c8] sm:$0xf]
  %v390 = vld [vmem:[%s1 + $0x1cc] sm:$0xf]
  %v391 = vld [vmem:[%s1 + $0x1d0] sm:$0xf]
  %v392 = vld [vmem:[%s1 + $0x1d4] sm:$0xf]
  %v393 = vld [vmem:[%s1 + $0x1d8] sm:$0xf]
  %v394 = vld [vmem:[%s1 + $0x1dc] sm:$0xf]
  %v395 = vld [vmem:[%s1 + $0x1e0] sm:$0xf]
  %v396 = vld [vmem:[%s1 + $0x1e4] sm:$0xf]
  %v397 = vld [vmem:[%s1 + $0x1e8] sm:$0xf]
  %v398 = vld [vmem:[%s1 + $0x1ec] sm:$0xf]
  %v399 = vld [vmem:[%s1 + $0x1f0] sm:$0xf]
  %v400 = vld [vmem:[%s1 + $0x1f4] sm:$0xf]
  %v401 = vld [vmem:[%s1 + $0x1f8] sm:$0xf]
  %v402 = vld [vmem:[%s1 + $0x1fc] sm:$0xf]
  %v403 = vld [vmem:[%s1 + $0x200] sm:$0xf]
  %v404 = vld [vmem:[%s1 + $0x204] sm:$0xf]
  %v405 = vld [vmem:[%s1 + $0x208] sm:$0xf]
  %v406 = vld [vmem:[%s1 + $0x20c] sm:$0xf]
  %v407 = vld [vmem:[%s1 + $0x210] sm:$0xf]
  %v408 = vld [vmem:[%s1 + $0x214] sm:$0xf]
  %v409 = vld [vmem:[%s1 + $0x218] sm:$0xf]
  %v410 = vld [vmem:[%s1 + $0x21c] sm:$0xf]
  %v411 = vld [vmem:[%s1 + $0x220] sm:$0xf]
  %v412 = vld [vmem:[%s1 + $0x224] sm:$0xf]
  %v413 = vld [vmem:[%s1 + $0x228] sm:$0xf]
  %v414 = vld [vmem:[%s1 + $0x22c] sm:$0xf]
  %v415 = vld [vmem:[%s1 + $0x230] sm:$0xf]
  %v416 = vld [vmem:[%s1 + $0x234] sm:$0xf]
  %v417 = vld [vmem:[%s1 + $0x238] sm:$0xf]
  %v418 = vld [vmem:[%s1 + $0x23c] sm:$0xf]
  %v419 = vld [vmem:[%s1 + $0x240] sm:$0xf]
  %v420 = vld [vmem:[%s1 + $0x244] sm:$0xf]
  %v421 = vld [vmem:[%s1 + $0x248] sm:$0xf]
  %v422 = vld [vmem:[%s1 + $0x24c] sm:$0xf]
  %v423 = vld [vmem:[%s1 + $0x250] sm:$0xf]
  %v424 = vld [vmem:[%s1 + $0x254] sm:$0xf]
  %v425 = vld [vmem:[%s1 + $0x258] sm:$0xf]
  %v426 = vld [vmem:[%s1 + $0x25c] sm:$0xf]
  %v427 = vld [vmem:[%s1 + $0x260] sm:$0xf]
  %v428 = vld [vmem:[%s1 + $0x264] sm:$0xf]
  %v429 = vld [vmem:[%s1 + $0x268] sm:$0xf]
  %v430 = vld [vmem:[%s1 + $0x26c] sm:$0xf]
  %v431 = vld [vmem:[%s1 + $0x270] sm:$0xf]
  %v432 = vld [vmem:[%s1 + $0x274] sm:$0xf]
  %v433 = vld [vmem:[%s1 + $0x278] sm:$0xf]
  %v434 = vld [vmem:[%s1 + $0x27c] sm:$0xf]
  %v435 = vld [vmem:[%s1 + $0x280] sm:$0xf]
  %v436 = vld [vmem:[%s1 + $0x284] sm:$0xf]
  %v437 = vld [vmem:[%s1 + $0x288] sm:$0xf]
  %v438 = vld [vmem:[%s1 + $0x28c] sm:$0xf]
  %v439 = vld [vmem:[%s1 + $0x290] sm:$0xf]
  %v440 = vld [vmem:[%s1 + $0x294] sm:$0xf]
  %v441 = vld [vmem:[%s1 + $0x298] sm:$0xf]
  %v442 = vld [vmem:[%s1 + $0x29c] sm:$0xf]
  %v443 = vld [vmem:[%s1 + $0x2a0] sm:$0xf]
  %v444 = vld [vmem:[%s1 + $0x2a4] sm:$0xf]
  %v445 = vld [vmem:[%s1 + $0x2a8] sm:$0xf]
  %v446 = vld [vmem:[%s1 + $0x2ac] sm:$0xf]
  %v447 = vld [vmem:[%s1 + $0x2b0] sm:$0xf]
  %v448 = vld [vmem:[%s1 + $0x2b4] sm:$0xf]
  %v449 = vld [vmem:[%s1 + $0x2b8] sm:$0xf]
  %v450 = vld [vmem:[%s1 + $0x2bc] sm:$0xf]
  %v451 = vld [vmem:[%s1 + $0x2c0] sm:$0xf]
  %v452 = vld [vmem:[%s1 + $0x2c4] sm:$0xf]
  %v453 = vld [vmem:[%s1 + $0x2c8] sm:$0xf]
  %v454 = vld [vmem:[%s1 + $0x2cc] sm:$0xf]
  %v455 = vld [vmem:[%s1 + $0x2d0] sm:$0xf]
  %v456 = vld [vmem:[%s1 + $0x2d4] sm:$0xf]
  %v457 = vld [vmem:[%s1 + $0x2d8] sm:$0xf]
  %v458 = vld [vmem:[%s1 + $0x2dc] sm:$0xf]
  %v459 = vld [vmem:[%s1 + $0x2e0] sm:$0xf]
  %v460 = vld [vmem:[%s1 + $0x2e4] sm:$0xf]
  %v461 = vld [vmem:[%s1 + $0x2e8] sm:$0xf]
  %v462 = vld [vmem:[%s1 + $0x2ec] sm:$0xf]
  %v463 = vld [vmem:[%s1 + $0x2f0] sm:$0xf]
  %v464 = vld [vmem:[%s1 + $0x2f4] sm:$0xf]
  %v465 = vld [vmem:[%s1 + $0x2f8] sm:$0xf]
  %v466 = vld [vmem:[%s1 + $0x2fc] sm:$0xf]
  %v467 = vld [vmem:[%s1 + $0x300] sm:$0xf]
  %v468 = vld [vmem:[%s1 + $0x304] sm:$0xf]
  %v469 = vld [vmem:[%s1 + $0x308] sm:$0xf]
  %v470 = vld [vmem:[%s1 + $0x30c] sm:$0xf]
  %v471 = vld [vmem:[%s1 + $0x310] sm:$0xf]
  %v472 = vld [vmem:[%s1 + $0x314] sm:$0xf]
  %v473 = vld [vmem:[%s1 + $0x318] sm:$0xf]
  %v474 = vld [vmem:[%s1 + $0x31c] sm:$0xf]
  %v475 = vld [vmem:[%s1 + $0x320] sm:$0xf]
  %v476 = vld [vmem:[%s1 + $0x324] sm:$0xf]
  %v477 = vld [vmem:[%s1 + $0x328] sm:$0xf]
  %v478 = vld [vmem:[%s1 + $0x32c] sm:$0xf]
  %v479 = vld [vmem:[%s1 + $0x330] sm:$0xf]
  %v480 = vld [vmem:[%s1 + $0x334] sm:$0xf]
  %v481 = vld [vmem:[%s1 + $0x338] sm:$0xf]
  %v482 = vld [vmem:[%s1 + $0x33c] sm:$0xf]
  %v483 = vld [vmem:[%s1 + $0x340] sm:$0xf]
  %v484 = vld [vmem:[%s1 + $0x344] sm:$0xf]
  %v485 = vld [vmem:[%s1 + $0x348] sm:$0xf]
  %v486 = vld [vmem:[%s1 + $0x34c] sm:$0xf]
  %v487 = vld [vmem:[%s1 + $0x350] sm:$0xf]
  %v488 = vld [vmem:[%s1 + $0x354] sm:$0xf]
  %v489 = vld [vmem:[%s1 + $0x358] sm:$0xf]
  %v490 = vld [vmem:[%s1 + $0x35c] sm:$0xf]
  %v491 = vld [vmem:[%s1 + $0x360] sm:$0xf]
  %v492 = vld [vmem:[%s1 + $0x364] sm:$0xf]
  %v493 = vld [vmem:[%s1 + $0x368] sm:$0xf]
  %v494 = vld [vmem:[%s1 + $0x36c] sm:$0xf]
  %v495 = vld [vmem:[%s1 + $0x370] sm:$0xf]
  %v496 = vld [vmem:[%s1 + $0x374] sm:$0xf]
  %v497 = vld [vmem:[%s1 + $0x378] sm:$0xf]
  %v498 = vld [vmem:[%s1 + $0x37c] sm:$0xf]
  %v499 = vld [vmem:[%s1 + $0x380] sm:$0xf]
  %v500 = vld [vmem:[%s1 + $0x384] sm:$0xf]
  %v501 = vld [vmem:[%s1 + $0x388] sm:$0xf]
  %v502 = vld [vmem:[%s1 + $0x38c] sm:$0xf]
  %v503 = vld [vmem:[%s1 + $0x390] sm:$0xf]
  %v504 = vld [vmem:[%s1 + $0x394] sm:$0xf]
  %v505 = vld [vmem:[%s1 + $0x398] sm:$0xf]
  %v506 = vld [vmem:[%s1 + $0x39c] sm:$0xf]
  %v507 = vld [vmem:[%s1 + $0x3a0] sm:$0xf]
  %v508 = vld [vmem:[%s1 + $0x3a4] sm:$0xf]
  %v509 = vld [vmem:[%s1 + $0x3a8] sm:$0xf]
  %v510 = vld [vmem:[%s1 + $0x3ac] sm:$0xf]
  %v511 = vld [vmem:[%s1 + $0x3b0] sm:$0xf]
  %v512 = vld [vmem:[%s1 + $0x3b4] sm:$0xf]
  %v513 = vld [vmem:[%s1 + $0x3b8] sm:$0xf]
  %v514 = vld [vmem:[%s1 + $0x3bc] sm:$0xf]
  %v515 = vld [vmem:[%s1 + $0x3c0] sm:$0xf]
  %v516 = vld [vmem:[%s1 + $0x3c4] sm:$0xf]
  %v517 = vld [vmem:[%s1 + $0x3c8] sm:$0xf]
  %v518 = vld [vmem:[%s1 + $0x3cc] sm:$0xf]
  %v519 = vld [vmem:[%s1 + $0x3d0] sm:$0xf]
  %v520 = vld [vmem:[%s1 + $0x3d4] sm:$0xf]
  %v521 = vld [vmem:[%s1 + $0x3d8] sm:$0xf]
  %v522 = vld [vmem:[%s1 + $0x3dc] sm:$0xf]
  %v523 = vld [vmem:[%s1 + $0x3e0] sm:$0xf]
  %v524 = vld [vmem:[%s1 + $0x3e4] sm:$0xf]
  %v525 = vld [vmem:[%s1 + $0x3e8] sm:$0xf]
  %v526 = vld [vmem:[%s1 + $0x3ec] sm:$0xf]
  %v527 = vld [vmem:[%s1 + $0x3f0] sm:$0xf]
  %v528 = vld [vmem:[%s1 + $0x3f4] sm:$0xf]
  %v529 = vld [vmem:[%s1 + $0x3f8] sm:$0xf]
  %v530 = vld [vmem:[%s1 + $0x3fc] sm:$0xf]
  %v531 = vld [vmem:[%s1 + $0x400] sm:$0xf]
  %v532 = vld [vmem:[%s1 + $0x404] sm:$0xf]
  %v533 = vld [vmem:[%s1 + $0x408] sm:$0xf]
  %v534 = vld [vmem:[%s1 + $0x40c] sm:$0xf]
  %v535 = vld [vmem:[%s1 + $0x410] sm:$0xf]
  %v536 = vld [vmem:[%s1 + $0x414] sm:$0xf]
  %v537 = vld [vmem:[%s1 + $0x418] sm:$0xf]
  %v538 = vld [vmem:[%s1 + $0x41c] sm:$0xf]
  %v539 = vld [vmem:[%s1 + $0x420] sm:$0xf]
  %v540 = vld [vmem:[%s1 + $0x424] sm:$0xf]
  %v541 = vld [vmem:[%s1 + $0x428] sm:$0xf]
  %v542 = vld [vmem:[%s1 + $0x42c] sm:$0xf]
  %v543 = vld [vmem:[%s1 + $0x430] sm:$0xf]
  %v544 = vld [vmem:[%s1 + $0x434] sm:$0xf]
  %v545 = vld [vmem:[%s1 + $0x438] sm:$0xf]
  %v546 = vld [vmem:[%s1 + $0x43c] sm:$0xf]
  %v547 = vld [vmem:[%s1 + $0x440] sm:$0xf]
  %v548 = vld [vmem:[%s1 + $0x444] sm:$0xf]
  %v549 = vld [vmem:[%s1 + $0x448] sm:$0xf]
  %v550 = vld [vmem:[%s1 + $0x44c] sm:$0xf]
  %v551 = vld [vmem:[%s1 + $0x450] sm:$0xf]
  %v552 = vld [vmem:[%s1 + $0x454] sm:$0xf]
  %v553 = vld [vmem:[%s1 + $0x458] sm:$0xf]
  %v554 = vld [vmem:[%s1 + $0x45c] sm:$0xf]
  %v555 = vld [vmem:[%s1 + $0x460] sm:$0xf]
  %v556 = vld [vmem:[%s1 + $0x464] sm:$0xf]
  %v557 = vld [vmem:[%s1 + $0x468] sm:$0xf]
  %v558 = vld [vmem:[%s1 + $0x46c] sm:$0xf]
  %v559 = vld [vmem:[%s1 + $0x470] sm:$0xf]
  %v560 = vld [vmem:[%s1 + $0x474] sm:$0xf]
  %v561 = vld [vmem:[%s1 + $0x478] sm:$0xf]
  %v562 = vld [vmem:[%s1 + $0x47c] sm:$0xf]
  %v563 = vld [vmem:[%s1 + $0x480] sm:$0xf]
  %v564 = vld [vmem:[%s1 + $0x484] sm:$0xf]
  %v565 = vld [vmem:[%s1 + $0x488] sm:$0xf]
  %v566 = vld [vmem:[%s1 + $0x48c] sm:$0xf]
  %v567 = vld [vmem:[%s1 + $0x490] sm:$0xf]
  %v568 = vld [vmem:[%s1 + $0x494] sm:$0xf]
  %v569 = vld [vmem:[%s1 + $0x498] sm:$0xf]
  %v570 = vld [vmem:[%s1 + $0x49c] sm:$0xf]
  %v571 = vld [vmem:[%s1 + $0x4a0] sm:$0xf]
  %v572 = vld [vmem:[%s1 + $0x4a4] sm:$0xf]
  %v573 = vld [vmem:[%s1 + $0x4a8] sm:$0xf]
  %v574 = vld [vmem:[%s1 + $0x4ac] sm:$0xf]
  %v575 = vld [vmem:[%s1 + $0x4b0] sm:$0xf]
  %v576 = vld [vmem:[%s1 + $0x4b4] sm:$0xf]
  %v577 = vld [vmem:[%s1 + $0x4b8] sm:$0xf]
  %v578 = vld [vmem:[%s1 + $0x4bc] sm:$0xf]
  %v579 = vld [vmem:[%s1 + $0x4c0] sm:$0xf]
  %v580 = vld [vmem:[%s1 + $0x4c4] sm:$0xf]
  %v581 = vld [vmem:[%s1 + $0x4c8] sm:$0xf]
  %v582 = vld [vmem:[%s1 + $0x4cc] sm:$0xf]
  %v583 = vld [vmem:[%s1 + $0x4d0] sm:$0xf]
  %v584 = vld [vmem:[%s1 + $0x4d4] sm:$0xf]
  %v585 = vld [vmem:[%s1 + $0x4d8] sm:$0xf]
  %v586 = vld [vmem:[%s1 + $0x4dc] sm:$0xf]
  %v587 = vld [vmem:[%s1 + $0x4e0] sm:$0xf]
  %v588 = vld [vmem:[%s1 + $0x4e4] sm:$0xf]
  %v589 = vld [vmem:[%s1 + $0x4e8] sm:$0xf]
  %v590 = vld [vmem:[%s1 + $0x4ec] sm:$0xf]
  %v591 = vld [vmem:[%s1 + $0x4f0] sm:$0xf]
  %v592 = vld [vmem:[%s1 + $0x4f4] sm:$0xf]
  %v593 = vld [vmem:[%s1 + $0x4f8] sm:$0xf]
  %v594 = vld [vmem:[%s1 + $0x4fc] sm:$0xf]
  %v595 = vld [vmem:[%s1 + $0x500] sm:$0xf]
  %v596 = vld [vmem:[%s1 + $0x504] sm:$0xf]
  %v597 = vld [vmem:[%s1 + $0x508] sm:$0xf]
  %v598 = vld [vmem:[%s1 + $0x50c] sm:$0xf]
  %v599 = vld [vmem:[%s1 + $0x510] sm:$0xf]
  %v600 = vld [vmem:[%s1 + $0x514] sm:$0xf]
  %v601 = vld [vmem:[%s1 + $0x518] sm:$0xf]
  %v602 = vld [vmem:[%s1 + $0x51c] sm:$0xf]
  %v603 = vld [vmem:[%s1 + $0x520] sm:$0xf]
  %v604 = vld [vmem:[%s1 + $0x524] sm:$0xf]
  %v605 = vld [vmem:[%s1 + $0x528] sm:$0xf]
  %v606 = vld [vmem:[%s1 + $0x52c] sm:$0xf]
  %v607 = vld [vmem:[%s1 + $0x530] sm:$0xf]
  %v608 = vld [vmem:[%s1 + $0x534] sm:$0xf]
  %v609 = vld [vmem:[%s1 + $0x538] sm:$0xf]
  %v610 = vld [vmem:[%s1 + $0x53c] sm:$0xf]
  %v611 = vld [vmem:[%s1 + $0x540] sm:$0xf]
  %v612 = vld [vmem:[%s1 + $0x544] sm:$0xf]
  %v613 = vld [vmem:[%s1 + $0x548] sm:$0xf]
  %v614 = vld [vmem:[%s1 + $0x54c] sm:$0xf]
  %v615 = vld [vmem:[%s1 + $0x550] sm:$0xf]
  %v616 = vld [vmem:[%s1 + $0x554] sm:$0xf]
  %v617 = vld [vmem:[%s1 + $0x558] sm:$0xf]
  %v618 = vld [vmem:[%s1 + $0x55c] sm:$0xf]
  %v619 = vld [vmem:[%s1 + $0x560] sm:$0xf]
  %v620 = vld [vmem:[%s1 + $0x564] sm:$0xf]
  %v621 = vld [vmem:[%s1 + $0x568] sm:$0xf]
  %v622 = vld [vmem:[%s1 + $0x56c] sm:$0xf]
  %v623 = vld [vmem:[%s1 + $0x570] sm:$0xf]
  %v624 = vld [vmem:[%s1 + $0x574] sm:$0xf]
  %v625 = vld [vmem:[%s1 + $0x578] sm:$0xf]
  %v626 = vld [vmem:[%s1 + $0x57c] sm:$0xf]
  %v627 = vld [vmem:[%s1 + $0x580] sm:$0xf]
  %v628 = vld [vmem:[%s1 + $0x584] sm:$0xf]
  %v629 = vld [vmem:[%s1 + $0x588] sm:$0xf]
  %v630 = vld [vmem:[%s1 + $0x58c] sm:$0xf]
  %v631 = vld [vmem:[%s1 + $0x590] sm:$0xf]
  %v632 = vld [vmem:[%s1 + $0x594] sm:$0xf]
  %v633 = vld [vmem:[%s1 + $0x598] sm:$0xf]
  %v634 = vld [vmem:[%s1 + $0x59c] sm:$0xf]
  %v635 = vld [vmem:[%s1 + $0x5a0] sm:$0xf]
  %v636 = vld [vmem:[%s1 + $0x5a4] sm:$0xf]
  %v637 = vld [vmem:[%s1 + $0x5a8] sm:$0xf]
  %v638 = vld [vmem:[%s1 + $0x5ac] sm:$0xf]
  %v639 = vld [vmem:[%s1 + $0x5b0] sm:$0xf]
  %v640 = vld [vmem:[%s1 + $0x5b4] sm:$0xf]
  %v641 = vld [vmem:[%s1 + $0x5b8] sm:$0xf]
  %v642 = vld [vmem:[%s1 + $0x5bc] sm:$0xf]
  %v643 = vld [vmem:[%s1 + $0x5c0] sm:$0xf]
  %v644 = vld [vmem:[%s1 + $0x5c4] sm:$0xf]
  %v645 = vld [vmem:[%s1 + $0x5c8] sm:$0xf]
  %v646 = vld [vmem:[%s1 + $0x5cc] sm:$0xf]
  %v647 = vld [vmem:[%s1 + $0x5d0] sm:$0xf]
  %v648 = vld [vmem:[%s1 + $0x5d4] sm:$0xf]
  %v649 = vld [vmem:[%s1 + $0x5d8] sm:$0xf]
  %v650 = vld [vmem:[%s1 + $0x5dc] sm:$0xf]
  %v651 = vld [vmem:[%s1 + $0x5e0] sm:$0xf]
  %v652 = vld [vmem:[%s1 + $0x5e4] sm:$0xf]
  %v653 = vld [vmem:[%s1 + $0x5e8] sm:$0xf]
  %v654 = vld [vmem:[%s1 + $0x5ec] sm:$0xf]
  %v655 = vld [vmem:[%s1 + $0x5f0] sm:$0xf]
  %v656 = vld [vmem:[%s1 + $0x5f4] sm:$0xf]
  %v657 = vld [vmem:[%s1 + $0x5f8] sm:$0xf]
  %v658 = vld [vmem:[%s1 + $0x5fc] sm:$0xf]
  %v659 = vld [vmem:[%s1 + $0x600] sm:$0xf]
  %v660 = vld [vmem:[%s1 + $0x604] sm:$0xf]
  %v661 = vld [vmem:[%s1 + $0x608] sm:$0xf]
  %v662 = vld [vmem:[%s1 + $0x60c] sm:$0xf]
  %v663 = vld [vmem:[%s1 + $0x610] sm:$0xf]
  %v664 = vld [vmem:[%s1 + $0x614] sm:$0xf]
  %v665 = vld [vmem:[%s1 + $0x618] sm:$0xf]
  %v666 = vld [vmem:[%s1 + $0x61c] sm:$0xf]
  %v667 = vld [vmem:[%s1 + $0x620] sm:$0xf]
  %v668 = vld [vmem:[%s1 + $0x624] sm:$0xf]
  %v669 = vld [vmem:[%s1 + $0x628] sm:$0xf]
  %v670 = vld [vmem:[%s1 + $0x62c] sm:$0xf]
  %v671 = vld [vmem:[%s1 + $0x630] sm:$0xf]
  %v672 = vld [vmem:[%s1 + $0x634] sm:$0xf]
  %v673 = vld [vmem:[%s1 + $0x638] sm:$0xf]
  %v674 = vld [vmem:[%s1 + $0x63c] sm:$0xf]
  %v675 = vld [vmem:[%s1 + $0x640] sm:$0xf]
  %v676 = vld [vmem:[%s1 + $0x644] sm:$0xf]
  %v677 = vld [vmem:[%s1 + $0x648] sm:$0xf]
  %v678 = vld [vmem:[%s1 + $0x64c] sm:$0xf]
  %v679 = vld [vmem:[%s1 + $0x650] sm:$0xf]
  %v680 = vld [vmem:[%s1 + $0x654] sm:$0xf]
  %v681 = vld [vmem:[%s1 + $0x658] sm:$0xf]
  %v682 = vld [vmem:[%s1 + $0x65c] sm:$0xf]
  %v683 = vld [vmem:[%s1 + $0x660] sm:$0xf]
  %v684 = vld [vmem:[%s1 + $0x664] sm:$0xf]
  %v685 = vld [vmem:[%s1 + $0x668] sm:$0xf]
  %v686 = vld [vmem:[%s1 + $0x66c] sm:$0xf]
  %v687 = vld [vmem:[%s1 + $0x670] sm:$0xf]
  %v688 = vld [vmem:[%s1 + $0x674] sm:$0xf]
  %v689 = vld [vmem:[%s1 + $0x678] sm:$0xf]
  %v690 = vld [vmem:[%s1 + $0x67c] sm:$0xf]
  %v691 = vld [vmem:[%s1 + $0x680] sm:$0xf]
  %v692 = vld [vmem:[%s1 + $0x684] sm:$0xf]
  %v693 = vld [vmem:[%s1 + $0x688] sm:$0xf]
  %v694 = vld [vmem:[%s1 + $0x68c] sm:$0xf]
  %v695 = vld [vmem:[%s1 + $0x690] sm:$0xf]
  %v696 = vld [vmem:[%s1 + $0x694] sm:$0xf]
  %v697 = vld [vmem:[%s1 + $0x698] sm:$0xf]
  %v698 = vld [vmem:[%s1 + $0x69c] sm:$0xf]
  %v699 = vld [vmem:[%s1 + $0x6a0] sm:$0xf]
  %v700 = vld [vmem:[%s1 + $0x6a4] sm:$0xf]
  %v701 = vld [vmem:[%s1 + $0x6a8] sm:$0xf]
  %v702 = vld [vmem:[%s1 + $0x6ac] sm:$0xf]
  %v703 = vld [vmem:[%s1 + $0x6b0] sm:$0xf]
  %v704 = vld [vmem:[%s1 + $0x6b4] sm:$0xf]
  %v705 = vld [vmem:[%s1 + $0x6b8] sm:$0xf]
  %v706 = vld [vmem:[%s1 + $0x6bc] sm:$0xf]
  %v707 = vld [vmem:[%s1 + $0x6c0] sm:$0xf]
  %v708 = vld [vmem:[%s1 + $0x6c4] sm:$0xf]
  %v709 = vld [vmem:[%s1 + $0x6c8] sm:$0xf]
  %v710 = vld [vmem:[%s1 + $0x6cc] sm:$0xf]
  %v711 = vld [vmem:[%s1 + $0x6d0] sm:$0xf]
  %v712 = vld [vmem:[%s1 + $0x6d4] sm:$0xf]
  %v713 = vld [vmem:[%s1 + $0x6d8] sm:$0xf]
  %v714 = vld [vmem:[%s1 + $0x6dc] sm:$0xf]
  %v715 = vld [vmem:[%s1 + $0x6e0] sm:$0xf]
  %v716 = vld [vmem:[%s1 + $0x6e4] sm:$0xf]
  %v717 = vld [vmem:[%s1 + $0x6e8] sm:$0xf]
  %v718 = vld [vmem:[%s1 + $0x6ec] sm:$0xf]
  %v719 = vld [vmem:[%s1 + $0x6f0] sm:$0xf]
  %v720 = vld [vmem:[%s1 + $0x6f4] sm:$0xf]
  %v721 = vld [vmem:[%s1 + $0x6f8] sm:$0xf]
  %v722 = vld [vmem:[%s1 + $0x6fc] sm:$0xf]
  %v723 = vld [vmem:[%s1 + $0x700] sm:$0xf]
  %v724 = vld [vmem:[%s1 + $0x704] sm:$0xf]
  %v725 = vld [vmem:[%s1 + $0x708] sm:$0xf]
  %v726 = vld [vmem:[%s1 + $0x70c] sm:$0xf]
  %v727 = vld [vmem:[%s1 + $0x710] sm:$0xf]
  %v728 = vld [vmem:[%s1 + $0x714] sm:$0xf]
  %v729 = vld [vmem:[%s1 + $0x718] sm:$0xf]
  %v730 = vld [vmem:[%s1 + $0x71c] sm:$0xf]
  %v731 = vld [vmem:[%s1 + $0x720] sm:$0xf]
  %v732 = vld [vmem:[%s1 + $0x724] sm:$0xf]
  %v733 = vld [vmem:[%s1 + $0x728] sm:$0xf]
  %v734 = vld [vmem:[%s1 + $0x72c] sm:$0xf]
  %v735 = vld [vmem:[%s1 + $0x730] sm:$0xf]
  %v736 = vld [vmem:[%s1 + $0x734] sm:$0xf]
  %v737 = vld [vmem:[%s1 + $0x738] sm:$0xf]
  %v738 = vld [vmem:[%s1 + $0x73c] sm:$0xf]
  %v739 = vld [vmem:[%s1 + $0x740] sm:$0xf]
  %v740 = vld [vmem:[%s1 + $0x744] sm:$0xf]
  %v741 = vld [vmem:[%s1 + $0x748] sm:$0xf]
  %v742 = vld [vmem:[%s1 + $0x74c] sm:$0xf]
  %v743 = vld [vmem:[%s1 + $0x750] sm:$0xf]
  %v744 = vld [vmem:[%s1 + $0x754] sm:$0xf]
  %v745 = vld [vmem:[%s1 + $0x758] sm:$0xf]
  %v746 = vld [vmem:[%s1 + $0x75c] sm:$0xf]
  %v747 = vld [vmem:[%s1 + $0x760] sm:$0xf]
  %v748 = vld [vmem:[%s1 + $0x764] sm:$0xf]
  %v749 = vld [vmem:[%s1 + $0x768] sm:$0xf]
  %v750 = vld [vmem:[%s1 + $0x76c] sm:$0xf]
  %v751 = vld [vmem:[%s1 + $0x770] sm:$0xf]
  %v752 = vld [vmem:[%s1 + $0x774] sm:$0xf]
  %v753 = vld [vmem:[%s1 + $0x778] sm:$0xf]
  %v754 = vld [vmem:[%s1 + $0x77c] sm:$0xf]
  %v755 = vld [vmem:[%s1 + $0x780] sm:$0xf]
  %v756 = vld [vmem:[%s1 + $0x784] sm:$0xf]
  %v757 = vld [vmem:[%s1 + $0x788] sm:$0xf]
  %v758 = vld [vmem:[%s1 + $0x78c] sm:$0xf]
  %v759 = vld [vmem:[%s1 + $0x790] sm:$0xf]
  %v760 = vld [vmem:[%s1 + $0x794] sm:$0xf]
  %v761 = vld [vmem:[%s1 + $0x798] sm:$0xf]
  %v762 = vld [vmem:[%s1 + $0x79c] sm:$0xf]
  %v763 = vld [vmem:[%s1 + $0x7a0] sm:$0xf]
  %v764 = vld [vmem:[%s1 + $0x7a4] sm:$0xf]
  %v765 = vld [vmem:[%s1 + $0x7a8] sm:$0xf]
  %v766 = vld [vmem:[%s1 + $0x7ac] sm:$0xf]
  %v767 = vld [vmem:[%s1 + $0x7b0] sm:$0xf]
  %v768 = vld [vmem:[%s1 + $0x7b4] sm:$0xf]
  %v769 = vld [vmem:[%s1 + $0x7b8] sm:$0xf]
  %v770 = vld [vmem:[%s1 + $0x7bc] sm:$0xf]
  %v771 = vld [vmem:[%s1 + $0x7c0] sm:$0xf]
  %v772 = vld [vmem:[%s1 + $0x7c4] sm:$0xf]
  %v773 = vld [vmem:[%s1 + $0x7c8] sm:$0xf]
  %v774 = vld [vmem:[%s1 + $0x7cc] sm:$0xf]
  %v775 = vld [vmem:[%s1 + $0x7d0] sm:$0xf]
  %v776 = vld [vmem:[%s1 + $0x7d4] sm:$0xf]
  %v777 = vld [vmem:[%s1 + $0x7d8] sm:$0xf]
  %v778 = vld [vmem:[%s1 + $0x7dc] sm:$0xf]
  %v779 = vld [vmem:[%s1 + $0x7e0] sm:$0xf]
  %v780 = vld [vmem:[%s1 + $0x7e4] sm:$0xf]
  %v781 = vld [vmem:[%s1 + $0x7e8] sm:$0xf]
  %v782 = vld [vmem:[%s1 + $0x7ec] sm:$0xf]
  %v783 = vld [vmem:[%s1 + $0x7f0] sm:$0xf]
  %v784 = vld [vmem:[%s1 + $0x7f4] sm:$0xf]
  %v785 = vld [vmem:[%s1 + $0x7f8] sm:$0xf]
  %v786 = vld [vmem:[%s1 + $0x7fc] sm:$0xf]
  %v787 = vld [vmem:[%s1 + $0x800] sm:$0xf]
  %v788 = vld [vmem:[%s1 + $0x804] sm:$0xf]
  %v789 = vld [vmem:[%s1 + $0x808] sm:$0xf]
  %v790 = vld [vmem:[%s1 + $0x80c] sm:$0xf]
  %v791 = vld [vmem:[%s1 + $0x810] sm:$0xf]
  %v792 = vld [vmem:[%s1 + $0x814] sm:$0xf]
  %v793 = vld [vmem:[%s1 + $0x818] sm:$0xf]
  %v794 = vld [vmem:[%s1 + $0x81c] sm:$0xf]
  %v795 = vld [vmem:[%s1 + $0x820] sm:$0xf]
  %v796 = vld [vmem:[%s1 + $0x824] sm:$0xf]
  %v797 = vld [vmem:[%s1 + $0x828] sm:$0xf]
  %v798 = vld [vmem:[%s1 + $0x82c] sm:$0xf]
  %v799 = vld [vmem:[%s1 + $0x830] sm:$0xf]
  %v800 = vld [vmem:[%s1 + $0x834] sm:$0xf]
  %v801 = vld [vmem:[%s1 + $0x838] sm:$0xf]
  %v802 = vld [vmem:[%s1 + $0x83c] sm:$0xf]
  %v803 = vld [vmem:[%s1 + $0x840] sm:$0xf]
  %v804 = vld [vmem:[%s1 + $0x844] sm:$0xf]
  %v805 = vld [vmem:[%s1 + $0x848] sm:$0xf]
  %v806 = vld [vmem:[%s1 + $0x84c] sm:$0xf]
  %v807 = vld [vmem:[%s1 + $0x850] sm:$0xf]
  %v808 = vld [vmem:[%s1 + $0x854] sm:$0xf]
  %v809 = vld [vmem:[%s1 + $0x858] sm:$0xf]
  %v810 = vld [vmem:[%s1 + $0x85c] sm:$0xf]
  %v811 = vld [vmem:[%s1 + $0x860] sm:$0xf]
  %v812 = vld [vmem:[%s1 + $0x864] sm:$0xf]
  %v813 = vld [vmem:[%s1 + $0x868] sm:$0xf]
  %v814 = vld [vmem:[%s1 + $0x86c] sm:$0xf]
  %v815 = vld [vmem:[%s1 + $0x870] sm:$0xf]
  %v816 = vld [vmem:[%s1 + $0x874] sm:$0xf]
  %v817 = vld [vmem:[%s1 + $0x878] sm:$0xf]
  %v818 = vld [vmem:[%s1 + $0x87c] sm:$0xf]
  %v819 = vld [vmem:[%s1 + $0x880] sm:$0xf]
  %v820 = vld [vmem:[%s1 + $0x884] sm:$0xf]
  %v821 = vld [vmem:[%s1 + $0x888] sm:$0xf]
  %v822 = vld [vmem:[%s1 + $0x88c] sm:$0xf]
  %v823 = vld [vmem:[%s1 + $0x890] sm:$0xf]
  %v824 = vld [vmem:[%s1 + $0x894] sm:$0xf]
  %v825 = vld [vmem:[%s1 + $0x898] sm:$0xf]
  %v826 = vld [vmem:[%s1 + $0x89c] sm:$0xf]
  %v827 = vld [vmem:[%s1 + $0x8a0] sm:$0xf]
  %v828 = vld [vmem:[%s1 + $0x8a4] sm:$0xf]
  %v829 = vld [vmem:[%s1 + $0x8a8] sm:$0xf]
  %v830 = vld [vmem:[%s1 + $0x8ac] sm:$0xf]
  %v831 = vld [vmem:[%s1 + $0x8b0] sm:$0xf]
  %v832 = vld [vmem:[%s1 + $0x8b4] sm:$0xf]
  %v833 = vld [vmem:[%s1 + $0x8b8] sm:$0xf]
  %v834 = vld [vmem:[%s1 + $0x8bc] sm:$0xf]
  %v835 = vld [vmem:[%s1 + $0x8c0] sm:$0xf]
  %v836 = vld [vmem:[%s1 + $0x8c4] sm:$0xf]
  %v837 = vld [vmem:[%s1 + $0x8c8] sm:$0xf]
  %v838 = vld [vmem:[%s1 + $0x8cc] sm:$0xf]
  %v839 = vld [vmem:[%s1 + $0x8d0] sm:$0xf]
  %v840 = vld [vmem:[%s1 + $0x8d4] sm:$0xf]
  %v841 = vld [vmem:[%s1 + $0x8d8] sm:$0xf]
  %v842 = vld [vmem:[%s1 + $0x8dc] sm:$0xf]
  %v843 = vld [vmem:[%s1 + $0x8e0] sm:$0xf]
  %v844 = vld [vmem:[%s1 + $0x8e4] sm:$0xf]
  %v845 = vld [vmem:[%s1 + $0x8e8] sm:$0xf]
  %v846 = vld [vmem:[%s1 + $0x8ec] sm:$0xf]
  %v847 = vld [vmem:[%s1 + $0x8f0] sm:$0xf]
  %v848 = vld [vmem:[%s1 + $0x8f4] sm:$0xf]
  %v849 = vld [vmem:[%s1 + $0x8f8] sm:$0xf]
  %v850 = vld [vmem:[%s1 + $0x8fc] sm:$0xf]
  %v1085 = vunpack.c.l.b16 %v41
  %v1086 = vunpack.c.h.b16 %v41
  %v1087 = vunpack.c.l.b16 %v42
  %v1088 = vunpack.c.h.b16 %v42
  %v1089 = vunpack.c.l.b16 %v43
  %v1090 = vunpack.c.h.b16 %v43
  %v1091 = vunpack.c.l.b16 %v44
  %v1092 = vunpack.c.h.b16 %v44
  %v1093 = vunpack.c.l.b16 %v45
  %v1094 = vunpack.c.h.b16 %v45
  %v1095 = vunpack.c.l.b16 %v46
  %v1096 = vunpack.c.h.b16 %v46
  %v1097 = vunpack.c.l.b16 %v47
  %v1098 = vunpack.c.h.b16 %v47
  %v1099 = vunpack.c.l.b16 %v48
  %v1100 = vunpack.c.h.b16 %v48
  %v1101 = vunpack.c.l.b16 %v49
  %v1102 = vunpack.c.h.b16 %v49
  %v1103 = vunpack.c.l.b16 %v50
  %v1104 = vunpack.c.h.b16 %v50
  %v1105 = vunpack.c.l.b16 %v51
  %v1106 = vunpack.c.h.b16 %v51
  %v1107 = vunpack.c.l.b16 %v52
  %v1108 = vunpack.c.h.b16 %v52
  %v1109 = vunpack.c.l.b16 %v53
  %v1110 = vunpack.c.h.b16 %v53
  %v1111 = vunpack.c.l.b16 %v54
  %v1112 = vunpack.c.h.b16 %v54
  %v1113 = vunpack.c.l.b16 %v55
  %v1114 = vunpack.c.h.b16 %v55
  %v1115 = vunpack.c.l.b16 %v56
  %v1116 = vunpack.c.h.b16 %v56
  %v1117 = vunpack.c.l.b16 %v57
  %v1118 = vunpack.c.h.b16 %v57
  %v1119 = vunpack.c.l.b16 %v58
  %v1120 = vunpack.c.h.b16 %v58
  %v1121 = vunpack.c.l.b16 %v59
  %v1122 = vunpack.c.h.b16 %v59
  %v1123 = vunpack.c.l.b16 %v60
  %v1124 = vunpack.c.h.b16 %v60
  %v1125 = vunpack.c.l.b16 %v61
  %v1126 = vunpack.c.h.b16 %v61
  %v1127 = vunpack.c.l.b16 %v62
  %v1128 = vunpack.c.h.b16 %v62
  %v1129 = vunpack.c.l.b16 %v63
  %v1130 = vunpack.c.h.b16 %v63
  %v1131 = vunpack.c.l.b16 %v64
  %v1132 = vunpack.c.h.b16 %v64
  %v1133 = vunpack.c.l.b16 %v65
  %v1134 = vunpack.c.h.b16 %v65
  %v1135 = vunpack.c.l.b16 %v66
  %v1136 = vunpack.c.h.b16 %v66
  %v1137 = vunpack.c.l.b16 %v67
  %v1138 = vunpack.c.h.b16 %v67
  %v1139 = vunpack.c.l.b16 %v68
  %v1140 = vunpack.c.h.b16 %v68
  %v1141 = vunpack.c.l.b16 %v69
  %v1142 = vunpack.c.h.b16 %v69
  %v1143 = vunpack.c.l.b16 %v70
  %v1144 = vunpack.c.h.b16 %v70
  %v1145 = vunpack.c.l.b16 %v71
  %v1146 = vunpack.c.h.b16 %v71
  %v1147 = vunpack.c.l.b16 %v72
  %v1148 = vunpack.c.h.b16 %v72
  %v1149 = vunpack.c.l.b16 %v73
  %v1150 = vunpack.c.h.b16 %v73
  %v1151 = vunpack.c.l.b16 %v74
  %v1152 = vunpack.c.h.b16 %v74
  %v1153 = vunpack.c.l.b16 %v75
  %v1154 = vunpack.c.h.b16 %v75
  %v1155 = vunpack.c.l.b16 %v76
  %v1156 = vunpack.c.h.b16 %v76
  %v1157 = vunpack.c.l.b16 %v77
  %v1158 = vunpack.c.h.b16 %v77
  %v1159 = vunpack.c.l.b16 %v78
  %v1160 = vunpack.c.h.b16 %v78
  %v1161 = vunpack.c.l.b16 %v79
  %v1162 = vunpack.c.h.b16 %v79
  %v1163 = vunpack.c.l.b16 %v80
  %v1164 = vunpack.c.h.b16 %v80
  %v1165 = vunpack.c.l.b16 %v81
  %v1166 = vunpack.c.h.b16 %v81
  %v1167 = vunpack.c.l.b16 %v82
  %v1168 = vunpack.c.h.b16 %v82
  %v1169 = vunpack.c.l.b16 %v83
  %v1170 = vunpack.c.h.b16 %v83
  %v1171 = vunpack.c.l.b16 %v84
  %v1172 = vunpack.c.h.b16 %v84
  %v1173 = vunpack.c.l.b16 %v85
  %v1174 = vunpack.c.h.b16 %v85
  %v1175 = vunpack.c.l.b16 %v86
  %v1176 = vunpack.c.h.b16 %v86
  %v1177 = vunpack.c.l.b16 %v87
  %v1178 = vunpack.c.h.b16 %v87
  %v1179 = vunpack.c.l.b16 %v88
  %v1180 = vunpack.c.h.b16 %v88
  %v1181 = vunpack.c.l.b16 %v89
  %v1182 = vunpack.c.h.b16 %v89
  %v1183 = vunpack.c.l.b16 %v90
  %v1184 = vunpack.c.h.b16 %v90
  %v1185 = vunpack.c.l.b16 %v91
  %v1186 = vunpack.c.h.b16 %v91
  %v1187 = vunpack.c.l.b16 %v92
  %v1188 = vunpack.c.h.b16 %v92
  %v1189 = vunpack.c.l.b16 %v93
  %v1190 = vunpack.c.h.b16 %v93
  %v1191 = vunpack.c.l.b16 %v94
  %v1192 = vunpack.c.h.b16 %v94
  %v1193 = vunpack.c.l.b16 %v95
  %v1194 = vunpack.c.h.b16 %v95
  %v1195 = vunpack.c.l.b16 %v96
  %v1196 = vunpack.c.h.b16 %v96
  %v1197 = vunpack.c.l.b16 %v97
  %v1198 = vunpack.c.h.b16 %v97
  %v1199 = vunpack.c.l.b16 %v98
  %v1200 = vunpack.c.h.b16 %v98
  %v1201 = vunpack.c.l.b16 %v99
  %v1202 = vunpack.c.h.b16 %v99
  %v1203 = vunpack.c.l.b16 %v100
  %v1204 = vunpack.c.h.b16 %v100
  %v1205 = vunpack.c.l.b16 %v101
  %v1206 = vunpack.c.h.b16 %v101
  %v1207 = vunpack.c.l.b16 %v102
  %v1208 = vunpack.c.h.b16 %v102
  %v1209 = vunpack.c.l.b16 %v103
  %v1210 = vunpack.c.h.b16 %v103
  %v1211 = vunpack.c.l.b16 %v104
  %v1212 = vunpack.c.h.b16 %v104
  %v1213 = vunpack.c.l.b16 %v105
  %v1214 = vunpack.c.h.b16 %v105
  %v1215 = vunpack.c.l.b16 %v106
  %v1216 = vunpack.c.h.b16 %v106
  %v1217 = vunpack.c.l.b16 %v107
  %v1218 = vunpack.c.h.b16 %v107
  %v1219 = vunpack.c.l.b16 %v108
  %v1220 = vunpack.c.h.b16 %v108
  %v1221 = vunpack.c.l.b16 %v109
  %v1222 = vunpack.c.h.b16 %v109
  %v1223 = vunpack.c.l.b16 %v110
  %v1224 = vunpack.c.h.b16 %v110
  %v1225 = vunpack.c.l.b16 %v111
  %v1226 = vunpack.c.h.b16 %v111
  %v1227 = vunpack.c.l.b16 %v112
  %v1228 = vunpack.c.h.b16 %v112
  %v1229 = vunpack.c.l.b16 %v113
  %v1230 = vunpack.c.h.b16 %v113
  %v1231 = vunpack.c.l.b16 %v114
  %v1232 = vunpack.c.h.b16 %v114
  %v1233 = vunpack.c.l.b16 %v115
  %v1234 = vunpack.c.h.b16 %v115
  %v1235 = vunpack.c.l.b16 %v116
  %v1236 = vunpack.c.h.b16 %v116
  %v1237 = vunpack.c.l.b16 %v117
  %v1238 = vunpack.c.h.b16 %v117
  %v1239 = vunpack.c.l.b16 %v118
  %v1240 = vunpack.c.h.b16 %v118
  %v1241 = vunpack.c.l.b16 %v119
  %v1242 = vunpack.c.h.b16 %v119
  %v1243 = vunpack.c.l.b16 %v120
  %v1244 = vunpack.c.h.b16 %v120
  %v1245 = vunpack.c.l.b16 %v121
  %v1246 = vunpack.c.h.b16 %v121
  %v1247 = vunpack.c.l.b16 %v122
  %v1248 = vunpack.c.h.b16 %v122
  %v1249 = vunpack.c.l.b16 %v123
  %v1250 = vunpack.c.h.b16 %v123
  %v1251 = vunpack.c.l.b16 %v124
  %v1252 = vunpack.c.h.b16 %v124
  %v1253 = vunpack.c.l.b16 %v125
  %v1254 = vunpack.c.h.b16 %v125
  %v1255 = vunpack.c.l.b16 %v126
  %v1256 = vunpack.c.h.b16 %v126
  %v1257 = vunpack.c.l.b16 %v127
  %v1258 = vunpack.c.h.b16 %v127
  %v1259 = vunpack.c.l.b16 %v128
  %v1260 = vunpack.c.h.b16 %v128
  %v1261 = vunpack.c.l.b16 %v129
  %v1262 = vunpack.c.h.b16 %v129
  %v1263 = vunpack.c.l.b16 %v130
  %v1264 = vunpack.c.h.b16 %v130
  %v1265 = vunpack.c.l.b16 %v131
  %v1266 = vunpack.c.h.b16 %v131
  %v1267 = vunpack.c.l.b16 %v132
  %v1268 = vunpack.c.h.b16 %v132
  %v1269 = vunpack.c.l.b16 %v133
  %v1270 = vunpack.c.h.b16 %v133
  %v1271 = vunpack.c.l.b16 %v134
  %v1272 = vunpack.c.h.b16 %v134
  %v1273 = vunpack.c.l.b16 %v135
  %v1274 = vunpack.c.h.b16 %v135
  %v1275 = vunpack.c.l.b16 %v136
  %v1276 = vunpack.c.h.b16 %v136
  %v1277 = vunpack.c.l.b16 %v137
  %v1278 = vunpack.c.h.b16 %v137
  %v1279 = vunpack.c.l.b16 %v138
  %v1280 = vunpack.c.h.b16 %v138
  %v1281 = vunpack.c.l.b16 %v139
  %v1282 = vunpack.c.h.b16 %v139
  %v1283 = vunpack.c.l.b16 %v140
  %v1284 = vunpack.c.h.b16 %v140
  %v1285 = vunpack.c.l.b16 %v141
  %v1286 = vunpack.c.h.b16 %v141
  %v1287 = vunpack.c.l.b16 %v142
  %v1288 = vunpack.c.h.b16 %v142
  %v1289 = vunpack.c.l.b16 %v143
  %v1290 = vunpack.c.h.b16 %v143
  %v1291 = vunpack.c.l.b16 %v144
  %v1292 = vunpack.c.h.b16 %v144
  %v1293 = vunpack.c.l.b16 %v145
  %v1294 = vunpack.c.h.b16 %v145
  %v1295 = vunpack.c.l.b16 %v146
  %v1296 = vunpack.c.h.b16 %v146
  %v1297 = vunpack.c.l.b16 %v147
  %v1298 = vunpack.c.h.b16 %v147
  %v1299 = vunpack.c.l.b16 %v148
  %v1300 = vunpack.c.h.b16 %v148
  %v1301 = vunpack.c.l.b16 %v149
  %v1302 = vunpack.c.h.b16 %v149
  %v1303 = vunpack.c.l.b16 %v150
  %v1304 = vunpack.c.h.b16 %v150
  %v1305 = vunpack.c.l.b16 %v151
  %v1306 = vunpack.c.h.b16 %v151
  %v1307 = vunpack.c.l.b16 %v152
  %v1308 = vunpack.c.h.b16 %v152
  %v1309 = vunpack.c.l.b16 %v153
  %v1310 = vunpack.c.h.b16 %v153
  %v1311 = vunpack.c.l.b16 %v154
  %v1312 = vunpack.c.h.b16 %v154
  %v1313 = vunpack.c.l.b16 %v155
  %v1314 = vunpack.c.h.b16 %v155
  %v1315 = vunpack.c.l.b16 %v156
  %v1316 = vunpack.c.h.b16 %v156
  %v1317 = vunpack.c.l.b16 %v157
  %v1318 = vunpack.c.h.b16 %v157
  %v1319 = vunpack.c.l.b16 %v158
  %v1320 = vunpack.c.h.b16 %v158
  %v1321 = vunpack.c.l.b16 %v159
  %v1322 = vunpack.c.h.b16 %v159
  %v1323 = vunpack.c.l.b16 %v160
  %v1324 = vunpack.c.h.b16 %v160
  %v1325 = vunpack.c.l.b16 %v161
  %v1326 = vunpack.c.h.b16 %v161
  %v1327 = vunpack.c.l.b16 %v162
  %v1328 = vunpack.c.h.b16 %v162
  %v1329 = vunpack.c.l.b16 %v163
  %v1330 = vunpack.c.h.b16 %v163
  %v1331 = vunpack.c.l.b16 %v164
  %v1332 = vunpack.c.h.b16 %v164
  %v1333 = vunpack.c.l.b16 %v165
  %v1334 = vunpack.c.h.b16 %v165
  %v1335 = vunpack.c.l.b16 %v166
  %v1336 = vunpack.c.h.b16 %v166
  %v1337 = vunpack.c.l.b16 %v167
  %v1338 = vunpack.c.h.b16 %v167
  %v1339 = vunpack.c.l.b16 %v168
  %v1340 = vunpack.c.h.b16 %v168
  %v1341 = vunpack.c.l.b16 %v169
  %v1342 = vunpack.c.h.b16 %v169
  %v1343 = vunpack.c.l.b16 %v170
  %v1344 = vunpack.c.h.b16 %v170
  %v1345 = vunpack.c.l.b16 %v171
  %v1346 = vunpack.c.h.b16 %v171
  %v1347 = vunpack.c.l.b16 %v172
  %v1348 = vunpack.c.h.b16 %v172
  %v1349 = vunpack.c.l.b16 %v173
  %v1350 = vunpack.c.h.b16 %v173
  %v1351 = vunpack.c.l.b16 %v174
  %v1352 = vunpack.c.h.b16 %v174
  %v1353 = vunpack.c.l.b16 %v175
  %v1354 = vunpack.c.h.b16 %v175
  %v1355 = vunpack.c.l.b16 %v176
  %v1356 = vunpack.c.h.b16 %v176
  %v1357 = vunpack.c.l.b16 %v177
  %v1358 = vunpack.c.h.b16 %v177
  %v1359 = vunpack.c.l.b16 %v178
  %v1360 = vunpack.c.h.b16 %v178
  %v1361 = vunpack.c.l.b16 %v179
  %v1362 = vunpack.c.h.b16 %v179
  %v1363 = vunpack.c.l.b16 %v180
  %v1364 = vunpack.c.h.b16 %v180
  %v1365 = vunpack.c.l.b16 %v181
  %v1366 = vunpack.c.h.b16 %v181
  %v1367 = vunpack.c.l.b16 %v182
  %v1368 = vunpack.c.h.b16 %v182
  %v1369 = vunpack.c.l.b16 %v183
  %v1370 = vunpack.c.h.b16 %v183
  %v1371 = vunpack.c.l.b16 %v184
  %v1372 = vunpack.c.h.b16 %v184
  %v1373 = vunpack.c.l.b16 %v185
  %v1374 = vunpack.c.h.b16 %v185
  %v1375 = vunpack.c.l.b16 %v186
  %v1376 = vunpack.c.h.b16 %v186
  %v1377 = vunpack.c.l.b16 %v187
  %v1378 = vunpack.c.h.b16 %v187
  %v1379 = vunpack.c.l.b16 %v188
  %v1380 = vunpack.c.h.b16 %v188
  %v1381 = vunpack.c.l.b16 %v189
  %v1382 = vunpack.c.h.b16 %v189
  %v1383 = vunpack.c.l.b16 %v190
  %v1384 = vunpack.c.h.b16 %v190
  %v1385 = vunpack.c.l.b16 %v191
  %v1386 = vunpack.c.h.b16 %v191
  %v1387 = vunpack.c.l.b16 %v192
  %v1388 = vunpack.c.h.b16 %v192
  %v1389 = vunpack.c.l.b16 %v193
  %v1390 = vunpack.c.h.b16 %v193
  %v1391 = vunpack.c.l.b16 %v194
  %v1392 = vunpack.c.h.b16 %v194
  %v1393 = vunpack.c.l.b16 %v195
  %v1394 = vunpack.c.h.b16 %v195
  %v1395 = vunpack.c.l.b16 %v196
  %v1396 = vunpack.c.h.b16 %v196
  %v1397 = vunpack.c.l.b16 %v197
  %v1398 = vunpack.c.h.b16 %v197
  %v1399 = vunpack.c.l.b16 %v198
  %v1400 = vunpack.c.h.b16 %v198
  %v1401 = vunpack.c.l.b16 %v199
  %v1402 = vunpack.c.h.b16 %v199
  %v1403 = vunpack.c.l.b16 %v200
  %v1404 = vunpack.c.h.b16 %v200
  %v1405 = vunpack.c.l.b16 %v201
  %v1406 = vunpack.c.h.b16 %v201
  %v1407 = vunpack.c.l.b16 %v202
  %v1408 = vunpack.c.h.b16 %v202
  %v1409 = vunpack.c.l.b16 %v203
  %v1410 = vunpack.c.h.b16 %v203
  %v1411 = vunpack.c.l.b16 %v204
  %v1412 = vunpack.c.h.b16 %v204
  %v1413 = vunpack.c.l.b16 %v205
  %v1414 = vunpack.c.h.b16 %v205
  %v1415 = vunpack.c.l.b16 %v206
  %v1416 = vunpack.c.h.b16 %v206
  %v1417 = vunpack.c.l.b16 %v207
  %v1418 = vunpack.c.h.b16 %v207
  %v1419 = vunpack.c.l.b16 %v208
  %v1420 = vunpack.c.h.b16 %v208
  %v1421 = vunpack.c.l.b16 %v209
  %v1422 = vunpack.c.h.b16 %v209
  %v1423 = vunpack.c.l.b16 %v210
  %v1424 = vunpack.c.h.b16 %v210
  %v1425 = vunpack.c.l.b16 %v211
  %v1426 = vunpack.c.h.b16 %v211
  %v1427 = vunpack.c.l.b16 %v212
  %v1428 = vunpack.c.h.b16 %v212
  %v1429 = vunpack.c.l.b16 %v213
  %v1430 = vunpack.c.h.b16 %v213
  %v1431 = vunpack.c.l.b16 %v214
  %v1432 = vunpack.c.h.b16 %v214
  %v1433 = vunpack.c.l.b16 %v215
  %v1434 = vunpack.c.h.b16 %v215
  %v1435 = vunpack.c.l.b16 %v216
  %v1436 = vunpack.c.h.b16 %v216
  %v1437 = vunpack.c.l.b16 %v217
  %v1438 = vunpack.c.h.b16 %v217
  %v1439 = vunpack.c.l.b16 %v218
  %v1440 = vunpack.c.h.b16 %v218
  %v1441 = vunpack.c.l.b16 %v219
  %v1442 = vunpack.c.h.b16 %v219
  %v1443 = vunpack.c.l.b16 %v220
  %v1444 = vunpack.c.h.b16 %v220
  %v1445 = vunpack.c.l.b16 %v221
  %v1446 = vunpack.c.h.b16 %v221
  %v1447 = vunpack.c.l.b16 %v222
  %v1448 = vunpack.c.h.b16 %v222
  %v1449 = vunpack.c.l.b16 %v223
  %v1450 = vunpack.c.h.b16 %v223
  %v1451 = vunpack.c.l.b16 %v224
  %v1452 = vunpack.c.h.b16 %v224
  %v1453 = vunpack.c.l.b16 %v225
  %v1454 = vunpack.c.h.b16 %v225
  %v1455 = vunpack.c.l.b16 %v226
  %v1456 = vunpack.c.h.b16 %v226
  %v1457 = vunpack.c.l.b16 %v227
  %v1458 = vunpack.c.h.b16 %v227
  %v1459 = vunpack.c.l.b16 %v228
  %v1460 = vunpack.c.h.b16 %v228
  %v1461 = vunpack.c.l.b16 %v229
  %v1462 = vunpack.c.h.b16 %v229
  %v1463 = vunpack.c.l.b16 %v230
  %v1464 = vunpack.c.h.b16 %v230
  %v1465 = vunpack.c.l.b16 %v231
  %v1466 = vunpack.c.h.b16 %v231
  %v1467 = vunpack.c.l.b16 %v232
  %v1468 = vunpack.c.h.b16 %v232
  %v1469 = vunpack.c.l.b16 %v233
  %v1470 = vunpack.c.h.b16 %v233
  %v1471 = vunpack.c.l.b16 %v234
  %v1472 = vunpack.c.h.b16 %v234
  %v1473 = vunpack.c.l.b16 %v235
  %v1474 = vunpack.c.h.b16 %v235
  %v1475 = vunpack.c.l.b16 %v236
  %v1476 = vunpack.c.h.b16 %v236
  %v1477 = vunpack.c.l.b16 %v237
  %v1478 = vunpack.c.h.b16 %v237
  %v1479 = vunpack.c.l.b16 %v238
  %v1480 = vunpack.c.h.b16 %v238
  %v1481 = vunpack.c.l.b16 %v239
  %v1482 = vunpack.c.h.b16 %v239
  %v1483 = vunpack.c.l.b16 %v240
  %v1484 = vunpack.c.h.b16 %v240
  %v1485 = vunpack.c.l.b16 %v241
  %v1486 = vunpack.c.h.b16 %v241
  %v1487 = vunpack.c.l.b16 %v242
  %v1488 = vunpack.c.h.b16 %v242
  %v1489 = vunpack.c.l.b16 %v243
  %v1490 = vunpack.c.h.b16 %v243
  %v1491 = vunpack.c.l.b16 %v244
  %v1492 = vunpack.c.h.b16 %v244
  %v1493 = vunpack.c.l.b16 %v245
  %v1494 = vunpack.c.h.b16 %v245
  %v1495 = vunpack.c.l.b16 %v246
  %v1496 = vunpack.c.h.b16 %v246
  %v1497 = vunpack.c.l.b16 %v247
  %v1498 = vunpack.c.h.b16 %v247
  %v1499 = vunpack.c.l.b16 %v248
  %v1500 = vunpack.c.h.b16 %v248
  %v1501 = vunpack.c.l.b16 %v249
  %v1502 = vunpack.c.h.b16 %v249
  %v1503 = vunpack.c.l.b16 %v250
  %v1504 = vunpack.c.h.b16 %v250
  %v1505 = vunpack.c.l.b16 %v251
  %v1506 = vunpack.c.h.b16 %v251
  %v1507 = vunpack.c.l.b16 %v252
  %v1508 = vunpack.c.h.b16 %v252
  %v1509 = vunpack.c.l.b16 %v253
  %v1510 = vunpack.c.h.b16 %v253
  %v1511 = vunpack.c.l.b16 %v254
  %v1512 = vunpack.c.h.b16 %v254
  %v1513 = vunpack.c.l.b16 %v255
  %v1514 = vunpack.c.h.b16 %v255
  %v1515 = vunpack.c.l.b16 %v256
  %v1516 = vunpack.c.h.b16 %v256
  %v1517 = vunpack.c.l.b16 %v257
  %v1518 = vunpack.c.h.b16 %v257
  %v1519 = vunpack.c.l.b16 %v258
  %v1520 = vunpack.c.h.b16 %v258
  %v1521 = vunpack.c.l.b16 %v259
  %v1522 = vunpack.c.h.b16 %v259
  %v1523 = vunpack.c.l.b16 %v260
  %v1524 = vunpack.c.h.b16 %v260
  %v1525 = vunpack.c.l.b16 %v261
  %v1526 = vunpack.c.h.b16 %v261
  %v1527 = vunpack.c.l.b16 %v262
  %v1528 = vunpack.c.h.b16 %v262
  %v1529 = vunpack.c.l.b16 %v263
  %v1530 = vunpack.c.h.b16 %v263
  %v1531 = vunpack.c.l.b16 %v264
  %v1532 = vunpack.c.h.b16 %v264
  %v1533 = vunpack.c.l.b16 %v265
  %v1534 = vunpack.c.h.b16 %v265
  %v1535 = vunpack.c.l.b16 %v266
  %v1536 = vunpack.c.h.b16 %v266
  %v1537 = vunpack.c.l.b16 %v267
  %v1538 = vunpack.c.h.b16 %v267
  %v1539 = vunpack.c.l.b16 %v268
  %v1540 = vunpack.c.h.b16 %v268
  %v1541 = vunpack.c.l.b16 %v269
  %v1542 = vunpack.c.h.b16 %v269
  %v1543 = vunpack.c.l.b16 %v270
  %v1544 = vunpack.c.h.b16 %v270
  %v1545 = vunpack.c.l.b16 %v271
  %v1546 = vunpack.c.h.b16 %v271
  %v1547 = vunpack.c.l.b16 %v272
  %v1548 = vunpack.c.h.b16 %v272
  %v1549 = vunpack.c.l.b16 %v273
  %v1550 = vunpack.c.h.b16 %v273
  %v1551 = vunpack.c.l.b16 %v274
  %v1552 = vunpack.c.h.b16 %v274
  %v1553 = vpack.c.b16 %v1121, %v1085
  %v1554 = vpack.c.b16 %v1122, %v1086
  %v1555 = vpack.c.b16 %v1123, %v1087
  %v1556 = vpack.c.b16 %v1124, %v1088
  %v1557 = vpack.c.b16 %v1125, %v1089
  %v1558 = vpack.c.b16 %v1126, %v1090
  %v1559 = vpack.c.b16 %v1127, %v1091
  %v1560 = vpack.c.b16 %v1128, %v1092
  %v1561 = vpack.c.b16 %v1129, %v1093
  %v1562 = vpack.c.b16 %v1130, %v1094
  %v1563 = vpack.c.b16 %v1131, %v1095
  %v1564 = vpack.c.b16 %v1132, %v1096
  %v1565 = vpack.c.b16 %v1133, %v1097
  %v1566 = vpack.c.b16 %v1134, %v1098
  %v1567 = vpack.c.b16 %v1135, %v1099
  %v1568 = vpack.c.b16 %v1136, %v1100
  %v1569 = vpack.c.b16 %v1137, %v1101
  %v1570 = vpack.c.b16 %v1138, %v1102
  %v1571 = vpack.c.b16 %v1139, %v1103
  %v1572 = vpack.c.b16 %v1140, %v1104
  %v1573 = vpack.c.b16 %v1141, %v1105
  %v1574 = vpack.c.b16 %v1142, %v1106
  %v1575 = vpack.c.b16 %v1143, %v1107
  %v1576 = vpack.c.b16 %v1144, %v1108
  %v1577 = vpack.c.b16 %v1145, %v1109
  %v1578 = vpack.c.b16 %v1146, %v1110
  %v1579 = vpack.c.b16 %v1147, %v1111
  %v1580 = vpack.c.b16 %v1148, %v1112
  %v1581 = vpack.c.b16 %v1149, %v1113
  %v1582 = vpack.c.b16 %v1150, %v1114
  %v1583 = vpack.c.b16 %v1151, %v1115
  %v1584 = vpack.c.b16 %v1152, %v1116
  %v1585 = vpack.c.b16 %v1153, %v1117
  %v1586 = vpack.c.b16 %v1154, %v1118
  %v1587 = vpack.c.b16 %v1155, %v1119
  %v1588 = vpack.c.b16 %v1156, %v1120
  %v1589 = vpack.c.b16 %v1193, %v1157
  %v1590 = vpack.c.b16 %v1194, %v1158
  %v1591 = vpack.c.b16 %v1195, %v1159
  %v1592 = vpack.c.b16 %v1196, %v1160
  %v1593 = vpack.c.b16 %v1197, %v1161
  %v1594 = vpack.c.b16 %v1198, %v1162
  %v1595 = vpack.c.b16 %v1199, %v1163
  %v1596 = vpack.c.b16 %v1200, %v1164
  %v1597 = vpack.c.b16 %v1201, %v1165
  %v1598 = vpack.c.b16 %v1202, %v1166
  %v1599 = vpack.c.b16 %v1203, %v1167
  %v1600 = vpack.c.b16 %v1204, %v1168
  %v1601 = vpack.c.b16 %v1205, %v1169
  %v1602 = vpack.c.b16 %v1206, %v1170
  %v1603 = vpack.c.b16 %v1207, %v1171
  %v1604 = vpack.c.b16 %v1208, %v1172
  %v1605 = vpack.c.b16 %v1209, %v1173
  %v1606 = vpack.c.b16 %v1210, %v1174
  %v1607 = vpack.c.b16 %v1211, %v1175
  %v1608 = vpack.c.b16 %v1212, %v1176
  %v1609 = vpack.c.b16 %v1213, %v1177
  %v1610 = vpack.c.b16 %v1214, %v1178
  %v1611 = vpack.c.b16 %v1215, %v1179
  %v1612 = vpack.c.b16 %v1216, %v1180
  %v1613 = vpack.c.b16 %v1217, %v1181
  %v1614 = vpack.c.b16 %v1218, %v1182
  %v1615 = vpack.c.b16 %v1219, %v1183
  %v1616 = vpack.c.b16 %v1220, %v1184
  %v1617 = vpack.c.b16 %v1221, %v1185
  %v1618 = vpack.c.b16 %v1222, %v1186
  %v1619 = vpack.c.b16 %v1223, %v1187
  %v1620 = vpack.c.b16 %v1224, %v1188
  %v1621 = vpack.c.b16 %v1225, %v1189
  %v1622 = vpack.c.b16 %v1226, %v1190
  %v1623 = vpack.c.b16 %v1227, %v1191
  %v1624 = vpack.c.b16 %v1228, %v1192
  %v1625 = vpack.c.b16 %v1265, %v1229
  %v1626 = vpack.c.b16 %v1266, %v1230
  %v1627 = vpack.c.b16 %v1267, %v1231
  %v1628 = vpack.c.b16 %v1268, %v1232
  %v1629 = vpack.c.b16 %v1269, %v1233
  %v1630 = vpack.c.b16 %v1270, %v1234
  %v1631 = vpack.c.b16 %v1271, %v1235
  %v1632 = vpack.c.b16 %v1272, %v1236
  %v1633 = vpack.c.b16 %v1273, %v1237
  %v1634 = vpack.c.b16 %v1274, %v1238
  %v1635 = vpack.c.b16 %v1275, %v1239
  %v1636 = vpack.c.b16 %v1276, %v1240
  %v1637 = vpack.c.b16 %v1277, %v1241
  %v1638 = vpack.c.b16 %v1278, %v1242
  %v1639 = vpack.c.b16 %v1279, %v1243
  %v1640 = vpack.c.b16 %v1280, %v1244
  %v1641 = vpack.c.b16 %v1281, %v1245
  %v1642 = vpack.c.b16 %v1282, %v1246
  %v1643 = vpack.c.b16 %v1283, %v1247
  %v1644 = vpack.c.b16 %v1284, %v1248
  %v1645 = vpack.c.b16 %v1285, %v1249
  %v1646 = vpack.c.b16 %v1286, %v1250
  %v1647 = vpack.c.b16 %v1287, %v1251
  %v1648 = vpack.c.b16 %v1288, %v1252
  %v1649 = vpack.c.b16 %v1289, %v1253
  %v1650 = vpack.c.b16 %v1290, %v1254
  %v1651 = vpack.c.b16 %v1291, %v1255
  %v1652 = vpack.c.b16 %v1292, %v1256
  %v1653 = vpack.c.b16 %v1293, %v1257
  %v1654 = vpack.c.b16 %v1294, %v1258
  %v1655 = vpack.c.b16 %v1295, %v1259
  %v1656 = vpack.c.b16 %v1296, %v1260
  %v1657 = vpack.c.b16 %v1297, %v1261
  %v1658 = vpack.c.b16 %v1298, %v1262
  %v1659 = vpack.c.b16 %v1299, %v1263
  %v1660 = vpack.c.b16 %v1300, %v1264
  %v1661 = vpack.c.b16 %v1337, %v1301
  %v1662 = vpack.c.b16 %v1338, %v1302
  %v1663 = vpack.c.b16 %v1339, %v1303
  %v1664 = vpack.c.b16 %v1340, %v1304
  %v1665 = vpack.c.b16 %v1341, %v1305
  %v1666 = vpack.c.b16 %v1342, %v1306
  %v1667 = vpack.c.b16 %v1343, %v1307
  %v1668 = vpack.c.b16 %v1344, %v1308
  %v1669 = vpack.c.b16 %v1345, %v1309
  %v1670 = vpack.c.b16 %v1346, %v1310
  %v1671 = vpack.c.b16 %v1347, %v1311
  %v1672 = vpack.c.b16 %v1348, %v1312
  %v1673 = vpack.c.b16 %v1349, %v1313
  %v1674 = vpack.c.b16 %v1350, %v1314
  %v1675 = vpack.c.b16 %v1351, %v1315
  %v1676 = vpack.c.b16 %v1352, %v1316
  %v1677 = vpack.c.b16 %v1353, %v1317
  %v1678 = vpack.c.b16 %v1354, %v1318
  %v1679 = vpack.c.b16 %v1355, %v1319
  %v1680 = vpack.c.b16 %v1356, %v1320
  %v1681 = vpack.c.b16 %v1357, %v1321
  %v1682 = vpack.c.b16 %v1358, %v1322
  %v1683 = vpack.c.b16 %v1359, %v1323
  %v1684 = vpack.c.b16 %v1360, %v1324
  %v1685 = vpack.c.b16 %v1361, %v1325
  %v1686 = vpack.c.b16 %v1362, %v1326
  %v1687 = vpack.c.b16 %v1363, %v1327
  %v1688 = vpack.c.b16 %v1364, %v1328
  %v1689 = vpack.c.b16 %v1365, %v1329
  %v1690 = vpack.c.b16 %v1366, %v1330
  %v1691 = vpack.c.b16 %v1367, %v1331
  %v1692 = vpack.c.b16 %v1368, %v1332
  %v1693 = vpack.c.b16 %v1369, %v1333
  %v1694 = vpack.c.b16 %v1370, %v1334
  %v1695 = vpack.c.b16 %v1371, %v1335
  %v1696 = vpack.c.b16 %v1372, %v1336
  %v1697 = vpack.c.b16 %v1409, %v1373
  %v1698 = vpack.c.b16 %v1410, %v1374
  %v1699 = vpack.c.b16 %v1411, %v1375
  %v1700 = vpack.c.b16 %v1412, %v1376
  %v1701 = vpack.c.b16 %v1413, %v1377
  %v1702 = vpack.c.b16 %v1414, %v1378
  %v1703 = vpack.c.b16 %v1415, %v1379
  %v1704 = vpack.c.b16 %v1416, %v1380
  %v1705 = vpack.c.b16 %v1417, %v1381
  %v1706 = vpack.c.b16 %v1418, %v1382
  %v1707 = vpack.c.b16 %v1419, %v1383
  %v1708 = vpack.c.b16 %v1420, %v1384
  %v1709 = vpack.c.b16 %v1421, %v1385
  %v1710 = vpack.c.b16 %v1422, %v1386
  %v1711 = vpack.c.b16 %v1423, %v1387
  %v1712 = vpack.c.b16 %v1424, %v1388
  %v1713 = vpack.c.b16 %v1425, %v1389
  %v1714 = vpack.c.b16 %v1426, %v1390
  %v1715 = vpack.c.b16 %v1427, %v1391
  %v1716 = vpack.c.b16 %v1428, %v1392
  %v1717 = vpack.c.b16 %v1429, %v1393
  %v1718 = vpack.c.b16 %v1430, %v1394
  %v1719 = vpack.c.b16 %v1431, %v1395
  %v1720 = vpack.c.b16 %v1432, %v1396
  %v1721 = vpack.c.b16 %v1433, %v1397
  %v1722 = vpack.c.b16 %v1434, %v1398
  %v1723 = vpack.c.b16 %v1435, %v1399
  %v1724 = vpack.c.b16 %v1436, %v1400
  %v1725 = vpack.c.b16 %v1437, %v1401
  %v1726 = vpack.c.b16 %v1438, %v1402
  %v1727 = vpack.c.b16 %v1439, %v1403
  %v1728 = vpack.c.b16 %v1440, %v1404
  %v1729 = vpack.c.b16 %v1441, %v1405
  %v1730 = vpack.c.b16 %v1442, %v1406
  %v1731 = vpack.c.b16 %v1443, %v1407
  %v1732 = vpack.c.b16 %v1444, %v1408
  %v1733 = vpack.c.b16 %v1481, %v1445
  %v1734 = vpack.c.b16 %v1482, %v1446
  %v1735 = vpack.c.b16 %v1483, %v1447
  %v1736 = vpack.c.b16 %v1484, %v1448
  %v1737 = vpack.c.b16 %v1485, %v1449
  %v1738 = vpack.c.b16 %v1486, %v1450
  %v1739 = vpack.c.b16 %v1487, %v1451
  %v1740 = vpack.c.b16 %v1488, %v1452
  %v1741 = vpack.c.b16 %v1489, %v1453
  %v1742 = vpack.c.b16 %v1490, %v1454
  %v1743 = vpack.c.b16 %v1491, %v1455
  %v1744 = vpack.c.b16 %v1492, %v1456
  %v1745 = vpack.c.b16 %v1493, %v1457
  %v1746 = vpack.c.b16 %v1494, %v1458
  %v1747 = vpack.c.b16 %v1495, %v1459
  %v1748 = vpack.c.b16 %v1496, %v1460
  %v1749 = vpack.c.b16 %v1497, %v1461
  %v1750 = vpack.c.b16 %v1498, %v1462
  %v1751 = vpack.c.b16 %v1499, %v1463
  %v1752 = vpack.c.b16 %v1500, %v1464
  %v1753 = vpack.c.b16 %v1501, %v1465
  %v1754 = vpack.c.b16 %v1502, %v1466
  %v1755 = vpack.c.b16 %v1503, %v1467
  %v1756 = vpack.c.b16 %v1504, %v1468
  %v1757 = vpack.c.b16 %v1505, %v1469
  %v1758 = vpack.c.b16 %v1506, %v1470
  %v1759 = vpack.c.b16 %v1507, %v1471
  %v1760 = vpack.c.b16 %v1508, %v1472
  %v1761 = vpack.c.b16 %v1509, %v1473
  %v1762 = vpack.c.b16 %v1510, %v1474
  %v1763 = vpack.c.b16 %v1511, %v1475
  %v1764 = vpack.c.b16 %v1512, %v1476
  %v1765 = vpack.c.b16 %v1513, %v1477
  %v1766 = vpack.c.b16 %v1514, %v1478
  %v1767 = vpack.c.b16 %v1515, %v1479
  %v1768 = vpack.c.b16 %v1516, %v1480
  %v1769 = vpack.c.b16 %v1517, %v1517
  %v1770 = vpack.c.b16 %v1518, %v1518
  %v1771 = vpack.c.b16 %v1519, %v1519
  %v1772 = vpack.c.b16 %v1520, %v1520
  %v1773 = vpack.c.b16 %v1521, %v1521
  %v1774 = vpack.c.b16 %v1522, %v1522
  %v1775 = vpack.c.b16 %v1523, %v1523
  %v1776 = vpack.c.b16 %v1524, %v1524
  %v1777 = vpack.c.b16 %v1525, %v1525
  %v1778 = vpack.c.b16 %v1526, %v1526
  %v1779 = vpack.c.b16 %v1527, %v1527
  %v1780 = vpack.c.b16 %v1528, %v1528
  %v1781 = vpack.c.b16 %v1529, %v1529
  %v1782 = vpack.c.b16 %v1530, %v1530
  %v1783 = vpack.c.b16 %v1531, %v1531
  %v1784 = vpack.c.b16 %v1532, %v1532
  %v1785 = vpack.c.b16 %v1533, %v1533
  %v1786 = vpack.c.b16 %v1534, %v1534
  %v1787 = vpack.c.b16 %v1535, %v1535
  %v1788 = vpack.c.b16 %v1536, %v1536
  %v1789 = vpack.c.b16 %v1537, %v1537
  %v1790 = vpack.c.b16 %v1538, %v1538
  %v1791 = vpack.c.b16 %v1539, %v1539
  %v1792 = vpack.c.b16 %v1540, %v1540
  %v1793 = vpack.c.b16 %v1541, %v1541
  %v1794 = vpack.c.b16 %v1542, %v1542
  %v1795 = vpack.c.b16 %v1543, %v1543
  %v1796 = vpack.c.b16 %v1544, %v1544
  %v1797 = vpack.c.b16 %v1545, %v1545
  %v1798 = vpack.c.b16 %v1546, %v1546
  %v1799 = vpack.c.b16 %v1547, %v1547
  %v1800 = vpack.c.b16 %v1548, %v1548
  %v1801 = vpack.c.b16 %v1549, %v1549
  %v1802 = vpack.c.b16 %v1550, %v1550
  %v1803 = vpack.c.b16 %v1551, %v1551
  %v1804 = vpack.c.b16 %v1552, %v1552
  %v2633 = vunpack.c.l.b16 %v275
  %v2634 = vunpack.c.l.b16 %v276
  %v2635 = vunpack.c.l.b16 %v277
  %v2636 = vunpack.c.l.b16 %v278
  %v2637 = vunpack.c.l.b16 %v279
  %v2638 = vunpack.c.l.b16 %v280
  %v2639 = vunpack.c.l.b16 %v281
  %v2640 = vunpack.c.l.b16 %v282
  %v2641 = vunpack.c.l.b16 %v283
  %v2642 = vunpack.c.l.b16 %v284
  %v2643 = vunpack.c.l.b16 %v285
  %v2644 = vunpack.c.l.b16 %v286
  %v2645 = vunpack.c.l.b16 %v287
  %v2646 = vunpack.c.l.b16 %v288
  %v2647 = vunpack.c.l.b16 %v289
  %v2648 = vunpack.c.l.b16 %v290
  %v2649 = vunpack.c.l.b16 %v291
  %v2650 = vunpack.c.l.b16 %v292
  %v2651 = vunpack.c.l.b16 %v293
  %v2652 = vunpack.c.l.b16 %v294
  %v2653 = vunpack.c.l.b16 %v295
  %v2654 = vunpack.c.l.b16 %v296
  %v2655 = vunpack.c.l.b16 %v297
  %v2656 = vunpack.c.l.b16 %v298
  %v2657 = vunpack.c.l.b16 %v299
  %v2658 = vunpack.c.l.b16 %v300
  %v2659 = vunpack.c.l.b16 %v301
  %v2660 = vunpack.c.l.b16 %v302
  %v2661 = vunpack.c.l.b16 %v303
  %v2662 = vunpack.c.l.b16 %v304
  %v2663 = vunpack.c.l.b16 %v305
  %v2664 = vunpack.c.l.b16 %v306
  %v2665 = vunpack.c.l.b16 %v307
  %v2666 = vunpack.c.l.b16 %v308
  %v2667 = vunpack.c.l.b16 %v309
  %v2668 = vunpack.c.l.b16 %v310
  %v2669 = vunpack.c.l.b16 %v311
  %v2670 = vunpack.c.l.b16 %v312
  %v2671 = vunpack.c.l.b16 %v313
  %v2672 = vunpack.c.l.b16 %v314
  %v2673 = vunpack.c.l.b16 %v315
  %v2674 = vunpack.c.l.b16 %v316
  %v2675 = vunpack.c.l.b16 %v317
  %v2676 = vunpack.c.l.b16 %v318
  %v2677 = vunpack.c.l.b16 %v319
  %v2678 = vunpack.c.l.b16 %v320
  %v2679 = vunpack.c.l.b16 %v321
  %v2680 = vunpack.c.l.b16 %v322
  %v2681 = vunpack.c.l.b16 %v323
  %v2682 = vunpack.c.l.b16 %v324
  %v2683 = vunpack.c.l.b16 %v325
  %v2684 = vunpack.c.l.b16 %v326
  %v2685 = vunpack.c.l.b16 %v327
  %v2686 = vunpack.c.l.b16 %v328
  %v2687 = vunpack.c.l.b16 %v329
  %v2688 = vunpack.c.l.b16 %v330
  %v2689 = vunpack.c.l.b16 %v331
  %v2690 = vunpack.c.l.b16 %v332
  %v2691 = vunpack.c.l.b16 %v333
  %v2692 = vunpack.c.l.b16 %v334
  %v2693 = vunpack.c.l.b16 %v335
  %v2694 = vunpack.c.l.b16 %v336
  %v2695 = vunpack.c.l.b16 %v337
  %v2696 = vunpack.c.l.b16 %v338
  %v2697 = vunpack.c.l.b16 %v339
  %v2698 = vunpack.c.l.b16 %v340
  %v2699 = vunpack.c.l.b16 %v341
  %v2700 = vunpack.c.l.b16 %v342
  %v2701 = vunpack.c.l.b16 %v343
  %v2702 = vunpack.c.l.b16 %v344
  %v2703 = vunpack.c.l.b16 %v345
  %v2704 = vunpack.c.l.b16 %v346
  %v2705 = vunpack.c.l.b16 %v347
  %v2706 = vunpack.c.l.b16 %v348
  %v2707 = vunpack.c.l.b16 %v349
  %v2708 = vunpack.c.l.b16 %v350
  %v2709 = vunpack.c.l.b16 %v351
  %v2710 = vunpack.c.l.b16 %v352
  %v2711 = vunpack.c.l.b16 %v353
  %v2712 = vunpack.c.l.b16 %v354
  %v2713 = vunpack.c.l.b16 %v355
  %v2714 = vunpack.c.l.b16 %v356
  %v2715 = vunpack.c.l.b16 %v357
  %v2716 = vunpack.c.l.b16 %v358
  %v2717 = vunpack.c.l.b16 %v359
  %v2718 = vunpack.c.l.b16 %v360
  %v2719 = vunpack.c.l.b16 %v361
  %v2720 = vunpack.c.l.b16 %v362
  %v2721 = vunpack.c.l.b16 %v363
  %v2722 = vunpack.c.l.b16 %v364
  %v2723 = vunpack.c.l.b16 %v365
  %v2724 = vunpack.c.l.b16 %v366
  %v2725 = vunpack.c.l.b16 %v367
  %v2726 = vunpack.c.l.b16 %v368
  %v2727 = vunpack.c.l.b16 %v369
  %v2728 = vunpack.c.l.b16 %v370
  %v2729 = vunpack.c.l.b16 %v371
  %v2730 = vunpack.c.l.b16 %v372
  %v2731 = vunpack.c.l.b16 %v373
  %v2732 = vunpack.c.l.b16 %v374
  %v2733 = vunpack.c.l.b16 %v375
  %v2734 = vunpack.c.l.b16 %v376
  %v2735 = vunpack.c.l.b16 %v377
  %v2736 = vunpack.c.l.b16 %v378
  %v2737 = vunpack.c.l.b16 %v379
  %v2738 = vunpack.c.l.b16 %v380
  %v2739 = vunpack.c.l.b16 %v381
  %v2740 = vunpack.c.l.b16 %v382
  %v2741 = vunpack.c.l.b16 %v383
  %v2742 = vunpack.c.l.b16 %v384
  %v2743 = vunpack.c.l.b16 %v385
  %v2744 = vunpack.c.l.b16 %v386
  %v2745 = vunpack.c.l.b16 %v387
  %v2746 = vunpack.c.l.b16 %v388
  %v2747 = vunpack.c.l.b16 %v389
  %v2748 = vunpack.c.l.b16 %v390
  %v2749 = vunpack.c.l.b16 %v391
  %v2750 = vunpack.c.l.b16 %v392
  %v2751 = vunpack.c.l.b16 %v393
  %v2752 = vunpack.c.l.b16 %v394
  %v2753 = vunpack.c.l.b16 %v395
  %v2754 = vunpack.c.l.b16 %v396
  %v2755 = vunpack.c.l.b16 %v397
  %v2756 = vunpack.c.l.b16 %v398
  %v2757 = vunpack.c.l.b16 %v399
  %v2758 = vunpack.c.l.b16 %v400
  %v2759 = vunpack.c.l.b16 %v401
  %v2760 = vunpack.c.l.b16 %v402
  %v2761 = vunpack.c.l.b16 %v403
  %v2762 = vunpack.c.l.b16 %v404
  %v2763 = vunpack.c.l.b16 %v405
  %v2764 = vunpack.c.l.b16 %v406
  %v2765 = vunpack.c.l.b16 %v407
  %v2766 = vunpack.c.l.b16 %v408
  %v2767 = vunpack.c.l.b16 %v409
  %v2768 = vunpack.c.l.b16 %v410
  %v2769 = vunpack.c.l.b16 %v411
  %v2770 = vunpack.c.l.b16 %v412
  %v2771 = vunpack.c.l.b16 %v413
  %v2772 = vunpack.c.l.b16 %v414
  %v2773 = vunpack.c.l.b16 %v415
  %v2774 = vunpack.c.l.b16 %v416
  %v2775 = vunpack.c.l.b16 %v417
  %v2776 = vunpack.c.l.b16 %v418
  %v2777 = vunpack.c.l.b16 %v419
  %v2778 = vunpack.c.l.b16 %v420
  %v2779 = vunpack.c.l.b16 %v421
  %v2780 = vunpack.c.l.b16 %v422
  %v2781 = vunpack.c.l.b16 %v423
  %v2782 = vunpack.c.l.b16 %v424
  %v2783 = vunpack.c.l.b16 %v425
  %v2784 = vunpack.c.l.b16 %v426
  %v2785 = vunpack.c.l.b16 %v427
  %v2786 = vunpack.c.l.b16 %v428
  %v2787 = vunpack.c.l.b16 %v429
  %v2788 = vunpack.c.l.b16 %v430
  %v2789 = vunpack.c.l.b16 %v431
  %v2790 = vunpack.c.l.b16 %v432
  %v2791 = vunpack.c.l.b16 %v433
  %v2792 = vunpack.c.l.b16 %v434
  %v2793 = vunpack.c.l.b16 %v435
  %v2794 = vunpack.c.l.b16 %v436
  %v2795 = vunpack.c.l.b16 %v437
  %v2796 = vunpack.c.l.b16 %v438
  %v2797 = vunpack.c.l.b16 %v439
  %v2798 = vunpack.c.l.b16 %v440
  %v2799 = vunpack.c.l.b16 %v441
  %v2800 = vunpack.c.l.b16 %v442
  %v2801 = vunpack.c.l.b16 %v443
  %v2802 = vunpack.c.l.b16 %v444
  %v2803 = vunpack.c.l.b16 %v445
  %v2804 = vunpack.c.l.b16 %v446
  %v2805 = vunpack.c.l.b16 %v447
  %v2806 = vunpack.c.l.b16 %v448
  %v2807 = vunpack.c.l.b16 %v449
  %v2808 = vunpack.c.l.b16 %v450
  %v2809 = vunpack.c.l.b16 %v451
  %v2810 = vunpack.c.l.b16 %v452
  %v2811 = vunpack.c.l.b16 %v453
  %v2812 = vunpack.c.l.b16 %v454
  %v2813 = vunpack.c.l.b16 %v455
  %v2814 = vunpack.c.l.b16 %v456
  %v2815 = vunpack.c.l.b16 %v457
  %v2816 = vunpack.c.l.b16 %v458
  %v2817 = vunpack.c.l.b16 %v459
  %v2818 = vunpack.c.l.b16 %v460
  %v2819 = vunpack.c.l.b16 %v461
  %v2820 = vunpack.c.l.b16 %v462
  %v2821 = vunpack.c.l.b16 %v463
  %v2822 = vunpack.c.l.b16 %v464
  %v2823 = vunpack.c.l.b16 %v465
  %v2824 = vunpack.c.l.b16 %v466
  %v2825 = vunpack.c.l.b16 %v467
  %v2826 = vunpack.c.l.b16 %v468
  %v2827 = vunpack.c.l.b16 %v469
  %v2828 = vunpack.c.l.b16 %v470
  %v2829 = vunpack.c.l.b16 %v471
  %v2830 = vunpack.c.l.b16 %v472
  %v2831 = vunpack.c.l.b16 %v473
  %v2832 = vunpack.c.l.b16 %v474
  %v2833 = vunpack.c.l.b16 %v475
  %v2834 = vunpack.c.l.b16 %v476
  %v2835 = vunpack.c.l.b16 %v477
  %v2836 = vunpack.c.l.b16 %v478
  %v2837 = vunpack.c.l.b16 %v479
  %v2838 = vunpack.c.l.b16 %v480
  %v2839 = vunpack.c.l.b16 %v481
  %v2840 = vunpack.c.l.b16 %v482
  %v2841 = vunpack.c.l.b16 %v483
  %v2842 = vunpack.c.l.b16 %v484
  %v2843 = vunpack.c.l.b16 %v485
  %v2844 = vunpack.c.l.b16 %v486
  %v2845 = vunpack.c.l.b16 %v487
  %v2846 = vunpack.c.l.b16 %v488
  %v2847 = vunpack.c.l.b16 %v489
  %v2848 = vunpack.c.l.b16 %v490
  %v2849 = vunpack.c.l.b16 %v491
  %v2850 = vunpack.c.l.b16 %v492
  %v2851 = vunpack.c.l.b16 %v493
  %v2852 = vunpack.c.l.b16 %v494
  %v2853 = vunpack.c.l.b16 %v495
  %v2854 = vunpack.c.l.b16 %v496
  %v2855 = vunpack.c.l.b16 %v497
  %v2856 = vunpack.c.l.b16 %v498
  %v2857 = vunpack.c.l.b16 %v499
  %v2858 = vunpack.c.l.b16 %v500
  %v2859 = vunpack.c.l.b16 %v501
  %v2860 = vunpack.c.l.b16 %v502
  %v2861 = vunpack.c.l.b16 %v503
  %v2862 = vunpack.c.l.b16 %v504
  %v2863 = vunpack.c.l.b16 %v505
  %v2864 = vunpack.c.l.b16 %v506
  %v2865 = vunpack.c.l.b16 %v507
  %v2866 = vunpack.c.l.b16 %v508
  %v2867 = vunpack.c.l.b16 %v509
  %v2868 = vunpack.c.l.b16 %v510
  %v2869 = vunpack.c.l.b16 %v511
  %v2870 = vunpack.c.l.b16 %v512
  %v2871 = vunpack.c.l.b16 %v513
  %v2872 = vunpack.c.l.b16 %v514
  %v2873 = vunpack.c.l.b16 %v515
  %v2874 = vunpack.c.l.b16 %v516
  %v2875 = vunpack.c.l.b16 %v517
  %v2876 = vunpack.c.l.b16 %v518
  %v2877 = vunpack.c.l.b16 %v519
  %v2878 = vunpack.c.l.b16 %v520
  %v2879 = vunpack.c.l.b16 %v521
  %v2880 = vunpack.c.l.b16 %v522
  %v2881 = vunpack.c.l.b16 %v523
  %v2882 = vunpack.c.l.b16 %v524
  %v2883 = vunpack.c.l.b16 %v525
  %v2884 = vunpack.c.l.b16 %v526
  %v2885 = vunpack.c.l.b16 %v527
  %v2886 = vunpack.c.l.b16 %v528
  %v2887 = vunpack.c.l.b16 %v529
  %v2888 = vunpack.c.l.b16 %v530
  %v2889 = vunpack.c.l.b16 %v531
  %v2890 = vunpack.c.l.b16 %v532
  %v2891 = vunpack.c.l.b16 %v533
  %v2892 = vunpack.c.l.b16 %v534
  %v2893 = vunpack.c.l.b16 %v535
  %v2894 = vunpack.c.l.b16 %v536
  %v2895 = vunpack.c.l.b16 %v537
  %v2896 = vunpack.c.l.b16 %v538
  %v2897 = vunpack.c.l.b16 %v539
  %v2898 = vunpack.c.l.b16 %v540
  %v2899 = vunpack.c.l.b16 %v541
  %v2900 = vunpack.c.l.b16 %v542
  %v2901 = vunpack.c.l.b16 %v543
  %v2902 = vunpack.c.l.b16 %v544
  %v2903 = vunpack.c.l.b16 %v545
  %v2904 = vunpack.c.l.b16 %v546
  %v2905 = vunpack.c.l.b16 %v547
  %v2906 = vunpack.c.l.b16 %v548
  %v2907 = vunpack.c.l.b16 %v549
  %v2908 = vunpack.c.l.b16 %v550
  %v2909 = vunpack.c.l.b16 %v551
  %v2910 = vunpack.c.l.b16 %v552
  %v2911 = vunpack.c.l.b16 %v553
  %v2912 = vunpack.c.l.b16 %v554
  %v2913 = vunpack.c.l.b16 %v555
  %v2914 = vunpack.c.l.b16 %v556
  %v2915 = vunpack.c.l.b16 %v557
  %v2916 = vunpack.c.l.b16 %v558
  %v2917 = vunpack.c.l.b16 %v559
  %v2918 = vunpack.c.l.b16 %v560
  %v2919 = vunpack.c.l.b16 %v561
  %v2920 = vunpack.c.l.b16 %v562
  %v2921 = vunpack.c.l.b16 %v563
  %v2922 = vunpack.c.l.b16 %v564
  %v2923 = vunpack.c.l.b16 %v565
  %v2924 = vunpack.c.l.b16 %v566
  %v2925 = vunpack.c.l.b16 %v567
  %v2926 = vunpack.c.l.b16 %v568
  %v2927 = vunpack.c.l.b16 %v569
  %v2928 = vunpack.c.l.b16 %v570
  %v2929 = vunpack.c.l.b16 %v571
  %v2930 = vunpack.c.l.b16 %v572
  %v2931 = vunpack.c.l.b16 %v573
  %v2932 = vunpack.c.l.b16 %v574
  %v2933 = vunpack.c.l.b16 %v575
  %v2934 = vunpack.c.l.b16 %v576
  %v2935 = vunpack.c.l.b16 %v577
  %v2936 = vunpack.c.l.b16 %v578
  %v2937 = vunpack.c.l.b16 %v579
  %v2938 = vunpack.c.l.b16 %v580
  %v2939 = vunpack.c.l.b16 %v581
  %v2940 = vunpack.c.l.b16 %v582
  %v2941 = vunpack.c.l.b16 %v583
  %v2942 = vunpack.c.l.b16 %v584
  %v2943 = vunpack.c.l.b16 %v585
  %v2944 = vunpack.c.l.b16 %v586
  %v2945 = vunpack.c.l.b16 %v587
  %v2946 = vunpack.c.l.b16 %v588
  %v2947 = vunpack.c.l.b16 %v589
  %v2948 = vunpack.c.l.b16 %v590
  %v2949 = vunpack.c.l.b16 %v591
  %v2950 = vunpack.c.l.b16 %v592
  %v2951 = vunpack.c.l.b16 %v593
  %v2952 = vunpack.c.l.b16 %v594
  %v2953 = vunpack.c.l.b16 %v595
  %v2954 = vunpack.c.l.b16 %v596
  %v2955 = vunpack.c.l.b16 %v597
  %v2956 = vunpack.c.l.b16 %v598
  %v2957 = vunpack.c.l.b16 %v599
  %v2958 = vunpack.c.l.b16 %v600
  %v2959 = vunpack.c.l.b16 %v601
  %v2960 = vunpack.c.l.b16 %v602
  %v2961 = vunpack.c.l.b16 %v603
  %v2962 = vunpack.c.l.b16 %v604
  %v2963 = vunpack.c.l.b16 %v605
  %v2964 = vunpack.c.l.b16 %v606
  %v2965 = vunpack.c.l.b16 %v607
  %v2966 = vunpack.c.l.b16 %v608
  %v2967 = vunpack.c.l.b16 %v609
  %v2968 = vunpack.c.l.b16 %v610
  %v2969 = vunpack.c.l.b16 %v611
  %v2970 = vunpack.c.l.b16 %v612
  %v2971 = vunpack.c.l.b16 %v613
  %v2972 = vunpack.c.l.b16 %v614
  %v2973 = vunpack.c.l.b16 %v615
  %v2974 = vunpack.c.l.b16 %v616
  %v2975 = vunpack.c.l.b16 %v617
  %v2976 = vunpack.c.l.b16 %v618
  %v2977 = vunpack.c.l.b16 %v619
  %v2978 = vunpack.c.l.b16 %v620
  %v2979 = vunpack.c.l.b16 %v621
  %v2980 = vunpack.c.l.b16 %v622
  %v2981 = vunpack.c.l.b16 %v623
  %v2982 = vunpack.c.l.b16 %v624
  %v2983 = vunpack.c.l.b16 %v625
  %v2984 = vunpack.c.l.b16 %v626
  %v2985 = vunpack.c.l.b16 %v627
  %v2986 = vunpack.c.l.b16 %v628
  %v2987 = vunpack.c.l.b16 %v629
  %v2988 = vunpack.c.l.b16 %v630
  %v2989 = vunpack.c.l.b16 %v631
  %v2990 = vunpack.c.l.b16 %v632
  %v2991 = vunpack.c.l.b16 %v633
  %v2992 = vunpack.c.l.b16 %v634
  %v2993 = vunpack.c.l.b16 %v635
  %v2994 = vunpack.c.l.b16 %v636
  %v2995 = vunpack.c.l.b16 %v637
  %v2996 = vunpack.c.l.b16 %v638
  %v2997 = vunpack.c.l.b16 %v639
  %v2998 = vunpack.c.l.b16 %v640
  %v2999 = vunpack.c.l.b16 %v641
  %v3000 = vunpack.c.l.b16 %v642
  %v3001 = vunpack.c.l.b16 %v643
  %v3002 = vunpack.c.l.b16 %v644
  %v3003 = vunpack.c.l.b16 %v645
  %v3004 = vunpack.c.l.b16 %v646
  %v3005 = vunpack.c.l.b16 %v647
  %v3006 = vunpack.c.l.b16 %v648
  %v3007 = vunpack.c.l.b16 %v649
  %v3008 = vunpack.c.l.b16 %v650
  %v3009 = vunpack.c.l.b16 %v651
  %v3010 = vunpack.c.l.b16 %v652
  %v3011 = vunpack.c.l.b16 %v653
  %v3012 = vunpack.c.l.b16 %v654
  %v3013 = vunpack.c.l.b16 %v655
  %v3014 = vunpack.c.l.b16 %v656
  %v3015 = vunpack.c.l.b16 %v657
  %v3016 = vunpack.c.l.b16 %v658
  %v3017 = vunpack.c.l.b16 %v659
  %v3018 = vunpack.c.l.b16 %v660
  %v3019 = vunpack.c.l.b16 %v661
  %v3020 = vunpack.c.l.b16 %v662
  %v3021 = vunpack.c.l.b16 %v663
  %v3022 = vunpack.c.l.b16 %v664
  %v3023 = vunpack.c.l.b16 %v665
  %v3024 = vunpack.c.l.b16 %v666
  %v3025 = vunpack.c.l.b16 %v667
  %v3026 = vunpack.c.l.b16 %v668
  %v3027 = vunpack.c.l.b16 %v669
  %v3028 = vunpack.c.l.b16 %v670
  %v3029 = vunpack.c.l.b16 %v671
  %v3030 = vunpack.c.l.b16 %v672
  %v3031 = vunpack.c.l.b16 %v673
  %v3032 = vunpack.c.l.b16 %v674
  %v3033 = vunpack.c.l.b16 %v675
  %v3034 = vunpack.c.l.b16 %v676
  %v3035 = vunpack.c.l.b16 %v677
  %v3036 = vunpack.c.l.b16 %v678
  %v3037 = vunpack.c.l.b16 %v679
  %v3038 = vunpack.c.l.b16 %v680
  %v3039 = vunpack.c.l.b16 %v681
  %v3040 = vunpack.c.l.b16 %v682
  %v3041 = vunpack.c.l.b16 %v683
  %v3042 = vunpack.c.l.b16 %v684
  %v3043 = vunpack.c.l.b16 %v685
  %v3044 = vunpack.c.l.b16 %v686
  %v3045 = vunpack.c.l.b16 %v687
  %v3046 = vunpack.c.l.b16 %v688
  %v3047 = vunpack.c.l.b16 %v689
  %v3048 = vunpack.c.l.b16 %v690
  %v3049 = vunpack.c.l.b16 %v691
  %v3050 = vunpack.c.l.b16 %v692
  %v3051 = vunpack.c.l.b16 %v693
  %v3052 = vunpack.c.l.b16 %v694
  %v3053 = vunpack.c.l.b16 %v695
  %v3054 = vunpack.c.l.b16 %v696
  %v3055 = vunpack.c.l.b16 %v697
  %v3056 = vunpack.c.l.b16 %v698
  %v3057 = vunpack.c.l.b16 %v699
  %v3058 = vunpack.c.l.b16 %v700
  %v3059 = vunpack.c.l.b16 %v701
  %v3060 = vunpack.c.l.b16 %v702
  %v3061 = vunpack.c.l.b16 %v703
  %v3062 = vunpack.c.l.b16 %v704
  %v3063 = vunpack.c.l.b16 %v705
  %v3064 = vunpack.c.l.b16 %v706
  %v3065 = vunpack.c.l.b16 %v707
  %v3066 = vunpack.c.l.b16 %v708
  %v3067 = vunpack.c.l.b16 %v709
  %v3068 = vunpack.c.l.b16 %v710
  %v3069 = vunpack.c.l.b16 %v711
  %v3070 = vunpack.c.l.b16 %v712
  %v3071 = vunpack.c.l.b16 %v713
  %v3072 = vunpack.c.l.b16 %v714
  %v3073 = vunpack.c.l.b16 %v715
  %v3074 = vunpack.c.l.b16 %v716
  %v3075 = vunpack.c.l.b16 %v717
  %v3076 = vunpack.c.l.b16 %v718
  %v3077 = vunpack.c.l.b16 %v719
  %v3078 = vunpack.c.l.b16 %v720
  %v3079 = vunpack.c.l.b16 %v721
  %v3080 = vunpack.c.l.b16 %v722
  %v3081 = vunpack.c.l.b16 %v723
  %v3082 = vunpack.c.l.b16 %v724
  %v3083 = vunpack.c.l.b16 %v725
  %v3084 = vunpack.c.l.b16 %v726
  %v3085 = vunpack.c.l.b16 %v727
  %v3086 = vunpack.c.l.b16 %v728
  %v3087 = vunpack.c.l.b16 %v729
  %v3088 = vunpack.c.l.b16 %v730
  %v3089 = vunpack.c.l.b16 %v731
  %v3090 = vunpack.c.l.b16 %v732
  %v3091 = vunpack.c.l.b16 %v733
  %v3092 = vunpack.c.l.b16 %v734
  %v3093 = vunpack.c.l.b16 %v735
  %v3094 = vunpack.c.l.b16 %v736
  %v3095 = vunpack.c.l.b16 %v737
  %v3096 = vunpack.c.l.b16 %v738
  %v3097 = vunpack.c.l.b16 %v739
  %v3098 = vunpack.c.l.b16 %v740
  %v3099 = vunpack.c.l.b16 %v741
  %v3100 = vunpack.c.l.b16 %v742
  %v3101 = vunpack.c.l.b16 %v743
  %v3102 = vunpack.c.l.b16 %v744
  %v3103 = vunpack.c.l.b16 %v745
  %v3104 = vunpack.c.l.b16 %v746
  %v3105 = vunpack.c.l.b16 %v747
  %v3106 = vunpack.c.l.b16 %v748
  %v3107 = vunpack.c.l.b16 %v749
  %v3108 = vunpack.c.l.b16 %v750
  %v3109 = vunpack.c.l.b16 %v751
  %v3110 = vunpack.c.l.b16 %v752
  %v3111 = vunpack.c.l.b16 %v753
  %v3112 = vunpack.c.l.b16 %v754
  %v3113 = vunpack.c.l.b16 %v755
  %v3114 = vunpack.c.l.b16 %v756
  %v3115 = vunpack.c.l.b16 %v757
  %v3116 = vunpack.c.l.b16 %v758
  %v3117 = vunpack.c.l.b16 %v759
  %v3118 = vunpack.c.l.b16 %v760
  %v3119 = vunpack.c.l.b16 %v761
  %v3120 = vunpack.c.l.b16 %v762
  %v3121 = vunpack.c.l.b16 %v763
  %v3122 = vunpack.c.l.b16 %v764
  %v3123 = vunpack.c.l.b16 %v765
  %v3124 = vunpack.c.l.b16 %v766
  %v3125 = vunpack.c.l.b16 %v767
  %v3126 = vunpack.c.l.b16 %v768
  %v3127 = vunpack.c.l.b16 %v769
  %v3128 = vunpack.c.l.b16 %v770
  %v3129 = vunpack.c.l.b16 %v771
  %v3130 = vunpack.c.l.b16 %v772
  %v3131 = vunpack.c.l.b16 %v773
  %v3132 = vunpack.c.l.b16 %v774
  %v3133 = vunpack.c.l.b16 %v775
  %v3134 = vunpack.c.l.b16 %v776
  %v3135 = vunpack.c.l.b16 %v777
  %v3136 = vunpack.c.l.b16 %v778
  %v3137 = vunpack.c.l.b16 %v779
  %v3138 = vunpack.c.l.b16 %v780
  %v3139 = vunpack.c.l.b16 %v781
  %v3140 = vunpack.c.l.b16 %v782
  %v3141 = vunpack.c.l.b16 %v783
  %v3142 = vunpack.c.l.b16 %v784
  %v3143 = vunpack.c.l.b16 %v785
  %v3144 = vunpack.c.l.b16 %v786
  %v3145 = vunpack.c.l.b16 %v787
  %v3146 = vunpack.c.l.b16 %v788
  %v3147 = vunpack.c.l.b16 %v789
  %v3148 = vunpack.c.l.b16 %v790
  %v3149 = vunpack.c.l.b16 %v791
  %v3150 = vunpack.c.l.b16 %v792
  %v3151 = vunpack.c.l.b16 %v793
  %v3152 = vunpack.c.l.b16 %v794
  %v3153 = vunpack.c.l.b16 %v795
  %v3154 = vunpack.c.l.b16 %v796
  %v3155 = vunpack.c.l.b16 %v797
  %v3156 = vunpack.c.l.b16 %v798
  %v3157 = vunpack.c.l.b16 %v799
  %v3158 = vunpack.c.l.b16 %v800
  %v3159 = vunpack.c.l.b16 %v801
  %v3160 = vunpack.c.l.b16 %v802
  %v3161 = vunpack.c.l.b16 %v803
  %v3162 = vunpack.c.l.b16 %v804
  %v3163 = vunpack.c.l.b16 %v805
  %v3164 = vunpack.c.l.b16 %v806
  %v3165 = vunpack.c.l.b16 %v807
  %v3166 = vunpack.c.l.b16 %v808
  %v3167 = vunpack.c.l.b16 %v809
  %v3168 = vunpack.c.l.b16 %v810
  %v3169 = vunpack.c.l.b16 %v811
  %v3170 = vunpack.c.l.b16 %v812
  %v3171 = vunpack.c.l.b16 %v813
  %v3172 = vunpack.c.l.b16 %v814
  %v3173 = vunpack.c.l.b16 %v815
  %v3174 = vunpack.c.l.b16 %v816
  %v3175 = vunpack.c.l.b16 %v817
  %v3176 = vunpack.c.l.b16 %v818
  %v3177 = vunpack.c.l.b16 %v819
  %v3178 = vunpack.c.l.b16 %v820
  %v3179 = vunpack.c.l.b16 %v821
  %v3180 = vunpack.c.l.b16 %v822
  %v3181 = vunpack.c.l.b16 %v823
  %v3182 = vunpack.c.l.b16 %v824
  %v3183 = vunpack.c.l.b16 %v825
  %v3184 = vunpack.c.l.b16 %v826
  %v3185 = vunpack.c.l.b16 %v827
  %v3186 = vunpack.c.l.b16 %v828
  %v3187 = vunpack.c.l.b16 %v829
  %v3188 = vunpack.c.l.b16 %v830
  %v3189 = vunpack.c.l.b16 %v831
  %v3190 = vunpack.c.l.b16 %v832
  %v3191 = vunpack.c.l.b16 %v833
  %v3192 = vunpack.c.l.b16 %v834
  %v3193 = vunpack.c.l.b16 %v835
  %v3194 = vunpack.c.l.b16 %v836
  %v3195 = vunpack.c.l.b16 %v837
  %v3196 = vunpack.c.l.b16 %v838
  %v3197 = vunpack.c.l.b16 %v839
  %v3198 = vunpack.c.l.b16 %v840
  %v3199 = vunpack.c.l.b16 %v841
  %v3200 = vunpack.c.l.b16 %v842
  %v3201 = vunpack.c.l.b16 %v843
  %v3202 = vunpack.c.l.b16 %v844
  %v3203 = vunpack.c.l.b16 %v845
  %v3204 = vunpack.c.l.b16 %v846
  %v3205 = vunpack.c.l.b16 %v847
  %v3206 = vunpack.c.l.b16 %v848
  %v3207 = vunpack.c.l.b16 %v849
  %v3208 = vunpack.c.l.b16 %v850
  %v3209 = vpack.c.b16 %v2634, %v2633
  %v3210 = vpack.c.b16 %v2636, %v2635
  %v3211 = vpack.c.b16 %v2638, %v2637
  %v3212 = vpack.c.b16 %v2640, %v2639
  %v3213 = vpack.c.b16 %v2642, %v2641
  %v3214 = vpack.c.b16 %v2644, %v2643
  %v3215 = vpack.c.b16 %v2646, %v2645
  %v3216 = vpack.c.b16 %v2648, %v2647
  %v3217 = vpack.c.b16 %v2650, %v2649
  %v3218 = vpack.c.b16 %v2652, %v2651
  %v3219 = vpack.c.b16 %v2654, %v2653
  %v3220 = vpack.c.b16 %v2656, %v2655
  %v3221 = vpack.c.b16 %v2658, %v2657
  %v3222 = vpack.c.b16 %v2660, %v2659
  %v3223 = vpack.c.b16 %v2662, %v2661
  %v3224 = vpack.c.b16 %v2664, %v2663
  %v3225 = vpack.c.b16 %v2666, %v2665
  %v3226 = vpack.c.b16 %v2668, %v2667
  %v3227 = vpack.c.b16 %v2670, %v2669
  %v3228 = vpack.c.b16 %v2672, %v2671
  %v3229 = vpack.c.b16 %v2674, %v2673
  %v3230 = vpack.c.b16 %v2676, %v2675
  %v3231 = vpack.c.b16 %v2678, %v2677
  %v3232 = vpack.c.b16 %v2680, %v2679
  %v3233 = vpack.c.b16 %v2682, %v2681
  %v3234 = vpack.c.b16 %v2684, %v2683
  %v3235 = vpack.c.b16 %v2686, %v2685
  %v3236 = vpack.c.b16 %v2688, %v2687
  %v3237 = vpack.c.b16 %v2690, %v2689
  %v3238 = vpack.c.b16 %v2692, %v2691
  %v3239 = vpack.c.b16 %v2694, %v2693
  %v3240 = vpack.c.b16 %v2696, %v2695
  %v3241 = vpack.c.b16 %v2698, %v2697
  %v3242 = vpack.c.b16 %v2700, %v2699
  %v3243 = vpack.c.b16 %v2702, %v2701
  %v3244 = vpack.c.b16 %v2704, %v2703
  %v3245 = vpack.c.b16 %v2706, %v2705
  %v3246 = vpack.c.b16 %v2708, %v2707
  %v3247 = vpack.c.b16 %v2710, %v2709
  %v3248 = vpack.c.b16 %v2712, %v2711
  %v3249 = vpack.c.b16 %v2714, %v2713
  %v3250 = vpack.c.b16 %v2716, %v2715
  %v3251 = vpack.c.b16 %v2718, %v2717
  %v3252 = vpack.c.b16 %v2720, %v2719
  %v3253 = vpack.c.b16 %v2722, %v2721
  %v3254 = vpack.c.b16 %v2724, %v2723
  %v3255 = vpack.c.b16 %v2726, %v2725
  %v3256 = vpack.c.b16 %v2728, %v2727
  %v3257 = vpack.c.b16 %v2730, %v2729
  %v3258 = vpack.c.b16 %v2732, %v2731
  %v3259 = vpack.c.b16 %v2734, %v2733
  %v3260 = vpack.c.b16 %v2736, %v2735
  %v3261 = vpack.c.b16 %v2738, %v2737
  %v3262 = vpack.c.b16 %v2740, %v2739
  %v3263 = vpack.c.b16 %v2742, %v2741
  %v3264 = vpack.c.b16 %v2744, %v2743
  %v3265 = vpack.c.b16 %v2746, %v2745
  %v3266 = vpack.c.b16 %v2748, %v2747
  %v3267 = vpack.c.b16 %v2750, %v2749
  %v3268 = vpack.c.b16 %v2752, %v2751
  %v3269 = vpack.c.b16 %v2754, %v2753
  %v3270 = vpack.c.b16 %v2756, %v2755
  %v3271 = vpack.c.b16 %v2758, %v2757
  %v3272 = vpack.c.b16 %v2760, %v2759
  %v3273 = vpack.c.b16 %v2762, %v2761
  %v3274 = vpack.c.b16 %v2764, %v2763
  %v3275 = vpack.c.b16 %v2766, %v2765
  %v3276 = vpack.c.b16 %v2768, %v2767
  %v3277 = vpack.c.b16 %v2770, %v2769
  %v3278 = vpack.c.b16 %v2772, %v2771
  %v3279 = vpack.c.b16 %v2774, %v2773
  %v3280 = vpack.c.b16 %v2776, %v2775
  %v3281 = vpack.c.b16 %v2778, %v2777
  %v3282 = vpack.c.b16 %v2780, %v2779
  %v3283 = vpack.c.b16 %v2782, %v2781
  %v3284 = vpack.c.b16 %v2784, %v2783
  %v3285 = vpack.c.b16 %v2786, %v2785
  %v3286 = vpack.c.b16 %v2788, %v2787
  %v3287 = vpack.c.b16 %v2790, %v2789
  %v3288 = vpack.c.b16 %v2792, %v2791
  %v3289 = vpack.c.b16 %v2794, %v2793
  %v3290 = vpack.c.b16 %v2796, %v2795
  %v3291 = vpack.c.b16 %v2798, %v2797
  %v3292 = vpack.c.b16 %v2800, %v2799
  %v3293 = vpack.c.b16 %v2802, %v2801
  %v3294 = vpack.c.b16 %v2804, %v2803
  %v3295 = vpack.c.b16 %v2806, %v2805
  %v3296 = vpack.c.b16 %v2808, %v2807
  %v3297 = vpack.c.b16 %v2810, %v2809
  %v3298 = vpack.c.b16 %v2812, %v2811
  %v3299 = vpack.c.b16 %v2814, %v2813
  %v3300 = vpack.c.b16 %v2816, %v2815
  %v3301 = vpack.c.b16 %v2818, %v2817
  %v3302 = vpack.c.b16 %v2820, %v2819
  %v3303 = vpack.c.b16 %v2822, %v2821
  %v3304 = vpack.c.b16 %v2824, %v2823
  %v3305 = vpack.c.b16 %v2826, %v2825
  %v3306 = vpack.c.b16 %v2828, %v2827
  %v3307 = vpack.c.b16 %v2830, %v2829
  %v3308 = vpack.c.b16 %v2832, %v2831
  %v3309 = vpack.c.b16 %v2834, %v2833
  %v3310 = vpack.c.b16 %v2836, %v2835
  %v3311 = vpack.c.b16 %v2838, %v2837
  %v3312 = vpack.c.b16 %v2840, %v2839
  %v3313 = vpack.c.b16 %v2842, %v2841
  %v3314 = vpack.c.b16 %v2844, %v2843
  %v3315 = vpack.c.b16 %v2846, %v2845
  %v3316 = vpack.c.b16 %v2848, %v2847
  %v3317 = vpack.c.b16 %v2850, %v2849
  %v3318 = vpack.c.b16 %v2852, %v2851
  %v3319 = vpack.c.b16 %v2854, %v2853
  %v3320 = vpack.c.b16 %v2856, %v2855
  %v3321 = vpack.c.b16 %v2858, %v2857
  %v3322 = vpack.c.b16 %v2860, %v2859
  %v3323 = vpack.c.b16 %v2862, %v2861
  %v3324 = vpack.c.b16 %v2864, %v2863
  %v3325 = vpack.c.b16 %v2866, %v2865
  %v3326 = vpack.c.b16 %v2868, %v2867
  %v3327 = vpack.c.b16 %v2870, %v2869
  %v3328 = vpack.c.b16 %v2872, %v2871
  %v3329 = vpack.c.b16 %v2874, %v2873
  %v3330 = vpack.c.b16 %v2876, %v2875
  %v3331 = vpack.c.b16 %v2878, %v2877
  %v3332 = vpack.c.b16 %v2880, %v2879
  %v3333 = vpack.c.b16 %v2882, %v2881
  %v3334 = vpack.c.b16 %v2884, %v2883
  %v3335 = vpack.c.b16 %v2886, %v2885
  %v3336 = vpack.c.b16 %v2888, %v2887
  %v3337 = vpack.c.b16 %v2890, %v2889
  %v3338 = vpack.c.b16 %v2892, %v2891
  %v3339 = vpack.c.b16 %v2894, %v2893
  %v3340 = vpack.c.b16 %v2896, %v2895
  %v3341 = vpack.c.b16 %v2898, %v2897
  %v3342 = vpack.c.b16 %v2900, %v2899
  %v3343 = vpack.c.b16 %v2902, %v2901
  %v3344 = vpack.c.b16 %v2904, %v2903
  %v3345 = vpack.c.b16 %v2906, %v2905
  %v3346 = vpack.c.b16 %v2908, %v2907
  %v3347 = vpack.c.b16 %v2910, %v2909
  %v3348 = vpack.c.b16 %v2912, %v2911
  %v3349 = vpack.c.b16 %v2914, %v2913
  %v3350 = vpack.c.b16 %v2916, %v2915
  %v3351 = vpack.c.b16 %v2918, %v2917
  %v3352 = vpack.c.b16 %v2920, %v2919
  %v3353 = vpack.c.b16 %v2922, %v2921
  %v3354 = vpack.c.b16 %v2924, %v2923
  %v3355 = vpack.c.b16 %v2926, %v2925
  %v3356 = vpack.c.b16 %v2928, %v2927
  %v3357 = vpack.c.b16 %v2930, %v2929
  %v3358 = vpack.c.b16 %v2932, %v2931
  %v3359 = vpack.c.b16 %v2934, %v2933
  %v3360 = vpack.c.b16 %v2936, %v2935
  %v3361 = vpack.c.b16 %v2938, %v2937
  %v3362 = vpack.c.b16 %v2940, %v2939
  %v3363 = vpack.c.b16 %v2942, %v2941
  %v3364 = vpack.c.b16 %v2944, %v2943
  %v3365 = vpack.c.b16 %v2946, %v2945
  %v3366 = vpack.c.b16 %v2948, %v2947
  %v3367 = vpack.c.b16 %v2950, %v2949
  %v3368 = vpack.c.b16 %v2952, %v2951
  %v3369 = vpack.c.b16 %v2954, %v2953
  %v3370 = vpack.c.b16 %v2956, %v2955
  %v3371 = vpack.c.b16 %v2958, %v2957
  %v3372 = vpack.c.b16 %v2960, %v2959
  %v3373 = vpack.c.b16 %v2962, %v2961
  %v3374 = vpack.c.b16 %v2964, %v2963
  %v3375 = vpack.c.b16 %v2966, %v2965
  %v3376 = vpack.c.b16 %v2968, %v2967
  %v3377 = vpack.c.b16 %v2970, %v2969
  %v3378 = vpack.c.b16 %v2972, %v2971
  %v3379 = vpack.c.b16 %v2974, %v2973
  %v3380 = vpack.c.b16 %v2976, %v2975
  %v3381 = vpack.c.b16 %v2978, %v2977
  %v3382 = vpack.c.b16 %v2980, %v2979
  %v3383 = vpack.c.b16 %v2982, %v2981
  %v3384 = vpack.c.b16 %v2984, %v2983
  %v3385 = vpack.c.b16 %v2986, %v2985
  %v3386 = vpack.c.b16 %v2988, %v2987
  %v3387 = vpack.c.b16 %v2990, %v2989
  %v3388 = vpack.c.b16 %v2992, %v2991
  %v3389 = vpack.c.b16 %v2994, %v2993
  %v3390 = vpack.c.b16 %v2996, %v2995
  %v3391 = vpack.c.b16 %v2998, %v2997
  %v3392 = vpack.c.b16 %v3000, %v2999
  %v3393 = vpack.c.b16 %v3002, %v3001
  %v3394 = vpack.c.b16 %v3004, %v3003
  %v3395 = vpack.c.b16 %v3006, %v3005
  %v3396 = vpack.c.b16 %v3008, %v3007
  %v3397 = vpack.c.b16 %v3010, %v3009
  %v3398 = vpack.c.b16 %v3012, %v3011
  %v3399 = vpack.c.b16 %v3014, %v3013
  %v3400 = vpack.c.b16 %v3016, %v3015
  %v3401 = vpack.c.b16 %v3018, %v3017
  %v3402 = vpack.c.b16 %v3020, %v3019
  %v3403 = vpack.c.b16 %v3022, %v3021
  %v3404 = vpack.c.b16 %v3024, %v3023
  %v3405 = vpack.c.b16 %v3026, %v3025
  %v3406 = vpack.c.b16 %v3028, %v3027
  %v3407 = vpack.c.b16 %v3030, %v3029
  %v3408 = vpack.c.b16 %v3032, %v3031
  %v3409 = vpack.c.b16 %v3034, %v3033
  %v3410 = vpack.c.b16 %v3036, %v3035
  %v3411 = vpack.c.b16 %v3038, %v3037
  %v3412 = vpack.c.b16 %v3040, %v3039
  %v3413 = vpack.c.b16 %v3042, %v3041
  %v3414 = vpack.c.b16 %v3044, %v3043
  %v3415 = vpack.c.b16 %v3046, %v3045
  %v3416 = vpack.c.b16 %v3048, %v3047
  %v3417 = vpack.c.b16 %v3050, %v3049
  %v3418 = vpack.c.b16 %v3052, %v3051
  %v3419 = vpack.c.b16 %v3054, %v3053
  %v3420 = vpack.c.b16 %v3056, %v3055
  %v3421 = vpack.c.b16 %v3058, %v3057
  %v3422 = vpack.c.b16 %v3060, %v3059
  %v3423 = vpack.c.b16 %v3062, %v3061
  %v3424 = vpack.c.b16 %v3064, %v3063
  %v3425 = vpack.c.b16 %v3066, %v3065
  %v3426 = vpack.c.b16 %v3068, %v3067
  %v3427 = vpack.c.b16 %v3070, %v3069
  %v3428 = vpack.c.b16 %v3072, %v3071
  %v3429 = vpack.c.b16 %v3074, %v3073
  %v3430 = vpack.c.b16 %v3076, %v3075
  %v3431 = vpack.c.b16 %v3078, %v3077
  %v3432 = vpack.c.b16 %v3080, %v3079
  %v3433 = vpack.c.b16 %v3082, %v3081
  %v3434 = vpack.c.b16 %v3084, %v3083
  %v3435 = vpack.c.b16 %v3086, %v3085
  %v3436 = vpack.c.b16 %v3088, %v3087
  %v3437 = vpack.c.b16 %v3090, %v3089
  %v3438 = vpack.c.b16 %v3092, %v3091
  %v3439 = vpack.c.b16 %v3094, %v3093
  %v3440 = vpack.c.b16 %v3096, %v3095
  %v3441 = vpack.c.b16 %v3098, %v3097
  %v3442 = vpack.c.b16 %v3100, %v3099
  %v3443 = vpack.c.b16 %v3102, %v3101
  %v3444 = vpack.c.b16 %v3104, %v3103
  %v3445 = vpack.c.b16 %v3106, %v3105
  %v3446 = vpack.c.b16 %v3108, %v3107
  %v3447 = vpack.c.b16 %v3110, %v3109
  %v3448 = vpack.c.b16 %v3112, %v3111
  %v3449 = vpack.c.b16 %v3114, %v3113
  %v3450 = vpack.c.b16 %v3116, %v3115
  %v3451 = vpack.c.b16 %v3118, %v3117
  %v3452 = vpack.c.b16 %v3120, %v3119
  %v3453 = vpack.c.b16 %v3122, %v3121
  %v3454 = vpack.c.b16 %v3124, %v3123
  %v3455 = vpack.c.b16 %v3126, %v3125
  %v3456 = vpack.c.b16 %v3128, %v3127
  %v3457 = vpack.c.b16 %v3130, %v3129
  %v3458 = vpack.c.b16 %v3132, %v3131
  %v3459 = vpack.c.b16 %v3134, %v3133
  %v3460 = vpack.c.b16 %v3136, %v3135
  %v3461 = vpack.c.b16 %v3138, %v3137
  %v3462 = vpack.c.b16 %v3140, %v3139
  %v3463 = vpack.c.b16 %v3142, %v3141
  %v3464 = vpack.c.b16 %v3144, %v3143
  %v3465 = vpack.c.b16 %v3146, %v3145
  %v3466 = vpack.c.b16 %v3148, %v3147
  %v3467 = vpack.c.b16 %v3150, %v3149
  %v3468 = vpack.c.b16 %v3152, %v3151
  %v3469 = vpack.c.b16 %v3154, %v3153
  %v3470 = vpack.c.b16 %v3156, %v3155
  %v3471 = vpack.c.b16 %v3158, %v3157
  %v3472 = vpack.c.b16 %v3160, %v3159
  %v3473 = vpack.c.b16 %v3162, %v3161
  %v3474 = vpack.c.b16 %v3164, %v3163
  %v3475 = vpack.c.b16 %v3166, %v3165
  %v3476 = vpack.c.b16 %v3168, %v3167
  %v3477 = vpack.c.b16 %v3170, %v3169
  %v3478 = vpack.c.b16 %v3172, %v3171
  %v3479 = vpack.c.b16 %v3174, %v3173
  %v3480 = vpack.c.b16 %v3176, %v3175
  %v3481 = vpack.c.b16 %v3178, %v3177
  %v3482 = vpack.c.b16 %v3180, %v3179
  %v3483 = vpack.c.b16 %v3182, %v3181
  %v3484 = vpack.c.b16 %v3184, %v3183
  %v3485 = vpack.c.b16 %v3186, %v3185
  %v3486 = vpack.c.b16 %v3188, %v3187
  %v3487 = vpack.c.b16 %v3190, %v3189
  %v3488 = vpack.c.b16 %v3192, %v3191
  %v3489 = vpack.c.b16 %v3194, %v3193
  %v3490 = vpack.c.b16 %v3196, %v3195
  %v3491 = vpack.c.b16 %v3198, %v3197
  %v3492 = vpack.c.b16 %v3200, %v3199
  %v3493 = vpack.c.b16 %v3202, %v3201
  %v3494 = vpack.c.b16 %v3204, %v3203
  %v3495 = vpack.c.b16 %v3206, %v3205
  %v3496 = vpack.c.b16 %v3208, %v3207
  %3785 = vmatpush.bf16.msra.mxu0 %v3216
  %3786 = vmatpush.bf16.msra.mxu0 %v3215
  %3787 = vmatpush.bf16.msra.mxu0 %v3214
  %3788 = vmatpush.bf16.msra.mxu0 %v3213
  %3789 = vmatpush.bf16.msra.mxu0 %v3212
  %3790 = vmatpush.bf16.msra.mxu0 %v3211
  %3791 = vmatpush.bf16.msra.mxu0 %v3210
  %3792 = vmatpush.bf16.msra.mxu0 %v3209
  %3793 = vmatmul.bf16.gmra.mxu0 %v1553
  %v3794 = vpop.f32.mrf.mxu0
  %v3795 = vadd.f32 0.0, %v3794
  %v3796 = vpop.f32.mrf.mxu0
  %v3797 = vadd.f32 0.0, %v3796
  %3798 = vmatmul.bf16.gmra.mxu0 %v1589
  %v3799 = vpop.f32.mrf.mxu0
  %v3800 = vadd.f32 0.0, %v3799
  %v3801 = vpop.f32.mrf.mxu0
  %v3802 = vadd.f32 0.0, %v3801
  %3803 = vmatmul.bf16.gmra.mxu0 %v1625
  %v3804 = vpop.f32.mrf.mxu0
  %v3805 = vadd.f32 0.0, %v3804
  %v3806 = vpop.f32.mrf.mxu0
  %v3807 = vadd.f32 0.0, %v3806
  %3808 = vmatmul.bf16.gmra.mxu0 %v1661
  %v3809 = vpop.f32.mrf.mxu0
  %v3810 = vadd.f32 0.0, %v3809
  %v3811 = vpop.f32.mrf.mxu0
  %v3812 = vadd.f32 0.0, %v3811
  %3813 = vmatmul.bf16.gmra.mxu0 %v1697
  %v3814 = vpop.f32.mrf.mxu0
  %v3815 = vadd.f32 0.0, %v3814
  %v3816 = vpop.f32.mrf.mxu0
  %v3817 = vadd.f32 0.0, %v3816
  %3818 = vmatmul.bf16.gmra.mxu0 %v1733
  %v3819 = vpop.f32.mrf.mxu0
  %v3820 = vadd.f32 0.0, %v3819
  %v3821 = vpop.f32.mrf.mxu0
  %v3822 = vadd.f32 0.0, %v3821
  %3823 = vmatmul.bf16.gmra.mxu0 %v1769
  %v3824 = vpop.f32.mrf.mxu0
  %v3825 = vadd.f32 0.0, %v3824
  %v3826 = vpop.f32.mrf.mxu0
  %3827 = vdwg.mxu0
  %3828 = vmatpush.bf16.msra.mxu0 %v3224
  %3829 = vmatpush.bf16.msra.mxu0 %v3223
  %3830 = vmatpush.bf16.msra.mxu0 %v3222
  %3831 = vmatpush.bf16.msra.mxu0 %v3221
  %3832 = vmatpush.bf16.msra.mxu0 %v3220
  %3833 = vmatpush.bf16.msra.mxu0 %v3219
  %3834 = vmatpush.bf16.msra.mxu0 %v3218
  %3835 = vmatpush.bf16.msra.mxu0 %v3217
  %3836 = vmatmul.bf16.gmra.mxu0 %v1554
  %v3837 = vpop.f32.mrf.mxu0
  %v3838 = vadd.f32 %v3795, %v3837
  %v3839 = vpop.f32.mrf.mxu0
  %v3840 = vadd.f32 %v3797, %v3839
  %3841 = vmatmul.bf16.gmra.mxu0 %v1590
  %v3842 = vpop.f32.mrf.mxu0
  %v3843 = vadd.f32 %v3800, %v3842
  %v3844 = vpop.f32.mrf.mxu0
  %v3845 = vadd.f32 %v3802, %v3844
  %3846 = vmatmul.bf16.gmra.mxu0 %v1626
  %v3847 = vpop.f32.mrf.mxu0
  %v3848 = vadd.f32 %v3805, %v3847
  %v3849 = vpop.f32.mrf.mxu0
  %v3850 = vadd.f32 %v3807, %v3849
  %3851 = vmatmul.bf16.gmra.mxu0 %v1662
  %v3852 = vpop.f32.mrf.mxu0
  %v3853 = vadd.f32 %v3810, %v3852
  %v3854 = vpop.f32.mrf.mxu0
  %v3855 = vadd.f32 %v3812, %v3854
  %3856 = vmatmul.bf16.gmra.mxu0 %v1698
  %v3857 = vpop.f32.mrf.mxu0
  %v3858 = vadd.f32 %v3815, %v3857
  %v3859 = vpop.f32.mrf.mxu0
  %v3860 = vadd.f32 %v3817, %v3859
  %3861 = vmatmul.bf16.gmra.mxu0 %v1734
  %v3862 = vpop.f32.mrf.mxu0
  %v3863 = vadd.f32 %v3820, %v3862
  %v3864 = vpop.f32.mrf.mxu0
  %v3865 = vadd.f32 %v3822, %v3864
  %3866 = vmatmul.bf16.gmra.mxu0 %v1770
  %v3867 = vpop.f32.mrf.mxu0
  %v3868 = vadd.f32 %v3825, %v3867
  %v3869 = vpop.f32.mrf.mxu0
  %3870 = vdwg.mxu0
  %3871 = vmatpush.bf16.msra.mxu0 %v3232
  %3872 = vmatpush.bf16.msra.mxu0 %v3231
  %3873 = vmatpush.bf16.msra.mxu0 %v3230
  %3874 = vmatpush.bf16.msra.mxu0 %v3229
  %3875 = vmatpush.bf16.msra.mxu0 %v3228
  %3876 = vmatpush.bf16.msra.mxu0 %v3227
  %3877 = vmatpush.bf16.msra.mxu0 %v3226
  %3878 = vmatpush.bf16.msra.mxu0 %v3225
  %3879 = vmatmul.bf16.gmra.mxu0 %v1555
  %v3880 = vpop.f32.mrf.mxu0
  %v3881 = vadd.f32 %v3838, %v3880
  %v3882 = vpop.f32.mrf.mxu0
  %v3883 = vadd.f32 %v3840, %v3882
  %3884 = vmatmul.bf16.gmra.mxu0 %v1591
  %v3885 = vpop.f32.mrf.mxu0
  %v3886 = vadd.f32 %v3843, %v3885
  %v3887 = vpop.f32.mrf.mxu0
  %v3888 = vadd.f32 %v3845, %v3887
  %3889 = vmatmul.bf16.gmra.mxu0 %v1627
  %v3890 = vpop.f32.mrf.mxu0
  %v3891 = vadd.f32 %v3848, %v3890
  %v3892 = vpop.f32.mrf.mxu0
  %v3893 = vadd.f32 %v3850, %v3892
  %3894 = vmatmul.bf16.gmra.mxu0 %v1663
  %v3895 = vpop.f32.mrf.mxu0
  %v3896 = vadd.f32 %v3853, %v3895
  %v3897 = vpop.f32.mrf.mxu0
  %v3898 = vadd.f32 %v3855, %v3897
  %3899 = vmatmul.bf16.gmra.mxu0 %v1699
  %v3900 = vpop.f32.mrf.mxu0
  %v3901 = vadd.f32 %v3858, %v3900
  %v3902 = vpop.f32.mrf.mxu0
  %v3903 = vadd.f32 %v3860, %v3902
  %3904 = vmatmul.bf16.gmra.mxu0 %v1735
  %v3905 = vpop.f32.mrf.mxu0
  %v3906 = vadd.f32 %v3863, %v3905
  %v3907 = vpop.f32.mrf.mxu0
  %v3908 = vadd.f32 %v3865, %v3907
  %3909 = vmatmul.bf16.gmra.mxu0 %v1771
  %v3910 = vpop.f32.mrf.mxu0
  %v3911 = vadd.f32 %v3868, %v3910
  %v3912 = vpop.f32.mrf.mxu0
  %3913 = vdwg.mxu0
  %3914 = vmatpush.bf16.msra.mxu0 %v3240
  %3915 = vmatpush.bf16.msra.mxu0 %v3239
  %3916 = vmatpush.bf16.msra.mxu0 %v3238
  %3917 = vmatpush.bf16.msra.mxu0 %v3237
  %3918 = vmatpush.bf16.msra.mxu0 %v3236
  %3919 = vmatpush.bf16.msra.mxu0 %v3235
  %3920 = vmatpush.bf16.msra.mxu0 %v3234
  %3921 = vmatpush.bf16.msra.mxu0 %v3233
  %3922 = vmatmul.bf16.gmra.mxu0 %v1556
  %v3923 = vpop.f32.mrf.mxu0
  %v3924 = vadd.f32 %v3881, %v3923
  %v3925 = vpop.f32.mrf.mxu0
  %v3926 = vadd.f32 %v3883, %v3925
  %3927 = vmatmul.bf16.gmra.mxu0 %v1592
  %v3928 = vpop.f32.mrf.mxu0
  %v3929 = vadd.f32 %v3886, %v3928
  %v3930 = vpop.f32.mrf.mxu0
  %v3931 = vadd.f32 %v3888, %v3930
  %3932 = vmatmul.bf16.gmra.mxu0 %v1628
  %v3933 = vpop.f32.mrf.mxu0
  %v3934 = vadd.f32 %v3891, %v3933
  %v3935 = vpop.f32.mrf.mxu0
  %v3936 = vadd.f32 %v3893, %v3935
  %3937 = vmatmul.bf16.gmra.mxu0 %v1664
  %v3938 = vpop.f32.mrf.mxu0
  %v3939 = vadd.f32 %v3896, %v3938
  %v3940 = vpop.f32.mrf.mxu0
  %v3941 = vadd.f32 %v3898, %v3940
  %3942 = vmatmul.bf16.gmra.mxu0 %v1700
  %v3943 = vpop.f32.mrf.mxu0
  %v3944 = vadd.f32 %v3901, %v3943
  %v3945 = vpop.f32.mrf.mxu0
  %v3946 = vadd.f32 %v3903, %v3945
  %3947 = vmatmul.bf16.gmra.mxu0 %v1736
  %v3948 = vpop.f32.mrf.mxu0
  %v3949 = vadd.f32 %v3906, %v3948
  %v3950 = vpop.f32.mrf.mxu0
  %v3951 = vadd.f32 %v3908, %v3950
  %3952 = vmatmul.bf16.gmra.mxu0 %v1772
  %v3953 = vpop.f32.mrf.mxu0
  %v3954 = vadd.f32 %v3911, %v3953
  %v3955 = vpop.f32.mrf.mxu0
  %3956 = vdwg.mxu0
  %3957 = vmatpush.bf16.msra.mxu0 %v3248
  %3958 = vmatpush.bf16.msra.mxu0 %v3247
  %3959 = vmatpush.bf16.msra.mxu0 %v3246
  %3960 = vmatpush.bf16.msra.mxu0 %v3245
  %3961 = vmatpush.bf16.msra.mxu0 %v3244
  %3962 = vmatpush.bf16.msra.mxu0 %v3243
  %3963 = vmatpush.bf16.msra.mxu0 %v3242
  %3964 = vmatpush.bf16.msra.mxu0 %v3241
  %3965 = vmatmul.bf16.gmra.mxu0 %v1557
  %v3966 = vpop.f32.mrf.mxu0
  %v3967 = vadd.f32 %v3924, %v3966
  %v3968 = vpop.f32.mrf.mxu0
  %v3969 = vadd.f32 %v3926, %v3968
  %3970 = vmatmul.bf16.gmra.mxu0 %v1593
  %v3971 = vpop.f32.mrf.mxu0
  %v3972 = vadd.f32 %v3929, %v3971
  %v3973 = vpop.f32.mrf.mxu0
  %v3974 = vadd.f32 %v3931, %v3973
  %3975 = vmatmul.bf16.gmra.mxu0 %v1629
  %v3976 = vpop.f32.mrf.mxu0
  %v3977 = vadd.f32 %v3934, %v3976
  %v3978 = vpop.f32.mrf.mxu0
  %v3979 = vadd.f32 %v3936, %v3978
  %3980 = vmatmul.bf16.gmra.mxu0 %v1665
  %v3981 = vpop.f32.mrf.mxu0
  %v3982 = vadd.f32 %v3939, %v3981
  %v3983 = vpop.f32.mrf.mxu0
  %v3984 = vadd.f32 %v3941, %v3983
  %3985 = vmatmul.bf16.gmra.mxu0 %v1701
  %v3986 = vpop.f32.mrf.mxu0
  %v3987 = vadd.f32 %v3944, %v3986
  %v3988 = vpop.f32.mrf.mxu0
  %v3989 = vadd.f32 %v3946, %v3988
  %3990 = vmatmul.bf16.gmra.mxu0 %v1737
  %v3991 = vpop.f32.mrf.mxu0
  %v3992 = vadd.f32 %v3949, %v3991
  %v3993 = vpop.f32.mrf.mxu0
  %v3994 = vadd.f32 %v3951, %v3993
  %3995 = vmatmul.bf16.gmra.mxu0 %v1773
  %v3996 = vpop.f32.mrf.mxu0
  %v3997 = vadd.f32 %v3954, %v3996
  %v3998 = vpop.f32.mrf.mxu0
  %3999 = vdwg.mxu0
  %4000 = vmatpush.bf16.msra.mxu0 %v3256
  %4001 = vmatpush.bf16.msra.mxu0 %v3255
  %4002 = vmatpush.bf16.msra.mxu0 %v3254
  %4003 = vmatpush.bf16.msra.mxu0 %v3253
  %4004 = vmatpush.bf16.msra.mxu0 %v3252
  %4005 = vmatpush.bf16.msra.mxu0 %v3251
  %4006 = vmatpush.bf16.msra.mxu0 %v3250
  %4007 = vmatpush.bf16.msra.mxu0 %v3249
  %4008 = vmatmul.bf16.gmra.mxu0 %v1558
  %v4009 = vpop.f32.mrf.mxu0
  %v4010 = vadd.f32 %v3967, %v4009
  %v4011 = vpop.f32.mrf.mxu0
  %v4012 = vadd.f32 %v3969, %v4011
  %4013 = vmatmul.bf16.gmra.mxu0 %v1594
  %v4014 = vpop.f32.mrf.mxu0
  %v4015 = vadd.f32 %v3972, %v4014
  %v4016 = vpop.f32.mrf.mxu0
  %v4017 = vadd.f32 %v3974, %v4016
  %4018 = vmatmul.bf16.gmra.mxu0 %v1630
  %v4019 = vpop.f32.mrf.mxu0
  %v4020 = vadd.f32 %v3977, %v4019
  %v4021 = vpop.f32.mrf.mxu0
  %v4022 = vadd.f32 %v3979, %v4021
  %4023 = vmatmul.bf16.gmra.mxu0 %v1666
  %v4024 = vpop.f32.mrf.mxu0
  %v4025 = vadd.f32 %v3982, %v4024
  %v4026 = vpop.f32.mrf.mxu0
  %v4027 = vadd.f32 %v3984, %v4026
  %4028 = vmatmul.bf16.gmra.mxu0 %v1702
  %v4029 = vpop.f32.mrf.mxu0
  %v4030 = vadd.f32 %v3987, %v4029
  %v4031 = vpop.f32.mrf.mxu0
  %v4032 = vadd.f32 %v3989, %v4031
  %4033 = vmatmul.bf16.gmra.mxu0 %v1738
  %v4034 = vpop.f32.mrf.mxu0
  %v4035 = vadd.f32 %v3992, %v4034
  %v4036 = vpop.f32.mrf.mxu0
  %v4037 = vadd.f32 %v3994, %v4036
  %4038 = vmatmul.bf16.gmra.mxu0 %v1774
  %v4039 = vpop.f32.mrf.mxu0
  %v4040 = vadd.f32 %v3997, %v4039
  %v4041 = vpop.f32.mrf.mxu0
  %4042 = vdwg.mxu0
  %4043 = vmatpush.bf16.msra.mxu0 %v3264
  %4044 = vmatpush.bf16.msra.mxu0 %v3263
  %4045 = vmatpush.bf16.msra.mxu0 %v3262
  %4046 = vmatpush.bf16.msra.mxu0 %v3261
  %4047 = vmatpush.bf16.msra.mxu0 %v3260
  %4048 = vmatpush.bf16.msra.mxu0 %v3259
  %4049 = vmatpush.bf16.msra.mxu0 %v3258
  %4050 = vmatpush.bf16.msra.mxu0 %v3257
  %4051 = vmatmul.bf16.gmra.mxu0 %v1559
  %v4052 = vpop.f32.mrf.mxu0
  %v4053 = vadd.f32 %v4010, %v4052
  %v4054 = vpop.f32.mrf.mxu0
  %v4055 = vadd.f32 %v4012, %v4054
  %4056 = vmatmul.bf16.gmra.mxu0 %v1595
  %v4057 = vpop.f32.mrf.mxu0
  %v4058 = vadd.f32 %v4015, %v4057
  %v4059 = vpop.f32.mrf.mxu0
  %v4060 = vadd.f32 %v4017, %v4059
  %4061 = vmatmul.bf16.gmra.mxu0 %v1631
  %v4062 = vpop.f32.mrf.mxu0
  %v4063 = vadd.f32 %v4020, %v4062
  %v4064 = vpop.f32.mrf.mxu0
  %v4065 = vadd.f32 %v4022, %v4064
  %4066 = vmatmul.bf16.gmra.mxu0 %v1667
  %v4067 = vpop.f32.mrf.mxu0
  %v4068 = vadd.f32 %v4025, %v4067
  %v4069 = vpop.f32.mrf.mxu0
  %v4070 = vadd.f32 %v4027, %v4069
  %4071 = vmatmul.bf16.gmra.mxu0 %v1703
  %v4072 = vpop.f32.mrf.mxu0
  %v4073 = vadd.f32 %v4030, %v4072
  %v4074 = vpop.f32.mrf.mxu0
  %v4075 = vadd.f32 %v4032, %v4074
  %4076 = vmatmul.bf16.gmra.mxu0 %v1739
  %v4077 = vpop.f32.mrf.mxu0
  %v4078 = vadd.f32 %v4035, %v4077
  %v4079 = vpop.f32.mrf.mxu0
  %v4080 = vadd.f32 %v4037, %v4079
  %4081 = vmatmul.bf16.gmra.mxu0 %v1775
  %v4082 = vpop.f32.mrf.mxu0
  %v4083 = vadd.f32 %v4040, %v4082
  %v4084 = vpop.f32.mrf.mxu0
  %4085 = vdwg.mxu0
  %4086 = vmatpush.bf16.msra.mxu0 %v3272
  %4087 = vmatpush.bf16.msra.mxu0 %v3271
  %4088 = vmatpush.bf16.msra.mxu0 %v3270
  %4089 = vmatpush.bf16.msra.mxu0 %v3269
  %4090 = vmatpush.bf16.msra.mxu0 %v3268
  %4091 = vmatpush.bf16.msra.mxu0 %v3267
  %4092 = vmatpush.bf16.msra.mxu0 %v3266
  %4093 = vmatpush.bf16.msra.mxu0 %v3265
  %4094 = vmatmul.bf16.gmra.mxu0 %v1560
  %v4095 = vpop.f32.mrf.mxu0
  %v4096 = vadd.f32 %v4053, %v4095
  %v4097 = vpop.f32.mrf.mxu0
  %v4098 = vadd.f32 %v4055, %v4097
  %4099 = vmatmul.bf16.gmra.mxu0 %v1596
  %v4100 = vpop.f32.mrf.mxu0
  %v4101 = vadd.f32 %v4058, %v4100
  %v4102 = vpop.f32.mrf.mxu0
  %v4103 = vadd.f32 %v4060, %v4102
  %4104 = vmatmul.bf16.gmra.mxu0 %v1632
  %v4105 = vpop.f32.mrf.mxu0
  %v4106 = vadd.f32 %v4063, %v4105
  %v4107 = vpop.f32.mrf.mxu0
  %v4108 = vadd.f32 %v4065, %v4107
  %4109 = vmatmul.bf16.gmra.mxu0 %v1668
  %v4110 = vpop.f32.mrf.mxu0
  %v4111 = vadd.f32 %v4068, %v4110
  %v4112 = vpop.f32.mrf.mxu0
  %v4113 = vadd.f32 %v4070, %v4112
  %4114 = vmatmul.bf16.gmra.mxu0 %v1704
  %v4115 = vpop.f32.mrf.mxu0
  %v4116 = vadd.f32 %v4073, %v4115
  %v4117 = vpop.f32.mrf.mxu0
  %v4118 = vadd.f32 %v4075, %v4117
  %4119 = vmatmul.bf16.gmra.mxu0 %v1740
  %v4120 = vpop.f32.mrf.mxu0
  %v4121 = vadd.f32 %v4078, %v4120
  %v4122 = vpop.f32.mrf.mxu0
  %v4123 = vadd.f32 %v4080, %v4122
  %4124 = vmatmul.bf16.gmra.mxu0 %v1776
  %v4125 = vpop.f32.mrf.mxu0
  %v4126 = vadd.f32 %v4083, %v4125
  %v4127 = vpop.f32.mrf.mxu0
  %4128 = vdwg.mxu0
  %4129 = vmatpush.bf16.msra.mxu0 %v3280
  %4130 = vmatpush.bf16.msra.mxu0 %v3279
  %4131 = vmatpush.bf16.msra.mxu0 %v3278
  %4132 = vmatpush.bf16.msra.mxu0 %v3277
  %4133 = vmatpush.bf16.msra.mxu0 %v3276
  %4134 = vmatpush.bf16.msra.mxu0 %v3275
  %4135 = vmatpush.bf16.msra.mxu0 %v3274
  %4136 = vmatpush.bf16.msra.mxu0 %v3273
  %4137 = vmatmul.bf16.gmra.mxu0 %v1561
  %v4138 = vpop.f32.mrf.mxu0
  %v4139 = vadd.f32 %v4096, %v4138
  %v4140 = vpop.f32.mrf.mxu0
  %v4141 = vadd.f32 %v4098, %v4140
  %4142 = vmatmul.bf16.gmra.mxu0 %v1597
  %v4143 = vpop.f32.mrf.mxu0
  %v4144 = vadd.f32 %v4101, %v4143
  %v4145 = vpop.f32.mrf.mxu0
  %v4146 = vadd.f32 %v4103, %v4145
  %4147 = vmatmul.bf16.gmra.mxu0 %v1633
  %v4148 = vpop.f32.mrf.mxu0
  %v4149 = vadd.f32 %v4106, %v4148
  %v4150 = vpop.f32.mrf.mxu0
  %v4151 = vadd.f32 %v4108, %v4150
  %4152 = vmatmul.bf16.gmra.mxu0 %v1669
  %v4153 = vpop.f32.mrf.mxu0
  %v4154 = vadd.f32 %v4111, %v4153
  %v4155 = vpop.f32.mrf.mxu0
  %v4156 = vadd.f32 %v4113, %v4155
  %4157 = vmatmul.bf16.gmra.mxu0 %v1705
  %v4158 = vpop.f32.mrf.mxu0
  %v4159 = vadd.f32 %v4116, %v4158
  %v4160 = vpop.f32.mrf.mxu0
  %v4161 = vadd.f32 %v4118, %v4160
  %4162 = vmatmul.bf16.gmra.mxu0 %v1741
  %v4163 = vpop.f32.mrf.mxu0
  %v4164 = vadd.f32 %v4121, %v4163
  %v4165 = vpop.f32.mrf.mxu0
  %v4166 = vadd.f32 %v4123, %v4165
  %4167 = vmatmul.bf16.gmra.mxu0 %v1777
  %v4168 = vpop.f32.mrf.mxu0
  %v4169 = vadd.f32 %v4126, %v4168
  %v4170 = vpop.f32.mrf.mxu0
  %4171 = vdwg.mxu0
  %4172 = vmatpush.bf16.msra.mxu0 %v3288
  %4173 = vmatpush.bf16.msra.mxu0 %v3287
  %4174 = vmatpush.bf16.msra.mxu0 %v3286
  %4175 = vmatpush.bf16.msra.mxu0 %v3285
  %4176 = vmatpush.bf16.msra.mxu0 %v3284
  %4177 = vmatpush.bf16.msra.mxu0 %v3283
  %4178 = vmatpush.bf16.msra.mxu0 %v3282
  %4179 = vmatpush.bf16.msra.mxu0 %v3281
  %4180 = vmatmul.bf16.gmra.mxu0 %v1562
  %v4181 = vpop.f32.mrf.mxu0
  %v4182 = vadd.f32 %v4139, %v4181
  %v4183 = vpop.f32.mrf.mxu0
  %v4184 = vadd.f32 %v4141, %v4183
  %4185 = vmatmul.bf16.gmra.mxu0 %v1598
  %v4186 = vpop.f32.mrf.mxu0
  %v4187 = vadd.f32 %v4144, %v4186
  %v4188 = vpop.f32.mrf.mxu0
  %v4189 = vadd.f32 %v4146, %v4188
  %4190 = vmatmul.bf16.gmra.mxu0 %v1634
  %v4191 = vpop.f32.mrf.mxu0
  %v4192 = vadd.f32 %v4149, %v4191
  %v4193 = vpop.f32.mrf.mxu0
  %v4194 = vadd.f32 %v4151, %v4193
  %4195 = vmatmul.bf16.gmra.mxu0 %v1670
  %v4196 = vpop.f32.mrf.mxu0
  %v4197 = vadd.f32 %v4154, %v4196
  %v4198 = vpop.f32.mrf.mxu0
  %v4199 = vadd.f32 %v4156, %v4198
  %4200 = vmatmul.bf16.gmra.mxu0 %v1706
  %v4201 = vpop.f32.mrf.mxu0
  %v4202 = vadd.f32 %v4159, %v4201
  %v4203 = vpop.f32.mrf.mxu0
  %v4204 = vadd.f32 %v4161, %v4203
  %4205 = vmatmul.bf16.gmra.mxu0 %v1742
  %v4206 = vpop.f32.mrf.mxu0
  %v4207 = vadd.f32 %v4164, %v4206
  %v4208 = vpop.f32.mrf.mxu0
  %v4209 = vadd.f32 %v4166, %v4208
  %4210 = vmatmul.bf16.gmra.mxu0 %v1778
  %v4211 = vpop.f32.mrf.mxu0
  %v4212 = vadd.f32 %v4169, %v4211
  %v4213 = vpop.f32.mrf.mxu0
  %4214 = vdwg.mxu0
  %4215 = vmatpush.bf16.msra.mxu0 %v3296
  %4216 = vmatpush.bf16.msra.mxu0 %v3295
  %4217 = vmatpush.bf16.msra.mxu0 %v3294
  %4218 = vmatpush.bf16.msra.mxu0 %v3293
  %4219 = vmatpush.bf16.msra.mxu0 %v3292
  %4220 = vmatpush.bf16.msra.mxu0 %v3291
  %4221 = vmatpush.bf16.msra.mxu0 %v3290
  %4222 = vmatpush.bf16.msra.mxu0 %v3289
  %4223 = vmatmul.bf16.gmra.mxu0 %v1563
  %v4224 = vpop.f32.mrf.mxu0
  %v4225 = vadd.f32 %v4182, %v4224
  %v4226 = vpop.f32.mrf.mxu0
  %v4227 = vadd.f32 %v4184, %v4226
  %4228 = vmatmul.bf16.gmra.mxu0 %v1599
  %v4229 = vpop.f32.mrf.mxu0
  %v4230 = vadd.f32 %v4187, %v4229
  %v4231 = vpop.f32.mrf.mxu0
  %v4232 = vadd.f32 %v4189, %v4231
  %4233 = vmatmul.bf16.gmra.mxu0 %v1635
  %v4234 = vpop.f32.mrf.mxu0
  %v4235 = vadd.f32 %v4192, %v4234
  %v4236 = vpop.f32.mrf.mxu0
  %v4237 = vadd.f32 %v4194, %v4236
  %4238 = vmatmul.bf16.gmra.mxu0 %v1671
  %v4239 = vpop.f32.mrf.mxu0
  %v4240 = vadd.f32 %v4197, %v4239
  %v4241 = vpop.f32.mrf.mxu0
  %v4242 = vadd.f32 %v4199, %v4241
  %4243 = vmatmul.bf16.gmra.mxu0 %v1707
  %v4244 = vpop.f32.mrf.mxu0
  %v4245 = vadd.f32 %v4202, %v4244
  %v4246 = vpop.f32.mrf.mxu0
  %v4247 = vadd.f32 %v4204, %v4246
  %4248 = vmatmul.bf16.gmra.mxu0 %v1743
  %v4249 = vpop.f32.mrf.mxu0
  %v4250 = vadd.f32 %v4207, %v4249
  %v4251 = vpop.f32.mrf.mxu0
  %v4252 = vadd.f32 %v4209, %v4251
  %4253 = vmatmul.bf16.gmra.mxu0 %v1779
  %v4254 = vpop.f32.mrf.mxu0
  %v4255 = vadd.f32 %v4212, %v4254
  %v4256 = vpop.f32.mrf.mxu0
  %4257 = vdwg.mxu0
  %4258 = vmatpush.bf16.msra.mxu0 %v3304
  %4259 = vmatpush.bf16.msra.mxu0 %v3303
  %4260 = vmatpush.bf16.msra.mxu0 %v3302
  %4261 = vmatpush.bf16.msra.mxu0 %v3301
  %4262 = vmatpush.bf16.msra.mxu0 %v3300
  %4263 = vmatpush.bf16.msra.mxu0 %v3299
  %4264 = vmatpush.bf16.msra.mxu0 %v3298
  %4265 = vmatpush.bf16.msra.mxu0 %v3297
  %4266 = vmatmul.bf16.gmra.mxu0 %v1564
  %v4267 = vpop.f32.mrf.mxu0
  %v4268 = vadd.f32 %v4225, %v4267
  %v4269 = vpop.f32.mrf.mxu0
  %v4270 = vadd.f32 %v4227, %v4269
  %4271 = vmatmul.bf16.gmra.mxu0 %v1600
  %v4272 = vpop.f32.mrf.mxu0
  %v4273 = vadd.f32 %v4230, %v4272
  %v4274 = vpop.f32.mrf.mxu0
  %v4275 = vadd.f32 %v4232, %v4274
  %4276 = vmatmul.bf16.gmra.mxu0 %v1636
  %v4277 = vpop.f32.mrf.mxu0
  %v4278 = vadd.f32 %v4235, %v4277
  %v4279 = vpop.f32.mrf.mxu0
  %v4280 = vadd.f32 %v4237, %v4279
  %4281 = vmatmul.bf16.gmra.mxu0 %v1672
  %v4282 = vpop.f32.mrf.mxu0
  %v4283 = vadd.f32 %v4240, %v4282
  %v4284 = vpop.f32.mrf.mxu0
  %v4285 = vadd.f32 %v4242, %v4284
  %4286 = vmatmul.bf16.gmra.mxu0 %v1708
  %v4287 = vpop.f32.mrf.mxu0
  %v4288 = vadd.f32 %v4245, %v4287
  %v4289 = vpop.f32.mrf.mxu0
  %v4290 = vadd.f32 %v4247, %v4289
  %4291 = vmatmul.bf16.gmra.mxu0 %v1744
  %v4292 = vpop.f32.mrf.mxu0
  %v4293 = vadd.f32 %v4250, %v4292
  %v4294 = vpop.f32.mrf.mxu0
  %v4295 = vadd.f32 %v4252, %v4294
  %4296 = vmatmul.bf16.gmra.mxu0 %v1780
  %v4297 = vpop.f32.mrf.mxu0
  %v4298 = vadd.f32 %v4255, %v4297
  %v4299 = vpop.f32.mrf.mxu0
  %4300 = vdwg.mxu0
  %4301 = vmatpush.bf16.msra.mxu0 %v3312
  %4302 = vmatpush.bf16.msra.mxu0 %v3311
  %4303 = vmatpush.bf16.msra.mxu0 %v3310
  %4304 = vmatpush.bf16.msra.mxu0 %v3309
  %4305 = vmatpush.bf16.msra.mxu0 %v3308
  %4306 = vmatpush.bf16.msra.mxu0 %v3307
  %4307 = vmatpush.bf16.msra.mxu0 %v3306
  %4308 = vmatpush.bf16.msra.mxu0 %v3305
  %4309 = vmatmul.bf16.gmra.mxu0 %v1565
  %v4310 = vpop.f32.mrf.mxu0
  %v4311 = vadd.f32 %v4268, %v4310
  %v4312 = vpop.f32.mrf.mxu0
  %v4313 = vadd.f32 %v4270, %v4312
  %4314 = vmatmul.bf16.gmra.mxu0 %v1601
  %v4315 = vpop.f32.mrf.mxu0
  %v4316 = vadd.f32 %v4273, %v4315
  %v4317 = vpop.f32.mrf.mxu0
  %v4318 = vadd.f32 %v4275, %v4317
  %4319 = vmatmul.bf16.gmra.mxu0 %v1637
  %v4320 = vpop.f32.mrf.mxu0
  %v4321 = vadd.f32 %v4278, %v4320
  %v4322 = vpop.f32.mrf.mxu0
  %v4323 = vadd.f32 %v4280, %v4322
  %4324 = vmatmul.bf16.gmra.mxu0 %v1673
  %v4325 = vpop.f32.mrf.mxu0
  %v4326 = vadd.f32 %v4283, %v4325
  %v4327 = vpop.f32.mrf.mxu0
  %v4328 = vadd.f32 %v4285, %v4327
  %4329 = vmatmul.bf16.gmra.mxu0 %v1709
  %v4330 = vpop.f32.mrf.mxu0
  %v4331 = vadd.f32 %v4288, %v4330
  %v4332 = vpop.f32.mrf.mxu0
  %v4333 = vadd.f32 %v4290, %v4332
  %4334 = vmatmul.bf16.gmra.mxu0 %v1745
  %v4335 = vpop.f32.mrf.mxu0
  %v4336 = vadd.f32 %v4293, %v4335
  %v4337 = vpop.f32.mrf.mxu0
  %v4338 = vadd.f32 %v4295, %v4337
  %4339 = vmatmul.bf16.gmra.mxu0 %v1781
  %v4340 = vpop.f32.mrf.mxu0
  %v4341 = vadd.f32 %v4298, %v4340
  %v4342 = vpop.f32.mrf.mxu0
  %4343 = vdwg.mxu0
  %4344 = vmatpush.bf16.msra.mxu0 %v3320
  %4345 = vmatpush.bf16.msra.mxu0 %v3319
  %4346 = vmatpush.bf16.msra.mxu0 %v3318
  %4347 = vmatpush.bf16.msra.mxu0 %v3317
  %4348 = vmatpush.bf16.msra.mxu0 %v3316
  %4349 = vmatpush.bf16.msra.mxu0 %v3315
  %4350 = vmatpush.bf16.msra.mxu0 %v3314
  %4351 = vmatpush.bf16.msra.mxu0 %v3313
  %4352 = vmatmul.bf16.gmra.mxu0 %v1566
  %v4353 = vpop.f32.mrf.mxu0
  %v4354 = vadd.f32 %v4311, %v4353
  %v4355 = vpop.f32.mrf.mxu0
  %v4356 = vadd.f32 %v4313, %v4355
  %4357 = vmatmul.bf16.gmra.mxu0 %v1602
  %v4358 = vpop.f32.mrf.mxu0
  %v4359 = vadd.f32 %v4316, %v4358
  %v4360 = vpop.f32.mrf.mxu0
  %v4361 = vadd.f32 %v4318, %v4360
  %4362 = vmatmul.bf16.gmra.mxu0 %v1638
  %v4363 = vpop.f32.mrf.mxu0
  %v4364 = vadd.f32 %v4321, %v4363
  %v4365 = vpop.f32.mrf.mxu0
  %v4366 = vadd.f32 %v4323, %v4365
  %4367 = vmatmul.bf16.gmra.mxu0 %v1674
  %v4368 = vpop.f32.mrf.mxu0
  %v4369 = vadd.f32 %v4326, %v4368
  %v4370 = vpop.f32.mrf.mxu0
  %v4371 = vadd.f32 %v4328, %v4370
  %4372 = vmatmul.bf16.gmra.mxu0 %v1710
  %v4373 = vpop.f32.mrf.mxu0
  %v4374 = vadd.f32 %v4331, %v4373
  %v4375 = vpop.f32.mrf.mxu0
  %v4376 = vadd.f32 %v4333, %v4375
  %4377 = vmatmul.bf16.gmra.mxu0 %v1746
  %v4378 = vpop.f32.mrf.mxu0
  %v4379 = vadd.f32 %v4336, %v4378
  %v4380 = vpop.f32.mrf.mxu0
  %v4381 = vadd.f32 %v4338, %v4380
  %4382 = vmatmul.bf16.gmra.mxu0 %v1782
  %v4383 = vpop.f32.mrf.mxu0
  %v4384 = vadd.f32 %v4341, %v4383
  %v4385 = vpop.f32.mrf.mxu0
  %4386 = vdwg.mxu0
  %4387 = vmatpush.bf16.msra.mxu0 %v3328
  %4388 = vmatpush.bf16.msra.mxu0 %v3327
  %4389 = vmatpush.bf16.msra.mxu0 %v3326
  %4390 = vmatpush.bf16.msra.mxu0 %v3325
  %4391 = vmatpush.bf16.msra.mxu0 %v3324
  %4392 = vmatpush.bf16.msra.mxu0 %v3323
  %4393 = vmatpush.bf16.msra.mxu0 %v3322
  %4394 = vmatpush.bf16.msra.mxu0 %v3321
  %4395 = vmatmul.bf16.gmra.mxu0 %v1567
  %v4396 = vpop.f32.mrf.mxu0
  %v4397 = vadd.f32 %v4354, %v4396
  %v4398 = vpop.f32.mrf.mxu0
  %v4399 = vadd.f32 %v4356, %v4398
  %4400 = vmatmul.bf16.gmra.mxu0 %v1603
  %v4401 = vpop.f32.mrf.mxu0
  %v4402 = vadd.f32 %v4359, %v4401
  %v4403 = vpop.f32.mrf.mxu0
  %v4404 = vadd.f32 %v4361, %v4403
  %4405 = vmatmul.bf16.gmra.mxu0 %v1639
  %v4406 = vpop.f32.mrf.mxu0
  %v4407 = vadd.f32 %v4364, %v4406
  %v4408 = vpop.f32.mrf.mxu0
  %v4409 = vadd.f32 %v4366, %v4408
  %4410 = vmatmul.bf16.gmra.mxu0 %v1675
  %v4411 = vpop.f32.mrf.mxu0
  %v4412 = vadd.f32 %v4369, %v4411
  %v4413 = vpop.f32.mrf.mxu0
  %v4414 = vadd.f32 %v4371, %v4413
  %4415 = vmatmul.bf16.gmra.mxu0 %v1711
  %v4416 = vpop.f32.mrf.mxu0
  %v4417 = vadd.f32 %v4374, %v4416
  %v4418 = vpop.f32.mrf.mxu0
  %v4419 = vadd.f32 %v4376, %v4418
  %4420 = vmatmul.bf16.gmra.mxu0 %v1747
  %v4421 = vpop.f32.mrf.mxu0
  %v4422 = vadd.f32 %v4379, %v4421
  %v4423 = vpop.f32.mrf.mxu0
  %v4424 = vadd.f32 %v4381, %v4423
  %4425 = vmatmul.bf16.gmra.mxu0 %v1783
  %v4426 = vpop.f32.mrf.mxu0
  %v4427 = vadd.f32 %v4384, %v4426
  %v4428 = vpop.f32.mrf.mxu0
  %4429 = vdwg.mxu0
  %4430 = vmatpush.bf16.msra.mxu0 %v3336
  %4431 = vmatpush.bf16.msra.mxu0 %v3335
  %4432 = vmatpush.bf16.msra.mxu0 %v3334
  %4433 = vmatpush.bf16.msra.mxu0 %v3333
  %4434 = vmatpush.bf16.msra.mxu0 %v3332
  %4435 = vmatpush.bf16.msra.mxu0 %v3331
  %4436 = vmatpush.bf16.msra.mxu0 %v3330
  %4437 = vmatpush.bf16.msra.mxu0 %v3329
  %4438 = vmatmul.bf16.gmra.mxu0 %v1568
  %v4439 = vpop.f32.mrf.mxu0
  %v4440 = vadd.f32 %v4397, %v4439
  %v4441 = vpop.f32.mrf.mxu0
  %v4442 = vadd.f32 %v4399, %v4441
  %4443 = vmatmul.bf16.gmra.mxu0 %v1604
  %v4444 = vpop.f32.mrf.mxu0
  %v4445 = vadd.f32 %v4402, %v4444
  %v4446 = vpop.f32.mrf.mxu0
  %v4447 = vadd.f32 %v4404, %v4446
  %4448 = vmatmul.bf16.gmra.mxu0 %v1640
  %v4449 = vpop.f32.mrf.mxu0
  %v4450 = vadd.f32 %v4407, %v4449
  %v4451 = vpop.f32.mrf.mxu0
  %v4452 = vadd.f32 %v4409, %v4451
  %4453 = vmatmul.bf16.gmra.mxu0 %v1676
  %v4454 = vpop.f32.mrf.mxu0
  %v4455 = vadd.f32 %v4412, %v4454
  %v4456 = vpop.f32.mrf.mxu0
  %v4457 = vadd.f32 %v4414, %v4456
  %4458 = vmatmul.bf16.gmra.mxu0 %v1712
  %v4459 = vpop.f32.mrf.mxu0
  %v4460 = vadd.f32 %v4417, %v4459
  %v4461 = vpop.f32.mrf.mxu0
  %v4462 = vadd.f32 %v4419, %v4461
  %4463 = vmatmul.bf16.gmra.mxu0 %v1748
  %v4464 = vpop.f32.mrf.mxu0
  %v4465 = vadd.f32 %v4422, %v4464
  %v4466 = vpop.f32.mrf.mxu0
  %v4467 = vadd.f32 %v4424, %v4466
  %4468 = vmatmul.bf16.gmra.mxu0 %v1784
  %v4469 = vpop.f32.mrf.mxu0
  %v4470 = vadd.f32 %v4427, %v4469
  %v4471 = vpop.f32.mrf.mxu0
  %4472 = vdwg.mxu0
  %4473 = vmatpush.bf16.msra.mxu0 %v3344
  %4474 = vmatpush.bf16.msra.mxu0 %v3343
  %4475 = vmatpush.bf16.msra.mxu0 %v3342
  %4476 = vmatpush.bf16.msra.mxu0 %v3341
  %4477 = vmatpush.bf16.msra.mxu0 %v3340
  %4478 = vmatpush.bf16.msra.mxu0 %v3339
  %4479 = vmatpush.bf16.msra.mxu0 %v3338
  %4480 = vmatpush.bf16.msra.mxu0 %v3337
  %4481 = vmatmul.bf16.gmra.mxu0 %v1569
  %v4482 = vpop.f32.mrf.mxu0
  %v4483 = vadd.f32 %v4440, %v4482
  %v4484 = vpop.f32.mrf.mxu0
  %v4485 = vadd.f32 %v4442, %v4484
  %4486 = vmatmul.bf16.gmra.mxu0 %v1605
  %v4487 = vpop.f32.mrf.mxu0
  %v4488 = vadd.f32 %v4445, %v4487
  %v4489 = vpop.f32.mrf.mxu0
  %v4490 = vadd.f32 %v4447, %v4489
  %4491 = vmatmul.bf16.gmra.mxu0 %v1641
  %v4492 = vpop.f32.mrf.mxu0
  %v4493 = vadd.f32 %v4450, %v4492
  %v4494 = vpop.f32.mrf.mxu0
  %v4495 = vadd.f32 %v4452, %v4494
  %4496 = vmatmul.bf16.gmra.mxu0 %v1677
  %v4497 = vpop.f32.mrf.mxu0
  %v4498 = vadd.f32 %v4455, %v4497
  %v4499 = vpop.f32.mrf.mxu0
  %v4500 = vadd.f32 %v4457, %v4499
  %4501 = vmatmul.bf16.gmra.mxu0 %v1713
  %v4502 = vpop.f32.mrf.mxu0
  %v4503 = vadd.f32 %v4460, %v4502
  %v4504 = vpop.f32.mrf.mxu0
  %v4505 = vadd.f32 %v4462, %v4504
  %4506 = vmatmul.bf16.gmra.mxu0 %v1749
  %v4507 = vpop.f32.mrf.mxu0
  %v4508 = vadd.f32 %v4465, %v4507
  %v4509 = vpop.f32.mrf.mxu0
  %v4510 = vadd.f32 %v4467, %v4509
  %4511 = vmatmul.bf16.gmra.mxu0 %v1785
  %v4512 = vpop.f32.mrf.mxu0
  %v4513 = vadd.f32 %v4470, %v4512
  %v4514 = vpop.f32.mrf.mxu0
  %4515 = vdwg.mxu0
  %4516 = vmatpush.bf16.msra.mxu0 %v3352
  %4517 = vmatpush.bf16.msra.mxu0 %v3351
  %4518 = vmatpush.bf16.msra.mxu0 %v3350
  %4519 = vmatpush.bf16.msra.mxu0 %v3349
  %4520 = vmatpush.bf16.msra.mxu0 %v3348
  %4521 = vmatpush.bf16.msra.mxu0 %v3347
  %4522 = vmatpush.bf16.msra.mxu0 %v3346
  %4523 = vmatpush.bf16.msra.mxu0 %v3345
  %4524 = vmatmul.bf16.gmra.mxu0 %v1570
  %v4525 = vpop.f32.mrf.mxu0
  %v4526 = vadd.f32 %v4483, %v4525
  %v4527 = vpop.f32.mrf.mxu0
  %v4528 = vadd.f32 %v4485, %v4527
  %4529 = vmatmul.bf16.gmra.mxu0 %v1606
  %v4530 = vpop.f32.mrf.mxu0
  %v4531 = vadd.f32 %v4488, %v4530
  %v4532 = vpop.f32.mrf.mxu0
  %v4533 = vadd.f32 %v4490, %v4532
  %4534 = vmatmul.bf16.gmra.mxu0 %v1642
  %v4535 = vpop.f32.mrf.mxu0
  %v4536 = vadd.f32 %v4493, %v4535
  %v4537 = vpop.f32.mrf.mxu0
  %v4538 = vadd.f32 %v4495, %v4537
  %4539 = vmatmul.bf16.gmra.mxu0 %v1678
  %v4540 = vpop.f32.mrf.mxu0
  %v4541 = vadd.f32 %v4498, %v4540
  %v4542 = vpop.f32.mrf.mxu0
  %v4543 = vadd.f32 %v4500, %v4542
  %4544 = vmatmul.bf16.gmra.mxu0 %v1714
  %v4545 = vpop.f32.mrf.mxu0
  %v4546 = vadd.f32 %v4503, %v4545
  %v4547 = vpop.f32.mrf.mxu0
  %v4548 = vadd.f32 %v4505, %v4547
  %4549 = vmatmul.bf16.gmra.mxu0 %v1750
  %v4550 = vpop.f32.mrf.mxu0
  %v4551 = vadd.f32 %v4508, %v4550
  %v4552 = vpop.f32.mrf.mxu0
  %v4553 = vadd.f32 %v4510, %v4552
  %4554 = vmatmul.bf16.gmra.mxu0 %v1786
  %v4555 = vpop.f32.mrf.mxu0
  %v4556 = vadd.f32 %v4513, %v4555
  %v4557 = vpop.f32.mrf.mxu0
  %4558 = vdwg.mxu0
  %4559 = vmatpush.bf16.msra.mxu0 %v3360
  %4560 = vmatpush.bf16.msra.mxu0 %v3359
  %4561 = vmatpush.bf16.msra.mxu0 %v3358
  %4562 = vmatpush.bf16.msra.mxu0 %v3357
  %4563 = vmatpush.bf16.msra.mxu0 %v3356
  %4564 = vmatpush.bf16.msra.mxu0 %v3355
  %4565 = vmatpush.bf16.msra.mxu0 %v3354
  %4566 = vmatpush.bf16.msra.mxu0 %v3353
  %4567 = vmatmul.bf16.gmra.mxu0 %v1571
  %v4568 = vpop.f32.mrf.mxu0
  %v4569 = vadd.f32 %v4526, %v4568
  %v4570 = vpop.f32.mrf.mxu0
  %v4571 = vadd.f32 %v4528, %v4570
  %4572 = vmatmul.bf16.gmra.mxu0 %v1607
  %v4573 = vpop.f32.mrf.mxu0
  %v4574 = vadd.f32 %v4531, %v4573
  %v4575 = vpop.f32.mrf.mxu0
  %v4576 = vadd.f32 %v4533, %v4575
  %4577 = vmatmul.bf16.gmra.mxu0 %v1643
  %v4578 = vpop.f32.mrf.mxu0
  %v4579 = vadd.f32 %v4536, %v4578
  %v4580 = vpop.f32.mrf.mxu0
  %v4581 = vadd.f32 %v4538, %v4580
  %4582 = vmatmul.bf16.gmra.mxu0 %v1679
  %v4583 = vpop.f32.mrf.mxu0
  %v4584 = vadd.f32 %v4541, %v4583
  %v4585 = vpop.f32.mrf.mxu0
  %v4586 = vadd.f32 %v4543, %v4585
  %4587 = vmatmul.bf16.gmra.mxu0 %v1715
  %v4588 = vpop.f32.mrf.mxu0
  %v4589 = vadd.f32 %v4546, %v4588
  %v4590 = vpop.f32.mrf.mxu0
  %v4591 = vadd.f32 %v4548, %v4590
  %4592 = vmatmul.bf16.gmra.mxu0 %v1751
  %v4593 = vpop.f32.mrf.mxu0
  %v4594 = vadd.f32 %v4551, %v4593
  %v4595 = vpop.f32.mrf.mxu0
  %v4596 = vadd.f32 %v4553, %v4595
  %4597 = vmatmul.bf16.gmra.mxu0 %v1787
  %v4598 = vpop.f32.mrf.mxu0
  %v4599 = vadd.f32 %v4556, %v4598
  %v4600 = vpop.f32.mrf.mxu0
  %4601 = vdwg.mxu0
  %4602 = vmatpush.bf16.msra.mxu0 %v3368
  %4603 = vmatpush.bf16.msra.mxu0 %v3367
  %4604 = vmatpush.bf16.msra.mxu0 %v3366
  %4605 = vmatpush.bf16.msra.mxu0 %v3365
  %4606 = vmatpush.bf16.msra.mxu0 %v3364
  %4607 = vmatpush.bf16.msra.mxu0 %v3363
  %4608 = vmatpush.bf16.msra.mxu0 %v3362
  %4609 = vmatpush.bf16.msra.mxu0 %v3361
  %4610 = vmatmul.bf16.gmra.mxu0 %v1572
  %v4611 = vpop.f32.mrf.mxu0
  %v4612 = vadd.f32 %v4569, %v4611
  %v4613 = vpop.f32.mrf.mxu0
  %v4614 = vadd.f32 %v4571, %v4613
  %4615 = vmatmul.bf16.gmra.mxu0 %v1608
  %v4616 = vpop.f32.mrf.mxu0
  %v4617 = vadd.f32 %v4574, %v4616
  %v4618 = vpop.f32.mrf.mxu0
  %v4619 = vadd.f32 %v4576, %v4618
  %4620 = vmatmul.bf16.gmra.mxu0 %v1644
  %v4621 = vpop.f32.mrf.mxu0
  %v4622 = vadd.f32 %v4579, %v4621
  %v4623 = vpop.f32.mrf.mxu0
  %v4624 = vadd.f32 %v4581, %v4623
  %4625 = vmatmul.bf16.gmra.mxu0 %v1680
  %v4626 = vpop.f32.mrf.mxu0
  %v4627 = vadd.f32 %v4584, %v4626
  %v4628 = vpop.f32.mrf.mxu0
  %v4629 = vadd.f32 %v4586, %v4628
  %4630 = vmatmul.bf16.gmra.mxu0 %v1716
  %v4631 = vpop.f32.mrf.mxu0
  %v4632 = vadd.f32 %v4589, %v4631
  %v4633 = vpop.f32.mrf.mxu0
  %v4634 = vadd.f32 %v4591, %v4633
  %4635 = vmatmul.bf16.gmra.mxu0 %v1752
  %v4636 = vpop.f32.mrf.mxu0
  %v4637 = vadd.f32 %v4594, %v4636
  %v4638 = vpop.f32.mrf.mxu0
  %v4639 = vadd.f32 %v4596, %v4638
  %4640 = vmatmul.bf16.gmra.mxu0 %v1788
  %v4641 = vpop.f32.mrf.mxu0
  %v4642 = vadd.f32 %v4599, %v4641
  %v4643 = vpop.f32.mrf.mxu0
  %4644 = vdwg.mxu0
  %4645 = vmatpush.bf16.msra.mxu0 %v3376
  %4646 = vmatpush.bf16.msra.mxu0 %v3375
  %4647 = vmatpush.bf16.msra.mxu0 %v3374
  %4648 = vmatpush.bf16.msra.mxu0 %v3373
  %4649 = vmatpush.bf16.msra.mxu0 %v3372
  %4650 = vmatpush.bf16.msra.mxu0 %v3371
  %4651 = vmatpush.bf16.msra.mxu0 %v3370
  %4652 = vmatpush.bf16.msra.mxu0 %v3369
  %4653 = vmatmul.bf16.gmra.mxu0 %v1573
  %v4654 = vpop.f32.mrf.mxu0
  %v4655 = vadd.f32 %v4612, %v4654
  %v4656 = vpop.f32.mrf.mxu0
  %v4657 = vadd.f32 %v4614, %v4656
  %4658 = vmatmul.bf16.gmra.mxu0 %v1609
  %v4659 = vpop.f32.mrf.mxu0
  %v4660 = vadd.f32 %v4617, %v4659
  %v4661 = vpop.f32.mrf.mxu0
  %v4662 = vadd.f32 %v4619, %v4661
  %4663 = vmatmul.bf16.gmra.mxu0 %v1645
  %v4664 = vpop.f32.mrf.mxu0
  %v4665 = vadd.f32 %v4622, %v4664
  %v4666 = vpop.f32.mrf.mxu0
  %v4667 = vadd.f32 %v4624, %v4666
  %4668 = vmatmul.bf16.gmra.mxu0 %v1681
  %v4669 = vpop.f32.mrf.mxu0
  %v4670 = vadd.f32 %v4627, %v4669
  %v4671 = vpop.f32.mrf.mxu0
  %v4672 = vadd.f32 %v4629, %v4671
  %4673 = vmatmul.bf16.gmra.mxu0 %v1717
  %v4674 = vpop.f32.mrf.mxu0
  %v4675 = vadd.f32 %v4632, %v4674
  %v4676 = vpop.f32.mrf.mxu0
  %v4677 = vadd.f32 %v4634, %v4676
  %4678 = vmatmul.bf16.gmra.mxu0 %v1753
  %v4679 = vpop.f32.mrf.mxu0
  %v4680 = vadd.f32 %v4637, %v4679
  %v4681 = vpop.f32.mrf.mxu0
  %v4682 = vadd.f32 %v4639, %v4681
  %4683 = vmatmul.bf16.gmra.mxu0 %v1789
  %v4684 = vpop.f32.mrf.mxu0
  %v4685 = vadd.f32 %v4642, %v4684
  %v4686 = vpop.f32.mrf.mxu0
  %4687 = vdwg.mxu0
  %4688 = vmatpush.bf16.msra.mxu0 %v3384
  %4689 = vmatpush.bf16.msra.mxu0 %v3383
  %4690 = vmatpush.bf16.msra.mxu0 %v3382
  %4691 = vmatpush.bf16.msra.mxu0 %v3381
  %4692 = vmatpush.bf16.msra.mxu0 %v3380
  %4693 = vmatpush.bf16.msra.mxu0 %v3379
  %4694 = vmatpush.bf16.msra.mxu0 %v3378
  %4695 = vmatpush.bf16.msra.mxu0 %v3377
  %4696 = vmatmul.bf16.gmra.mxu0 %v1574
  %v4697 = vpop.f32.mrf.mxu0
  %v4698 = vadd.f32 %v4655, %v4697
  %v4699 = vpop.f32.mrf.mxu0
  %v4700 = vadd.f32 %v4657, %v4699
  %4701 = vmatmul.bf16.gmra.mxu0 %v1610
  %v4702 = vpop.f32.mrf.mxu0
  %v4703 = vadd.f32 %v4660, %v4702
  %v4704 = vpop.f32.mrf.mxu0
  %v4705 = vadd.f32 %v4662, %v4704
  %4706 = vmatmul.bf16.gmra.mxu0 %v1646
  %v4707 = vpop.f32.mrf.mxu0
  %v4708 = vadd.f32 %v4665, %v4707
  %v4709 = vpop.f32.mrf.mxu0
  %v4710 = vadd.f32 %v4667, %v4709
  %4711 = vmatmul.bf16.gmra.mxu0 %v1682
  %v4712 = vpop.f32.mrf.mxu0
  %v4713 = vadd.f32 %v4670, %v4712
  %v4714 = vpop.f32.mrf.mxu0
  %v4715 = vadd.f32 %v4672, %v4714
  %4716 = vmatmul.bf16.gmra.mxu0 %v1718
  %v4717 = vpop.f32.mrf.mxu0
  %v4718 = vadd.f32 %v4675, %v4717
  %v4719 = vpop.f32.mrf.mxu0
  %v4720 = vadd.f32 %v4677, %v4719
  %4721 = vmatmul.bf16.gmra.mxu0 %v1754
  %v4722 = vpop.f32.mrf.mxu0
  %v4723 = vadd.f32 %v4680, %v4722
  %v4724 = vpop.f32.mrf.mxu0
  %v4725 = vadd.f32 %v4682, %v4724
  %4726 = vmatmul.bf16.gmra.mxu0 %v1790
  %v4727 = vpop.f32.mrf.mxu0
  %v4728 = vadd.f32 %v4685, %v4727
  %v4729 = vpop.f32.mrf.mxu0
  %4730 = vdwg.mxu0
  %4731 = vmatpush.bf16.msra.mxu0 %v3392
  %4732 = vmatpush.bf16.msra.mxu0 %v3391
  %4733 = vmatpush.bf16.msra.mxu0 %v3390
  %4734 = vmatpush.bf16.msra.mxu0 %v3389
  %4735 = vmatpush.bf16.msra.mxu0 %v3388
  %4736 = vmatpush.bf16.msra.mxu0 %v3387
  %4737 = vmatpush.bf16.msra.mxu0 %v3386
  %4738 = vmatpush.bf16.msra.mxu0 %v3385
  %4739 = vmatmul.bf16.gmra.mxu0 %v1575
  %v4740 = vpop.f32.mrf.mxu0
  %v4741 = vadd.f32 %v4698, %v4740
  %v4742 = vpop.f32.mrf.mxu0
  %v4743 = vadd.f32 %v4700, %v4742
  %4744 = vmatmul.bf16.gmra.mxu0 %v1611
  %v4745 = vpop.f32.mrf.mxu0
  %v4746 = vadd.f32 %v4703, %v4745
  %v4747 = vpop.f32.mrf.mxu0
  %v4748 = vadd.f32 %v4705, %v4747
  %4749 = vmatmul.bf16.gmra.mxu0 %v1647
  %v4750 = vpop.f32.mrf.mxu0
  %v4751 = vadd.f32 %v4708, %v4750
  %v4752 = vpop.f32.mrf.mxu0
  %v4753 = vadd.f32 %v4710, %v4752
  %4754 = vmatmul.bf16.gmra.mxu0 %v1683
  %v4755 = vpop.f32.mrf.mxu0
  %v4756 = vadd.f32 %v4713, %v4755
  %v4757 = vpop.f32.mrf.mxu0
  %v4758 = vadd.f32 %v4715, %v4757
  %4759 = vmatmul.bf16.gmra.mxu0 %v1719
  %v4760 = vpop.f32.mrf.mxu0
  %v4761 = vadd.f32 %v4718, %v4760
  %v4762 = vpop.f32.mrf.mxu0
  %v4763 = vadd.f32 %v4720, %v4762
  %4764 = vmatmul.bf16.gmra.mxu0 %v1755
  %v4765 = vpop.f32.mrf.mxu0
  %v4766 = vadd.f32 %v4723, %v4765
  %v4767 = vpop.f32.mrf.mxu0
  %v4768 = vadd.f32 %v4725, %v4767
  %4769 = vmatmul.bf16.gmra.mxu0 %v1791
  %v4770 = vpop.f32.mrf.mxu0
  %v4771 = vadd.f32 %v4728, %v4770
  %v4772 = vpop.f32.mrf.mxu0
  %4773 = vdwg.mxu0
  %4774 = vmatpush.bf16.msra.mxu0 %v3400
  %4775 = vmatpush.bf16.msra.mxu0 %v3399
  %4776 = vmatpush.bf16.msra.mxu0 %v3398
  %4777 = vmatpush.bf16.msra.mxu0 %v3397
  %4778 = vmatpush.bf16.msra.mxu0 %v3396
  %4779 = vmatpush.bf16.msra.mxu0 %v3395
  %4780 = vmatpush.bf16.msra.mxu0 %v3394
  %4781 = vmatpush.bf16.msra.mxu0 %v3393
  %4782 = vmatmul.bf16.gmra.mxu0 %v1576
  %v4783 = vpop.f32.mrf.mxu0
  %v4784 = vadd.f32 %v4741, %v4783
  %v4785 = vpop.f32.mrf.mxu0
  %v4786 = vadd.f32 %v4743, %v4785
  %4787 = vmatmul.bf16.gmra.mxu0 %v1612
  %v4788 = vpop.f32.mrf.mxu0
  %v4789 = vadd.f32 %v4746, %v4788
  %v4790 = vpop.f32.mrf.mxu0
  %v4791 = vadd.f32 %v4748, %v4790
  %4792 = vmatmul.bf16.gmra.mxu0 %v1648
  %v4793 = vpop.f32.mrf.mxu0
  %v4794 = vadd.f32 %v4751, %v4793
  %v4795 = vpop.f32.mrf.mxu0
  %v4796 = vadd.f32 %v4753, %v4795
  %4797 = vmatmul.bf16.gmra.mxu0 %v1684
  %v4798 = vpop.f32.mrf.mxu0
  %v4799 = vadd.f32 %v4756, %v4798
  %v4800 = vpop.f32.mrf.mxu0
  %v4801 = vadd.f32 %v4758, %v4800
  %4802 = vmatmul.bf16.gmra.mxu0 %v1720
  %v4803 = vpop.f32.mrf.mxu0
  %v4804 = vadd.f32 %v4761, %v4803
  %v4805 = vpop.f32.mrf.mxu0
  %v4806 = vadd.f32 %v4763, %v4805
  %4807 = vmatmul.bf16.gmra.mxu0 %v1756
  %v4808 = vpop.f32.mrf.mxu0
  %v4809 = vadd.f32 %v4766, %v4808
  %v4810 = vpop.f32.mrf.mxu0
  %v4811 = vadd.f32 %v4768, %v4810
  %4812 = vmatmul.bf16.gmra.mxu0 %v1792
  %v4813 = vpop.f32.mrf.mxu0
  %v4814 = vadd.f32 %v4771, %v4813
  %v4815 = vpop.f32.mrf.mxu0
  %4816 = vdwg.mxu0
  %4817 = vmatpush.bf16.msra.mxu0 %v3408
  %4818 = vmatpush.bf16.msra.mxu0 %v3407
  %4819 = vmatpush.bf16.msra.mxu0 %v3406
  %4820 = vmatpush.bf16.msra.mxu0 %v3405
  %4821 = vmatpush.bf16.msra.mxu0 %v3404
  %4822 = vmatpush.bf16.msra.mxu0 %v3403
  %4823 = vmatpush.bf16.msra.mxu0 %v3402
  %4824 = vmatpush.bf16.msra.mxu0 %v3401
  %4825 = vmatmul.bf16.gmra.mxu0 %v1577
  %v4826 = vpop.f32.mrf.mxu0
  %v4827 = vadd.f32 %v4784, %v4826
  %v4828 = vpop.f32.mrf.mxu0
  %v4829 = vadd.f32 %v4786, %v4828
  %4830 = vmatmul.bf16.gmra.mxu0 %v1613
  %v4831 = vpop.f32.mrf.mxu0
  %v4832 = vadd.f32 %v4789, %v4831
  %v4833 = vpop.f32.mrf.mxu0
  %v4834 = vadd.f32 %v4791, %v4833
  %4835 = vmatmul.bf16.gmra.mxu0 %v1649
  %v4836 = vpop.f32.mrf.mxu0
  %v4837 = vadd.f32 %v4794, %v4836
  %v4838 = vpop.f32.mrf.mxu0
  %v4839 = vadd.f32 %v4796, %v4838
  %4840 = vmatmul.bf16.gmra.mxu0 %v1685
  %v4841 = vpop.f32.mrf.mxu0
  %v4842 = vadd.f32 %v4799, %v4841
  %v4843 = vpop.f32.mrf.mxu0
  %v4844 = vadd.f32 %v4801, %v4843
  %4845 = vmatmul.bf16.gmra.mxu0 %v1721
  %v4846 = vpop.f32.mrf.mxu0
  %v4847 = vadd.f32 %v4804, %v4846
  %v4848 = vpop.f32.mrf.mxu0
  %v4849 = vadd.f32 %v4806, %v4848
  %4850 = vmatmul.bf16.gmra.mxu0 %v1757
  %v4851 = vpop.f32.mrf.mxu0
  %v4852 = vadd.f32 %v4809, %v4851
  %v4853 = vpop.f32.mrf.mxu0
  %v4854 = vadd.f32 %v4811, %v4853
  %4855 = vmatmul.bf16.gmra.mxu0 %v1793
  %v4856 = vpop.f32.mrf.mxu0
  %v4857 = vadd.f32 %v4814, %v4856
  %v4858 = vpop.f32.mrf.mxu0
  %4859 = vdwg.mxu0
  %4860 = vmatpush.bf16.msra.mxu0 %v3416
  %4861 = vmatpush.bf16.msra.mxu0 %v3415
  %4862 = vmatpush.bf16.msra.mxu0 %v3414
  %4863 = vmatpush.bf16.msra.mxu0 %v3413
  %4864 = vmatpush.bf16.msra.mxu0 %v3412
  %4865 = vmatpush.bf16.msra.mxu0 %v3411
  %4866 = vmatpush.bf16.msra.mxu0 %v3410
  %4867 = vmatpush.bf16.msra.mxu0 %v3409
  %4868 = vmatmul.bf16.gmra.mxu0 %v1578
  %v4869 = vpop.f32.mrf.mxu0
  %v4870 = vadd.f32 %v4827, %v4869
  %v4871 = vpop.f32.mrf.mxu0
  %v4872 = vadd.f32 %v4829, %v4871
  %4873 = vmatmul.bf16.gmra.mxu0 %v1614
  %v4874 = vpop.f32.mrf.mxu0
  %v4875 = vadd.f32 %v4832, %v4874
  %v4876 = vpop.f32.mrf.mxu0
  %v4877 = vadd.f32 %v4834, %v4876
  %4878 = vmatmul.bf16.gmra.mxu0 %v1650
  %v4879 = vpop.f32.mrf.mxu0
  %v4880 = vadd.f32 %v4837, %v4879
  %v4881 = vpop.f32.mrf.mxu0
  %v4882 = vadd.f32 %v4839, %v4881
  %4883 = vmatmul.bf16.gmra.mxu0 %v1686
  %v4884 = vpop.f32.mrf.mxu0
  %v4885 = vadd.f32 %v4842, %v4884
  %v4886 = vpop.f32.mrf.mxu0
  %v4887 = vadd.f32 %v4844, %v4886
  %4888 = vmatmul.bf16.gmra.mxu0 %v1722
  %v4889 = vpop.f32.mrf.mxu0
  %v4890 = vadd.f32 %v4847, %v4889
  %v4891 = vpop.f32.mrf.mxu0
  %v4892 = vadd.f32 %v4849, %v4891
  %4893 = vmatmul.bf16.gmra.mxu0 %v1758
  %v4894 = vpop.f32.mrf.mxu0
  %v4895 = vadd.f32 %v4852, %v4894
  %v4896 = vpop.f32.mrf.mxu0
  %v4897 = vadd.f32 %v4854, %v4896
  %4898 = vmatmul.bf16.gmra.mxu0 %v1794
  %v4899 = vpop.f32.mrf.mxu0
  %v4900 = vadd.f32 %v4857, %v4899
  %v4901 = vpop.f32.mrf.mxu0
  %4902 = vdwg.mxu0
  %4903 = vmatpush.bf16.msra.mxu0 %v3424
  %4904 = vmatpush.bf16.msra.mxu0 %v3423
  %4905 = vmatpush.bf16.msra.mxu0 %v3422
  %4906 = vmatpush.bf16.msra.mxu0 %v3421
  %4907 = vmatpush.bf16.msra.mxu0 %v3420
  %4908 = vmatpush.bf16.msra.mxu0 %v3419
  %4909 = vmatpush.bf16.msra.mxu0 %v3418
  %4910 = vmatpush.bf16.msra.mxu0 %v3417
  %4911 = vmatmul.bf16.gmra.mxu0 %v1579
  %v4912 = vpop.f32.mrf.mxu0
  %v4913 = vadd.f32 %v4870, %v4912
  %v4914 = vpop.f32.mrf.mxu0
  %v4915 = vadd.f32 %v4872, %v4914
  %4916 = vmatmul.bf16.gmra.mxu0 %v1615
  %v4917 = vpop.f32.mrf.mxu0
  %v4918 = vadd.f32 %v4875, %v4917
  %v4919 = vpop.f32.mrf.mxu0
  %v4920 = vadd.f32 %v4877, %v4919
  %4921 = vmatmul.bf16.gmra.mxu0 %v1651
  %v4922 = vpop.f32.mrf.mxu0
  %v4923 = vadd.f32 %v4880, %v4922
  %v4924 = vpop.f32.mrf.mxu0
  %v4925 = vadd.f32 %v4882, %v4924
  %4926 = vmatmul.bf16.gmra.mxu0 %v1687
  %v4927 = vpop.f32.mrf.mxu0
  %v4928 = vadd.f32 %v4885, %v4927
  %v4929 = vpop.f32.mrf.mxu0
  %v4930 = vadd.f32 %v4887, %v4929
  %4931 = vmatmul.bf16.gmra.mxu0 %v1723
  %v4932 = vpop.f32.mrf.mxu0
  %v4933 = vadd.f32 %v4890, %v4932
  %v4934 = vpop.f32.mrf.mxu0
  %v4935 = vadd.f32 %v4892, %v4934
  %4936 = vmatmul.bf16.gmra.mxu0 %v1759
  %v4937 = vpop.f32.mrf.mxu0
  %v4938 = vadd.f32 %v4895, %v4937
  %v4939 = vpop.f32.mrf.mxu0
  %v4940 = vadd.f32 %v4897, %v4939
  %4941 = vmatmul.bf16.gmra.mxu0 %v1795
  %v4942 = vpop.f32.mrf.mxu0
  %v4943 = vadd.f32 %v4900, %v4942
  %v4944 = vpop.f32.mrf.mxu0
  %4945 = vdwg.mxu0
  %4946 = vmatpush.bf16.msra.mxu0 %v3432
  %4947 = vmatpush.bf16.msra.mxu0 %v3431
  %4948 = vmatpush.bf16.msra.mxu0 %v3430
  %4949 = vmatpush.bf16.msra.mxu0 %v3429
  %4950 = vmatpush.bf16.msra.mxu0 %v3428
  %4951 = vmatpush.bf16.msra.mxu0 %v3427
  %4952 = vmatpush.bf16.msra.mxu0 %v3426
  %4953 = vmatpush.bf16.msra.mxu0 %v3425
  %4954 = vmatmul.bf16.gmra.mxu0 %v1580
  %v4955 = vpop.f32.mrf.mxu0
  %v4956 = vadd.f32 %v4913, %v4955
  %v4957 = vpop.f32.mrf.mxu0
  %v4958 = vadd.f32 %v4915, %v4957
  %4959 = vmatmul.bf16.gmra.mxu0 %v1616
  %v4960 = vpop.f32.mrf.mxu0
  %v4961 = vadd.f32 %v4918, %v4960
  %v4962 = vpop.f32.mrf.mxu0
  %v4963 = vadd.f32 %v4920, %v4962
  %4964 = vmatmul.bf16.gmra.mxu0 %v1652
  %v4965 = vpop.f32.mrf.mxu0
  %v4966 = vadd.f32 %v4923, %v4965
  %v4967 = vpop.f32.mrf.mxu0
  %v4968 = vadd.f32 %v4925, %v4967
  %4969 = vmatmul.bf16.gmra.mxu0 %v1688
  %v4970 = vpop.f32.mrf.mxu0
  %v4971 = vadd.f32 %v4928, %v4970
  %v4972 = vpop.f32.mrf.mxu0
  %v4973 = vadd.f32 %v4930, %v4972
  %4974 = vmatmul.bf16.gmra.mxu0 %v1724
  %v4975 = vpop.f32.mrf.mxu0
  %v4976 = vadd.f32 %v4933, %v4975
  %v4977 = vpop.f32.mrf.mxu0
  %v4978 = vadd.f32 %v4935, %v4977
  %4979 = vmatmul.bf16.gmra.mxu0 %v1760
  %v4980 = vpop.f32.mrf.mxu0
  %v4981 = vadd.f32 %v4938, %v4980
  %v4982 = vpop.f32.mrf.mxu0
  %v4983 = vadd.f32 %v4940, %v4982
  %4984 = vmatmul.bf16.gmra.mxu0 %v1796
  %v4985 = vpop.f32.mrf.mxu0
  %v4986 = vadd.f32 %v4943, %v4985
  %v4987 = vpop.f32.mrf.mxu0
  %4988 = vdwg.mxu0
  %4989 = vmatpush.bf16.msra.mxu0 %v3440
  %4990 = vmatpush.bf16.msra.mxu0 %v3439
  %4991 = vmatpush.bf16.msra.mxu0 %v3438
  %4992 = vmatpush.bf16.msra.mxu0 %v3437
  %4993 = vmatpush.bf16.msra.mxu0 %v3436
  %4994 = vmatpush.bf16.msra.mxu0 %v3435
  %4995 = vmatpush.bf16.msra.mxu0 %v3434
  %4996 = vmatpush.bf16.msra.mxu0 %v3433
  %4997 = vmatmul.bf16.gmra.mxu0 %v1581
  %v4998 = vpop.f32.mrf.mxu0
  %v4999 = vadd.f32 %v4956, %v4998
  %v5000 = vpop.f32.mrf.mxu0
  %v5001 = vadd.f32 %v4958, %v5000
  %5002 = vmatmul.bf16.gmra.mxu0 %v1617
  %v5003 = vpop.f32.mrf.mxu0
  %v5004 = vadd.f32 %v4961, %v5003
  %v5005 = vpop.f32.mrf.mxu0
  %v5006 = vadd.f32 %v4963, %v5005
  %5007 = vmatmul.bf16.gmra.mxu0 %v1653
  %v5008 = vpop.f32.mrf.mxu0
  %v5009 = vadd.f32 %v4966, %v5008
  %v5010 = vpop.f32.mrf.mxu0
  %v5011 = vadd.f32 %v4968, %v5010
  %5012 = vmatmul.bf16.gmra.mxu0 %v1689
  %v5013 = vpop.f32.mrf.mxu0
  %v5014 = vadd.f32 %v4971, %v5013
  %v5015 = vpop.f32.mrf.mxu0
  %v5016 = vadd.f32 %v4973, %v5015
  %5017 = vmatmul.bf16.gmra.mxu0 %v1725
  %v5018 = vpop.f32.mrf.mxu0
  %v5019 = vadd.f32 %v4976, %v5018
  %v5020 = vpop.f32.mrf.mxu0
  %v5021 = vadd.f32 %v4978, %v5020
  %5022 = vmatmul.bf16.gmra.mxu0 %v1761
  %v5023 = vpop.f32.mrf.mxu0
  %v5024 = vadd.f32 %v4981, %v5023
  %v5025 = vpop.f32.mrf.mxu0
  %v5026 = vadd.f32 %v4983, %v5025
  %5027 = vmatmul.bf16.gmra.mxu0 %v1797
  %v5028 = vpop.f32.mrf.mxu0
  %v5029 = vadd.f32 %v4986, %v5028
  %v5030 = vpop.f32.mrf.mxu0
  %5031 = vdwg.mxu0
  %5032 = vmatpush.bf16.msra.mxu0 %v3448
  %5033 = vmatpush.bf16.msra.mxu0 %v3447
  %5034 = vmatpush.bf16.msra.mxu0 %v3446
  %5035 = vmatpush.bf16.msra.mxu0 %v3445
  %5036 = vmatpush.bf16.msra.mxu0 %v3444
  %5037 = vmatpush.bf16.msra.mxu0 %v3443
  %5038 = vmatpush.bf16.msra.mxu0 %v3442
  %5039 = vmatpush.bf16.msra.mxu0 %v3441
  %5040 = vmatmul.bf16.gmra.mxu0 %v1582
  %v5041 = vpop.f32.mrf.mxu0
  %v5042 = vadd.f32 %v4999, %v5041
  %v5043 = vpop.f32.mrf.mxu0
  %v5044 = vadd.f32 %v5001, %v5043
  %5045 = vmatmul.bf16.gmra.mxu0 %v1618
  %v5046 = vpop.f32.mrf.mxu0
  %v5047 = vadd.f32 %v5004, %v5046
  %v5048 = vpop.f32.mrf.mxu0
  %v5049 = vadd.f32 %v5006, %v5048
  %5050 = vmatmul.bf16.gmra.mxu0 %v1654
  %v5051 = vpop.f32.mrf.mxu0
  %v5052 = vadd.f32 %v5009, %v5051
  %v5053 = vpop.f32.mrf.mxu0
  %v5054 = vadd.f32 %v5011, %v5053
  %5055 = vmatmul.bf16.gmra.mxu0 %v1690
  %v5056 = vpop.f32.mrf.mxu0
  %v5057 = vadd.f32 %v5014, %v5056
  %v5058 = vpop.f32.mrf.mxu0
  %v5059 = vadd.f32 %v5016, %v5058
  %5060 = vmatmul.bf16.gmra.mxu0 %v1726
  %v5061 = vpop.f32.mrf.mxu0
  %v5062 = vadd.f32 %v5019, %v5061
  %v5063 = vpop.f32.mrf.mxu0
  %v5064 = vadd.f32 %v5021, %v5063
  %5065 = vmatmul.bf16.gmra.mxu0 %v1762
  %v5066 = vpop.f32.mrf.mxu0
  %v5067 = vadd.f32 %v5024, %v5066
  %v5068 = vpop.f32.mrf.mxu0
  %v5069 = vadd.f32 %v5026, %v5068
  %5070 = vmatmul.bf16.gmra.mxu0 %v1798
  %v5071 = vpop.f32.mrf.mxu0
  %v5072 = vadd.f32 %v5029, %v5071
  %v5073 = vpop.f32.mrf.mxu0
  %5074 = vdwg.mxu0
  %5075 = vmatpush.bf16.msra.mxu0 %v3456
  %5076 = vmatpush.bf16.msra.mxu0 %v3455
  %5077 = vmatpush.bf16.msra.mxu0 %v3454
  %5078 = vmatpush.bf16.msra.mxu0 %v3453
  %5079 = vmatpush.bf16.msra.mxu0 %v3452
  %5080 = vmatpush.bf16.msra.mxu0 %v3451
  %5081 = vmatpush.bf16.msra.mxu0 %v3450
  %5082 = vmatpush.bf16.msra.mxu0 %v3449
  %5083 = vmatmul.bf16.gmra.mxu0 %v1583
  %v5084 = vpop.f32.mrf.mxu0
  %v5085 = vadd.f32 %v5042, %v5084
  %v5086 = vpop.f32.mrf.mxu0
  %v5087 = vadd.f32 %v5044, %v5086
  %5088 = vmatmul.bf16.gmra.mxu0 %v1619
  %v5089 = vpop.f32.mrf.mxu0
  %v5090 = vadd.f32 %v5047, %v5089
  %v5091 = vpop.f32.mrf.mxu0
  %v5092 = vadd.f32 %v5049, %v5091
  %5093 = vmatmul.bf16.gmra.mxu0 %v1655
  %v5094 = vpop.f32.mrf.mxu0
  %v5095 = vadd.f32 %v5052, %v5094
  %v5096 = vpop.f32.mrf.mxu0
  %v5097 = vadd.f32 %v5054, %v5096
  %5098 = vmatmul.bf16.gmra.mxu0 %v1691
  %v5099 = vpop.f32.mrf.mxu0
  %v5100 = vadd.f32 %v5057, %v5099
  %v5101 = vpop.f32.mrf.mxu0
  %v5102 = vadd.f32 %v5059, %v5101
  %5103 = vmatmul.bf16.gmra.mxu0 %v1727
  %v5104 = vpop.f32.mrf.mxu0
  %v5105 = vadd.f32 %v5062, %v5104
  %v5106 = vpop.f32.mrf.mxu0
  %v5107 = vadd.f32 %v5064, %v5106
  %5108 = vmatmul.bf16.gmra.mxu0 %v1763
  %v5109 = vpop.f32.mrf.mxu0
  %v5110 = vadd.f32 %v5067, %v5109
  %v5111 = vpop.f32.mrf.mxu0
  %v5112 = vadd.f32 %v5069, %v5111
  %5113 = vmatmul.bf16.gmra.mxu0 %v1799
  %v5114 = vpop.f32.mrf.mxu0
  %v5115 = vadd.f32 %v5072, %v5114
  %v5116 = vpop.f32.mrf.mxu0
  %5117 = vdwg.mxu0
  %5118 = vmatpush.bf16.msra.mxu0 %v3464
  %5119 = vmatpush.bf16.msra.mxu0 %v3463
  %5120 = vmatpush.bf16.msra.mxu0 %v3462
  %5121 = vmatpush.bf16.msra.mxu0 %v3461
  %5122 = vmatpush.bf16.msra.mxu0 %v3460
  %5123 = vmatpush.bf16.msra.mxu0 %v3459
  %5124 = vmatpush.bf16.msra.mxu0 %v3458
  %5125 = vmatpush.bf16.msra.mxu0 %v3457
  %5126 = vmatmul.bf16.gmra.mxu0 %v1584
  %v5127 = vpop.f32.mrf.mxu0
  %v5128 = vadd.f32 %v5085, %v5127
  %v5129 = vpop.f32.mrf.mxu0
  %v5130 = vadd.f32 %v5087, %v5129
  %5131 = vmatmul.bf16.gmra.mxu0 %v1620
  %v5132 = vpop.f32.mrf.mxu0
  %v5133 = vadd.f32 %v5090, %v5132
  %v5134 = vpop.f32.mrf.mxu0
  %v5135 = vadd.f32 %v5092, %v5134
  %5136 = vmatmul.bf16.gmra.mxu0 %v1656
  %v5137 = vpop.f32.mrf.mxu0
  %v5138 = vadd.f32 %v5095, %v5137
  %v5139 = vpop.f32.mrf.mxu0
  %v5140 = vadd.f32 %v5097, %v5139
  %5141 = vmatmul.bf16.gmra.mxu0 %v1692
  %v5142 = vpop.f32.mrf.mxu0
  %v5143 = vadd.f32 %v5100, %v5142
  %v5144 = vpop.f32.mrf.mxu0
  %v5145 = vadd.f32 %v5102, %v5144
  %5146 = vmatmul.bf16.gmra.mxu0 %v1728
  %v5147 = vpop.f32.mrf.mxu0
  %v5148 = vadd.f32 %v5105, %v5147
  %v5149 = vpop.f32.mrf.mxu0
  %v5150 = vadd.f32 %v5107, %v5149
  %5151 = vmatmul.bf16.gmra.mxu0 %v1764
  %v5152 = vpop.f32.mrf.mxu0
  %v5153 = vadd.f32 %v5110, %v5152
  %v5154 = vpop.f32.mrf.mxu0
  %v5155 = vadd.f32 %v5112, %v5154
  %5156 = vmatmul.bf16.gmra.mxu0 %v1800
  %v5157 = vpop.f32.mrf.mxu0
  %v5158 = vadd.f32 %v5115, %v5157
  %v5159 = vpop.f32.mrf.mxu0
  %5160 = vdwg.mxu0
  %5161 = vmatpush.bf16.msra.mxu0 %v3472
  %5162 = vmatpush.bf16.msra.mxu0 %v3471
  %5163 = vmatpush.bf16.msra.mxu0 %v3470
  %5164 = vmatpush.bf16.msra.mxu0 %v3469
  %5165 = vmatpush.bf16.msra.mxu0 %v3468
  %5166 = vmatpush.bf16.msra.mxu0 %v3467
  %5167 = vmatpush.bf16.msra.mxu0 %v3466
  %5168 = vmatpush.bf16.msra.mxu0 %v3465
  %5169 = vmatmul.bf16.gmra.mxu0 %v1585
  %v5170 = vpop.f32.mrf.mxu0
  %v5171 = vadd.f32 %v5128, %v5170
  %v5172 = vpop.f32.mrf.mxu0
  %v5173 = vadd.f32 %v5130, %v5172
  %5174 = vmatmul.bf16.gmra.mxu0 %v1621
  %v5175 = vpop.f32.mrf.mxu0
  %v5176 = vadd.f32 %v5133, %v5175
  %v5177 = vpop.f32.mrf.mxu0
  %v5178 = vadd.f32 %v5135, %v5177
  %5179 = vmatmul.bf16.gmra.mxu0 %v1657
  %v5180 = vpop.f32.mrf.mxu0
  %v5181 = vadd.f32 %v5138, %v5180
  %v5182 = vpop.f32.mrf.mxu0
  %v5183 = vadd.f32 %v5140, %v5182
  %5184 = vmatmul.bf16.gmra.mxu0 %v1693
  %v5185 = vpop.f32.mrf.mxu0
  %v5186 = vadd.f32 %v5143, %v5185
  %v5187 = vpop.f32.mrf.mxu0
  %v5188 = vadd.f32 %v5145, %v5187
  %5189 = vmatmul.bf16.gmra.mxu0 %v1729
  %v5190 = vpop.f32.mrf.mxu0
  %v5191 = vadd.f32 %v5148, %v5190
  %v5192 = vpop.f32.mrf.mxu0
  %v5193 = vadd.f32 %v5150, %v5192
  %5194 = vmatmul.bf16.gmra.mxu0 %v1765
  %v5195 = vpop.f32.mrf.mxu0
  %v5196 = vadd.f32 %v5153, %v5195
  %v5197 = vpop.f32.mrf.mxu0
  %v5198 = vadd.f32 %v5155, %v5197
  %5199 = vmatmul.bf16.gmra.mxu0 %v1801
  %v5200 = vpop.f32.mrf.mxu0
  %v5201 = vadd.f32 %v5158, %v5200
  %v5202 = vpop.f32.mrf.mxu0
  %5203 = vdwg.mxu0
  %5204 = vmatpush.bf16.msra.mxu0 %v3480
  %5205 = vmatpush.bf16.msra.mxu0 %v3479
  %5206 = vmatpush.bf16.msra.mxu0 %v3478
  %5207 = vmatpush.bf16.msra.mxu0 %v3477
  %5208 = vmatpush.bf16.msra.mxu0 %v3476
  %5209 = vmatpush.bf16.msra.mxu0 %v3475
  %5210 = vmatpush.bf16.msra.mxu0 %v3474
  %5211 = vmatpush.bf16.msra.mxu0 %v3473
  %5212 = vmatmul.bf16.gmra.mxu0 %v1586
  %v5213 = vpop.f32.mrf.mxu0
  %v5214 = vadd.f32 %v5171, %v5213
  %v5215 = vpop.f32.mrf.mxu0
  %v5216 = vadd.f32 %v5173, %v5215
  %5217 = vmatmul.bf16.gmra.mxu0 %v1622
  %v5218 = vpop.f32.mrf.mxu0
  %v5219 = vadd.f32 %v5176, %v5218
  %v5220 = vpop.f32.mrf.mxu0
  %v5221 = vadd.f32 %v5178, %v5220
  %5222 = vmatmul.bf16.gmra.mxu0 %v1658
  %v5223 = vpop.f32.mrf.mxu0
  %v5224 = vadd.f32 %v5181, %v5223
  %v5225 = vpop.f32.mrf.mxu0
  %v5226 = vadd.f32 %v5183, %v5225
  %5227 = vmatmul.bf16.gmra.mxu0 %v1694
  %v5228 = vpop.f32.mrf.mxu0
  %v5229 = vadd.f32 %v5186, %v5228
  %v5230 = vpop.f32.mrf.mxu0
  %v5231 = vadd.f32 %v5188, %v5230
  %5232 = vmatmul.bf16.gmra.mxu0 %v1730
  %v5233 = vpop.f32.mrf.mxu0
  %v5234 = vadd.f32 %v5191, %v5233
  %v5235 = vpop.f32.mrf.mxu0
  %v5236 = vadd.f32 %v5193, %v5235
  %5237 = vmatmul.bf16.gmra.mxu0 %v1766
  %v5238 = vpop.f32.mrf.mxu0
  %v5239 = vadd.f32 %v5196, %v5238
  %v5240 = vpop.f32.mrf.mxu0
  %v5241 = vadd.f32 %v5198, %v5240
  %5242 = vmatmul.bf16.gmra.mxu0 %v1802
  %v5243 = vpop.f32.mrf.mxu0
  %v5244 = vadd.f32 %v5201, %v5243
  %v5245 = vpop.f32.mrf.mxu0
  %5246 = vdwg.mxu0
  %5247 = vmatpush.bf16.msra.mxu0 %v3488
  %5248 = vmatpush.bf16.msra.mxu0 %v3487
  %5249 = vmatpush.bf16.msra.mxu0 %v3486
  %5250 = vmatpush.bf16.msra.mxu0 %v3485
  %5251 = vmatpush.bf16.msra.mxu0 %v3484
  %5252 = vmatpush.bf16.msra.mxu0 %v3483
  %5253 = vmatpush.bf16.msra.mxu0 %v3482
  %5254 = vmatpush.bf16.msra.mxu0 %v3481
  %5255 = vmatmul.bf16.gmra.mxu0 %v1587
  %v5256 = vpop.f32.mrf.mxu0
  %v5257 = vadd.f32 %v5214, %v5256
  %v5258 = vpop.f32.mrf.mxu0
  %v5259 = vadd.f32 %v5216, %v5258
  %5260 = vmatmul.bf16.gmra.mxu0 %v1623
  %v5261 = vpop.f32.mrf.mxu0
  %v5262 = vadd.f32 %v5219, %v5261
  %v5263 = vpop.f32.mrf.mxu0
  %v5264 = vadd.f32 %v5221, %v5263
  %5265 = vmatmul.bf16.gmra.mxu0 %v1659
  %v5266 = vpop.f32.mrf.mxu0
  %v5267 = vadd.f32 %v5224, %v5266
  %v5268 = vpop.f32.mrf.mxu0
  %v5269 = vadd.f32 %v5226, %v5268
  %5270 = vmatmul.bf16.gmra.mxu0 %v1695
  %v5271 = vpop.f32.mrf.mxu0
  %v5272 = vadd.f32 %v5229, %v5271
  %v5273 = vpop.f32.mrf.mxu0
  %v5274 = vadd.f32 %v5231, %v5273
  %5275 = vmatmul.bf16.gmra.mxu0 %v1731
  %v5276 = vpop.f32.mrf.mxu0
  %v5277 = vadd.f32 %v5234, %v5276
  %v5278 = vpop.f32.mrf.mxu0
  %v5279 = vadd.f32 %v5236, %v5278
  %5280 = vmatmul.bf16.gmra.mxu0 %v1767
  %v5281 = vpop.f32.mrf.mxu0
  %v5282 = vadd.f32 %v5239, %v5281
  %v5283 = vpop.f32.mrf.mxu0
  %v5284 = vadd.f32 %v5241, %v5283
  %5285 = vmatmul.bf16.gmra.mxu0 %v1803
  %v5286 = vpop.f32.mrf.mxu0
  %v5287 = vadd.f32 %v5244, %v5286
  %v5288 = vpop.f32.mrf.mxu0
  %5289 = vdwg.mxu0
  %5290 = vmatpush.bf16.msra.mxu0 %v3496
  %5291 = vmatpush.bf16.msra.mxu0 %v3495
  %5292 = vmatpush.bf16.msra.mxu0 %v3494
  %5293 = vmatpush.bf16.msra.mxu0 %v3493
  %5294 = vmatpush.bf16.msra.mxu0 %v3492
  %5295 = vmatpush.bf16.msra.mxu0 %v3491
  %5296 = vmatpush.bf16.msra.mxu0 %v3490
  %5297 = vmatpush.bf16.msra.mxu0 %v3489
  %5298 = vmatmul.bf16.gmra.mxu0 %v1588
  %v5299 = vpop.f32.mrf.mxu0
  %v5300 = vadd.f32 %v5257, %v5299
  %v5301 = vpop.f32.mrf.mxu0
  %v5302 = vadd.f32 %v5259, %v5301
  %5303 = vmatmul.bf16.gmra.mxu0 %v1624
  %v5304 = vpop.f32.mrf.mxu0
  %v5305 = vadd.f32 %v5262, %v5304
  %v5306 = vpop.f32.mrf.mxu0
  %v5307 = vadd.f32 %v5264, %v5306
  %5308 = vmatmul.bf16.gmra.mxu0 %v1660
  %v5309 = vpop.f32.mrf.mxu0
  %v5310 = vadd.f32 %v5267, %v5309
  %v5311 = vpop.f32.mrf.mxu0
  %v5312 = vadd.f32 %v5269, %v5311
  %5313 = vmatmul.bf16.gmra.mxu0 %v1696
  %v5314 = vpop.f32.mrf.mxu0
  %v5315 = vadd.f32 %v5272, %v5314
  %v5316 = vpop.f32.mrf.mxu0
  %v5317 = vadd.f32 %v5274, %v5316
  %5318 = vmatmul.bf16.gmra.mxu0 %v1732
  %v5319 = vpop.f32.mrf.mxu0
  %v5320 = vadd.f32 %v5277, %v5319
  %v5321 = vpop.f32.mrf.mxu0
  %v5322 = vadd.f32 %v5279, %v5321
  %5323 = vmatmul.bf16.gmra.mxu0 %v1768
  %v5324 = vpop.f32.mrf.mxu0
  %v5325 = vadd.f32 %v5282, %v5324
  %v5326 = vpop.f32.mrf.mxu0
  %v5327 = vadd.f32 %v5284, %v5326
  %5328 = vmatmul.bf16.gmra.mxu0 %v1804
  %v5329 = vpop.f32.mrf.mxu0
  %v5330 = vadd.f32 %v5287, %v5329
  %v5331 = vpop.f32.mrf.mxu0
  %5332 = vdwg.mxu0
  %v5333 = vadd.f32 %v28, %v5300
  %v5334 = vadd.f32 %v29, %v5302
  %v5335 = vadd.f32 %v30, %v5305
  %v5336 = vadd.f32 %v31, %v5307
  %v5337 = vadd.f32 %v32, %v5310
  %v5338 = vadd.f32 %v33, %v5312
  %v5339 = vadd.f32 %v34, %v5315
  %v5340 = vadd.f32 %v35, %v5317
  %v5341 = vadd.f32 %v36, %v5320
  %v5342 = vadd.f32 %v37, %v5322
  %v5343 = vadd.f32 %v38, %v5325
  %v5344 = vadd.f32 %v39, %v5327
  %v5345 = vadd.f32 %v40, %v5330
  %5346 = vst [vmem:[%s2] sm:$0xff] %v5333
  %5347 = vst [vmem:[%s2 + $0x8] sm:$0xff] %v5334
  %5348 = vst [vmem:[%s2 + $0x10] sm:$0xff] %v5335
  %5349 = vst [vmem:[%s2 + $0x18] sm:$0xff] %v5336
  %5350 = vst [vmem:[%s2 + $0x20] sm:$0xff] %v5337
  %5351 = vst [vmem:[%s2 + $0x28] sm:$0xff] %v5338
  %5352 = vst [vmem:[%s2 + $0x30] sm:$0xff] %v5339
  %5353 = vst [vmem:[%s2 + $0x38] sm:$0xff] %v5340
  %5354 = vst [vmem:[%s2 + $0x40] sm:$0xff] %v5341
  %5355 = vst [vmem:[%s2 + $0x48] sm:$0xff] %v5342
  %5356 = vst [vmem:[%s2 + $0x50] sm:$0xff] %v5343
  %5357 = vst [vmem:[%s2 + $0x58] sm:$0xff] %v5344
  %5358 = vst [vmem:[%s2 + $0x60] sm:$0x3] %v5345
  // Predicated region
  $region14: #{relation_network_forward.4} parent=0 // pred_check
    _
  $region15: #{relation_network_forward.4} parent=0 // pred_check_branch
    %5360 = sbr.rel (0) target = $region17
  $region16: #{relation_network_forward.4} parent=0 // pred_region
    _
  $region17: #{relation_network_forward.4} parent=0 // pred_fallthru
    _
  // Predicated region
  $region18: #{relation_network_forward.4} parent=0 // pred_check
    _
  $region19: #{relation_network_forward.4} parent=0 // pred_check_branch
    %5362 = sbr.rel (0) target = $region21
  $region20: #{relation_network_forward.4} parent=0 // pred_region
    _
  $region21: #{relation_network_forward.4} parent=0 // pred_fallthru
    _

// kernel: relation_network_forward.7
$region0: #{relation_network_forward.7}
  #allocation0 [shape = 'u32[]', space=smem, size = 0x4, offset = 0x4, fixed_abs, tag = 'smem constant byte address 0x4 - core index']
  #allocation1 [shape = 'u32[72,128]{1,0:T(1,128)}', space=vmem, size = 0x9000, scoped, tag = 'internal scratch']
  %s0 = inlined_call_operand.vmem [shape: bf16[54,1152], index: 0, kind: input, shape index: {}]
  %s1 = inlined_call_operand.vmem [shape: bf16[1152,128], index: 1, kind: input, shape index: {}]
  %s2 = inlined_call_operand.vmem [shape: f32[1,128], index: 2, kind: input, shape index: {}]
  %s3 = inlined_call_operand.vmem [shape: f32[1,128], index: 3, kind: input, shape index: {}]
  %s4 = inlined_call_operand.vmem [shape: f32[1,128], index: 4, kind: input, shape index: {}]
  %s5 = inlined_call_operand.vmem [shape: f32[128,128], index: 5, kind: input, shape index: {}]
  %s6 = inlined_call_operand.vmem [shape: f32[1,128], index: 6, kind: input, shape index: {}]
  %s7 = inlined_call_operand.vmem [shape: f32[128,128], index: 7, kind: input, shape index: {}]
  %s8 = inlined_call_operand.vmem [shape: f32[1,128], index: 8, kind: input, shape index: {}]
  %s9 = inlined_call_operand.vmem [shape: f32[6,128], index: 9, kind: output, shape index: {}]
  %s10 = sld [smem:[#allocation0]]
  $region46: #{relation_network_forward.7} parent=0
    _
  %s12 = ssub.s32 1, %s10
  %s13 = scalar_select 0, %s12, %s10
  // Predicated region
  $region2: #{relation_network_forward.7} parent=0 // pred_check
    _
  $region3: #{relation_network_forward.7} parent=0 // pred_check_branch
    %15 = sbr.rel (0) target = $region5
  $region4: #{relation_network_forward.7} parent=0 // pred_region
    _
  $region5: #{relation_network_forward.7} parent=0 // pred_fallthru
    _
  // Predicated region
  $region6: #{relation_network_forward.7} parent=0 // pred_check
    _
  $region7: #{relation_network_forward.7} parent=0 // pred_check_branch
    %17 = sbr.rel (0) target = $region9
  $region8: #{relation_network_forward.7} parent=0 // pred_region
    _
  $region9: #{relation_network_forward.7} parent=0 // pred_fallthru
    _
  // Predicated region
  $region10: #{relation_network_forward.7} parent=0 // pred_check
    _
  $region11: #{relation_network_forward.7} parent=0 // pred_check_branch
    %19 = sbr.rel (0) target = $region13
  $region12: #{relation_network_forward.7} parent=0 // pred_region
    _
  $region13: #{relation_network_forward.7} parent=0 // pred_fallthru
    _
  // Predicated region
  $region14: #{relation_network_forward.7} parent=0 // pred_check
    _
  $region15: #{relation_network_forward.7} parent=0 // pred_check_branch
    %21 = sbr.rel (0) target = $region17
  $region16: #{relation_network_forward.7} parent=0 // pred_region
    _
  $region17: #{relation_network_forward.7} parent=0 // pred_fallthru
    _
  // Predicated region
  $region18: #{relation_network_forward.7} parent=0 // pred_check
    _
  $region19: #{relation_network_forward.7} parent=0 // pred_check_branch
    %23 = sbr.rel (0) target = $region21
  $region20: #{relation_network_forward.7} parent=0 // pred_region
    _
  $region21: #{relation_network_forward.7} parent=0 // pred_fallthru
    _
  // Predicated region
  $region22: #{relation_network_forward.7} parent=0 // pred_check
    _
  $region23: #{relation_network_forward.7} parent=0 // pred_check_branch
    %25 = sbr.rel (0) target = $region25
  $region24: #{relation_network_forward.7} parent=0 // pred_region
    _
  $region25: #{relation_network_forward.7} parent=0 // pred_fallthru
    _
  // Predicated region
  $region26: #{relation_network_forward.7} parent=0 // pred_check
    _
  $region27: #{relation_network_forward.7} parent=0 // pred_check_branch
    %27 = sbr.rel (0) target = $region29
  $region28: #{relation_network_forward.7} parent=0 // pred_region
    _
  $region29: #{relation_network_forward.7} parent=0 // pred_fallthru
    _
  // Predicated region
  $region30: #{relation_network_forward.7} parent=0 // pred_check
    _
  $region31: #{relation_network_forward.7} parent=0 // pred_check_branch
    %29 = sbr.rel (0) target = $region33
  $region32: #{relation_network_forward.7} parent=0 // pred_region
    _
  $region33: #{relation_network_forward.7} parent=0 // pred_fallthru
    _
  // Predicated region
  $region34: #{relation_network_forward.7} parent=0 // pred_check
    _
  $region35: #{relation_network_forward.7} parent=0 // pred_check_branch
    %31 = sbr.rel (0) target = $region37
  $region36: #{relation_network_forward.7} parent=0 // pred_region
    _
  $region37: #{relation_network_forward.7} parent=0 // pred_fallthru
    _
  %v32 = vld [vmem:[%s0] sm:$0xff]
  %v33 = vld [vmem:[%s0 + $0x8] sm:$0xff]
  %v34 = vld [vmem:[%s0 + $0x10] sm:$0xff]
  %v35 = vld [vmem:[%s0 + $0x18] sm:$0xff]
  %v36 = vld [vmem:[%s0 + $0x20] sm:$0xf]
  %v37 = vld [vmem:[%s0 + $0x24] sm:$0xff]
  %v38 = vld [vmem:[%s0 + $0x2c] sm:$0xff]
  %v39 = vld [vmem:[%s0 + $0x34] sm:$0xff]
  %v40 = vld [vmem:[%s0 + $0x3c] sm:$0xff]
  %v41 = vld [vmem:[%s0 + $0x44] sm:$0xf]
  %v42 = vld [vmem:[%s0 + $0x48] sm:$0xff]
  %v43 = vld [vmem:[%s0 + $0x50] sm:$0xff]
  %v44 = vld [vmem:[%s0 + $0x58] sm:$0xff]
  %v45 = vld [vmem:[%s0 + $0x60] sm:$0xff]
  %v46 = vld [vmem:[%s0 + $0x68] sm:$0xf]
  %v47 = vld [vmem:[%s0 + $0x6c] sm:$0xff]
  %v48 = vld [vmem:[%s0 + $0x74] sm:$0xff]
  %v49 = vld [vmem:[%s0 + $0x7c] sm:$0xff]
  %v50 = vld [vmem:[%s0 + $0x84] sm:$0xff]
  %v51 = vld [vmem:[%s0 + $0x8c] sm:$0xf]
  %v52 = vld [vmem:[%s0 + $0x90] sm:$0xff]
  %v53 = vld [vmem:[%s0 + $0x98] sm:$0xff]
  %v54 = vld [vmem:[%s0 + $0xa0] sm:$0xff]
  %v55 = vld [vmem:[%s0 + $0xa8] sm:$0xff]
  %v56 = vld [vmem:[%s0 + $0xb0] sm:$0xf]
  %v57 = vld [vmem:[%s0 + $0xb4] sm:$0xff]
  %v58 = vld [vmem:[%s0 + $0xbc] sm:$0xff]
  %v59 = vld [vmem:[%s0 + $0xc4] sm:$0xff]
  %v60 = vld [vmem:[%s0 + $0xcc] sm:$0xff]
  %v61 = vld [vmem:[%s0 + $0xd4] sm:$0xf]
  %v62 = vld [vmem:[%s0 + $0xd8] sm:$0x77]
  %v63 = vld [vmem:[%s0 + $0xe0] sm:$0x77]
  %v64 = vld [vmem:[%s0 + $0xe8] sm:$0x77]
  %v65 = vld [vmem:[%s0 + $0xf0] sm:$0x77]
  %v66 = vld [vmem:[%s0 + $0xf8] sm:$0x7]
  %v67 = vld [vmem:[%s1] sm:$0xf]
  %v68 = vld [vmem:[%s1 + $0x4] sm:$0xf]
  %v69 = vld [vmem:[%s1 + $0x8] sm:$0xf]
  %v70 = vld [vmem:[%s1 + $0xc] sm:$0xf]
  %v71 = vld [vmem:[%s1 + $0x10] sm:$0xf]
  %v72 = vld [vmem:[%s1 + $0x14] sm:$0xf]
  %v73 = vld [vmem:[%s1 + $0x18] sm:$0xf]
  %v74 = vld [vmem:[%s1 + $0x1c] sm:$0xf]
  %v75 = vld [vmem:[%s1 + $0x20] sm:$0xf]
  %v76 = vld [vmem:[%s1 + $0x24] sm:$0xf]
  %v77 = vld [vmem:[%s1 + $0x28] sm:$0xf]
  %v78 = vld [vmem:[%s1 + $0x2c] sm:$0xf]
  %v79 = vld [vmem:[%s1 + $0x30] sm:$0xf]
  %v80 = vld [vmem:[%s1 + $0x34] sm:$0xf]
  %v81 = vld [vmem:[%s1 + $0x38] sm:$0xf]
  %v82 = vld [vmem:[%s1 + $0x3c] sm:$0xf]
  %v83 = vld [vmem:[%s1 + $0x40] sm:$0xf]
  %v84 = vld [vmem:[%s1 + $0x44] sm:$0xf]
  %v85 = vld [vmem:[%s1 + $0x48] sm:$0xf]
  %v86 = vld [vmem:[%s1 + $0x4c] sm:$0xf]
  %v87 = vld [vmem:[%s1 + $0x50] sm:$0xf]
  %v88 = vld [vmem:[%s1 + $0x54] sm:$0xf]
  %v89 = vld [vmem:[%s1 + $0x58] sm:$0xf]
  %v90 = vld [vmem:[%s1 + $0x5c] sm:$0xf]
  %v91 = vld [vmem:[%s1 + $0x60] sm:$0xf]
  %v92 = vld [vmem:[%s1 + $0x64] sm:$0xf]
  %v93 = vld [vmem:[%s1 + $0x68] sm:$0xf]
  %v94 = vld [vmem:[%s1 + $0x6c] sm:$0xf]
  %v95 = vld [vmem:[%s1 + $0x70] sm:$0xf]
  %v96 = vld [vmem:[%s1 + $0x74] sm:$0xf]
  %v97 = vld [vmem:[%s1 + $0x78] sm:$0xf]
  %v98 = vld [vmem:[%s1 + $0x7c] sm:$0xf]
  %v99 = vld [vmem:[%s1 + $0x80] sm:$0xf]
  %v100 = vld [vmem:[%s1 + $0x84] sm:$0xf]
  %v101 = vld [vmem:[%s1 + $0x88] sm:$0xf]
  %v102 = vld [vmem:[%s1 + $0x8c] sm:$0xf]
  %v103 = vld [vmem:[%s1 + $0x90] sm:$0xf]
  %v104 = vld [vmem:[%s1 + $0x94] sm:$0xf]
  %v105 = vld [vmem:[%s1 + $0x98] sm:$0xf]
  %v106 = vld [vmem:[%s1 + $0x9c] sm:$0xf]
  %v107 = vld [vmem:[%s1 + $0xa0] sm:$0xf]
  %v108 = vld [vmem:[%s1 + $0xa4] sm:$0xf]
  %v109 = vld [vmem:[%s1 + $0xa8] sm:$0xf]
  %v110 = vld [vmem:[%s1 + $0xac] sm:$0xf]
  %v111 = vld [vmem:[%s1 + $0xb0] sm:$0xf]
  %v112 = vld [vmem:[%s1 + $0xb4] sm:$0xf]
  %v113 = vld [vmem:[%s1 + $0xb8] sm:$0xf]
  %v114 = vld [vmem:[%s1 + $0xbc] sm:$0xf]
  %v115 = vld [vmem:[%s1 + $0xc0] sm:$0xf]
  %v116 = vld [vmem:[%s1 + $0xc4] sm:$0xf]
  %v117 = vld [vmem:[%s1 + $0xc8] sm:$0xf]
  %v118 = vld [vmem:[%s1 + $0xcc] sm:$0xf]
  %v119 = vld [vmem:[%s1 + $0xd0] sm:$0xf]
  %v120 = vld [vmem:[%s1 + $0xd4] sm:$0xf]
  %v121 = vld [vmem:[%s1 + $0xd8] sm:$0xf]
  %v122 = vld [vmem:[%s1 + $0xdc] sm:$0xf]
  %v123 = vld [vmem:[%s1 + $0xe0] sm:$0xf]
  %v124 = vld [vmem:[%s1 + $0xe4] sm:$0xf]
  %v125 = vld [vmem:[%s1 + $0xe8] sm:$0xf]
  %v126 = vld [vmem:[%s1 + $0xec] sm:$0xf]
  %v127 = vld [vmem:[%s1 + $0xf0] sm:$0xf]
  %v128 = vld [vmem:[%s1 + $0xf4] sm:$0xf]
  %v129 = vld [vmem:[%s1 + $0xf8] sm:$0xf]
  %v130 = vld [vmem:[%s1 + $0xfc] sm:$0xf]
  %v131 = vld [vmem:[%s1 + $0x100] sm:$0xf]
  %v132 = vld [vmem:[%s1 + $0x104] sm:$0xf]
  %v133 = vld [vmem:[%s1 + $0x108] sm:$0xf]
  %v134 = vld [vmem:[%s1 + $0x10c] sm:$0xf]
  %v135 = vld [vmem:[%s1 + $0x110] sm:$0xf]
  %v136 = vld [vmem:[%s1 + $0x114] sm:$0xf]
  %v137 = vld [vmem:[%s1 + $0x118] sm:$0xf]
  %v138 = vld [vmem:[%s1 + $0x11c] sm:$0xf]
  %v139 = vld [vmem:[%s1 + $0x120] sm:$0xf]
  %v140 = vld [vmem:[%s1 + $0x124] sm:$0xf]
  %v141 = vld [vmem:[%s1 + $0x128] sm:$0xf]
  %v142 = vld [vmem:[%s1 + $0x12c] sm:$0xf]
  %v143 = vld [vmem:[%s1 + $0x130] sm:$0xf]
  %v144 = vld [vmem:[%s1 + $0x134] sm:$0xf]
  %v145 = vld [vmem:[%s1 + $0x138] sm:$0xf]
  %v146 = vld [vmem:[%s1 + $0x13c] sm:$0xf]
  %v147 = vld [vmem:[%s1 + $0x140] sm:$0xf]
  %v148 = vld [vmem:[%s1 + $0x144] sm:$0xf]
  %v149 = vld [vmem:[%s1 + $0x148] sm:$0xf]
  %v150 = vld [vmem:[%s1 + $0x14c] sm:$0xf]
  %v151 = vld [vmem:[%s1 + $0x150] sm:$0xf]
  %v152 = vld [vmem:[%s1 + $0x154] sm:$0xf]
  %v153 = vld [vmem:[%s1 + $0x158] sm:$0xf]
  %v154 = vld [vmem:[%s1 + $0x15c] sm:$0xf]
  %v155 = vld [vmem:[%s1 + $0x160] sm:$0xf]
  %v156 = vld [vmem:[%s1 + $0x164] sm:$0xf]
  %v157 = vld [vmem:[%s1 + $0x168] sm:$0xf]
  %v158 = vld [vmem:[%s1 + $0x16c] sm:$0xf]
  %v159 = vld [vmem:[%s1 + $0x170] sm:$0xf]
  %v160 = vld [vmem:[%s1 + $0x174] sm:$0xf]
  %v161 = vld [vmem:[%s1 + $0x178] sm:$0xf]
  %v162 = vld [vmem:[%s1 + $0x17c] sm:$0xf]
  %v163 = vld [vmem:[%s1 + $0x180] sm:$0xf]
  %v164 = vld [vmem:[%s1 + $0x184] sm:$0xf]
  %v165 = vld [vmem:[%s1 + $0x188] sm:$0xf]
  %v166 = vld [vmem:[%s1 + $0x18c] sm:$0xf]
  %v167 = vld [vmem:[%s1 + $0x190] sm:$0xf]
  %v168 = vld [vmem:[%s1 + $0x194] sm:$0xf]
  %v169 = vld [vmem:[%s1 + $0x198] sm:$0xf]
  %v170 = vld [vmem:[%s1 + $0x19c] sm:$0xf]
  %v171 = vld [vmem:[%s1 + $0x1a0] sm:$0xf]
  %v172 = vld [vmem:[%s1 + $0x1a4] sm:$0xf]
  %v173 = vld [vmem:[%s1 + $0x1a8] sm:$0xf]
  %v174 = vld [vmem:[%s1 + $0x1ac] sm:$0xf]
  %v175 = vld [vmem:[%s1 + $0x1b0] sm:$0xf]
  %v176 = vld [vmem:[%s1 + $0x1b4] sm:$0xf]
  %v177 = vld [vmem:[%s1 + $0x1b8] sm:$0xf]
  %v178 = vld [vmem:[%s1 + $0x1bc] sm:$0xf]
  %v179 = vld [vmem:[%s1 + $0x1c0] sm:$0xf]
  %v180 = vld [vmem:[%s1 + $0x1c4] sm:$0xf]
  %v181 = vld [vmem:[%s1 + $0x1c8] sm:$0xf]
  %v182 = vld [vmem:[%s1 + $0x1cc] sm:$0xf]
  %v183 = vld [vmem:[%s1 + $0x1d0] sm:$0xf]
  %v184 = vld [vmem:[%s1 + $0x1d4] sm:$0xf]
  %v185 = vld [vmem:[%s1 + $0x1d8] sm:$0xf]
  %v186 = vld [vmem:[%s1 + $0x1dc] sm:$0xf]
  %v187 = vld [vmem:[%s1 + $0x1e0] sm:$0xf]
  %v188 = vld [vmem:[%s1 + $0x1e4] sm:$0xf]
  %v189 = vld [vmem:[%s1 + $0x1e8] sm:$0xf]
  %v190 = vld [vmem:[%s1 + $0x1ec] sm:$0xf]
  %v191 = vld [vmem:[%s1 + $0x1f0] sm:$0xf]
  %v192 = vld [vmem:[%s1 + $0x1f4] sm:$0xf]
  %v193 = vld [vmem:[%s1 + $0x1f8] sm:$0xf]
  %v194 = vld [vmem:[%s1 + $0x1fc] sm:$0xf]
  %v195 = vld [vmem:[%s1 + $0x200] sm:$0xf]
  %v196 = vld [vmem:[%s1 + $0x204] sm:$0xf]
  %v197 = vld [vmem:[%s1 + $0x208] sm:$0xf]
  %v198 = vld [vmem:[%s1 + $0x20c] sm:$0xf]
  %v199 = vld [vmem:[%s1 + $0x210] sm:$0xf]
  %v200 = vld [vmem:[%s1 + $0x214] sm:$0xf]
  %v201 = vld [vmem:[%s1 + $0x218] sm:$0xf]
  %v202 = vld [vmem:[%s1 + $0x21c] sm:$0xf]
  %v203 = vld [vmem:[%s1 + $0x220] sm:$0xf]
  %v204 = vld [vmem:[%s1 + $0x224] sm:$0xf]
  %v205 = vld [vmem:[%s1 + $0x228] sm:$0xf]
  %v206 = vld [vmem:[%s1 + $0x22c] sm:$0xf]
  %v207 = vld [vmem:[%s1 + $0x230] sm:$0xf]
  %v208 = vld [vmem:[%s1 + $0x234] sm:$0xf]
  %v209 = vld [vmem:[%s1 + $0x238] sm:$0xf]
  %v210 = vld [vmem:[%s1 + $0x23c] sm:$0xf]
  %v211 = vld [vmem:[%s2] sm:$0x1]
  %v213 = vperm.slane %v211, 0
  %v250 = vunpack.c.l.b16 %v32
  %v251 = vunpack.c.h.b16 %v32
  %v252 = vunpack.c.l.b16 %v33
  %v253 = vunpack.c.h.b16 %v33
  %v254 = vunpack.c.l.b16 %v34
  %v255 = vunpack.c.h.b16 %v34
  %v256 = vunpack.c.l.b16 %v35
  %v257 = vunpack.c.h.b16 %v35
  %v258 = vunpack.c.l.b16 %v36
  %v259 = vunpack.c.l.b16 %v37
  %v260 = vunpack.c.h.b16 %v37
  %v261 = vunpack.c.l.b16 %v38
  %v262 = vunpack.c.h.b16 %v38
  %v263 = vunpack.c.l.b16 %v39
  %v264 = vunpack.c.h.b16 %v39
  %v265 = vunpack.c.l.b16 %v40
  %v266 = vunpack.c.h.b16 %v40
  %v267 = vunpack.c.l.b16 %v41
  %v268 = vunpack.c.l.b16 %v42
  %v269 = vunpack.c.h.b16 %v42
  %v270 = vunpack.c.l.b16 %v43
  %v271 = vunpack.c.h.b16 %v43
  %v272 = vunpack.c.l.b16 %v44
  %v273 = vunpack.c.h.b16 %v44
  %v274 = vunpack.c.l.b16 %v45
  %v275 = vunpack.c.h.b16 %v45
  %v276 = vunpack.c.l.b16 %v46
  %v277 = vunpack.c.l.b16 %v47
  %v278 = vunpack.c.h.b16 %v47
  %v279 = vunpack.c.l.b16 %v48
  %v280 = vunpack.c.h.b16 %v48
  %v281 = vunpack.c.l.b16 %v49
  %v282 = vunpack.c.h.b16 %v49
  %v283 = vunpack.c.l.b16 %v50
  %v284 = vunpack.c.h.b16 %v50
  %v285 = vunpack.c.l.b16 %v51
  %v286 = vunpack.c.l.b16 %v52
  %v287 = vunpack.c.h.b16 %v52
  %v288 = vunpack.c.l.b16 %v53
  %v289 = vunpack.c.h.b16 %v53
  %v290 = vunpack.c.l.b16 %v54
  %v291 = vunpack.c.h.b16 %v54
  %v292 = vunpack.c.l.b16 %v55
  %v293 = vunpack.c.h.b16 %v55
  %v294 = vunpack.c.l.b16 %v56
  %v295 = vunpack.c.l.b16 %v57
  %v296 = vunpack.c.h.b16 %v57
  %v297 = vunpack.c.l.b16 %v58
  %v298 = vunpack.c.h.b16 %v58
  %v299 = vunpack.c.l.b16 %v59
  %v300 = vunpack.c.h.b16 %v59
  %v301 = vunpack.c.l.b16 %v60
  %v302 = vunpack.c.h.b16 %v60
  %v303 = vunpack.c.l.b16 %v61
  %v304 = vunpack.c.l.b16 %v62
  %v305 = vunpack.c.h.b16 %v62
  %v306 = vunpack.c.l.b16 %v63
  %v307 = vunpack.c.h.b16 %v63
  %v308 = vunpack.c.l.b16 %v64
  %v309 = vunpack.c.h.b16 %v64
  %v310 = vunpack.c.l.b16 %v65
  %v311 = vunpack.c.h.b16 %v65
  %v312 = vunpack.c.l.b16 %v66
  %v313 = vpack.c.b16 %v259, %v250
  %v314 = vpack.c.b16 %v260, %v251
  %v315 = vpack.c.b16 %v261, %v252
  %v316 = vpack.c.b16 %v262, %v253
  %v317 = vpack.c.b16 %v263, %v254
  %v318 = vpack.c.b16 %v264, %v255
  %v319 = vpack.c.b16 %v265, %v256
  %v320 = vpack.c.b16 %v266, %v257
  %v321 = vpack.c.b16 %v267, %v258
  %v322 = vpack.c.b16 %v277, %v268
  %v323 = vpack.c.b16 %v278, %v269
  %v324 = vpack.c.b16 %v279, %v270
  %v325 = vpack.c.b16 %v280, %v271
  %v326 = vpack.c.b16 %v281, %v272
  %v327 = vpack.c.b16 %v282, %v273
  %v328 = vpack.c.b16 %v283, %v274
  %v329 = vpack.c.b16 %v284, %v275
  %v330 = vpack.c.b16 %v285, %v276
  %v331 = vpack.c.b16 %v295, %v286
  %v332 = vpack.c.b16 %v296, %v287
  %v333 = vpack.c.b16 %v297, %v288
  %v334 = vpack.c.b16 %v298, %v289
  %v335 = vpack.c.b16 %v299, %v290
  %v336 = vpack.c.b16 %v300, %v291
  %v337 = vpack.c.b16 %v301, %v292
  %v338 = vpack.c.b16 %v302, %v293
  %v339 = vpack.c.b16 %v303, %v294
  %v340 = vpack.c.b16 %v304, %v304
  %v341 = vpack.c.b16 %v305, %v305
  %v342 = vpack.c.b16 %v306, %v306
  %v343 = vpack.c.b16 %v307, %v307
  %v344 = vpack.c.b16 %v308, %v308
  %v345 = vpack.c.b16 %v309, %v309
  %v346 = vpack.c.b16 %v310, %v310
  %v347 = vpack.c.b16 %v311, %v311
  %v348 = vpack.c.b16 %v312, %v312
  %v529 = vunpack.c.l.b16 %v67
  %v530 = vunpack.c.l.b16 %v68
  %v531 = vunpack.c.l.b16 %v69
  %v532 = vunpack.c.l.b16 %v70
  %v533 = vunpack.c.l.b16 %v71
  %v534 = vunpack.c.l.b16 %v72
  %v535 = vunpack.c.l.b16 %v73
  %v536 = vunpack.c.l.b16 %v74
  %v537 = vunpack.c.l.b16 %v75
  %v538 = vunpack.c.l.b16 %v76
  %v539 = vunpack.c.l.b16 %v77
  %v540 = vunpack.c.l.b16 %v78
  %v541 = vunpack.c.l.b16 %v79
  %v542 = vunpack.c.l.b16 %v80
  %v543 = vunpack.c.l.b16 %v81
  %v544 = vunpack.c.l.b16 %v82
  %v545 = vunpack.c.l.b16 %v83
  %v546 = vunpack.c.l.b16 %v84
  %v547 = vunpack.c.l.b16 %v85
  %v548 = vunpack.c.l.b16 %v86
  %v549 = vunpack.c.l.b16 %v87
  %v550 = vunpack.c.l.b16 %v88
  %v551 = vunpack.c.l.b16 %v89
  %v552 = vunpack.c.l.b16 %v90
  %v553 = vunpack.c.l.b16 %v91
  %v554 = vunpack.c.l.b16 %v92
  %v555 = vunpack.c.l.b16 %v93
  %v556 = vunpack.c.l.b16 %v94
  %v557 = vunpack.c.l.b16 %v95
  %v558 = vunpack.c.l.b16 %v96
  %v559 = vunpack.c.l.b16 %v97
  %v560 = vunpack.c.l.b16 %v98
  %v561 = vunpack.c.l.b16 %v99
  %v562 = vunpack.c.l.b16 %v100
  %v563 = vunpack.c.l.b16 %v101
  %v564 = vunpack.c.l.b16 %v102
  %v565 = vunpack.c.l.b16 %v103
  %v566 = vunpack.c.l.b16 %v104
  %v567 = vunpack.c.l.b16 %v105
  %v568 = vunpack.c.l.b16 %v106
  %v569 = vunpack.c.l.b16 %v107
  %v570 = vunpack.c.l.b16 %v108
  %v571 = vunpack.c.l.b16 %v109
  %v572 = vunpack.c.l.b16 %v110
  %v573 = vunpack.c.l.b16 %v111
  %v574 = vunpack.c.l.b16 %v112
  %v575 = vunpack.c.l.b16 %v113
  %v576 = vunpack.c.l.b16 %v114
  %v577 = vunpack.c.l.b16 %v115
  %v578 = vunpack.c.l.b16 %v116
  %v579 = vunpack.c.l.b16 %v117
  %v580 = vunpack.c.l.b16 %v118
  %v581 = vunpack.c.l.b16 %v119
  %v582 = vunpack.c.l.b16 %v120
  %v583 = vunpack.c.l.b16 %v121
  %v584 = vunpack.c.l.b16 %v122
  %v585 = vunpack.c.l.b16 %v123
  %v586 = vunpack.c.l.b16 %v124
  %v587 = vunpack.c.l.b16 %v125
  %v588 = vunpack.c.l.b16 %v126
  %v589 = vunpack.c.l.b16 %v127
  %v590 = vunpack.c.l.b16 %v128
  %v591 = vunpack.c.l.b16 %v129
  %v592 = vunpack.c.l.b16 %v130
  %v593 = vunpack.c.l.b16 %v131
  %v594 = vunpack.c.l.b16 %v132
  %v595 = vunpack.c.l.b16 %v133
  %v596 = vunpack.c.l.b16 %v134
  %v597 = vunpack.c.l.b16 %v135
  %v598 = vunpack.c.l.b16 %v136
  %v599 = vunpack.c.l.b16 %v137
  %v600 = vunpack.c.l.b16 %v138
  %v601 = vunpack.c.l.b16 %v139
  %v602 = vunpack.c.l.b16 %v140
  %v603 = vunpack.c.l.b16 %v141
  %v604 = vunpack.c.l.b16 %v142
  %v605 = vunpack.c.l.b16 %v143
  %v606 = vunpack.c.l.b16 %v144
  %v607 = vunpack.c.l.b16 %v145
  %v608 = vunpack.c.l.b16 %v146
  %v609 = vunpack.c.l.b16 %v147
  %v610 = vunpack.c.l.b16 %v148
  %v611 = vunpack.c.l.b16 %v149
  %v612 = vunpack.c.l.b16 %v150
  %v613 = vunpack.c.l.b16 %v151
  %v614 = vunpack.c.l.b16 %v152
  %v615 = vunpack.c.l.b16 %v153
  %v616 = vunpack.c.l.b16 %v154
  %v617 = vunpack.c.l.b16 %v155
  %v618 = vunpack.c.l.b16 %v156
  %v619 = vunpack.c.l.b16 %v157
  %v620 = vunpack.c.l.b16 %v158
  %v621 = vunpack.c.l.b16 %v159
  %v622 = vunpack.c.l.b16 %v160
  %v623 = vunpack.c.l.b16 %v161
  %v624 = vunpack.c.l.b16 %v162
  %v625 = vunpack.c.l.b16 %v163
  %v626 = vunpack.c.l.b16 %v164
  %v627 = vunpack.c.l.b16 %v165
  %v628 = vunpack.c.l.b16 %v166
  %v629 = vunpack.c.l.b16 %v167
  %v630 = vunpack.c.l.b16 %v168
  %v631 = vunpack.c.l.b16 %v169
  %v632 = vunpack.c.l.b16 %v170
  %v633 = vunpack.c.l.b16 %v171
  %v634 = vunpack.c.l.b16 %v172
  %v635 = vunpack.c.l.b16 %v173
  %v636 = vunpack.c.l.b16 %v174
  %v637 = vunpack.c.l.b16 %v175
  %v638 = vunpack.c.l.b16 %v176
  %v639 = vunpack.c.l.b16 %v177
  %v640 = vunpack.c.l.b16 %v178
  %v641 = vunpack.c.l.b16 %v179
  %v642 = vunpack.c.l.b16 %v180
  %v643 = vunpack.c.l.b16 %v181
  %v644 = vunpack.c.l.b16 %v182
  %v645 = vunpack.c.l.b16 %v183
  %v646 = vunpack.c.l.b16 %v184
  %v647 = vunpack.c.l.b16 %v185
  %v648 = vunpack.c.l.b16 %v186
  %v649 = vunpack.c.l.b16 %v187
  %v650 = vunpack.c.l.b16 %v188
  %v651 = vunpack.c.l.b16 %v189
  %v652 = vunpack.c.l.b16 %v190
  %v653 = vunpack.c.l.b16 %v191
  %v654 = vunpack.c.l.b16 %v192
  %v655 = vunpack.c.l.b16 %v193
  %v656 = vunpack.c.l.b16 %v194
  %v657 = vunpack.c.l.b16 %v195
  %v658 = vunpack.c.l.b16 %v196
  %v659 = vunpack.c.l.b16 %v197
  %v660 = vunpack.c.l.b16 %v198
  %v661 = vunpack.c.l.b16 %v199
  %v662 = vunpack.c.l.b16 %v200
  %v663 = vunpack.c.l.b16 %v201
  %v664 = vunpack.c.l.b16 %v202
  %v665 = vunpack.c.l.b16 %v203
  %v666 = vunpack.c.l.b16 %v204
  %v667 = vunpack.c.l.b16 %v205
  %v668 = vunpack.c.l.b16 %v206
  %v669 = vunpack.c.l.b16 %v207
  %v670 = vunpack.c.l.b16 %v208
  %v671 = vunpack.c.l.b16 %v209
  %v672 = vunpack.c.l.b16 %v210
  %v673 = vpack.c.b16 %v530, %v529
  %v674 = vpack.c.b16 %v532, %v531
  %v675 = vpack.c.b16 %v534, %v533
  %v676 = vpack.c.b16 %v536, %v535
  %v677 = vpack.c.b16 %v538, %v537
  %v678 = vpack.c.b16 %v540, %v539
  %v679 = vpack.c.b16 %v542, %v541
  %v680 = vpack.c.b16 %v544, %v543
  %v681 = vpack.c.b16 %v546, %v545
  %v682 = vpack.c.b16 %v548, %v547
  %v683 = vpack.c.b16 %v550, %v549
  %v684 = vpack.c.b16 %v552, %v551
  %v685 = vpack.c.b16 %v554, %v553
  %v686 = vpack.c.b16 %v556, %v555
  %v687 = vpack.c.b16 %v558, %v557
  %v688 = vpack.c.b16 %v560, %v559
  %v689 = vpack.c.b16 %v562, %v561
  %v690 = vpack.c.b16 %v564, %v563
  %v691 = vpack.c.b16 %v566, %v565
  %v692 = vpack.c.b16 %v568, %v567
  %v693 = vpack.c.b16 %v570, %v569
  %v694 = vpack.c.b16 %v572, %v571
  %v695 = vpack.c.b16 %v574, %v573
  %v696 = vpack.c.b16 %v576, %v575
  %v697 = vpack.c.b16 %v578, %v577
  %v698 = vpack.c.b16 %v580, %v579
  %v699 = vpack.c.b16 %v582, %v581
  %v700 = vpack.c.b16 %v584, %v583
  %v701 = vpack.c.b16 %v586, %v585
  %v702 = vpack.c.b16 %v588, %v587
  %v703 = vpack.c.b16 %v590, %v589
  %v704 = vpack.c.b16 %v592, %v591
  %v705 = vpack.c.b16 %v594, %v593
  %v706 = vpack.c.b16 %v596, %v595
  %v707 = vpack.c.b16 %v598, %v597
  %v708 = vpack.c.b16 %v600, %v599
  %v709 = vpack.c.b16 %v602, %v601
  %v710 = vpack.c.b16 %v604, %v603
  %v711 = vpack.c.b16 %v606, %v605
  %v712 = vpack.c.b16 %v608, %v607
  %v713 = vpack.c.b16 %v610, %v609
  %v714 = vpack.c.b16 %v612, %v611
  %v715 = vpack.c.b16 %v614, %v613
  %v716 = vpack.c.b16 %v616, %v615
  %v717 = vpack.c.b16 %v618, %v617
  %v718 = vpack.c.b16 %v620, %v619
  %v719 = vpack.c.b16 %v622, %v621
  %v720 = vpack.c.b16 %v624, %v623
  %v721 = vpack.c.b16 %v626, %v625
  %v722 = vpack.c.b16 %v628, %v627
  %v723 = vpack.c.b16 %v630, %v629
  %v724 = vpack.c.b16 %v632, %v631
  %v725 = vpack.c.b16 %v634, %v633
  %v726 = vpack.c.b16 %v636, %v635
  %v727 = vpack.c.b16 %v638, %v637
  %v728 = vpack.c.b16 %v640, %v639
  %v729 = vpack.c.b16 %v642, %v641
  %v730 = vpack.c.b16 %v644, %v643
  %v731 = vpack.c.b16 %v646, %v645
  %v732 = vpack.c.b16 %v648, %v647
  %v733 = vpack.c.b16 %v650, %v649
  %v734 = vpack.c.b16 %v652, %v651
  %v735 = vpack.c.b16 %v654, %v653
  %v736 = vpack.c.b16 %v656, %v655
  %v737 = vpack.c.b16 %v658, %v657
  %v738 = vpack.c.b16 %v660, %v659
  %v739 = vpack.c.b16 %v662, %v661
  %v740 = vpack.c.b16 %v664, %v663
  %v741 = vpack.c.b16 %v666, %v665
  %v742 = vpack.c.b16 %v668, %v667
  %v743 = vpack.c.b16 %v670, %v669
  %v744 = vpack.c.b16 %v672, %v671
  %817 = vmatpush.bf16.msra.mxu0 %v680
  %818 = vmatpush.bf16.msra.mxu0 %v679
  %819 = vmatpush.bf16.msra.mxu0 %v678
  %820 = vmatpush.bf16.msra.mxu0 %v677
  %821 = vmatpush.bf16.msra.mxu0 %v676
  %822 = vmatpush.bf16.msra.mxu0 %v675
  %823 = vmatpush.bf16.msra.mxu0 %v674
  %824 = vmatpush.bf16.msra.mxu0 %v673
  %825 = vmatmul.bf16.gmra.mxu0 %v313
  %v826 = vpop.f32.mrf.mxu0
  %v827 = vadd.f32 %v213, %v826
  %v828 = vpop.f32.mrf.mxu0
  %v829 = vadd.f32 %v213, %v828
  %830 = vmatmul.bf16.gmra.mxu0 %v322
  %v831 = vpop.f32.mrf.mxu0
  %v832 = vadd.f32 %v213, %v831
  %v833 = vpop.f32.mrf.mxu0
  %v834 = vadd.f32 %v213, %v833
  %835 = vmatmul.bf16.gmra.mxu0 %v331
  %v836 = vpop.f32.mrf.mxu0
  %v837 = vadd.f32 %v213, %v836
  %v838 = vpop.f32.mrf.mxu0
  %v839 = vadd.f32 %v213, %v838
  %840 = vmatmul.bf16.gmra.mxu0 %v340
  %v841 = vpop.f32.mrf.mxu0
  %v842 = vadd.f32 %v213, %v841
  %v843 = vpop.f32.mrf.mxu0
  %844 = vdwg.mxu0
  %845 = vmatpush.bf16.msra.mxu0 %v688
  %846 = vmatpush.bf16.msra.mxu0 %v687
  %847 = vmatpush.bf16.msra.mxu0 %v686
  %848 = vmatpush.bf16.msra.mxu0 %v685
  %849 = vmatpush.bf16.msra.mxu0 %v684
  %850 = vmatpush.bf16.msra.mxu0 %v683
  %851 = vmatpush.bf16.msra.mxu0 %v682
  %852 = vmatpush.bf16.msra.mxu0 %v681
  %853 = vmatmul.bf16.gmra.mxu0 %v314
  %v854 = vpop.f32.mrf.mxu0
  %v855 = vadd.f32 %v827, %v854
  %v856 = vpop.f32.mrf.mxu0
  %v857 = vadd.f32 %v829, %v856
  %858 = vmatmul.bf16.gmra.mxu0 %v323
  %v859 = vpop.f32.mrf.mxu0
  %v860 = vadd.f32 %v832, %v859
  %v861 = vpop.f32.mrf.mxu0
  %v862 = vadd.f32 %v834, %v861
  %863 = vmatmul.bf16.gmra.mxu0 %v332
  %v864 = vpop.f32.mrf.mxu0
  %v865 = vadd.f32 %v837, %v864
  %v866 = vpop.f32.mrf.mxu0
  %v867 = vadd.f32 %v839, %v866
  %868 = vmatmul.bf16.gmra.mxu0 %v341
  %v869 = vpop.f32.mrf.mxu0
  %v870 = vadd.f32 %v842, %v869
  %v871 = vpop.f32.mrf.mxu0
  %872 = vdwg.mxu0
  %873 = vmatpush.bf16.msra.mxu0 %v696
  %874 = vmatpush.bf16.msra.mxu0 %v695
  %875 = vmatpush.bf16.msra.mxu0 %v694
  %876 = vmatpush.bf16.msra.mxu0 %v693
  %877 = vmatpush.bf16.msra.mxu0 %v692
  %878 = vmatpush.bf16.msra.mxu0 %v691
  %879 = vmatpush.bf16.msra.mxu0 %v690
  %880 = vmatpush.bf16.msra.mxu0 %v689
  %881 = vmatmul.bf16.gmra.mxu0 %v315
  %v882 = vpop.f32.mrf.mxu0
  %v883 = vadd.f32 %v855, %v882
  %v884 = vpop.f32.mrf.mxu0
  %v885 = vadd.f32 %v857, %v884
  %886 = vmatmul.bf16.gmra.mxu0 %v324
  %v887 = vpop.f32.mrf.mxu0
  %v888 = vadd.f32 %v860, %v887
  %v889 = vpop.f32.mrf.mxu0
  %v890 = vadd.f32 %v862, %v889
  %891 = vmatmul.bf16.gmra.mxu0 %v333
  %v892 = vpop.f32.mrf.mxu0
  %v893 = vadd.f32 %v865, %v892
  %v894 = vpop.f32.mrf.mxu0
  %v895 = vadd.f32 %v867, %v894
  %896 = vmatmul.bf16.gmra.mxu0 %v342
  %v897 = vpop.f32.mrf.mxu0
  %v898 = vadd.f32 %v870, %v897
  %v899 = vpop.f32.mrf.mxu0
  %900 = vdwg.mxu0
  %901 = vmatpush.bf16.msra.mxu0 %v704
  %902 = vmatpush.bf16.msra.mxu0 %v703
  %903 = vmatpush.bf16.msra.mxu0 %v702
  %904 = vmatpush.bf16.msra.mxu0 %v701
  %905 = vmatpush.bf16.msra.mxu0 %v700
  %906 = vmatpush.bf16.msra.mxu0 %v699
  %907 = vmatpush.bf16.msra.mxu0 %v698
  %908 = vmatpush.bf16.msra.mxu0 %v697
  %909 = vmatmul.bf16.gmra.mxu0 %v316
  %v910 = vpop.f32.mrf.mxu0
  %v911 = vadd.f32 %v883, %v910
  %v912 = vpop.f32.mrf.mxu0
  %v913 = vadd.f32 %v885, %v912
  %914 = vmatmul.bf16.gmra.mxu0 %v325
  %v915 = vpop.f32.mrf.mxu0
  %v916 = vadd.f32 %v888, %v915
  %v917 = vpop.f32.mrf.mxu0
  %v918 = vadd.f32 %v890, %v917
  %919 = vmatmul.bf16.gmra.mxu0 %v334
  %v920 = vpop.f32.mrf.mxu0
  %v921 = vadd.f32 %v893, %v920
  %v922 = vpop.f32.mrf.mxu0
  %v923 = vadd.f32 %v895, %v922
  %924 = vmatmul.bf16.gmra.mxu0 %v343
  %v925 = vpop.f32.mrf.mxu0
  %v926 = vadd.f32 %v898, %v925
  %v927 = vpop.f32.mrf.mxu0
  %928 = vdwg.mxu0
  %929 = vmatpush.bf16.msra.mxu0 %v712
  %930 = vmatpush.bf16.msra.mxu0 %v711
  %931 = vmatpush.bf16.msra.mxu0 %v710
  %932 = vmatpush.bf16.msra.mxu0 %v709
  %933 = vmatpush.bf16.msra.mxu0 %v708
  %934 = vmatpush.bf16.msra.mxu0 %v707
  %935 = vmatpush.bf16.msra.mxu0 %v706
  %936 = vmatpush.bf16.msra.mxu0 %v705
  %937 = vmatmul.bf16.gmra.mxu0 %v317
  %v938 = vpop.f32.mrf.mxu0
  %v939 = vadd.f32 %v911, %v938
  %v940 = vpop.f32.mrf.mxu0
  %v941 = vadd.f32 %v913, %v940
  %942 = vmatmul.bf16.gmra.mxu0 %v326
  %v943 = vpop.f32.mrf.mxu0
  %v944 = vadd.f32 %v916, %v943
  %v945 = vpop.f32.mrf.mxu0
  %v946 = vadd.f32 %v918, %v945
  %947 = vmatmul.bf16.gmra.mxu0 %v335
  %v948 = vpop.f32.mrf.mxu0
  %v949 = vadd.f32 %v921, %v948
  %v950 = vpop.f32.mrf.mxu0
  %v951 = vadd.f32 %v923, %v950
  %952 = vmatmul.bf16.gmra.mxu0 %v344
  %v953 = vpop.f32.mrf.mxu0
  %v954 = vadd.f32 %v926, %v953
  %v955 = vpop.f32.mrf.mxu0
  %956 = vdwg.mxu0
  %957 = vmatpush.bf16.msra.mxu0 %v720
  %958 = vmatpush.bf16.msra.mxu0 %v719
  %959 = vmatpush.bf16.msra.mxu0 %v718
  %960 = vmatpush.bf16.msra.mxu0 %v717
  %961 = vmatpush.bf16.msra.mxu0 %v716
  %962 = vmatpush.bf16.msra.mxu0 %v715
  %963 = vmatpush.bf16.msra.mxu0 %v714
  %964 = vmatpush.bf16.msra.mxu0 %v713
  %965 = vmatmul.bf16.gmra.mxu0 %v318
  %v966 = vpop.f32.mrf.mxu0
  %v967 = vadd.f32 %v939, %v966
  %v968 = vpop.f32.mrf.mxu0
  %v969 = vadd.f32 %v941, %v968
  %970 = vmatmul.bf16.gmra.mxu0 %v327
  %v971 = vpop.f32.mrf.mxu0
  %v972 = vadd.f32 %v944, %v971
  %v973 = vpop.f32.mrf.mxu0
  %v974 = vadd.f32 %v946, %v973
  %975 = vmatmul.bf16.gmra.mxu0 %v336
  %v976 = vpop.f32.mrf.mxu0
  %v977 = vadd.f32 %v949, %v976
  %v978 = vpop.f32.mrf.mxu0
  %v979 = vadd.f32 %v951, %v978
  %980 = vmatmul.bf16.gmra.mxu0 %v345
  %v981 = vpop.f32.mrf.mxu0
  %v982 = vadd.f32 %v954, %v981
  %v983 = vpop.f32.mrf.mxu0
  %984 = vdwg.mxu0
  %985 = vmatpush.bf16.msra.mxu0 %v728
  %986 = vmatpush.bf16.msra.mxu0 %v727
  %987 = vmatpush.bf16.msra.mxu0 %v726
  %988 = vmatpush.bf16.msra.mxu0 %v725
  %989 = vmatpush.bf16.msra.mxu0 %v724
  %990 = vmatpush.bf16.msra.mxu0 %v723
  %991 = vmatpush.bf16.msra.mxu0 %v722
  %992 = vmatpush.bf16.msra.mxu0 %v721
  %993 = vmatmul.bf16.gmra.mxu0 %v319
  %v994 = vpop.f32.mrf.mxu0
  %v995 = vadd.f32 %v967, %v994
  %v996 = vpop.f32.mrf.mxu0
  %v997 = vadd.f32 %v969, %v996
  %998 = vmatmul.bf16.gmra.mxu0 %v328
  %v999 = vpop.f32.mrf.mxu0
  %v1000 = vadd.f32 %v972, %v999
  %v1001 = vpop.f32.mrf.mxu0
  %v1002 = vadd.f32 %v974, %v1001
  %1003 = vmatmul.bf16.gmra.mxu0 %v337
  %v1004 = vpop.f32.mrf.mxu0
  %v1005 = vadd.f32 %v977, %v1004
  %v1006 = vpop.f32.mrf.mxu0
  %v1007 = vadd.f32 %v979, %v1006
  %1008 = vmatmul.bf16.gmra.mxu0 %v346
  %v1009 = vpop.f32.mrf.mxu0
  %v1010 = vadd.f32 %v982, %v1009
  %v1011 = vpop.f32.mrf.mxu0
  %1012 = vdwg.mxu0
  %1013 = vmatpush.bf16.msra.mxu0 %v736
  %1014 = vmatpush.bf16.msra.mxu0 %v735
  %1015 = vmatpush.bf16.msra.mxu0 %v734
  %1016 = vmatpush.bf16.msra.mxu0 %v733
  %1017 = vmatpush.bf16.msra.mxu0 %v732
  %1018 = vmatpush.bf16.msra.mxu0 %v731
  %1019 = vmatpush.bf16.msra.mxu0 %v730
  %1020 = vmatpush.bf16.msra.mxu0 %v729
  %1021 = vmatmul.bf16.gmra.mxu0 %v320
  %v1022 = vpop.f32.mrf.mxu0
  %v1023 = vadd.f32 %v995, %v1022
  %v1024 = vpop.f32.mrf.mxu0
  %v1025 = vadd.f32 %v997, %v1024
  %1026 = vmatmul.bf16.gmra.mxu0 %v329
  %v1027 = vpop.f32.mrf.mxu0
  %v1028 = vadd.f32 %v1000, %v1027
  %v1029 = vpop.f32.mrf.mxu0
  %v1030 = vadd.f32 %v1002, %v1029
  %1031 = vmatmul.bf16.gmra.mxu0 %v338
  %v1032 = vpop.f32.mrf.mxu0
  %v1033 = vadd.f32 %v1005, %v1032
  %v1034 = vpop.f32.mrf.mxu0
  %v1035 = vadd.f32 %v1007, %v1034
  %1036 = vmatmul.bf16.gmra.mxu0 %v347
  %v1037 = vpop.f32.mrf.mxu0
  %v1038 = vadd.f32 %v1010, %v1037
  %v1039 = vpop.f32.mrf.mxu0
  %1040 = vdwg.mxu0
  %1041 = vmatpush.bf16.msra.mxu0 %v744
  %1042 = vmatpush.bf16.msra.mxu0 %v743
  %1043 = vmatpush.bf16.msra.mxu0 %v742
  %1044 = vmatpush.bf16.msra.mxu0 %v741
  %1045 = vmatpush.bf16.msra.mxu0 %v740
  %1046 = vmatpush.bf16.msra.mxu0 %v739
  %1047 = vmatpush.bf16.msra.mxu0 %v738
  %1048 = vmatpush.bf16.msra.mxu0 %v737
  %1049 = vmatmul.bf16.gmra.mxu0 %v321
  %v1050 = vpop.f32.mrf.mxu0
  %v1051 = vadd.f32 %v1023, %v1050
  %v1052 = vpop.f32.mrf.mxu0
  %v1053 = vadd.f32 %v1025, %v1052
  %1054 = vmatmul.bf16.gmra.mxu0 %v330
  %v1055 = vpop.f32.mrf.mxu0
  %v1056 = vadd.f32 %v1028, %v1055
  %v1057 = vpop.f32.mrf.mxu0
  %v1058 = vadd.f32 %v1030, %v1057
  %1059 = vmatmul.bf16.gmra.mxu0 %v339
  %v1060 = vpop.f32.mrf.mxu0
  %v1061 = vadd.f32 %v1033, %v1060
  %v1062 = vpop.f32.mrf.mxu0
  %v1063 = vadd.f32 %v1035, %v1062
  %1064 = vmatmul.bf16.gmra.mxu0 %v348
  %v1065 = vpop.f32.mrf.mxu0
  %v1066 = vadd.f32 %v1038, %v1065
  %v1067 = vpop.f32.mrf.mxu0
  %1068 = vdwg.mxu0
  %v1069 = vadd.f32 %v1051, %v1053
  %v1070 = vadd.f32 %v1069, %v1056
  %v1071 = vadd.f32 %v1070, %v1058
  %v1072 = vadd.f32 %v1071, %v1061
  %v1073 = vadd.f32 %v1072, %v1063
  %vm1074 = vcmask 1045504
  %v1075 = vsel %vm1074, %v1066, 0.0
  %v1076 = vadd.f32 %v1073, %v1075
  %v1077 = vrot.slane %v1076, 4
  %v1078 = vadd.f32 %v1076, %v1077
  %v1079 = vrot.slane %v1078, 2
  %v1080 = vadd.f32 %v1078, %v1079
  %v1081 = vrot.slane %v1080, 1
  %v1082 = vadd.f32 %v1080, %v1081
  %v1083 = vrcp.pop 54.0
  %v1084 = vmul.f32 54.0, %v1083
  %v1085 = vsub.f32 1.0, %v1084
  %v1086 = vmul.f32 %v1083, %v1085
  %v1087 = vadd.f32 %v1083, %v1086
  %vm1088 = vweird.f32 %v1083
  %v1089 = vsel %vm1088, %v1083, %v1087
  %v1090 = vmul.f32 %v1082, %v1089
  %v1091 = vsub.f32 %v1051, %v1090
  %v1092 = vsub.f32 %v1053, %v1090
  %v1093 = vsub.f32 %v1056, %v1090
  %v1094 = vsub.f32 %v1058, %v1090
  %v1095 = vsub.f32 %v1061, %v1090
  %v1096 = vsub.f32 %v1063, %v1090
  %v1097 = vsub.f32 %v1066, %v1090
  %v1098 = vmul.f32 %v1091, %v1091
  %v1099 = vmul.f32 %v1092, %v1092
  %v1100 = vmul.f32 %v1093, %v1093
  %v1101 = vmul.f32 %v1094, %v1094
  %v1102 = vmul.f32 %v1095, %v1095
  %v1103 = vmul.f32 %v1096, %v1096
  %v1104 = vmul.f32 %v1097, %v1097
  %v1105 = vadd.f32 %v1098, %v1099
  %v1106 = vadd.f32 %v1105, %v1100
  %v1107 = vadd.f32 %v1106, %v1101
  %v1108 = vadd.f32 %v1107, %v1102
  %v1109 = vadd.f32 %v1108, %v1103
  %v1110 = vsel %vm1074, %v1104, 0.0
  %v1111 = vadd.f32 %v1109, %v1110
  %v1112 = vrot.slane %v1111, 4
  %v1113 = vadd.f32 %v1111, %v1112
  %v1114 = vrot.slane %v1113, 2
  %v1115 = vadd.f32 %v1113, %v1114
  %v1116 = vrot.slane %v1115, 1
  %v1117 = vadd.f32 %v1115, %v1116
  %v1118 = vmul.f32 %v1117, %v1089
  %v1119 = vadd.f32 %v1118, 1e-05
  %v1120 = vrsqrt.pop %v1119
  %v1121 = vmul.f32 %v1120, %v1119
  %v1122 = vmul.f32 %v1121, %v1120
  %v1123 = vmul.f32 0.5, %v1122
  %v1124 = vsub.f32 1.5, %v1123
  %v1125 = vmul.f32 %v1120, %v1124
  %vm1126 = vweird.f32 %v1119
  %vm1127 = vweird.f32 %v1120
  %vm1128 = vmor %vm1126, %vm1127
  %v1129 = vsel %vm1128, %v1120, %v1125
  %v1130 = vmul.f32 %v1091, %v1129
  %v1131 = vmul.f32 %v1092, %v1129
  %v1132 = vmul.f32 %v1093, %v1129
  %v1133 = vmul.f32 %v1094, %v1129
  %v1134 = vld [vmem:[%s3] sm:$0x1]
  %v1136 = vperm.slane %v1134, 0
  %v1138 = vmul.f32 %v1130, %v1136
  %v1139 = vmul.f32 %v1131, %v1136
  %v1140 = vmul.f32 %v1132, %v1136
  %v1141 = vmul.f32 %v1133, %v1136
  %v1142 = vld [vmem:[%s4] sm:$0x1]
  %v1144 = vperm.slane %v1142, 0
  %v1146 = vadd.f32 %v1138, %v1144
  %v1147 = vadd.f32 %v1139, %v1144
  %v1148 = vadd.f32 %v1140, %v1144
  %v1149 = vadd.f32 %v1141, %v1144
  %v1150 = vmax.f32 %v1146, 0.0
  %v1151 = vmax.f32 %v1147, 0.0
  %v1152 = vmax.f32 %v1148, 0.0
  %v1153 = vmax.f32 %v1149, 0.0
  %vm1156 = vcmask 1041408
  %v1157 = vrot.slane %v1150, 6
  %v1158 = vrot.slane %v1151, 6
  %v1159 = vsel %vm1156, %v1157, %v1158
  %v1161 = vmax.f32 %v1150, %v1159
  %v1163 = vrot.slane %v1153, 6
  %v1165 = vmax.f32 %v1152, %v1163
  %v1167 = vrot.slane %v1165, 2
  %v1169 = vmax.f32 %v1161, %v1167
  %v1170 = vld [vmem:[%s5] sm:$0xff]
  %v1171 = vld [vmem:[%s5 + $0x8] sm:$0xff]
  %v1172 = vld [vmem:[%s5 + $0x10] sm:$0xff]
  %v1173 = vld [vmem:[%s5 + $0x18] sm:$0xff]
  %v1174 = vld [vmem:[%s5 + $0x20] sm:$0xff]
  %v1175 = vld [vmem:[%s5 + $0x28] sm:$0xff]
  %v1176 = vld [vmem:[%s5 + $0x30] sm:$0xff]
  %v1177 = vld [vmem:[%s5 + $0x38] sm:$0xff]
  %v1178 = vld [vmem:[%s5 + $0x40] sm:$0xff]
  %v1179 = vld [vmem:[%s5 + $0x48] sm:$0xff]
  %v1180 = vld [vmem:[%s5 + $0x50] sm:$0xff]
  %v1181 = vld [vmem:[%s5 + $0x58] sm:$0xff]
  %v1182 = vld [vmem:[%s5 + $0x60] sm:$0xff]
  %v1183 = vld [vmem:[%s5 + $0x68] sm:$0xff]
  %v1184 = vld [vmem:[%s5 + $0x70] sm:$0xff]
  %v1185 = vld [vmem:[%s5 + $0x78] sm:$0xff]
  %v1186 = vld [vmem:[%s6] sm:$0x1]
  %v1188 = vperm.slane %v1186, 0
  %1190 = vmatpush.msra.mxu0 %v1185
  %1191 = vmatpush.msra.mxu0 %v1184
  %1192 = vmatpush.msra.mxu0 %v1183
  %1193 = vmatpush.msra.mxu0 %v1182
  %1194 = vmatpush.msra.mxu0 %v1181
  %1195 = vmatpush.msra.mxu0 %v1180
  %1196 = vmatpush.msra.mxu0 %v1179
  %1197 = vmatpush.msra.mxu0 %v1178
  %1198 = vmatpush.msra.mxu0 %v1177
  %1199 = vmatpush.msra.mxu0 %v1176
  %1200 = vmatpush.msra.mxu0 %v1175
  %1201 = vmatpush.msra.mxu0 %v1174
  %1202 = vmatpush.msra.mxu0 %v1173
  %1203 = vmatpush.msra.mxu0 %v1172
  %1204 = vmatpush.msra.mxu0 %v1171
  %1205 = vmatpush.msra.mxu0 %v1170
  %1206 = vmatmul.f32.gmra.mxu0 %v1169
  %v1207 = vpop.f32.mrf.mxu0
  %v1208 = vadd.f32 %v1188, %v1207
  %1209 = vdwg.mxu0
  %v1210 = vmax.f32 %v1208, 0.0
  %v1211 = vld [vmem:[%s7] sm:$0xff]
  %v1212 = vld [vmem:[%s7 + $0x8] sm:$0xff]
  %v1213 = vld [vmem:[%s7 + $0x10] sm:$0xff]
  %v1214 = vld [vmem:[%s7 + $0x18] sm:$0xff]
  %v1215 = vld [vmem:[%s7 + $0x20] sm:$0xff]
  %v1216 = vld [vmem:[%s7 + $0x28] sm:$0xff]
  %v1217 = vld [vmem:[%s7 + $0x30] sm:$0xff]
  %v1218 = vld [vmem:[%s7 + $0x38] sm:$0xff]
  %v1219 = vld [vmem:[%s7 + $0x40] sm:$0xff]
  %v1220 = vld [vmem:[%s7 + $0x48] sm:$0xff]
  %v1221 = vld [vmem:[%s7 + $0x50] sm:$0xff]
  %v1222 = vld [vmem:[%s7 + $0x58] sm:$0xff]
  %v1223 = vld [vmem:[%s7 + $0x60] sm:$0xff]
  %v1224 = vld [vmem:[%s7 + $0x68] sm:$0xff]
  %v1225 = vld [vmem:[%s7 + $0x70] sm:$0xff]
  %v1226 = vld [vmem:[%s7 + $0x78] sm:$0xff]
  %v1227 = vld [vmem:[%s8] sm:$0x1]
  %v1229 = vperm.slane %v1227, 0
  %1231 = vmatpush.msra.mxu0 %v1226
  %1232 = vmatpush.msra.mxu0 %v1225
  %1233 = vmatpush.msra.mxu0 %v1224
  %1234 = vmatpush.msra.mxu0 %v1223
  %1235 = vmatpush.msra.mxu0 %v1222
  %1236 = vmatpush.msra.mxu0 %v1221
  %1237 = vmatpush.msra.mxu0 %v1220
  %1238 = vmatpush.msra.mxu0 %v1219
  %1239 = vmatpush.msra.mxu0 %v1218
  %1240 = vmatpush.msra.mxu0 %v1217
  %1241 = vmatpush.msra.mxu0 %v1216
  %1242 = vmatpush.msra.mxu0 %v1215
  %1243 = vmatpush.msra.mxu0 %v1214
  %1244 = vmatpush.msra.mxu0 %v1213
  %1245 = vmatpush.msra.mxu0 %v1212
  %1246 = vmatpush.msra.mxu0 %v1211
  %1247 = vmatmul.f32.gmra.mxu0 %v1210
  %v1248 = vpop.f32.mrf.mxu0
  %v1249 = vadd.f32 %v1229, %v1248
  %1250 = vdwg.mxu0
  %v1251 = vsub.f32 0.0, %v1249
  %v1252 = vmul.f32 %v1251, 1.442695
  %v1253 = vpow.pop %v1252
  %v1254 = vadd.f32 %v1253, 1.0
  %v1255 = vrcp.pop %v1254
  %v1256 = vmul.f32 %v1254, %v1255
  %v1257 = vsub.f32 1.0, %v1256
  %v1258 = vmul.f32 %v1255, %v1257
  %v1259 = vadd.f32 %v1255, %v1258
  %vm1260 = vweird.f32 %v1254
  %vm1261 = vweird.f32 %v1255
  %vm1262 = vmor %vm1260, %vm1261
  %v1263 = vsel %vm1262, %v1255, %v1259
  %v1264 = vand.u32 2147483647, %v1254
  %vm1265 = vcmp.eq.f32.partialorder %v1264, 8.507059e+37
  %v1266 = vand.u32 %v1254, 2147483648
  %v1267 = vor.u32 1.1754944e-38, %v1266
  %v1268 = vsel %vm1265, %v1267, %v1263
  %v1269 = vmul.f32 1.0, %v1268
  %1270 = vst [vmem:[%s9] sm:$0x3f] %v1269
  // Predicated region
  $region38: #{relation_network_forward.7} parent=0 // pred_check
    _
  $region39: #{relation_network_forward.7} parent=0 // pred_check_branch
    %1272 = sbr.rel (0) target = $region41
  $region40: #{relation_network_forward.7} parent=0 // pred_region
    _
  $region41: #{relation_network_forward.7} parent=0 // pred_fallthru
    _
  // Predicated region
  $region42: #{relation_network_forward.7} parent=0 // pred_check
    _
  $region43: #{relation_network_forward.7} parent=0 // pred_check_branch
    %1274 = sbr.rel (0) target = $region45
  $region44: #{relation_network_forward.7} parent=0 // pred_region
    _
  $region45: #{relation_network_forward.7} parent=0 // pred_fallthru
    _

</llo_original>
